<compile_context>
chip_gen: v7x
topology: tpu7x:2x2x1
jax: 0.10.0
libtpu: 0.0.40
codegen_flags: <defaults>
</compile_context>

<pallas_src>
import functools

import jax
import jax.numpy as jnp
from jax import lax
from jax.experimental import pallas as pl
from jax.experimental.pallas import tpu as pltpu

# ----------------------------- configuration --------------------------------
B = 2            # batch
T_TITLE = 8      # input_variable (title) length
T_ABS = 8        # prev_generated_seq length
T_TGT = 8        # target_variable length
N_TOPICS = 4     # topics per example
E = 32           # embedding dim
H = 32           # hidden dim
V = 128          # vocab size (encoder.embedding.num_embeddings)
V_TOPIC = 16     # topic vocab
V_STRUCT = 8     # structure-label vocab

assert T_TITLE == T_ABS, "fused kernel assumes equal title/prev-seq lengths"
assert T_TGT == T_ABS, "structural_embedding[:, 1:] branch of the reference not needed"
T_SEQ = T_TITLE
N_DEC = B * (T_TGT - 1)                 # 14 decoder positions
N_PAD = ((N_DEC + 7) // 8) * 8          # pad to sublane multiple (16)

F32 = jnp.float32
VMEM_SPEC = functools.partial(pl.BlockSpec, memory_space=pltpu.MemorySpace.VMEM)


# ----------------------------- shared GRU step --------------------------------
def _gru_step(h, gx_t, wh_cat, bhn_b):
    """One PyTorch-convention GRU step with lane-concatenated gates [r|z|n].

    gx_t  : (B, 3H) hoisted x-side pre-activations, with bhr/bhz already folded in
    wh_cat: (H, 3H) recurrent weights, one MXU matmul per step
    bhn_b : (B, H)  recurrent n-gate bias, pre-broadcast outside the loop
    """
    gh = jnp.dot(h, wh_cat, preferred_element_type=F32)          # (B, 3H)
    r = jax.nn.sigmoid(gx_t[:, 0:H] + gh[:, 0:H])
    z = jax.nn.sigmoid(gx_t[:, H:2 * H] + gh[:, H:2 * H])
    n = jnp.tanh(gx_t[:, 2 * H:3 * H] + r * (gh[:, 2 * H:3 * H] + bhn_b))
    return (1.0 - z) * n + z * h


# ----------------------------- the fused kernel --------------------------------
def fused_seq2seq_kernel(title_ids_ref, prev_ids_ref, dec_ids_ref, tgt_ref,
                         topics_ref, struct_ids_ref,
                         word_emb_ref, topic_emb_ref, struct_emb_ref,
                         wx_ref, wh_ref, bx_ref, bhn_ref,
                         wc_ref, bc_ref, wo_ref, bo_ref,
                         logp_ref, pred_ref, loss_ref, dec_h_ref):
    # ---- context_encoder: topical (mean of topic embeddings) + structural ----
    topics = topics_ref[...]                                     # (B, N_TOPICS) int32
    lane_t = lax.broadcasted_iota(jnp.int32, (B, V_TOPIC), 1)
    cnt = jnp.zeros((B, V_TOPIC), F32)
    for j in range(N_TOPICS):                                    # static unroll (4)
        cnt = cnt + (lane_t == topics[:, j:j + 1]).astype(F32)
    topical = jnp.dot(cnt * (1.0 / N_TOPICS), topic_emb_ref[...],
                      preferred_element_type=F32)                # (B, E)
    # time-major tiling of the per-batch topical embedding: row t*B+b -> topical[b]
    topical_tm = jnp.concatenate([topical] * T_SEQ, axis=0)      # (T*B, E)

    lane_s = lax.broadcasted_iota(jnp.int32, (T_TGT * B, V_STRUCT), 1)
    s_hot = (lane_s == struct_ids_ref[...]).astype(F32)
    struct_tm = jnp.dot(s_hot, struct_emb_ref[...],
                        preferred_element_type=F32)              # (T*B, E) time-major

    # ---- word embeddings as one-hot MXU matmuls (off the recurrence path) ----
    word_emb = word_emb_ref[...]                                 # (V, E)
    lane_v = lax.broadcasted_iota(jnp.int32, (T_SEQ * B, V), 1)

    def embed(ids_ref):                                          # ids: (T*B, 1) int32
        hot = (lane_v == ids_ref[...]).astype(F32)
        return jnp.dot(hot, word_emb, preferred_element_type=F32)

    x_title = embed(title_ids_ref) + topical_tm                  # (T*B, E)
    x_prev = embed(prev_ids_ref) + topical_tm + struct_tm        # (T*B, E)
    x_dec = embed(dec_ids_ref) + topical_tm + struct_tm          # rows >= N_DEC unused

    # ---- hoisted x-side gate pre-activations (one matmul per GRU, all steps) ----
    gx_title = jnp.dot(x_title, wx_ref[0], preferred_element_type=F32) + bx_ref[0]
    gx_prev = jnp.dot(x_prev, wx_ref[1], preferred_element_type=F32) + bx_ref[1]
    gx_dec = jnp.dot(x_dec, wx_ref[2], preferred_element_type=F32) + bx_ref[2]

    wh_t, wh_p, wh_d = wh_ref[0], wh_ref[1], wh_ref[2]           # (H, 3H) each
    bhn_t = jnp.broadcast_to(bhn_ref[0], (B, H))                 # hoisted broadcasts
    bhn_p = jnp.broadcast_to(bhn_ref[1], (B, H))
    bhn_d = jnp.broadcast_to(bhn_ref[2], (B, H))

    # ---- both encoders, interleaved (independent chains hide MXU latency) ----
    h_t = jnp.zeros((B, H), F32)
    h_p = jnp.zeros((B, H), F32)
    rows_t, rows_p = [], []
    for t in range(T_SEQ):                                       # static unroll (8)
        lo = t * B
        h_t = _gru_step(h_t, gx_title[lo:lo + B, :], wh_t, bhn_t)
        h_p = _gru_step(h_p, gx_prev[lo:lo + B, :], wh_p, bhn_p)
        rows_t.append(h_t)
        rows_p.append(h_p)

    # all encoder states as one flat matrix; row j = k*B + b
    # (k < T: title step k; k >= T: prev-seq step k-T).  One aggregated build,
    # no per-step misaligned stores.
    enc_flat = jnp.concatenate(rows_t + rows_p, axis=0)          # (2T*B, H)
    col = lax.broadcasted_iota(jnp.int32, (B, 2 * T_SEQ * B), 1)
    row = lax.broadcasted_iota(jnp.int32, (B, 2 * T_SEQ * B), 0)
    valid = (col % B) == row                                     # own-batch columns only

    # ---- decoder: GRU + MXU attention; states accumulated in registers ----
    h_d = h_t                                                    # encoder_hidden (title)
    h_list, c_list = [], []
    for t in range(T_TGT - 1):                                   # static unroll (7)
        lo = t * B
        h_d = _gru_step(h_d, gx_dec[lo:lo + B, :], wh_d, bhn_d)
        # scores = h . enc  (MXU, q @ k^T pattern), masked to own-batch columns
        scores = jnp.einsum('bh,kh->bk', h_d, enc_flat,
                            preferred_element_type=F32)          # (B, 2T*B)
        scores = jnp.where(valid, scores, jnp.float32(-1e30))
        scores = scores - jnp.max(scores, axis=-1, keepdims=True)
        p = jnp.exp(scores)
        p = p / jnp.sum(p, axis=-1, keepdims=True)               # exact softmax
        ctx = jnp.dot(p, enc_flat, preferred_element_type=F32)   # (B, H), MXU
        h_list.append(h_d)
        c_list.append(ctx)
    dec_h_ref[...] = h_d

    # ---- fused output head over all timesteps (aligned, batched matmuls) ----
    pad_rows = jnp.zeros((N_PAD - N_DEC, H), F32)                # zero padding rows
    hs = jnp.concatenate(h_list + [pad_rows], axis=0)            # (N_PAD, H)
    cs = jnp.concatenate(c_list + [pad_rows], axis=0)            # (N_PAD, H)
    # tanh([h ; ctx] @ Wc + bc) split as two matmuls (avoids lane concat)
    comb = jnp.tanh(jnp.dot(hs, wc_ref[0:H, :], preferred_element_type=F32)
                    + jnp.dot(cs, wc_ref[H:2 * H, :], preferred_element_type=F32)
                    + bc_ref[...])                               # (N_PAD, H)
    logits = jnp.dot(comb, wo_ref[...], preferred_element_type=F32) + bo_ref[...]

    # log_softmax (decode_function = F.log_softmax)
    m = jnp.max(logits, axis=-1, keepdims=True)
    ex = jnp.exp(logits - m)
    lse = jnp.log(jnp.sum(ex, axis=-1, keepdims=True)) + m
    logp = logits - lse
    logp_ref[...] = logp                                         # lane-dense (N_PAD, V)

    lane_o = lax.broadcasted_iota(jnp.int32, (N_PAD, V), 1)

    # torch.topk(result[0], 1, dim=2)[1] -> first index of the max
    is_max = logits >= m
    pred_ref[...] = jnp.min(jnp.where(is_max, lane_o, V), axis=-1,
                            keepdims=True).astype(jnp.int32)

    # nn.CrossEntropyLoss(ignore_index=0), mean over non-ignored targets.
    # (Padding rows carry target 0, so they are ignored.  If *every* target is
    # 0 this returns 0 whereas PyTorch returns NaN — documented divergence.)
    tgt = tgt_ref[...]                                           # (N_PAD, 1) int32
    onehot_tgt = (lane_o == tgt).astype(F32)
    picked = jnp.sum(logp * onehot_tgt, axis=-1, keepdims=True)  # (N_PAD, 1)
    mask = (tgt != 0).astype(F32)
    num = jnp.sum(picked * mask, axis=0, keepdims=True)          # (1, 1)
    den = jnp.maximum(jnp.sum(mask, axis=0, keepdims=True), 1.0)
    loss_ref[...] = -num / den


# ----------------------------- pallas_call wrapper -----------------------------
def run_fused(title_ids, prev_ids, dec_ids, tgt_ids, topics_i, struct_ids,
              word_emb, topic_emb, struct_emb,
              wx_all, wh_all, bx_all, bhn_all, wc, bc, wo, bo):
    return pl.pallas_call(
        fused_seq2seq_kernel,
        out_shape=(
            jax.ShapeDtypeStruct((N_PAD, V), F32),               # log-prob decoder outputs
            jax.ShapeDtypeStruct((N_PAD, 1), jnp.int32),         # argmax ids
            jax.ShapeDtypeStruct((1, 1), F32),                   # CE loss
            jax.ShapeDtypeStruct((B, H), F32),                   # decoder last hidden
        ),
        in_specs=[VMEM_SPEC()] * 17,
        out_specs=(VMEM_SPEC(), VMEM_SPEC(), VMEM_SPEC(), VMEM_SPEC()),
    )(title_ids, prev_ids, dec_ids, tgt_ids, topics_i, struct_ids,
      word_emb, topic_emb, struct_emb,
      wx_all, wh_all, bx_all, bhn_all, wc, bc, wo, bo)


# ----------------------------- params / glue (plain JAX) ----------------------
def init_params(key):
    def dense(k, shape, scale=0.1):
        return jax.random.normal(k, shape, F32) * scale

    ks = jax.random.split(key, 9)
    p = {}
    p["word_emb"] = dense(ks[0], (V, E))
    p["topic_emb"] = dense(ks[1], (V_TOPIC, E))
    p["struct_emb"] = dense(ks[2], (V_STRUCT, E))

    def gru_params(k):
        k1, k2, k3, k4 = jax.random.split(k, 4)
        return {"wx": dense(k1, (E, 3 * H)), "wh": dense(k2, (H, 3 * H)),
                "bx": dense(k3, (1, 3 * H), 0.01), "bh": dense(k4, (1, 3 * H), 0.01)}

    p["enc_title_gru"] = gru_params(ks[3])
    p["enc_gru"] = gru_params(ks[4])
    p["dec_gru"] = gru_params(ks[5])
    p["wc"] = dense(ks[6], (2 * H, H))
    p["bc"] = jnp.zeros((1, H), F32)
    p["wo"] = dense(ks[7], (H, V))
    p["bo"] = jnp.zeros((1, V), F32)
    return p


def _tm_ids(x):
    """(B, T) int ids -> time-major flattened (T*B, 1) int32 (row = t*B + b)."""
    return jnp.swapaxes(x, 0, 1).reshape(-1, 1).astype(jnp.int32)


def fb_seq2seq_forward(params, input_variable, prev_generated_seq,
                       target_variable, topics, structure_abstracts):
    # ---- pack GRU weights: lane-concatenated gates, recurrent r/z biases folded.
    # (constant-folded at compile time; params are jit closure constants)
    def fold(g):
        bx_fold = g["bx"] + jnp.concatenate(
            [g["bh"][:, :2 * H], jnp.zeros((1, H), F32)], axis=-1)
        return g["wx"], g["wh"], bx_fold, g["bh"][:, 2 * H:]

    packs = [fold(params[k]) for k in ("enc_title_gru", "enc_gru", "dec_gru")]
    wx_all = jnp.stack([q[0] for q in packs])                    # (3, E, 3H)
    wh_all = jnp.stack([q[1] for q in packs])                    # (3, H, 3H)
    bx_all = jnp.stack([q[2] for q in packs])                    # (3, 1, 3H)
    bhn_all = jnp.stack([q[3] for q in packs])                   # (3, 1, H)

    # ---- tiny int32 id rearrangements (only remaining XLA-side glue) ----
    pad_ids = jnp.zeros((N_PAD - N_DEC, 1), jnp.int32)
    title_ids = _tm_ids(input_variable)                          # (T*B, 1)
    prev_ids = _tm_ids(prev_generated_seq)                       # (T*B, 1)
    dec_ids = jnp.concatenate([_tm_ids(target_variable[:, :-1]), pad_ids], axis=0)
    tgt_ids = jnp.concatenate([_tm_ids(target_variable[:, 1:]), pad_ids], axis=0)
    struct_ids = _tm_ids(structure_abstracts)                    # (T*B, 1)
    topics_i = topics.astype(jnp.int32)                          # (B, N_TOPICS)

    logp_pad, pred_pad, loss2d, dec_h_last = run_fused(
        title_ids, prev_ids, dec_ids, tgt_ids, topics_i, struct_ids,
        params["word_emb"], params["topic_emb"], params["struct_emb"],
        wx_all, wh_all, bx_all, bhn_all,
        params["wc"], params["bc"], params["wo"], params["bo"])

    decoder_outputs = logp_pad[:N_DEC].reshape(T_TGT - 1, B, V).swapaxes(0, 1)  # result[0]
    prev_generated_seq_out = pred_pad[:N_DEC, 0].reshape(T_TGT - 1, B).T        # topk/view
    loss = loss2d.reshape(1)                                                    # unsqueeze(0)
    result_2 = dec_h_last          # stand-in for the decoder's ret_dict (result[2])
    # TODO(synk): encoder.rnn.flatten_parameters() has no Pallas equivalent (cuDNN-only).
    return loss, prev_generated_seq_out, result_2, decoder_outputs


# --------------------------------- main ---------------------------------------
if __name__ == "__main__":
    key = jax.random.PRNGKey(0)
    k_param, k1, k2, k3, k4, k5 = jax.random.split(key, 6)
    params = init_params(k_param)

    input_variable = jax.random.randint(k1, (B, T_TITLE), 1, V, dtype=jnp.int32)
    prev_generated_seq = jax.random.randint(k2, (B, T_ABS), 1, V, dtype=jnp.int32)
    target_variable = jax.random.randint(k3, (B, T_TGT), 0, V, dtype=jnp.int32)
    topics = jax.random.randint(k4, (B, N_TOPICS), 0, V_TOPIC, dtype=jnp.int32)
    structure_abstracts = jax.random.randint(k5, (B, T_TGT), 0, V_STRUCT,
                                             dtype=jnp.int32)

    fwd = jax.jit(functools.partial(fb_seq2seq_forward, params))
    loss, prev_seq, hidden, dec_out = fwd(input_variable, prev_generated_seq,
                                          target_variable, topics,
                                          structure_abstracts)
    jax.block_until_ready((loss, prev_seq, hidden, dec_out))

    assert loss.shape == (1,)
    assert prev_seq.shape == (B, T_TGT - 1)
    assert hidden.shape == (B, H)
    assert dec_out.shape == (B, T_TGT - 1, V)
    assert bool(jnp.isfinite(loss).all())
    assert bool(jnp.isfinite(dec_out).all())
    print("KERNEL_OK")
</pallas_src>

<mosaic_0001>
module attributes {stable_mosaic.version = 11 : i64} {
  func.func @fused_seq2seq_kernel(%arg0: memref<16x1xi32, #tpu.memory_space<vmem>>, %arg1: memref<16x1xi32, #tpu.memory_space<vmem>>, %arg2: memref<16x1xi32, #tpu.memory_space<vmem>>, %arg3: memref<16x1xi32, #tpu.memory_space<vmem>>, %arg4: memref<2x4xi32, #tpu.memory_space<vmem>>, %arg5: memref<16x1xi32, #tpu.memory_space<vmem>>, %arg6: memref<128x32xf32, #tpu.memory_space<vmem>>, %arg7: memref<16x32xf32, #tpu.memory_space<vmem>>, %arg8: memref<8x32xf32, #tpu.memory_space<vmem>>, %arg9: memref<3x32x96xf32, #tpu.memory_space<vmem>>, %arg10: memref<3x32x96xf32, #tpu.memory_space<vmem>>, %arg11: memref<3x1x96xf32, #tpu.memory_space<vmem>>, %arg12: memref<3x1x32xf32, #tpu.memory_space<vmem>>, %arg13: memref<64x32xf32, #tpu.memory_space<vmem>>, %arg14: memref<1x32xf32, #tpu.memory_space<vmem>>, %arg15: memref<32x128xf32, #tpu.memory_space<vmem>>, %arg16: memref<1x128xf32, #tpu.memory_space<vmem>>, %arg17: memref<16x128xf32, #tpu.memory_space<vmem>>, %arg18: memref<16x1xi32, #tpu.memory_space<vmem>>, %arg19: memref<1x1xf32, #tpu.memory_space<vmem>>, %arg20: memref<2x32xf32, #tpu.memory_space<vmem>>) attributes {dimension_semantics = [], scalar_prefetch = 0 : i64, scratch_operands = 0 : i64, tpu.core_type = #tpu.core_type<tc>} {
    %c0 = arith.constant 0 : index
    %c0_0 = arith.constant 0 : index
    %0 = vector.load %arg4[%c0, %c0_0] : memref<2x4xi32, #tpu.memory_space<vmem>>, vector<2x4xi32>
    %1 = tpu.iota {dimensions = array<i32: 1>} : vector<2x16xi32>
    %cst = arith.constant 0.000000e+00 : f32
    %2 = vector.broadcast %cst : f32 to vector<2x16xf32>
    %3 = vector.extract_strided_slice %0 {offsets = [0, 0], sizes = [2, 1], strides = [1, 1]} : vector<2x4xi32> to vector<2x1xi32>
    %4 = vector.broadcast %3 : vector<2x1xi32> to vector<2x16xi32>
    %5 = arith.cmpi eq, %1, %4 : vector<2x16xi32>
    %6 = arith.extui %5 : vector<2x16xi1> to vector<2x16xi32>
    %7 = arith.sitofp %6 : vector<2x16xi32> to vector<2x16xf32>
    %8 = arith.addf %2, %7 : vector<2x16xf32>
    %9 = vector.extract_strided_slice %0 {offsets = [0, 1], sizes = [2, 1], strides = [1, 1]} : vector<2x4xi32> to vector<2x1xi32>
    %10 = vector.broadcast %9 : vector<2x1xi32> to vector<2x16xi32>
    %11 = arith.cmpi eq, %1, %10 : vector<2x16xi32>
    %12 = arith.extui %11 : vector<2x16xi1> to vector<2x16xi32>
    %13 = arith.sitofp %12 : vector<2x16xi32> to vector<2x16xf32>
    %14 = arith.addf %8, %13 : vector<2x16xf32>
    %15 = vector.extract_strided_slice %0 {offsets = [0, 2], sizes = [2, 1], strides = [1, 1]} : vector<2x4xi32> to vector<2x1xi32>
    %16 = vector.broadcast %15 : vector<2x1xi32> to vector<2x16xi32>
    %17 = arith.cmpi eq, %1, %16 : vector<2x16xi32>
    %18 = arith.extui %17 : vector<2x16xi1> to vector<2x16xi32>
    %19 = arith.sitofp %18 : vector<2x16xi32> to vector<2x16xf32>
    %20 = arith.addf %14, %19 : vector<2x16xf32>
    %21 = vector.extract_strided_slice %0 {offsets = [0, 3], sizes = [2, 1], strides = [1, 1]} : vector<2x4xi32> to vector<2x1xi32>
    %22 = vector.broadcast %21 : vector<2x1xi32> to vector<2x16xi32>
    %23 = arith.cmpi eq, %1, %22 : vector<2x16xi32>
    %24 = arith.extui %23 : vector<2x16xi1> to vector<2x16xi32>
    %25 = arith.sitofp %24 : vector<2x16xi32> to vector<2x16xf32>
    %26 = arith.addf %20, %25 : vector<2x16xf32>
    %cst_1 = arith.constant 2.500000e-01 : f32
    %27 = vector.broadcast %cst_1 : f32 to vector<2x16xf32>
    %28 = arith.mulf %26, %27 : vector<2x16xf32>
    %c0_2 = arith.constant 0 : index
    %c0_3 = arith.constant 0 : index
    %29 = vector.load %arg7[%c0_2, %c0_3] : memref<16x32xf32, #tpu.memory_space<vmem>>, vector<16x32xf32>
    %cst_4 = arith.constant dense<0.000000e+00> : vector<2x32xf32>
    %30 = tpu.matmul %28, %29, %cst_4 {dimension_numbers = #tpu.dot_dimension_numbers<[1], [0], [0], [1], [0, 0, 1, 1], [], []>} : vector<2x16xf32>, vector<16x32xf32>, vector<2x32xf32> -> vector<2x32xf32>
    %31 = tpu.concatenate %30, %30, %30, %30, %30, %30, %30, %30 in 0 : vector<2x32xf32>, vector<2x32xf32>, vector<2x32xf32>, vector<2x32xf32>, vector<2x32xf32>, vector<2x32xf32>, vector<2x32xf32>, vector<2x32xf32> -> vector<16x32xf32>
    %32 = tpu.iota {dimensions = array<i32: 1>} : vector<16x8xi32>
    %c0_5 = arith.constant 0 : index
    %c0_6 = arith.constant 0 : index
    %33 = vector.load %arg5[%c0_5, %c0_6] : memref<16x1xi32, #tpu.memory_space<vmem>>, vector<16x1xi32>
    %34 = vector.broadcast %33 : vector<16x1xi32> to vector<16x8xi32>
    %35 = arith.cmpi eq, %32, %34 : vector<16x8xi32>
    %36 = arith.extui %35 : vector<16x8xi1> to vector<16x8xi32>
    %37 = arith.sitofp %36 : vector<16x8xi32> to vector<16x8xf32>
    %c0_7 = arith.constant 0 : index
    %c0_8 = arith.constant 0 : index
    %38 = vector.load %arg8[%c0_7, %c0_8] : memref<8x32xf32, #tpu.memory_space<vmem>>, vector<8x32xf32>
    %cst_9 = arith.constant dense<0.000000e+00> : vector<16x32xf32>
    %39 = tpu.matmul %37, %38, %cst_9 {dimension_numbers = #tpu.dot_dimension_numbers<[1], [0], [0], [1], [0, 0, 1, 1], [], []>} : vector<16x8xf32>, vector<8x32xf32>, vector<16x32xf32> -> vector<16x32xf32>
    %c0_10 = arith.constant 0 : index
    %c0_11 = arith.constant 0 : index
    %40 = vector.load %arg6[%c0_10, %c0_11] : memref<128x32xf32, #tpu.memory_space<vmem>>, vector<128x32xf32>
    %41 = tpu.iota {dimensions = array<i32: 1>} : vector<16x128xi32>
    %c0_12 = arith.constant 0 : index
    %c0_13 = arith.constant 0 : index
    %42 = vector.load %arg0[%c0_12, %c0_13] : memref<16x1xi32, #tpu.memory_space<vmem>>, vector<16x1xi32>
    %43 = vector.broadcast %42 : vector<16x1xi32> to vector<16x128xi32>
    %44 = arith.cmpi eq, %41, %43 : vector<16x128xi32>
    %45 = arith.extui %44 : vector<16x128xi1> to vector<16x128xi32>
    %46 = arith.sitofp %45 : vector<16x128xi32> to vector<16x128xf32>
    %cst_14 = arith.constant dense<0.000000e+00> : vector<16x32xf32>
    %47 = tpu.matmul %46, %40, %cst_14 {dimension_numbers = #tpu.dot_dimension_numbers<[1], [0], [0], [1], [0, 0, 1, 1], [], []>} : vector<16x128xf32>, vector<128x32xf32>, vector<16x32xf32> -> vector<16x32xf32>
    %48 = arith.addf %47, %31 : vector<16x32xf32>
    %c0_15 = arith.constant 0 : index
    %c0_16 = arith.constant 0 : index
    %49 = vector.load %arg1[%c0_15, %c0_16] : memref<16x1xi32, #tpu.memory_space<vmem>>, vector<16x1xi32>
    %50 = vector.broadcast %49 : vector<16x1xi32> to vector<16x128xi32>
    %51 = arith.cmpi eq, %41, %50 : vector<16x128xi32>
    %52 = arith.extui %51 : vector<16x128xi1> to vector<16x128xi32>
    %53 = arith.sitofp %52 : vector<16x128xi32> to vector<16x128xf32>
    %cst_17 = arith.constant dense<0.000000e+00> : vector<16x32xf32>
    %54 = tpu.matmul %53, %40, %cst_17 {dimension_numbers = #tpu.dot_dimension_numbers<[1], [0], [0], [1], [0, 0, 1, 1], [], []>} : vector<16x128xf32>, vector<128x32xf32>, vector<16x32xf32> -> vector<16x32xf32>
    %55 = arith.addf %54, %31 : vector<16x32xf32>
    %56 = arith.addf %55, %39 : vector<16x32xf32>
    %c0_18 = arith.constant 0 : index
    %c0_19 = arith.constant 0 : index
    %57 = vector.load %arg2[%c0_18, %c0_19] : memref<16x1xi32, #tpu.memory_space<vmem>>, vector<16x1xi32>
    %58 = vector.broadcast %57 : vector<16x1xi32> to vector<16x128xi32>
    %59 = arith.cmpi eq, %41, %58 : vector<16x128xi32>
    %60 = arith.extui %59 : vector<16x128xi1> to vector<16x128xi32>
    %61 = arith.sitofp %60 : vector<16x128xi32> to vector<16x128xf32>
    %cst_20 = arith.constant dense<0.000000e+00> : vector<16x32xf32>
    %62 = tpu.matmul %61, %40, %cst_20 {dimension_numbers = #tpu.dot_dimension_numbers<[1], [0], [0], [1], [0, 0, 1, 1], [], []>} : vector<16x128xf32>, vector<128x32xf32>, vector<16x32xf32> -> vector<16x32xf32>
    %63 = arith.addf %62, %31 : vector<16x32xf32>
    %64 = arith.addf %63, %39 : vector<16x32xf32>
    %c0_21 = arith.constant 0 : index
    %c0_22 = arith.constant 0 : index
    %c0_23 = arith.constant 0 : index
    %65 = vector.load %arg9[%c0_21, %c0_22, %c0_23] : memref<3x32x96xf32, #tpu.memory_space<vmem>>, vector<1x32x96xf32>
    %66 = vector.shape_cast %65 : vector<1x32x96xf32> to vector<32x96xf32>
    %cst_24 = arith.constant dense<0.000000e+00> : vector<16x96xf32>
    %67 = tpu.matmul %48, %66, %cst_24 {dimension_numbers = #tpu.dot_dimension_numbers<[1], [0], [0], [1], [0, 0, 1, 1], [], []>} : vector<16x32xf32>, vector<32x96xf32>, vector<16x96xf32> -> vector<16x96xf32>
    %c0_25 = arith.constant 0 : index
    %c0_26 = arith.constant 0 : index
    %c0_27 = arith.constant 0 : index
    %68 = vector.load %arg11[%c0_25, %c0_26, %c0_27] : memref<3x1x96xf32, #tpu.memory_space<vmem>>, vector<1x1x96xf32>
    %69 = vector.shape_cast %68 : vector<1x1x96xf32> to vector<1x96xf32>
    %70 = vector.broadcast %69 : vector<1x96xf32> to vector<16x96xf32>
    %71 = arith.addf %67, %70 : vector<16x96xf32>
    %c1 = arith.constant 1 : index
    %c0_28 = arith.constant 0 : index
    %c0_29 = arith.constant 0 : index
    %72 = vector.load %arg9[%c1, %c0_28, %c0_29] : memref<3x32x96xf32, #tpu.memory_space<vmem>>, vector<1x32x96xf32>
    %73 = vector.shape_cast %72 : vector<1x32x96xf32> to vector<32x96xf32>
    %cst_30 = arith.constant dense<0.000000e+00> : vector<16x96xf32>
    %74 = tpu.matmul %56, %73, %cst_30 {dimension_numbers = #tpu.dot_dimension_numbers<[1], [0], [0], [1], [0, 0, 1, 1], [], []>} : vector<16x32xf32>, vector<32x96xf32>, vector<16x96xf32> -> vector<16x96xf32>
    %c1_31 = arith.constant 1 : index
    %c0_32 = arith.constant 0 : index
    %c0_33 = arith.constant 0 : index
    %75 = vector.load %arg11[%c1_31, %c0_32, %c0_33] : memref<3x1x96xf32, #tpu.memory_space<vmem>>, vector<1x1x96xf32>
    %76 = vector.shape_cast %75 : vector<1x1x96xf32> to vector<1x96xf32>
    %77 = vector.broadcast %76 : vector<1x96xf32> to vector<16x96xf32>
    %78 = arith.addf %74, %77 : vector<16x96xf32>
    %c2 = arith.constant 2 : index
    %c0_34 = arith.constant 0 : index
    %c0_35 = arith.constant 0 : index
    %79 = vector.load %arg9[%c2, %c0_34, %c0_35] : memref<3x32x96xf32, #tpu.memory_space<vmem>>, vector<1x32x96xf32>
    %80 = vector.shape_cast %79 : vector<1x32x96xf32> to vector<32x96xf32>
    %cst_36 = arith.constant dense<0.000000e+00> : vector<16x96xf32>
    %81 = tpu.matmul %64, %80, %cst_36 {dimension_numbers = #tpu.dot_dimension_numbers<[1], [0], [0], [1], [0, 0, 1, 1], [], []>} : vector<16x32xf32>, vector<32x96xf32>, vector<16x96xf32> -> vector<16x96xf32>
    %c2_37 = arith.constant 2 : index
    %c0_38 = arith.constant 0 : index
    %c0_39 = arith.constant 0 : index
    %82 = vector.load %arg11[%c2_37, %c0_38, %c0_39] : memref<3x1x96xf32, #tpu.memory_space<vmem>>, vector<1x1x96xf32>
    %83 = vector.shape_cast %82 : vector<1x1x96xf32> to vector<1x96xf32>
    %84 = vector.broadcast %83 : vector<1x96xf32> to vector<16x96xf32>
    %85 = arith.addf %81, %84 : vector<16x96xf32>
    %c0_40 = arith.constant 0 : index
    %c0_41 = arith.constant 0 : index
    %c0_42 = arith.constant 0 : index
    %86 = vector.load %arg10[%c0_40, %c0_41, %c0_42] : memref<3x32x96xf32, #tpu.memory_space<vmem>>, vector<1x32x96xf32>
    %87 = vector.shape_cast %86 : vector<1x32x96xf32> to vector<32x96xf32>
    %c1_43 = arith.constant 1 : index
    %c0_44 = arith.constant 0 : index
    %c0_45 = arith.constant 0 : index
    %88 = vector.load %arg10[%c1_43, %c0_44, %c0_45] : memref<3x32x96xf32, #tpu.memory_space<vmem>>, vector<1x32x96xf32>
    %89 = vector.shape_cast %88 : vector<1x32x96xf32> to vector<32x96xf32>
    %c2_46 = arith.constant 2 : index
    %c0_47 = arith.constant 0 : index
    %c0_48 = arith.constant 0 : index
    %90 = vector.load %arg10[%c2_46, %c0_47, %c0_48] : memref<3x32x96xf32, #tpu.memory_space<vmem>>, vector<1x32x96xf32>
    %91 = vector.shape_cast %90 : vector<1x32x96xf32> to vector<32x96xf32>
    %c0_49 = arith.constant 0 : index
    %c0_50 = arith.constant 0 : index
    %c0_51 = arith.constant 0 : index
    %92 = vector.load %arg12[%c0_49, %c0_50, %c0_51] : memref<3x1x32xf32, #tpu.memory_space<vmem>>, vector<1x1x32xf32>
    %93 = vector.shape_cast %92 : vector<1x1x32xf32> to vector<1x32xf32>
    %94 = vector.shape_cast %93 : vector<1x32xf32> to vector<1x32xf32>
    %95 = vector.broadcast %94 : vector<1x32xf32> to vector<2x32xf32>
    %c1_52 = arith.constant 1 : index
    %c0_53 = arith.constant 0 : index
    %c0_54 = arith.constant 0 : index
    %96 = vector.load %arg12[%c1_52, %c0_53, %c0_54] : memref<3x1x32xf32, #tpu.memory_space<vmem>>, vector<1x1x32xf32>
    %97 = vector.shape_cast %96 : vector<1x1x32xf32> to vector<1x32xf32>
    %98 = vector.shape_cast %97 : vector<1x32xf32> to vector<1x32xf32>
    %99 = vector.broadcast %98 : vector<1x32xf32> to vector<2x32xf32>
    %c2_55 = arith.constant 2 : index
    %c0_56 = arith.constant 0 : index
    %c0_57 = arith.constant 0 : index
    %100 = vector.load %arg12[%c2_55, %c0_56, %c0_57] : memref<3x1x32xf32, #tpu.memory_space<vmem>>, vector<1x1x32xf32>
    %101 = vector.shape_cast %100 : vector<1x1x32xf32> to vector<1x32xf32>
    %102 = vector.shape_cast %101 : vector<1x32xf32> to vector<1x32xf32>
    %103 = vector.broadcast %102 : vector<1x32xf32> to vector<2x32xf32>
    %cst_58 = arith.constant 0.000000e+00 : f32
    %104 = vector.broadcast %cst_58 : f32 to vector<2x32xf32>
    %cst_59 = arith.constant 0.000000e+00 : f32
    %105 = vector.broadcast %cst_59 : f32 to vector<2x32xf32>
    %106 = vector.extract_strided_slice %71 {offsets = [0, 0], sizes = [2, 96], strides = [1, 1]} : vector<16x96xf32> to vector<2x96xf32>
    %cst_60 = arith.constant dense<0.000000e+00> : vector<2x96xf32>
    %107 = tpu.matmul %104, %87, %cst_60 {dimension_numbers = #tpu.dot_dimension_numbers<[1], [0], [0], [1], [0, 0, 1, 1], [], []>} : vector<2x32xf32>, vector<32x96xf32>, vector<2x96xf32> -> vector<2x96xf32>
    %108 = vector.extract_strided_slice %106 {offsets = [0, 0], sizes = [2, 32], strides = [1, 1]} : vector<2x96xf32> to vector<2x32xf32>
    %109 = vector.extract_strided_slice %107 {offsets = [0, 0], sizes = [2, 32], strides = [1, 1]} : vector<2x96xf32> to vector<2x32xf32>
    %110 = arith.addf %108, %109 : vector<2x32xf32>
    %111 = arith.negf %110 : vector<2x32xf32>
    %112 = math.exp %111 : vector<2x32xf32>
    %cst_61 = arith.constant 1.000000e+00 : f32
    %113 = vector.broadcast %cst_61 : f32 to vector<2x32xf32>
    %114 = arith.addf %113, %112 : vector<2x32xf32>
    %115 = arith.divf %113, %114 : vector<2x32xf32>
    %116 = vector.extract_strided_slice %106 {offsets = [0, 32], sizes = [2, 32], strides = [1, 1]} : vector<2x96xf32> to vector<2x32xf32>
    %117 = vector.extract_strided_slice %107 {offsets = [0, 32], sizes = [2, 32], strides = [1, 1]} : vector<2x96xf32> to vector<2x32xf32>
    %118 = arith.addf %116, %117 : vector<2x32xf32>
    %119 = arith.negf %118 : vector<2x32xf32>
    %120 = math.exp %119 : vector<2x32xf32>
    %cst_62 = arith.constant 1.000000e+00 : f32
    %121 = vector.broadcast %cst_62 : f32 to vector<2x32xf32>
    %122 = arith.addf %121, %120 : vector<2x32xf32>
    %123 = arith.divf %121, %122 : vector<2x32xf32>
    %124 = vector.extract_strided_slice %106 {offsets = [0, 64], sizes = [2, 32], strides = [1, 1]} : vector<2x96xf32> to vector<2x32xf32>
    %125 = vector.extract_strided_slice %107 {offsets = [0, 64], sizes = [2, 32], strides = [1, 1]} : vector<2x96xf32> to vector<2x32xf32>
    %126 = arith.addf %125, %95 : vector<2x32xf32>
    %127 = arith.mulf %115, %126 : vector<2x32xf32>
    %128 = arith.addf %124, %127 : vector<2x32xf32>
    %129 = math.tanh %128 : vector<2x32xf32>
    %cst_63 = arith.constant 1.000000e+00 : f32
    %130 = vector.broadcast %cst_63 : f32 to vector<2x32xf32>
    %131 = arith.subf %130, %123 : vector<2x32xf32>
    %132 = arith.mulf %131, %129 : vector<2x32xf32>
    %133 = arith.mulf %123, %104 : vector<2x32xf32>
    %134 = arith.addf %132, %133 : vector<2x32xf32>
    %135 = vector.extract_strided_slice %78 {offsets = [0, 0], sizes = [2, 96], strides = [1, 1]} : vector<16x96xf32> to vector<2x96xf32>
    %cst_64 = arith.constant dense<0.000000e+00> : vector<2x96xf32>
    %136 = tpu.matmul %105, %89, %cst_64 {dimension_numbers = #tpu.dot_dimension_numbers<[1], [0], [0], [1], [0, 0, 1, 1], [], []>} : vector<2x32xf32>, vector<32x96xf32>, vector<2x96xf32> -> vector<2x96xf32>
    %137 = vector.extract_strided_slice %135 {offsets = [0, 0], sizes = [2, 32], strides = [1, 1]} : vector<2x96xf32> to vector<2x32xf32>
    %138 = vector.extract_strided_slice %136 {offsets = [0, 0], sizes = [2, 32], strides = [1, 1]} : vector<2x96xf32> to vector<2x32xf32>
    %139 = arith.addf %137, %138 : vector<2x32xf32>
    %140 = arith.negf %139 : vector<2x32xf32>
    %141 = math.exp %140 : vector<2x32xf32>
    %cst_65 = arith.constant 1.000000e+00 : f32
    %142 = vector.broadcast %cst_65 : f32 to vector<2x32xf32>
    %143 = arith.addf %142, %141 : vector<2x32xf32>
    %144 = arith.divf %142, %143 : vector<2x32xf32>
    %145 = vector.extract_strided_slice %135 {offsets = [0, 32], sizes = [2, 32], strides = [1, 1]} : vector<2x96xf32> to vector<2x32xf32>
    %146 = vector.extract_strided_slice %136 {offsets = [0, 32], sizes = [2, 32], strides = [1, 1]} : vector<2x96xf32> to vector<2x32xf32>
    %147 = arith.addf %145, %146 : vector<2x32xf32>
    %148 = arith.negf %147 : vector<2x32xf32>
    %149 = math.exp %148 : vector<2x32xf32>
    %cst_66 = arith.constant 1.000000e+00 : f32
    %150 = vector.broadcast %cst_66 : f32 to vector<2x32xf32>
    %151 = arith.addf %150, %149 : vector<2x32xf32>
    %152 = arith.divf %150, %151 : vector<2x32xf32>
    %153 = vector.extract_strided_slice %135 {offsets = [0, 64], sizes = [2, 32], strides = [1, 1]} : vector<2x96xf32> to vector<2x32xf32>
    %154 = vector.extract_strided_slice %136 {offsets = [0, 64], sizes = [2, 32], strides = [1, 1]} : vector<2x96xf32> to vector<2x32xf32>
    %155 = arith.addf %154, %99 : vector<2x32xf32>
    %156 = arith.mulf %144, %155 : vector<2x32xf32>
    %157 = arith.addf %153, %156 : vector<2x32xf32>
    %158 = math.tanh %157 : vector<2x32xf32>
    %cst_67 = arith.constant 1.000000e+00 : f32
    %159 = vector.broadcast %cst_67 : f32 to vector<2x32xf32>
    %160 = arith.subf %159, %152 : vector<2x32xf32>
    %161 = arith.mulf %160, %158 : vector<2x32xf32>
    %162 = arith.mulf %152, %105 : vector<2x32xf32>
    %163 = arith.addf %161, %162 : vector<2x32xf32>
    %164 = vector.extract_strided_slice %71 {offsets = [2, 0], sizes = [2, 96], strides = [1, 1]} : vector<16x96xf32> to vector<2x96xf32>
    %cst_68 = arith.constant dense<0.000000e+00> : vector<2x96xf32>
    %165 = tpu.matmul %134, %87, %cst_68 {dimension_numbers = #tpu.dot_dimension_numbers<[1], [0], [0], [1], [0, 0, 1, 1], [], []>} : vector<2x32xf32>, vector<32x96xf32>, vector<2x96xf32> -> vector<2x96xf32>
    %166 = vector.extract_strided_slice %164 {offsets = [0, 0], sizes = [2, 32], strides = [1, 1]} : vector<2x96xf32> to vector<2x32xf32>
    %167 = vector.extract_strided_slice %165 {offsets = [0, 0], sizes = [2, 32], strides = [1, 1]} : vector<2x96xf32> to vector<2x32xf32>
    %168 = arith.addf %166, %167 : vector<2x32xf32>
    %169 = arith.negf %168 : vector<2x32xf32>
    %170 = math.exp %169 : vector<2x32xf32>
    %cst_69 = arith.constant 1.000000e+00 : f32
    %171 = vector.broadcast %cst_69 : f32 to vector<2x32xf32>
    %172 = arith.addf %171, %170 : vector<2x32xf32>
    %173 = arith.divf %171, %172 : vector<2x32xf32>
    %174 = vector.extract_strided_slice %164 {offsets = [0, 32], sizes = [2, 32], strides = [1, 1]} : vector<2x96xf32> to vector<2x32xf32>
    %175 = vector.extract_strided_slice %165 {offsets = [0, 32], sizes = [2, 32], strides = [1, 1]} : vector<2x96xf32> to vector<2x32xf32>
    %176 = arith.addf %174, %175 : vector<2x32xf32>
    %177 = arith.negf %176 : vector<2x32xf32>
    %178 = math.exp %177 : vector<2x32xf32>
    %cst_70 = arith.constant 1.000000e+00 : f32
    %179 = vector.broadcast %cst_70 : f32 to vector<2x32xf32>
    %180 = arith.addf %179, %178 : vector<2x32xf32>
    %181 = arith.divf %179, %180 : vector<2x32xf32>
    %182 = vector.extract_strided_slice %164 {offsets = [0, 64], sizes = [2, 32], strides = [1, 1]} : vector<2x96xf32> to vector<2x32xf32>
    %183 = vector.extract_strided_slice %165 {offsets = [0, 64], sizes = [2, 32], strides = [1, 1]} : vector<2x96xf32> to vector<2x32xf32>
    %184 = arith.addf %183, %95 : vector<2x32xf32>
    %185 = arith.mulf %173, %184 : vector<2x32xf32>
    %186 = arith.addf %182, %185 : vector<2x32xf32>
    %187 = math.tanh %186 : vector<2x32xf32>
    %cst_71 = arith.constant 1.000000e+00 : f32
    %188 = vector.broadcast %cst_71 : f32 to vector<2x32xf32>
    %189 = arith.subf %188, %181 : vector<2x32xf32>
    %190 = arith.mulf %189, %187 : vector<2x32xf32>
    %191 = arith.mulf %181, %134 : vector<2x32xf32>
    %192 = arith.addf %190, %191 : vector<2x32xf32>
    %193 = vector.extract_strided_slice %78 {offsets = [2, 0], sizes = [2, 96], strides = [1, 1]} : vector<16x96xf32> to vector<2x96xf32>
    %cst_72 = arith.constant dense<0.000000e+00> : vector<2x96xf32>
    %194 = tpu.matmul %163, %89, %cst_72 {dimension_numbers = #tpu.dot_dimension_numbers<[1], [0], [0], [1], [0, 0, 1, 1], [], []>} : vector<2x32xf32>, vector<32x96xf32>, vector<2x96xf32> -> vector<2x96xf32>
    %195 = vector.extract_strided_slice %193 {offsets = [0, 0], sizes = [2, 32], strides = [1, 1]} : vector<2x96xf32> to vector<2x32xf32>
    %196 = vector.extract_strided_slice %194 {offsets = [0, 0], sizes = [2, 32], strides = [1, 1]} : vector<2x96xf32> to vector<2x32xf32>
    %197 = arith.addf %195, %196 : vector<2x32xf32>
    %198 = arith.negf %197 : vector<2x32xf32>
    %199 = math.exp %198 : vector<2x32xf32>
    %cst_73 = arith.constant 1.000000e+00 : f32
    %200 = vector.broadcast %cst_73 : f32 to vector<2x32xf32>
    %201 = arith.addf %200, %199 : vector<2x32xf32>
    %202 = arith.divf %200, %201 : vector<2x32xf32>
    %203 = vector.extract_strided_slice %193 {offsets = [0, 32], sizes = [2, 32], strides = [1, 1]} : vector<2x96xf32> to vector<2x32xf32>
    %204 = vector.extract_strided_slice %194 {offsets = [0, 32], sizes = [2, 32], strides = [1, 1]} : vector<2x96xf32> to vector<2x32xf32>
    %205 = arith.addf %203, %204 : vector<2x32xf32>
    %206 = arith.negf %205 : vector<2x32xf32>
    %207 = math.exp %206 : vector<2x32xf32>
    %cst_74 = arith.constant 1.000000e+00 : f32
    %208 = vector.broadcast %cst_74 : f32 to vector<2x32xf32>
    %209 = arith.addf %208, %207 : vector<2x32xf32>
    %210 = arith.divf %208, %209 : vector<2x32xf32>
    %211 = vector.extract_strided_slice %193 {offsets = [0, 64], sizes = [2, 32], strides = [1, 1]} : vector<2x96xf32> to vector<2x32xf32>
    %212 = vector.extract_strided_slice %194 {offsets = [0, 64], sizes = [2, 32], strides = [1, 1]} : vector<2x96xf32> to vector<2x32xf32>
    %213 = arith.addf %212, %99 : vector<2x32xf32>
    %214 = arith.mulf %202, %213 : vector<2x32xf32>
    %215 = arith.addf %211, %214 : vector<2x32xf32>
    %216 = math.tanh %215 : vector<2x32xf32>
    %cst_75 = arith.constant 1.000000e+00 : f32
    %217 = vector.broadcast %cst_75 : f32 to vector<2x32xf32>
    %218 = arith.subf %217, %210 : vector<2x32xf32>
    %219 = arith.mulf %218, %216 : vector<2x32xf32>
    %220 = arith.mulf %210, %163 : vector<2x32xf32>
    %221 = arith.addf %219, %220 : vector<2x32xf32>
    %222 = vector.extract_strided_slice %71 {offsets = [4, 0], sizes = [2, 96], strides = [1, 1]} : vector<16x96xf32> to vector<2x96xf32>
    %cst_76 = arith.constant dense<0.000000e+00> : vector<2x96xf32>
    %223 = tpu.matmul %192, %87, %cst_76 {dimension_numbers = #tpu.dot_dimension_numbers<[1], [0], [0], [1], [0, 0, 1, 1], [], []>} : vector<2x32xf32>, vector<32x96xf32>, vector<2x96xf32> -> vector<2x96xf32>
    %224 = vector.extract_strided_slice %222 {offsets = [0, 0], sizes = [2, 32], strides = [1, 1]} : vector<2x96xf32> to vector<2x32xf32>
    %225 = vector.extract_strided_slice %223 {offsets = [0, 0], sizes = [2, 32], strides = [1, 1]} : vector<2x96xf32> to vector<2x32xf32>
    %226 = arith.addf %224, %225 : vector<2x32xf32>
    %227 = arith.negf %226 : vector<2x32xf32>
    %228 = math.exp %227 : vector<2x32xf32>
    %cst_77 = arith.constant 1.000000e+00 : f32
    %229 = vector.broadcast %cst_77 : f32 to vector<2x32xf32>
    %230 = arith.addf %229, %228 : vector<2x32xf32>
    %231 = arith.divf %229, %230 : vector<2x32xf32>
    %232 = vector.extract_strided_slice %222 {offsets = [0, 32], sizes = [2, 32], strides = [1, 1]} : vector<2x96xf32> to vector<2x32xf32>
    %233 = vector.extract_strided_slice %223 {offsets = [0, 32], sizes = [2, 32], strides = [1, 1]} : vector<2x96xf32> to vector<2x32xf32>
    %234 = arith.addf %232, %233 : vector<2x32xf32>
    %235 = arith.negf %234 : vector<2x32xf32>
    %236 = math.exp %235 : vector<2x32xf32>
    %cst_78 = arith.constant 1.000000e+00 : f32
    %237 = vector.broadcast %cst_78 : f32 to vector<2x32xf32>
    %238 = arith.addf %237, %236 : vector<2x32xf32>
    %239 = arith.divf %237, %238 : vector<2x32xf32>
    %240 = vector.extract_strided_slice %222 {offsets = [0, 64], sizes = [2, 32], strides = [1, 1]} : vector<2x96xf32> to vector<2x32xf32>
    %241 = vector.extract_strided_slice %223 {offsets = [0, 64], sizes = [2, 32], strides = [1, 1]} : vector<2x96xf32> to vector<2x32xf32>
    %242 = arith.addf %241, %95 : vector<2x32xf32>
    %243 = arith.mulf %231, %242 : vector<2x32xf32>
    %244 = arith.addf %240, %243 : vector<2x32xf32>
    %245 = math.tanh %244 : vector<2x32xf32>
    %cst_79 = arith.constant 1.000000e+00 : f32
    %246 = vector.broadcast %cst_79 : f32 to vector<2x32xf32>
    %247 = arith.subf %246, %239 : vector<2x32xf32>
    %248 = arith.mulf %247, %245 : vector<2x32xf32>
    %249 = arith.mulf %239, %192 : vector<2x32xf32>
    %250 = arith.addf %248, %249 : vector<2x32xf32>
    %251 = vector.extract_strided_slice %78 {offsets = [4, 0], sizes = [2, 96], strides = [1, 1]} : vector<16x96xf32> to vector<2x96xf32>
    %cst_80 = arith.constant dense<0.000000e+00> : vector<2x96xf32>
    %252 = tpu.matmul %221, %89, %cst_80 {dimension_numbers = #tpu.dot_dimension_numbers<[1], [0], [0], [1], [0, 0, 1, 1], [], []>} : vector<2x32xf32>, vector<32x96xf32>, vector<2x96xf32> -> vector<2x96xf32>
    %253 = vector.extract_strided_slice %251 {offsets = [0, 0], sizes = [2, 32], strides = [1, 1]} : vector<2x96xf32> to vector<2x32xf32>
    %254 = vector.extract_strided_slice %252 {offsets = [0, 0], sizes = [2, 32], strides = [1, 1]} : vector<2x96xf32> to vector<2x32xf32>
    %255 = arith.addf %253, %254 : vector<2x32xf32>
    %256 = arith.negf %255 : vector<2x32xf32>
    %257 = math.exp %256 : vector<2x32xf32>
    %cst_81 = arith.constant 1.000000e+00 : f32
    %258 = vector.broadcast %cst_81 : f32 to vector<2x32xf32>
    %259 = arith.addf %258, %257 : vector<2x32xf32>
    %260 = arith.divf %258, %259 : vector<2x32xf32>
    %261 = vector.extract_strided_slice %251 {offsets = [0, 32], sizes = [2, 32], strides = [1, 1]} : vector<2x96xf32> to vector<2x32xf32>
    %262 = vector.extract_strided_slice %252 {offsets = [0, 32], sizes = [2, 32], strides = [1, 1]} : vector<2x96xf32> to vector<2x32xf32>
    %263 = arith.addf %261, %262 : vector<2x32xf32>
    %264 = arith.negf %263 : vector<2x32xf32>
    %265 = math.exp %264 : vector<2x32xf32>
    %cst_82 = arith.constant 1.000000e+00 : f32
    %266 = vector.broadcast %cst_82 : f32 to vector<2x32xf32>
    %267 = arith.addf %266, %265 : vector<2x32xf32>
    %268 = arith.divf %266, %267 : vector<2x32xf32>
    %269 = vector.extract_strided_slice %251 {offsets = [0, 64], sizes = [2, 32], strides = [1, 1]} : vector<2x96xf32> to vector<2x32xf32>
    %270 = vector.extract_strided_slice %252 {offsets = [0, 64], sizes = [2, 32], strides = [1, 1]} : vector<2x96xf32> to vector<2x32xf32>
    %271 = arith.addf %270, %99 : vector<2x32xf32>
    %272 = arith.mulf %260, %271 : vector<2x32xf32>
    %273 = arith.addf %269, %272 : vector<2x32xf32>
    %274 = math.tanh %273 : vector<2x32xf32>
    %cst_83 = arith.constant 1.000000e+00 : f32
    %275 = vector.broadcast %cst_83 : f32 to vector<2x32xf32>
    %276 = arith.subf %275, %268 : vector<2x32xf32>
    %277 = arith.mulf %276, %274 : vector<2x32xf32>
    %278 = arith.mulf %268, %221 : vector<2x32xf32>
    %279 = arith.addf %277, %278 : vector<2x32xf32>
    %280 = vector.extract_strided_slice %71 {offsets = [6, 0], sizes = [2, 96], strides = [1, 1]} : vector<16x96xf32> to vector<2x96xf32>
    %cst_84 = arith.constant dense<0.000000e+00> : vector<2x96xf32>
    %281 = tpu.matmul %250, %87, %cst_84 {dimension_numbers = #tpu.dot_dimension_numbers<[1], [0], [0], [1], [0, 0, 1, 1], [], []>} : vector<2x32xf32>, vector<32x96xf32>, vector<2x96xf32> -> vector<2x96xf32>
    %282 = vector.extract_strided_slice %280 {offsets = [0, 0], sizes = [2, 32], strides = [1, 1]} : vector<2x96xf32> to vector<2x32xf32>
    %283 = vector.extract_strided_slice %281 {offsets = [0, 0], sizes = [2, 32], strides = [1, 1]} : vector<2x96xf32> to vector<2x32xf32>
    %284 = arith.addf %282, %283 : vector<2x32xf32>
    %285 = arith.negf %284 : vector<2x32xf32>
    %286 = math.exp %285 : vector<2x32xf32>
    %cst_85 = arith.constant 1.000000e+00 : f32
    %287 = vector.broadcast %cst_85 : f32 to vector<2x32xf32>
    %288 = arith.addf %287, %286 : vector<2x32xf32>
    %289 = arith.divf %287, %288 : vector<2x32xf32>
    %290 = vector.extract_strided_slice %280 {offsets = [0, 32], sizes = [2, 32], strides = [1, 1]} : vector<2x96xf32> to vector<2x32xf32>
    %291 = vector.extract_strided_slice %281 {offsets = [0, 32], sizes = [2, 32], strides = [1, 1]} : vector<2x96xf32> to vector<2x32xf32>
    %292 = arith.addf %290, %291 : vector<2x32xf32>
    %293 = arith.negf %292 : vector<2x32xf32>
    %294 = math.exp %293 : vector<2x32xf32>
    %cst_86 = arith.constant 1.000000e+00 : f32
    %295 = vector.broadcast %cst_86 : f32 to vector<2x32xf32>
    %296 = arith.addf %295, %294 : vector<2x32xf32>
    %297 = arith.divf %295, %296 : vector<2x32xf32>
    %298 = vector.extract_strided_slice %280 {offsets = [0, 64], sizes = [2, 32], strides = [1, 1]} : vector<2x96xf32> to vector<2x32xf32>
    %299 = vector.extract_strided_slice %281 {offsets = [0, 64], sizes = [2, 32], strides = [1, 1]} : vector<2x96xf32> to vector<2x32xf32>
    %300 = arith.addf %299, %95 : vector<2x32xf32>
    %301 = arith.mulf %289, %300 : vector<2x32xf32>
    %302 = arith.addf %298, %301 : vector<2x32xf32>
    %303 = math.tanh %302 : vector<2x32xf32>
    %cst_87 = arith.constant 1.000000e+00 : f32
    %304 = vector.broadcast %cst_87 : f32 to vector<2x32xf32>
    %305 = arith.subf %304, %297 : vector<2x32xf32>
    %306 = arith.mulf %305, %303 : vector<2x32xf32>
    %307 = arith.mulf %297, %250 : vector<2x32xf32>
    %308 = arith.addf %306, %307 : vector<2x32xf32>
    %309 = vector.extract_strided_slice %78 {offsets = [6, 0], sizes = [2, 96], strides = [1, 1]} : vector<16x96xf32> to vector<2x96xf32>
    %cst_88 = arith.constant dense<0.000000e+00> : vector<2x96xf32>
    %310 = tpu.matmul %279, %89, %cst_88 {dimension_numbers = #tpu.dot_dimension_numbers<[1], [0], [0], [1], [0, 0, 1, 1], [], []>} : vector<2x32xf32>, vector<32x96xf32>, vector<2x96xf32> -> vector<2x96xf32>
    %311 = vector.extract_strided_slice %309 {offsets = [0, 0], sizes = [2, 32], strides = [1, 1]} : vector<2x96xf32> to vector<2x32xf32>
    %312 = vector.extract_strided_slice %310 {offsets = [0, 0], sizes = [2, 32], strides = [1, 1]} : vector<2x96xf32> to vector<2x32xf32>
    %313 = arith.addf %311, %312 : vector<2x32xf32>
    %314 = arith.negf %313 : vector<2x32xf32>
    %315 = math.exp %314 : vector<2x32xf32>
    %cst_89 = arith.constant 1.000000e+00 : f32
    %316 = vector.broadcast %cst_89 : f32 to vector<2x32xf32>
    %317 = arith.addf %316, %315 : vector<2x32xf32>
    %318 = arith.divf %316, %317 : vector<2x32xf32>
    %319 = vector.extract_strided_slice %309 {offsets = [0, 32], sizes = [2, 32], strides = [1, 1]} : vector<2x96xf32> to vector<2x32xf32>
    %320 = vector.extract_strided_slice %310 {offsets = [0, 32], sizes = [2, 32], strides = [1, 1]} : vector<2x96xf32> to vector<2x32xf32>
    %321 = arith.addf %319, %320 : vector<2x32xf32>
    %322 = arith.negf %321 : vector<2x32xf32>
    %323 = math.exp %322 : vector<2x32xf32>
    %cst_90 = arith.constant 1.000000e+00 : f32
    %324 = vector.broadcast %cst_90 : f32 to vector<2x32xf32>
    %325 = arith.addf %324, %323 : vector<2x32xf32>
    %326 = arith.divf %324, %325 : vector<2x32xf32>
    %327 = vector.extract_strided_slice %309 {offsets = [0, 64], sizes = [2, 32], strides = [1, 1]} : vector<2x96xf32> to vector<2x32xf32>
    %328 = vector.extract_strided_slice %310 {offsets = [0, 64], sizes = [2, 32], strides = [1, 1]} : vector<2x96xf32> to vector<2x32xf32>
    %329 = arith.addf %328, %99 : vector<2x32xf32>
    %330 = arith.mulf %318, %329 : vector<2x32xf32>
    %331 = arith.addf %327, %330 : vector<2x32xf32>
    %332 = math.tanh %331 : vector<2x32xf32>
    %cst_91 = arith.constant 1.000000e+00 : f32
    %333 = vector.broadcast %cst_91 : f32 to vector<2x32xf32>
    %334 = arith.subf %333, %326 : vector<2x32xf32>
    %335 = arith.mulf %334, %332 : vector<2x32xf32>
    %336 = arith.mulf %326, %279 : vector<2x32xf32>
    %337 = arith.addf %335, %336 : vector<2x32xf32>
    %338 = vector.extract_strided_slice %71 {offsets = [8, 0], sizes = [2, 96], strides = [1, 1]} : vector<16x96xf32> to vector<2x96xf32>
    %cst_92 = arith.constant dense<0.000000e+00> : vector<2x96xf32>
    %339 = tpu.matmul %308, %87, %cst_92 {dimension_numbers = #tpu.dot_dimension_numbers<[1], [0], [0], [1], [0, 0, 1, 1], [], []>} : vector<2x32xf32>, vector<32x96xf32>, vector<2x96xf32> -> vector<2x96xf32>
    %340 = vector.extract_strided_slice %338 {offsets = [0, 0], sizes = [2, 32], strides = [1, 1]} : vector<2x96xf32> to vector<2x32xf32>
    %341 = vector.extract_strided_slice %339 {offsets = [0, 0], sizes = [2, 32], strides = [1, 1]} : vector<2x96xf32> to vector<2x32xf32>
    %342 = arith.addf %340, %341 : vector<2x32xf32>
    %343 = arith.negf %342 : vector<2x32xf32>
    %344 = math.exp %343 : vector<2x32xf32>
    %cst_93 = arith.constant 1.000000e+00 : f32
    %345 = vector.broadcast %cst_93 : f32 to vector<2x32xf32>
    %346 = arith.addf %345, %344 : vector<2x32xf32>
    %347 = arith.divf %345, %346 : vector<2x32xf32>
    %348 = vector.extract_strided_slice %338 {offsets = [0, 32], sizes = [2, 32], strides = [1, 1]} : vector<2x96xf32> to vector<2x32xf32>
    %349 = vector.extract_strided_slice %339 {offsets = [0, 32], sizes = [2, 32], strides = [1, 1]} : vector<2x96xf32> to vector<2x32xf32>
    %350 = arith.addf %348, %349 : vector<2x32xf32>
    %351 = arith.negf %350 : vector<2x32xf32>
    %352 = math.exp %351 : vector<2x32xf32>
    %cst_94 = arith.constant 1.000000e+00 : f32
    %353 = vector.broadcast %cst_94 : f32 to vector<2x32xf32>
    %354 = arith.addf %353, %352 : vector<2x32xf32>
    %355 = arith.divf %353, %354 : vector<2x32xf32>
    %356 = vector.extract_strided_slice %338 {offsets = [0, 64], sizes = [2, 32], strides = [1, 1]} : vector<2x96xf32> to vector<2x32xf32>
    %357 = vector.extract_strided_slice %339 {offsets = [0, 64], sizes = [2, 32], strides = [1, 1]} : vector<2x96xf32> to vector<2x32xf32>
    %358 = arith.addf %357, %95 : vector<2x32xf32>
    %359 = arith.mulf %347, %358 : vector<2x32xf32>
    %360 = arith.addf %356, %359 : vector<2x32xf32>
    %361 = math.tanh %360 : vector<2x32xf32>
    %cst_95 = arith.constant 1.000000e+00 : f32
    %362 = vector.broadcast %cst_95 : f32 to vector<2x32xf32>
    %363 = arith.subf %362, %355 : vector<2x32xf32>
    %364 = arith.mulf %363, %361 : vector<2x32xf32>
    %365 = arith.mulf %355, %308 : vector<2x32xf32>
    %366 = arith.addf %364, %365 : vector<2x32xf32>
    %367 = vector.extract_strided_slice %78 {offsets = [8, 0], sizes = [2, 96], strides = [1, 1]} : vector<16x96xf32> to vector<2x96xf32>
    %cst_96 = arith.constant dense<0.000000e+00> : vector<2x96xf32>
    %368 = tpu.matmul %337, %89, %cst_96 {dimension_numbers = #tpu.dot_dimension_numbers<[1], [0], [0], [1], [0, 0, 1, 1], [], []>} : vector<2x32xf32>, vector<32x96xf32>, vector<2x96xf32> -> vector<2x96xf32>
    %369 = vector.extract_strided_slice %367 {offsets = [0, 0], sizes = [2, 32], strides = [1, 1]} : vector<2x96xf32> to vector<2x32xf32>
    %370 = vector.extract_strided_slice %368 {offsets = [0, 0], sizes = [2, 32], strides = [1, 1]} : vector<2x96xf32> to vector<2x32xf32>
    %371 = arith.addf %369, %370 : vector<2x32xf32>
    %372 = arith.negf %371 : vector<2x32xf32>
    %373 = math.exp %372 : vector<2x32xf32>
    %cst_97 = arith.constant 1.000000e+00 : f32
    %374 = vector.broadcast %cst_97 : f32 to vector<2x32xf32>
    %375 = arith.addf %374, %373 : vector<2x32xf32>
    %376 = arith.divf %374, %375 : vector<2x32xf32>
    %377 = vector.extract_strided_slice %367 {offsets = [0, 32], sizes = [2, 32], strides = [1, 1]} : vector<2x96xf32> to vector<2x32xf32>
    %378 = vector.extract_strided_slice %368 {offsets = [0, 32], sizes = [2, 32], strides = [1, 1]} : vector<2x96xf32> to vector<2x32xf32>
    %379 = arith.addf %377, %378 : vector<2x32xf32>
    %380 = arith.negf %379 : vector<2x32xf32>
    %381 = math.exp %380 : vector<2x32xf32>
    %cst_98 = arith.constant 1.000000e+00 : f32
    %382 = vector.broadcast %cst_98 : f32 to vector<2x32xf32>
    %383 = arith.addf %382, %381 : vector<2x32xf32>
    %384 = arith.divf %382, %383 : vector<2x32xf32>
    %385 = vector.extract_strided_slice %367 {offsets = [0, 64], sizes = [2, 32], strides = [1, 1]} : vector<2x96xf32> to vector<2x32xf32>
    %386 = vector.extract_strided_slice %368 {offsets = [0, 64], sizes = [2, 32], strides = [1, 1]} : vector<2x96xf32> to vector<2x32xf32>
    %387 = arith.addf %386, %99 : vector<2x32xf32>
    %388 = arith.mulf %376, %387 : vector<2x32xf32>
    %389 = arith.addf %385, %388 : vector<2x32xf32>
    %390 = math.tanh %389 : vector<2x32xf32>
    %cst_99 = arith.constant 1.000000e+00 : f32
    %391 = vector.broadcast %cst_99 : f32 to vector<2x32xf32>
    %392 = arith.subf %391, %384 : vector<2x32xf32>
    %393 = arith.mulf %392, %390 : vector<2x32xf32>
    %394 = arith.mulf %384, %337 : vector<2x32xf32>
    %395 = arith.addf %393, %394 : vector<2x32xf32>
    %396 = vector.extract_strided_slice %71 {offsets = [10, 0], sizes = [2, 96], strides = [1, 1]} : vector<16x96xf32> to vector<2x96xf32>
    %cst_100 = arith.constant dense<0.000000e+00> : vector<2x96xf32>
    %397 = tpu.matmul %366, %87, %cst_100 {dimension_numbers = #tpu.dot_dimension_numbers<[1], [0], [0], [1], [0, 0, 1, 1], [], []>} : vector<2x32xf32>, vector<32x96xf32>, vector<2x96xf32> -> vector<2x96xf32>
    %398 = vector.extract_strided_slice %396 {offsets = [0, 0], sizes = [2, 32], strides = [1, 1]} : vector<2x96xf32> to vector<2x32xf32>
    %399 = vector.extract_strided_slice %397 {offsets = [0, 0], sizes = [2, 32], strides = [1, 1]} : vector<2x96xf32> to vector<2x32xf32>
    %400 = arith.addf %398, %399 : vector<2x32xf32>
    %401 = arith.negf %400 : vector<2x32xf32>
    %402 = math.exp %401 : vector<2x32xf32>
    %cst_101 = arith.constant 1.000000e+00 : f32
    %403 = vector.broadcast %cst_101 : f32 to vector<2x32xf32>
    %404 = arith.addf %403, %402 : vector<2x32xf32>
    %405 = arith.divf %403, %404 : vector<2x32xf32>
    %406 = vector.extract_strided_slice %396 {offsets = [0, 32], sizes = [2, 32], strides = [1, 1]} : vector<2x96xf32> to vector<2x32xf32>
    %407 = vector.extract_strided_slice %397 {offsets = [0, 32], sizes = [2, 32], strides = [1, 1]} : vector<2x96xf32> to vector<2x32xf32>
    %408 = arith.addf %406, %407 : vector<2x32xf32>
    %409 = arith.negf %408 : vector<2x32xf32>
    %410 = math.exp %409 : vector<2x32xf32>
    %cst_102 = arith.constant 1.000000e+00 : f32
    %411 = vector.broadcast %cst_102 : f32 to vector<2x32xf32>
    %412 = arith.addf %411, %410 : vector<2x32xf32>
    %413 = arith.divf %411, %412 : vector<2x32xf32>
    %414 = vector.extract_strided_slice %396 {offsets = [0, 64], sizes = [2, 32], strides = [1, 1]} : vector<2x96xf32> to vector<2x32xf32>
    %415 = vector.extract_strided_slice %397 {offsets = [0, 64], sizes = [2, 32], strides = [1, 1]} : vector<2x96xf32> to vector<2x32xf32>
    %416 = arith.addf %415, %95 : vector<2x32xf32>
    %417 = arith.mulf %405, %416 : vector<2x32xf32>
    %418 = arith.addf %414, %417 : vector<2x32xf32>
    %419 = math.tanh %418 : vector<2x32xf32>
    %cst_103 = arith.constant 1.000000e+00 : f32
    %420 = vector.broadcast %cst_103 : f32 to vector<2x32xf32>
    %421 = arith.subf %420, %413 : vector<2x32xf32>
    %422 = arith.mulf %421, %419 : vector<2x32xf32>
    %423 = arith.mulf %413, %366 : vector<2x32xf32>
    %424 = arith.addf %422, %423 : vector<2x32xf32>
    %425 = vector.extract_strided_slice %78 {offsets = [10, 0], sizes = [2, 96], strides = [1, 1]} : vector<16x96xf32> to vector<2x96xf32>
    %cst_104 = arith.constant dense<0.000000e+00> : vector<2x96xf32>
    %426 = tpu.matmul %395, %89, %cst_104 {dimension_numbers = #tpu.dot_dimension_numbers<[1], [0], [0], [1], [0, 0, 1, 1], [], []>} : vector<2x32xf32>, vector<32x96xf32>, vector<2x96xf32> -> vector<2x96xf32>
    %427 = vector.extract_strided_slice %425 {offsets = [0, 0], sizes = [2, 32], strides = [1, 1]} : vector<2x96xf32> to vector<2x32xf32>
    %428 = vector.extract_strided_slice %426 {offsets = [0, 0], sizes = [2, 32], strides = [1, 1]} : vector<2x96xf32> to vector<2x32xf32>
    %429 = arith.addf %427, %428 : vector<2x32xf32>
    %430 = arith.negf %429 : vector<2x32xf32>
    %431 = math.exp %430 : vector<2x32xf32>
    %cst_105 = arith.constant 1.000000e+00 : f32
    %432 = vector.broadcast %cst_105 : f32 to vector<2x32xf32>
    %433 = arith.addf %432, %431 : vector<2x32xf32>
    %434 = arith.divf %432, %433 : vector<2x32xf32>
    %435 = vector.extract_strided_slice %425 {offsets = [0, 32], sizes = [2, 32], strides = [1, 1]} : vector<2x96xf32> to vector<2x32xf32>
    %436 = vector.extract_strided_slice %426 {offsets = [0, 32], sizes = [2, 32], strides = [1, 1]} : vector<2x96xf32> to vector<2x32xf32>
    %437 = arith.addf %435, %436 : vector<2x32xf32>
    %438 = arith.negf %437 : vector<2x32xf32>
    %439 = math.exp %438 : vector<2x32xf32>
    %cst_106 = arith.constant 1.000000e+00 : f32
    %440 = vector.broadcast %cst_106 : f32 to vector<2x32xf32>
    %441 = arith.addf %440, %439 : vector<2x32xf32>
    %442 = arith.divf %440, %441 : vector<2x32xf32>
    %443 = vector.extract_strided_slice %425 {offsets = [0, 64], sizes = [2, 32], strides = [1, 1]} : vector<2x96xf32> to vector<2x32xf32>
    %444 = vector.extract_strided_slice %426 {offsets = [0, 64], sizes = [2, 32], strides = [1, 1]} : vector<2x96xf32> to vector<2x32xf32>
    %445 = arith.addf %444, %99 : vector<2x32xf32>
    %446 = arith.mulf %434, %445 : vector<2x32xf32>
    %447 = arith.addf %443, %446 : vector<2x32xf32>
    %448 = math.tanh %447 : vector<2x32xf32>
    %cst_107 = arith.constant 1.000000e+00 : f32
    %449 = vector.broadcast %cst_107 : f32 to vector<2x32xf32>
    %450 = arith.subf %449, %442 : vector<2x32xf32>
    %451 = arith.mulf %450, %448 : vector<2x32xf32>
    %452 = arith.mulf %442, %395 : vector<2x32xf32>
    %453 = arith.addf %451, %452 : vector<2x32xf32>
    %454 = vector.extract_strided_slice %71 {offsets = [12, 0], sizes = [2, 96], strides = [1, 1]} : vector<16x96xf32> to vector<2x96xf32>
    %cst_108 = arith.constant dense<0.000000e+00> : vector<2x96xf32>
    %455 = tpu.matmul %424, %87, %cst_108 {dimension_numbers = #tpu.dot_dimension_numbers<[1], [0], [0], [1], [0, 0, 1, 1], [], []>} : vector<2x32xf32>, vector<32x96xf32>, vector<2x96xf32> -> vector<2x96xf32>
    %456 = vector.extract_strided_slice %454 {offsets = [0, 0], sizes = [2, 32], strides = [1, 1]} : vector<2x96xf32> to vector<2x32xf32>
    %457 = vector.extract_strided_slice %455 {offsets = [0, 0], sizes = [2, 32], strides = [1, 1]} : vector<2x96xf32> to vector<2x32xf32>
    %458 = arith.addf %456, %457 : vector<2x32xf32>
    %459 = arith.negf %458 : vector<2x32xf32>
    %460 = math.exp %459 : vector<2x32xf32>
    %cst_109 = arith.constant 1.000000e+00 : f32
    %461 = vector.broadcast %cst_109 : f32 to vector<2x32xf32>
    %462 = arith.addf %461, %460 : vector<2x32xf32>
    %463 = arith.divf %461, %462 : vector<2x32xf32>
    %464 = vector.extract_strided_slice %454 {offsets = [0, 32], sizes = [2, 32], strides = [1, 1]} : vector<2x96xf32> to vector<2x32xf32>
    %465 = vector.extract_strided_slice %455 {offsets = [0, 32], sizes = [2, 32], strides = [1, 1]} : vector<2x96xf32> to vector<2x32xf32>
    %466 = arith.addf %464, %465 : vector<2x32xf32>
    %467 = arith.negf %466 : vector<2x32xf32>
    %468 = math.exp %467 : vector<2x32xf32>
    %cst_110 = arith.constant 1.000000e+00 : f32
    %469 = vector.broadcast %cst_110 : f32 to vector<2x32xf32>
    %470 = arith.addf %469, %468 : vector<2x32xf32>
    %471 = arith.divf %469, %470 : vector<2x32xf32>
    %472 = vector.extract_strided_slice %454 {offsets = [0, 64], sizes = [2, 32], strides = [1, 1]} : vector<2x96xf32> to vector<2x32xf32>
    %473 = vector.extract_strided_slice %455 {offsets = [0, 64], sizes = [2, 32], strides = [1, 1]} : vector<2x96xf32> to vector<2x32xf32>
    %474 = arith.addf %473, %95 : vector<2x32xf32>
    %475 = arith.mulf %463, %474 : vector<2x32xf32>
    %476 = arith.addf %472, %475 : vector<2x32xf32>
    %477 = math.tanh %476 : vector<2x32xf32>
    %cst_111 = arith.constant 1.000000e+00 : f32
    %478 = vector.broadcast %cst_111 : f32 to vector<2x32xf32>
    %479 = arith.subf %478, %471 : vector<2x32xf32>
    %480 = arith.mulf %479, %477 : vector<2x32xf32>
    %481 = arith.mulf %471, %424 : vector<2x32xf32>
    %482 = arith.addf %480, %481 : vector<2x32xf32>
    %483 = vector.extract_strided_slice %78 {offsets = [12, 0], sizes = [2, 96], strides = [1, 1]} : vector<16x96xf32> to vector<2x96xf32>
    %cst_112 = arith.constant dense<0.000000e+00> : vector<2x96xf32>
    %484 = tpu.matmul %453, %89, %cst_112 {dimension_numbers = #tpu.dot_dimension_numbers<[1], [0], [0], [1], [0, 0, 1, 1], [], []>} : vector<2x32xf32>, vector<32x96xf32>, vector<2x96xf32> -> vector<2x96xf32>
    %485 = vector.extract_strided_slice %483 {offsets = [0, 0], sizes = [2, 32], strides = [1, 1]} : vector<2x96xf32> to vector<2x32xf32>
    %486 = vector.extract_strided_slice %484 {offsets = [0, 0], sizes = [2, 32], strides = [1, 1]} : vector<2x96xf32> to vector<2x32xf32>
    %487 = arith.addf %485, %486 : vector<2x32xf32>
    %488 = arith.negf %487 : vector<2x32xf32>
    %489 = math.exp %488 : vector<2x32xf32>
    %cst_113 = arith.constant 1.000000e+00 : f32
    %490 = vector.broadcast %cst_113 : f32 to vector<2x32xf32>
    %491 = arith.addf %490, %489 : vector<2x32xf32>
    %492 = arith.divf %490, %491 : vector<2x32xf32>
    %493 = vector.extract_strided_slice %483 {offsets = [0, 32], sizes = [2, 32], strides = [1, 1]} : vector<2x96xf32> to vector<2x32xf32>
    %494 = vector.extract_strided_slice %484 {offsets = [0, 32], sizes = [2, 32], strides = [1, 1]} : vector<2x96xf32> to vector<2x32xf32>
    %495 = arith.addf %493, %494 : vector<2x32xf32>
    %496 = arith.negf %495 : vector<2x32xf32>
    %497 = math.exp %496 : vector<2x32xf32>
    %cst_114 = arith.constant 1.000000e+00 : f32
    %498 = vector.broadcast %cst_114 : f32 to vector<2x32xf32>
    %499 = arith.addf %498, %497 : vector<2x32xf32>
    %500 = arith.divf %498, %499 : vector<2x32xf32>
    %501 = vector.extract_strided_slice %483 {offsets = [0, 64], sizes = [2, 32], strides = [1, 1]} : vector<2x96xf32> to vector<2x32xf32>
    %502 = vector.extract_strided_slice %484 {offsets = [0, 64], sizes = [2, 32], strides = [1, 1]} : vector<2x96xf32> to vector<2x32xf32>
    %503 = arith.addf %502, %99 : vector<2x32xf32>
    %504 = arith.mulf %492, %503 : vector<2x32xf32>
    %505 = arith.addf %501, %504 : vector<2x32xf32>
    %506 = math.tanh %505 : vector<2x32xf32>
    %cst_115 = arith.constant 1.000000e+00 : f32
    %507 = vector.broadcast %cst_115 : f32 to vector<2x32xf32>
    %508 = arith.subf %507, %500 : vector<2x32xf32>
    %509 = arith.mulf %508, %506 : vector<2x32xf32>
    %510 = arith.mulf %500, %453 : vector<2x32xf32>
    %511 = arith.addf %509, %510 : vector<2x32xf32>
    %512 = vector.extract_strided_slice %71 {offsets = [14, 0], sizes = [2, 96], strides = [1, 1]} : vector<16x96xf32> to vector<2x96xf32>
    %cst_116 = arith.constant dense<0.000000e+00> : vector<2x96xf32>
    %513 = tpu.matmul %482, %87, %cst_116 {dimension_numbers = #tpu.dot_dimension_numbers<[1], [0], [0], [1], [0, 0, 1, 1], [], []>} : vector<2x32xf32>, vector<32x96xf32>, vector<2x96xf32> -> vector<2x96xf32>
    %514 = vector.extract_strided_slice %512 {offsets = [0, 0], sizes = [2, 32], strides = [1, 1]} : vector<2x96xf32> to vector<2x32xf32>
    %515 = vector.extract_strided_slice %513 {offsets = [0, 0], sizes = [2, 32], strides = [1, 1]} : vector<2x96xf32> to vector<2x32xf32>
    %516 = arith.addf %514, %515 : vector<2x32xf32>
    %517 = arith.negf %516 : vector<2x32xf32>
    %518 = math.exp %517 : vector<2x32xf32>
    %cst_117 = arith.constant 1.000000e+00 : f32
    %519 = vector.broadcast %cst_117 : f32 to vector<2x32xf32>
    %520 = arith.addf %519, %518 : vector<2x32xf32>
    %521 = arith.divf %519, %520 : vector<2x32xf32>
    %522 = vector.extract_strided_slice %512 {offsets = [0, 32], sizes = [2, 32], strides = [1, 1]} : vector<2x96xf32> to vector<2x32xf32>
    %523 = vector.extract_strided_slice %513 {offsets = [0, 32], sizes = [2, 32], strides = [1, 1]} : vector<2x96xf32> to vector<2x32xf32>
    %524 = arith.addf %522, %523 : vector<2x32xf32>
    %525 = arith.negf %524 : vector<2x32xf32>
    %526 = math.exp %525 : vector<2x32xf32>
    %cst_118 = arith.constant 1.000000e+00 : f32
    %527 = vector.broadcast %cst_118 : f32 to vector<2x32xf32>
    %528 = arith.addf %527, %526 : vector<2x32xf32>
    %529 = arith.divf %527, %528 : vector<2x32xf32>
    %530 = vector.extract_strided_slice %512 {offsets = [0, 64], sizes = [2, 32], strides = [1, 1]} : vector<2x96xf32> to vector<2x32xf32>
    %531 = vector.extract_strided_slice %513 {offsets = [0, 64], sizes = [2, 32], strides = [1, 1]} : vector<2x96xf32> to vector<2x32xf32>
    %532 = arith.addf %531, %95 : vector<2x32xf32>
    %533 = arith.mulf %521, %532 : vector<2x32xf32>
    %534 = arith.addf %530, %533 : vector<2x32xf32>
    %535 = math.tanh %534 : vector<2x32xf32>
    %cst_119 = arith.constant 1.000000e+00 : f32
    %536 = vector.broadcast %cst_119 : f32 to vector<2x32xf32>
    %537 = arith.subf %536, %529 : vector<2x32xf32>
    %538 = arith.mulf %537, %535 : vector<2x32xf32>
    %539 = arith.mulf %529, %482 : vector<2x32xf32>
    %540 = arith.addf %538, %539 : vector<2x32xf32>
    %541 = vector.extract_strided_slice %78 {offsets = [14, 0], sizes = [2, 96], strides = [1, 1]} : vector<16x96xf32> to vector<2x96xf32>
    %cst_120 = arith.constant dense<0.000000e+00> : vector<2x96xf32>
    %542 = tpu.matmul %511, %89, %cst_120 {dimension_numbers = #tpu.dot_dimension_numbers<[1], [0], [0], [1], [0, 0, 1, 1], [], []>} : vector<2x32xf32>, vector<32x96xf32>, vector<2x96xf32> -> vector<2x96xf32>
    %543 = vector.extract_strided_slice %541 {offsets = [0, 0], sizes = [2, 32], strides = [1, 1]} : vector<2x96xf32> to vector<2x32xf32>
    %544 = vector.extract_strided_slice %542 {offsets = [0, 0], sizes = [2, 32], strides = [1, 1]} : vector<2x96xf32> to vector<2x32xf32>
    %545 = arith.addf %543, %544 : vector<2x32xf32>
    %546 = arith.negf %545 : vector<2x32xf32>
    %547 = math.exp %546 : vector<2x32xf32>
    %cst_121 = arith.constant 1.000000e+00 : f32
    %548 = vector.broadcast %cst_121 : f32 to vector<2x32xf32>
    %549 = arith.addf %548, %547 : vector<2x32xf32>
    %550 = arith.divf %548, %549 : vector<2x32xf32>
    %551 = vector.extract_strided_slice %541 {offsets = [0, 32], sizes = [2, 32], strides = [1, 1]} : vector<2x96xf32> to vector<2x32xf32>
    %552 = vector.extract_strided_slice %542 {offsets = [0, 32], sizes = [2, 32], strides = [1, 1]} : vector<2x96xf32> to vector<2x32xf32>
    %553 = arith.addf %551, %552 : vector<2x32xf32>
    %554 = arith.negf %553 : vector<2x32xf32>
    %555 = math.exp %554 : vector<2x32xf32>
    %cst_122 = arith.constant 1.000000e+00 : f32
    %556 = vector.broadcast %cst_122 : f32 to vector<2x32xf32>
    %557 = arith.addf %556, %555 : vector<2x32xf32>
    %558 = arith.divf %556, %557 : vector<2x32xf32>
    %559 = vector.extract_strided_slice %541 {offsets = [0, 64], sizes = [2, 32], strides = [1, 1]} : vector<2x96xf32> to vector<2x32xf32>
    %560 = vector.extract_strided_slice %542 {offsets = [0, 64], sizes = [2, 32], strides = [1, 1]} : vector<2x96xf32> to vector<2x32xf32>
    %561 = arith.addf %560, %99 : vector<2x32xf32>
    %562 = arith.mulf %550, %561 : vector<2x32xf32>
    %563 = arith.addf %559, %562 : vector<2x32xf32>
    %564 = math.tanh %563 : vector<2x32xf32>
    %cst_123 = arith.constant 1.000000e+00 : f32
    %565 = vector.broadcast %cst_123 : f32 to vector<2x32xf32>
    %566 = arith.subf %565, %558 : vector<2x32xf32>
    %567 = arith.mulf %566, %564 : vector<2x32xf32>
    %568 = arith.mulf %558, %511 : vector<2x32xf32>
    %569 = arith.addf %567, %568 : vector<2x32xf32>
    %570 = tpu.concatenate %134, %192, %250, %308, %366, %424, %482, %540, %163, %221, %279, %337, %395, %453, %511, %569 in 0 : vector<2x32xf32>, vector<2x32xf32>, vector<2x32xf32>, vector<2x32xf32>, vector<2x32xf32>, vector<2x32xf32>, vector<2x32xf32>, vector<2x32xf32>, vector<2x32xf32>, vector<2x32xf32>, vector<2x32xf32>, vector<2x32xf32>, vector<2x32xf32>, vector<2x32xf32>, vector<2x32xf32>, vector<2x32xf32> -> vector<32x32xf32>
    %571 = tpu.iota {dimensions = array<i32: 1>} : vector<2x32xi32>
    %572 = tpu.iota {dimensions = array<i32: 0>} : vector<2x32xi32>
    %c2_i32 = arith.constant 2 : i32
    %c0_i32 = arith.constant 0 : i32
    %573 = arith.cmpi eq, %c2_i32, %c0_i32 : i32
    %c1_i32 = arith.constant 1 : i32
    %574 = arith.select %573, %c1_i32, %c2_i32 : i32
    %575 = vector.broadcast %574 : i32 to vector<2x32xi32>
    %576 = arith.remsi %571, %575 : vector<2x32xi32>
    %c0_i32_124 = arith.constant 0 : i32
    %577 = vector.broadcast %c0_i32_124 : i32 to vector<2x32xi32>
    %578 = arith.cmpi ne, %576, %577 : vector<2x32xi32>
    %c0_i32_125 = arith.constant 0 : i32
    %579 = vector.broadcast %c0_i32_125 : i32 to vector<2x32xi32>
    %580 = arith.cmpi slt, %576, %579 : vector<2x32xi32>
    %c0_i32_126 = arith.constant 0 : i32
    %581 = arith.cmpi slt, %574, %c0_i32_126 : i32
    %582 = vector.broadcast %581 : i1 to vector<2x32xi1>
    %583 = vector.broadcast %582 : vector<2x32xi1> to vector<2x32xi1>
    %584 = arith.xori %580, %583 : vector<2x32xi1>
    %585 = arith.andi %584, %578 : vector<2x32xi1>
    %586 = vector.broadcast %574 : i32 to vector<2x32xi32>
    %587 = arith.addi %576, %586 : vector<2x32xi32>
    %588 = arith.select %585, %587, %576 : vector<2x32xi1>, vector<2x32xi32>
    %589 = arith.cmpi eq, %588, %572 : vector<2x32xi32>
    %590 = vector.extract_strided_slice %85 {offsets = [0, 0], sizes = [2, 96], strides = [1, 1]} : vector<16x96xf32> to vector<2x96xf32>
    %cst_127 = arith.constant dense<0.000000e+00> : vector<2x96xf32>
    %591 = tpu.matmul %540, %91, %cst_127 {dimension_numbers = #tpu.dot_dimension_numbers<[1], [0], [0], [1], [0, 0, 1, 1], [], []>} : vector<2x32xf32>, vector<32x96xf32>, vector<2x96xf32> -> vector<2x96xf32>
    %592 = vector.extract_strided_slice %590 {offsets = [0, 0], sizes = [2, 32], strides = [1, 1]} : vector<2x96xf32> to vector<2x32xf32>
    %593 = vector.extract_strided_slice %591 {offsets = [0, 0], sizes = [2, 32], strides = [1, 1]} : vector<2x96xf32> to vector<2x32xf32>
    %594 = arith.addf %592, %593 : vector<2x32xf32>
    %595 = arith.negf %594 : vector<2x32xf32>
    %596 = math.exp %595 : vector<2x32xf32>
    %cst_128 = arith.constant 1.000000e+00 : f32
    %597 = vector.broadcast %cst_128 : f32 to vector<2x32xf32>
    %598 = arith.addf %597, %596 : vector<2x32xf32>
    %599 = arith.divf %597, %598 : vector<2x32xf32>
    %600 = vector.extract_strided_slice %590 {offsets = [0, 32], sizes = [2, 32], strides = [1, 1]} : vector<2x96xf32> to vector<2x32xf32>
    %601 = vector.extract_strided_slice %591 {offsets = [0, 32], sizes = [2, 32], strides = [1, 1]} : vector<2x96xf32> to vector<2x32xf32>
    %602 = arith.addf %600, %601 : vector<2x32xf32>
    %603 = arith.negf %602 : vector<2x32xf32>
    %604 = math.exp %603 : vector<2x32xf32>
    %cst_129 = arith.constant 1.000000e+00 : f32
    %605 = vector.broadcast %cst_129 : f32 to vector<2x32xf32>
    %606 = arith.addf %605, %604 : vector<2x32xf32>
    %607 = arith.divf %605, %606 : vector<2x32xf32>
    %608 = vector.extract_strided_slice %590 {offsets = [0, 64], sizes = [2, 32], strides = [1, 1]} : vector<2x96xf32> to vector<2x32xf32>
    %609 = vector.extract_strided_slice %591 {offsets = [0, 64], sizes = [2, 32], strides = [1, 1]} : vector<2x96xf32> to vector<2x32xf32>
    %610 = arith.addf %609, %103 : vector<2x32xf32>
    %611 = arith.mulf %599, %610 : vector<2x32xf32>
    %612 = arith.addf %608, %611 : vector<2x32xf32>
    %613 = math.tanh %612 : vector<2x32xf32>
    %cst_130 = arith.constant 1.000000e+00 : f32
    %614 = vector.broadcast %cst_130 : f32 to vector<2x32xf32>
    %615 = arith.subf %614, %607 : vector<2x32xf32>
    %616 = arith.mulf %615, %613 : vector<2x32xf32>
    %617 = arith.mulf %607, %540 : vector<2x32xf32>
    %618 = arith.addf %616, %617 : vector<2x32xf32>
    "tpu.trace_start"() <{level = 10 : i32, message = "bh,kh->bk"}> : () -> ()
    %cst_131 = arith.constant dense<0.000000e+00> : vector<2x32xf32>
    %619 = tpu.matmul %618, %570, %cst_131 {dimension_numbers = #tpu.dot_dimension_numbers<[1], [1], [0], [0], [0, 0, 1, 0], [], []>} : vector<2x32xf32>, vector<32x32xf32>, vector<2x32xf32> -> vector<2x32xf32>
    %cst_132 = arith.constant -1.000000e+30 : f32
    "tpu.trace_stop"() : () -> ()
    %620 = vector.broadcast %cst_132 : f32 to vector<2x32xf32>
    %621 = arith.select %589, %619, %620 : vector<2x32xi1>, vector<2x32xf32>
    %cst_133 = arith.constant dense<0xFF800000> : vector<2xf32>
    %622 = vector.multi_reduction <maximumf>, %621, %cst_133 [1] : vector<2x32xf32> to vector<2xf32>
    %623 = vector.shape_cast %622 : vector<2xf32> to vector<2x1xf32>
    %624 = vector.broadcast %623 : vector<2x1xf32> to vector<2x32xf32>
    %625 = arith.subf %621, %624 : vector<2x32xf32>
    %626 = math.exp %625 : vector<2x32xf32>
    %cst_134 = arith.constant dense<0.000000e+00> : vector<2xf32>
    %627 = vector.multi_reduction <add>, %626, %cst_134 [1] : vector<2x32xf32> to vector<2xf32>
    %628 = vector.shape_cast %627 : vector<2xf32> to vector<2x1xf32>
    %629 = vector.broadcast %628 : vector<2x1xf32> to vector<2x32xf32>
    %630 = arith.divf %626, %629 : vector<2x32xf32>
    %cst_135 = arith.constant dense<0.000000e+00> : vector<2x32xf32>
    %631 = tpu.matmul %630, %570, %cst_135 {dimension_numbers = #tpu.dot_dimension_numbers<[1], [0], [0], [1], [0, 0, 1, 1], [], []>} : vector<2x32xf32>, vector<32x32xf32>, vector<2x32xf32> -> vector<2x32xf32>
    %632 = vector.extract_strided_slice %85 {offsets = [2, 0], sizes = [2, 96], strides = [1, 1]} : vector<16x96xf32> to vector<2x96xf32>
    %cst_136 = arith.constant dense<0.000000e+00> : vector<2x96xf32>
    %633 = tpu.matmul %618, %91, %cst_136 {dimension_numbers = #tpu.dot_dimension_numbers<[1], [0], [0], [1], [0, 0, 1, 1], [], []>} : vector<2x32xf32>, vector<32x96xf32>, vector<2x96xf32> -> vector<2x96xf32>
    %634 = vector.extract_strided_slice %632 {offsets = [0, 0], sizes = [2, 32], strides = [1, 1]} : vector<2x96xf32> to vector<2x32xf32>
    %635 = vector.extract_strided_slice %633 {offsets = [0, 0], sizes = [2, 32], strides = [1, 1]} : vector<2x96xf32> to vector<2x32xf32>
    %636 = arith.addf %634, %635 : vector<2x32xf32>
    %637 = arith.negf %636 : vector<2x32xf32>
    %638 = math.exp %637 : vector<2x32xf32>
    %cst_137 = arith.constant 1.000000e+00 : f32
    %639 = vector.broadcast %cst_137 : f32 to vector<2x32xf32>
    %640 = arith.addf %639, %638 : vector<2x32xf32>
    %641 = arith.divf %639, %640 : vector<2x32xf32>
    %642 = vector.extract_strided_slice %632 {offsets = [0, 32], sizes = [2, 32], strides = [1, 1]} : vector<2x96xf32> to vector<2x32xf32>
    %643 = vector.extract_strided_slice %633 {offsets = [0, 32], sizes = [2, 32], strides = [1, 1]} : vector<2x96xf32> to vector<2x32xf32>
    %644 = arith.addf %642, %643 : vector<2x32xf32>
    %645 = arith.negf %644 : vector<2x32xf32>
    %646 = math.exp %645 : vector<2x32xf32>
    %cst_138 = arith.constant 1.000000e+00 : f32
    %647 = vector.broadcast %cst_138 : f32 to vector<2x32xf32>
    %648 = arith.addf %647, %646 : vector<2x32xf32>
    %649 = arith.divf %647, %648 : vector<2x32xf32>
    %650 = vector.extract_strided_slice %632 {offsets = [0, 64], sizes = [2, 32], strides = [1, 1]} : vector<2x96xf32> to vector<2x32xf32>
    %651 = vector.extract_strided_slice %633 {offsets = [0, 64], sizes = [2, 32], strides = [1, 1]} : vector<2x96xf32> to vector<2x32xf32>
    %652 = arith.addf %651, %103 : vector<2x32xf32>
    %653 = arith.mulf %641, %652 : vector<2x32xf32>
    %654 = arith.addf %650, %653 : vector<2x32xf32>
    %655 = math.tanh %654 : vector<2x32xf32>
    %cst_139 = arith.constant 1.000000e+00 : f32
    %656 = vector.broadcast %cst_139 : f32 to vector<2x32xf32>
    %657 = arith.subf %656, %649 : vector<2x32xf32>
    %658 = arith.mulf %657, %655 : vector<2x32xf32>
    %659 = arith.mulf %649, %618 : vector<2x32xf32>
    %660 = arith.addf %658, %659 : vector<2x32xf32>
    "tpu.trace_start"() <{level = 10 : i32, message = "bh,kh->bk"}> : () -> ()
    %cst_140 = arith.constant dense<0.000000e+00> : vector<2x32xf32>
    %661 = tpu.matmul %660, %570, %cst_140 {dimension_numbers = #tpu.dot_dimension_numbers<[1], [1], [0], [0], [0, 0, 1, 0], [], []>} : vector<2x32xf32>, vector<32x32xf32>, vector<2x32xf32> -> vector<2x32xf32>
    %cst_141 = arith.constant -1.000000e+30 : f32
    "tpu.trace_stop"() : () -> ()
    %662 = vector.broadcast %cst_141 : f32 to vector<2x32xf32>
    %663 = arith.select %589, %661, %662 : vector<2x32xi1>, vector<2x32xf32>
    %cst_142 = arith.constant dense<0xFF800000> : vector<2xf32>
    %664 = vector.multi_reduction <maximumf>, %663, %cst_142 [1] : vector<2x32xf32> to vector<2xf32>
    %665 = vector.shape_cast %664 : vector<2xf32> to vector<2x1xf32>
    %666 = vector.broadcast %665 : vector<2x1xf32> to vector<2x32xf32>
    %667 = arith.subf %663, %666 : vector<2x32xf32>
    %668 = math.exp %667 : vector<2x32xf32>
    %cst_143 = arith.constant dense<0.000000e+00> : vector<2xf32>
    %669 = vector.multi_reduction <add>, %668, %cst_143 [1] : vector<2x32xf32> to vector<2xf32>
    %670 = vector.shape_cast %669 : vector<2xf32> to vector<2x1xf32>
    %671 = vector.broadcast %670 : vector<2x1xf32> to vector<2x32xf32>
    %672 = arith.divf %668, %671 : vector<2x32xf32>
    %cst_144 = arith.constant dense<0.000000e+00> : vector<2x32xf32>
    %673 = tpu.matmul %672, %570, %cst_144 {dimension_numbers = #tpu.dot_dimension_numbers<[1], [0], [0], [1], [0, 0, 1, 1], [], []>} : vector<2x32xf32>, vector<32x32xf32>, vector<2x32xf32> -> vector<2x32xf32>
    %674 = vector.extract_strided_slice %85 {offsets = [4, 0], sizes = [2, 96], strides = [1, 1]} : vector<16x96xf32> to vector<2x96xf32>
    %cst_145 = arith.constant dense<0.000000e+00> : vector<2x96xf32>
    %675 = tpu.matmul %660, %91, %cst_145 {dimension_numbers = #tpu.dot_dimension_numbers<[1], [0], [0], [1], [0, 0, 1, 1], [], []>} : vector<2x32xf32>, vector<32x96xf32>, vector<2x96xf32> -> vector<2x96xf32>
    %676 = vector.extract_strided_slice %674 {offsets = [0, 0], sizes = [2, 32], strides = [1, 1]} : vector<2x96xf32> to vector<2x32xf32>
    %677 = vector.extract_strided_slice %675 {offsets = [0, 0], sizes = [2, 32], strides = [1, 1]} : vector<2x96xf32> to vector<2x32xf32>
    %678 = arith.addf %676, %677 : vector<2x32xf32>
    %679 = arith.negf %678 : vector<2x32xf32>
    %680 = math.exp %679 : vector<2x32xf32>
    %cst_146 = arith.constant 1.000000e+00 : f32
    %681 = vector.broadcast %cst_146 : f32 to vector<2x32xf32>
    %682 = arith.addf %681, %680 : vector<2x32xf32>
    %683 = arith.divf %681, %682 : vector<2x32xf32>
    %684 = vector.extract_strided_slice %674 {offsets = [0, 32], sizes = [2, 32], strides = [1, 1]} : vector<2x96xf32> to vector<2x32xf32>
    %685 = vector.extract_strided_slice %675 {offsets = [0, 32], sizes = [2, 32], strides = [1, 1]} : vector<2x96xf32> to vector<2x32xf32>
    %686 = arith.addf %684, %685 : vector<2x32xf32>
    %687 = arith.negf %686 : vector<2x32xf32>
    %688 = math.exp %687 : vector<2x32xf32>
    %cst_147 = arith.constant 1.000000e+00 : f32
    %689 = vector.broadcast %cst_147 : f32 to vector<2x32xf32>
    %690 = arith.addf %689, %688 : vector<2x32xf32>
    %691 = arith.divf %689, %690 : vector<2x32xf32>
    %692 = vector.extract_strided_slice %674 {offsets = [0, 64], sizes = [2, 32], strides = [1, 1]} : vector<2x96xf32> to vector<2x32xf32>
    %693 = vector.extract_strided_slice %675 {offsets = [0, 64], sizes = [2, 32], strides = [1, 1]} : vector<2x96xf32> to vector<2x32xf32>
    %694 = arith.addf %693, %103 : vector<2x32xf32>
    %695 = arith.mulf %683, %694 : vector<2x32xf32>
    %696 = arith.addf %692, %695 : vector<2x32xf32>
    %697 = math.tanh %696 : vector<2x32xf32>
    %cst_148 = arith.constant 1.000000e+00 : f32
    %698 = vector.broadcast %cst_148 : f32 to vector<2x32xf32>
    %699 = arith.subf %698, %691 : vector<2x32xf32>
    %700 = arith.mulf %699, %697 : vector<2x32xf32>
    %701 = arith.mulf %691, %660 : vector<2x32xf32>
    %702 = arith.addf %700, %701 : vector<2x32xf32>
    "tpu.trace_start"() <{level = 10 : i32, message = "bh,kh->bk"}> : () -> ()
    %cst_149 = arith.constant dense<0.000000e+00> : vector<2x32xf32>
    %703 = tpu.matmul %702, %570, %cst_149 {dimension_numbers = #tpu.dot_dimension_numbers<[1], [1], [0], [0], [0, 0, 1, 0], [], []>} : vector<2x32xf32>, vector<32x32xf32>, vector<2x32xf32> -> vector<2x32xf32>
    %cst_150 = arith.constant -1.000000e+30 : f32
    "tpu.trace_stop"() : () -> ()
    %704 = vector.broadcast %cst_150 : f32 to vector<2x32xf32>
    %705 = arith.select %589, %703, %704 : vector<2x32xi1>, vector<2x32xf32>
    %cst_151 = arith.constant dense<0xFF800000> : vector<2xf32>
    %706 = vector.multi_reduction <maximumf>, %705, %cst_151 [1] : vector<2x32xf32> to vector<2xf32>
    %707 = vector.shape_cast %706 : vector<2xf32> to vector<2x1xf32>
    %708 = vector.broadcast %707 : vector<2x1xf32> to vector<2x32xf32>
    %709 = arith.subf %705, %708 : vector<2x32xf32>
    %710 = math.exp %709 : vector<2x32xf32>
    %cst_152 = arith.constant dense<0.000000e+00> : vector<2xf32>
    %711 = vector.multi_reduction <add>, %710, %cst_152 [1] : vector<2x32xf32> to vector<2xf32>
    %712 = vector.shape_cast %711 : vector<2xf32> to vector<2x1xf32>
    %713 = vector.broadcast %712 : vector<2x1xf32> to vector<2x32xf32>
    %714 = arith.divf %710, %713 : vector<2x32xf32>
    %cst_153 = arith.constant dense<0.000000e+00> : vector<2x32xf32>
    %715 = tpu.matmul %714, %570, %cst_153 {dimension_numbers = #tpu.dot_dimension_numbers<[1], [0], [0], [1], [0, 0, 1, 1], [], []>} : vector<2x32xf32>, vector<32x32xf32>, vector<2x32xf32> -> vector<2x32xf32>
    %716 = vector.extract_strided_slice %85 {offsets = [6, 0], sizes = [2, 96], strides = [1, 1]} : vector<16x96xf32> to vector<2x96xf32>
    %cst_154 = arith.constant dense<0.000000e+00> : vector<2x96xf32>
    %717 = tpu.matmul %702, %91, %cst_154 {dimension_numbers = #tpu.dot_dimension_numbers<[1], [0], [0], [1], [0, 0, 1, 1], [], []>} : vector<2x32xf32>, vector<32x96xf32>, vector<2x96xf32> -> vector<2x96xf32>
    %718 = vector.extract_strided_slice %716 {offsets = [0, 0], sizes = [2, 32], strides = [1, 1]} : vector<2x96xf32> to vector<2x32xf32>
    %719 = vector.extract_strided_slice %717 {offsets = [0, 0], sizes = [2, 32], strides = [1, 1]} : vector<2x96xf32> to vector<2x32xf32>
    %720 = arith.addf %718, %719 : vector<2x32xf32>
    %721 = arith.negf %720 : vector<2x32xf32>
    %722 = math.exp %721 : vector<2x32xf32>
    %cst_155 = arith.constant 1.000000e+00 : f32
    %723 = vector.broadcast %cst_155 : f32 to vector<2x32xf32>
    %724 = arith.addf %723, %722 : vector<2x32xf32>
    %725 = arith.divf %723, %724 : vector<2x32xf32>
    %726 = vector.extract_strided_slice %716 {offsets = [0, 32], sizes = [2, 32], strides = [1, 1]} : vector<2x96xf32> to vector<2x32xf32>
    %727 = vector.extract_strided_slice %717 {offsets = [0, 32], sizes = [2, 32], strides = [1, 1]} : vector<2x96xf32> to vector<2x32xf32>
    %728 = arith.addf %726, %727 : vector<2x32xf32>
    %729 = arith.negf %728 : vector<2x32xf32>
    %730 = math.exp %729 : vector<2x32xf32>
    %cst_156 = arith.constant 1.000000e+00 : f32
    %731 = vector.broadcast %cst_156 : f32 to vector<2x32xf32>
    %732 = arith.addf %731, %730 : vector<2x32xf32>
    %733 = arith.divf %731, %732 : vector<2x32xf32>
    %734 = vector.extract_strided_slice %716 {offsets = [0, 64], sizes = [2, 32], strides = [1, 1]} : vector<2x96xf32> to vector<2x32xf32>
    %735 = vector.extract_strided_slice %717 {offsets = [0, 64], sizes = [2, 32], strides = [1, 1]} : vector<2x96xf32> to vector<2x32xf32>
    %736 = arith.addf %735, %103 : vector<2x32xf32>
    %737 = arith.mulf %725, %736 : vector<2x32xf32>
    %738 = arith.addf %734, %737 : vector<2x32xf32>
    %739 = math.tanh %738 : vector<2x32xf32>
    %cst_157 = arith.constant 1.000000e+00 : f32
    %740 = vector.broadcast %cst_157 : f32 to vector<2x32xf32>
    %741 = arith.subf %740, %733 : vector<2x32xf32>
    %742 = arith.mulf %741, %739 : vector<2x32xf32>
    %743 = arith.mulf %733, %702 : vector<2x32xf32>
    %744 = arith.addf %742, %743 : vector<2x32xf32>
    "tpu.trace_start"() <{level = 10 : i32, message = "bh,kh->bk"}> : () -> ()
    %cst_158 = arith.constant dense<0.000000e+00> : vector<2x32xf32>
    %745 = tpu.matmul %744, %570, %cst_158 {dimension_numbers = #tpu.dot_dimension_numbers<[1], [1], [0], [0], [0, 0, 1, 0], [], []>} : vector<2x32xf32>, vector<32x32xf32>, vector<2x32xf32> -> vector<2x32xf32>
    %cst_159 = arith.constant -1.000000e+30 : f32
    "tpu.trace_stop"() : () -> ()
    %746 = vector.broadcast %cst_159 : f32 to vector<2x32xf32>
    %747 = arith.select %589, %745, %746 : vector<2x32xi1>, vector<2x32xf32>
    %cst_160 = arith.constant dense<0xFF800000> : vector<2xf32>
    %748 = vector.multi_reduction <maximumf>, %747, %cst_160 [1] : vector<2x32xf32> to vector<2xf32>
    %749 = vector.shape_cast %748 : vector<2xf32> to vector<2x1xf32>
    %750 = vector.broadcast %749 : vector<2x1xf32> to vector<2x32xf32>
    %751 = arith.subf %747, %750 : vector<2x32xf32>
    %752 = math.exp %751 : vector<2x32xf32>
    %cst_161 = arith.constant dense<0.000000e+00> : vector<2xf32>
    %753 = vector.multi_reduction <add>, %752, %cst_161 [1] : vector<2x32xf32> to vector<2xf32>
    %754 = vector.shape_cast %753 : vector<2xf32> to vector<2x1xf32>
    %755 = vector.broadcast %754 : vector<2x1xf32> to vector<2x32xf32>
    %756 = arith.divf %752, %755 : vector<2x32xf32>
    %cst_162 = arith.constant dense<0.000000e+00> : vector<2x32xf32>
    %757 = tpu.matmul %756, %570, %cst_162 {dimension_numbers = #tpu.dot_dimension_numbers<[1], [0], [0], [1], [0, 0, 1, 1], [], []>} : vector<2x32xf32>, vector<32x32xf32>, vector<2x32xf32> -> vector<2x32xf32>
    %758 = vector.extract_strided_slice %85 {offsets = [8, 0], sizes = [2, 96], strides = [1, 1]} : vector<16x96xf32> to vector<2x96xf32>
    %cst_163 = arith.constant dense<0.000000e+00> : vector<2x96xf32>
    %759 = tpu.matmul %744, %91, %cst_163 {dimension_numbers = #tpu.dot_dimension_numbers<[1], [0], [0], [1], [0, 0, 1, 1], [], []>} : vector<2x32xf32>, vector<32x96xf32>, vector<2x96xf32> -> vector<2x96xf32>
    %760 = vector.extract_strided_slice %758 {offsets = [0, 0], sizes = [2, 32], strides = [1, 1]} : vector<2x96xf32> to vector<2x32xf32>
    %761 = vector.extract_strided_slice %759 {offsets = [0, 0], sizes = [2, 32], strides = [1, 1]} : vector<2x96xf32> to vector<2x32xf32>
    %762 = arith.addf %760, %761 : vector<2x32xf32>
    %763 = arith.negf %762 : vector<2x32xf32>
    %764 = math.exp %763 : vector<2x32xf32>
    %cst_164 = arith.constant 1.000000e+00 : f32
    %765 = vector.broadcast %cst_164 : f32 to vector<2x32xf32>
    %766 = arith.addf %765, %764 : vector<2x32xf32>
    %767 = arith.divf %765, %766 : vector<2x32xf32>
    %768 = vector.extract_strided_slice %758 {offsets = [0, 32], sizes = [2, 32], strides = [1, 1]} : vector<2x96xf32> to vector<2x32xf32>
    %769 = vector.extract_strided_slice %759 {offsets = [0, 32], sizes = [2, 32], strides = [1, 1]} : vector<2x96xf32> to vector<2x32xf32>
    %770 = arith.addf %768, %769 : vector<2x32xf32>
    %771 = arith.negf %770 : vector<2x32xf32>
    %772 = math.exp %771 : vector<2x32xf32>
    %cst_165 = arith.constant 1.000000e+00 : f32
    %773 = vector.broadcast %cst_165 : f32 to vector<2x32xf32>
    %774 = arith.addf %773, %772 : vector<2x32xf32>
    %775 = arith.divf %773, %774 : vector<2x32xf32>
    %776 = vector.extract_strided_slice %758 {offsets = [0, 64], sizes = [2, 32], strides = [1, 1]} : vector<2x96xf32> to vector<2x32xf32>
    %777 = vector.extract_strided_slice %759 {offsets = [0, 64], sizes = [2, 32], strides = [1, 1]} : vector<2x96xf32> to vector<2x32xf32>
    %778 = arith.addf %777, %103 : vector<2x32xf32>
    %779 = arith.mulf %767, %778 : vector<2x32xf32>
    %780 = arith.addf %776, %779 : vector<2x32xf32>
    %781 = math.tanh %780 : vector<2x32xf32>
    %cst_166 = arith.constant 1.000000e+00 : f32
    %782 = vector.broadcast %cst_166 : f32 to vector<2x32xf32>
    %783 = arith.subf %782, %775 : vector<2x32xf32>
    %784 = arith.mulf %783, %781 : vector<2x32xf32>
    %785 = arith.mulf %775, %744 : vector<2x32xf32>
    %786 = arith.addf %784, %785 : vector<2x32xf32>
    "tpu.trace_start"() <{level = 10 : i32, message = "bh,kh->bk"}> : () -> ()
    %cst_167 = arith.constant dense<0.000000e+00> : vector<2x32xf32>
    %787 = tpu.matmul %786, %570, %cst_167 {dimension_numbers = #tpu.dot_dimension_numbers<[1], [1], [0], [0], [0, 0, 1, 0], [], []>} : vector<2x32xf32>, vector<32x32xf32>, vector<2x32xf32> -> vector<2x32xf32>
    %cst_168 = arith.constant -1.000000e+30 : f32
    "tpu.trace_stop"() : () -> ()
    %788 = vector.broadcast %cst_168 : f32 to vector<2x32xf32>
    %789 = arith.select %589, %787, %788 : vector<2x32xi1>, vector<2x32xf32>
    %cst_169 = arith.constant dense<0xFF800000> : vector<2xf32>
    %790 = vector.multi_reduction <maximumf>, %789, %cst_169 [1] : vector<2x32xf32> to vector<2xf32>
    %791 = vector.shape_cast %790 : vector<2xf32> to vector<2x1xf32>
    %792 = vector.broadcast %791 : vector<2x1xf32> to vector<2x32xf32>
    %793 = arith.subf %789, %792 : vector<2x32xf32>
    %794 = math.exp %793 : vector<2x32xf32>
    %cst_170 = arith.constant dense<0.000000e+00> : vector<2xf32>
    %795 = vector.multi_reduction <add>, %794, %cst_170 [1] : vector<2x32xf32> to vector<2xf32>
    %796 = vector.shape_cast %795 : vector<2xf32> to vector<2x1xf32>
    %797 = vector.broadcast %796 : vector<2x1xf32> to vector<2x32xf32>
    %798 = arith.divf %794, %797 : vector<2x32xf32>
    %cst_171 = arith.constant dense<0.000000e+00> : vector<2x32xf32>
    %799 = tpu.matmul %798, %570, %cst_171 {dimension_numbers = #tpu.dot_dimension_numbers<[1], [0], [0], [1], [0, 0, 1, 1], [], []>} : vector<2x32xf32>, vector<32x32xf32>, vector<2x32xf32> -> vector<2x32xf32>
    %800 = vector.extract_strided_slice %85 {offsets = [10, 0], sizes = [2, 96], strides = [1, 1]} : vector<16x96xf32> to vector<2x96xf32>
    %cst_172 = arith.constant dense<0.000000e+00> : vector<2x96xf32>
    %801 = tpu.matmul %786, %91, %cst_172 {dimension_numbers = #tpu.dot_dimension_numbers<[1], [0], [0], [1], [0, 0, 1, 1], [], []>} : vector<2x32xf32>, vector<32x96xf32>, vector<2x96xf32> -> vector<2x96xf32>
    %802 = vector.extract_strided_slice %800 {offsets = [0, 0], sizes = [2, 32], strides = [1, 1]} : vector<2x96xf32> to vector<2x32xf32>
    %803 = vector.extract_strided_slice %801 {offsets = [0, 0], sizes = [2, 32], strides = [1, 1]} : vector<2x96xf32> to vector<2x32xf32>
    %804 = arith.addf %802, %803 : vector<2x32xf32>
    %805 = arith.negf %804 : vector<2x32xf32>
    %806 = math.exp %805 : vector<2x32xf32>
    %cst_173 = arith.constant 1.000000e+00 : f32
    %807 = vector.broadcast %cst_173 : f32 to vector<2x32xf32>
    %808 = arith.addf %807, %806 : vector<2x32xf32>
    %809 = arith.divf %807, %808 : vector<2x32xf32>
    %810 = vector.extract_strided_slice %800 {offsets = [0, 32], sizes = [2, 32], strides = [1, 1]} : vector<2x96xf32> to vector<2x32xf32>
    %811 = vector.extract_strided_slice %801 {offsets = [0, 32], sizes = [2, 32], strides = [1, 1]} : vector<2x96xf32> to vector<2x32xf32>
    %812 = arith.addf %810, %811 : vector<2x32xf32>
    %813 = arith.negf %812 : vector<2x32xf32>
    %814 = math.exp %813 : vector<2x32xf32>
    %cst_174 = arith.constant 1.000000e+00 : f32
    %815 = vector.broadcast %cst_174 : f32 to vector<2x32xf32>
    %816 = arith.addf %815, %814 : vector<2x32xf32>
    %817 = arith.divf %815, %816 : vector<2x32xf32>
    %818 = vector.extract_strided_slice %800 {offsets = [0, 64], sizes = [2, 32], strides = [1, 1]} : vector<2x96xf32> to vector<2x32xf32>
    %819 = vector.extract_strided_slice %801 {offsets = [0, 64], sizes = [2, 32], strides = [1, 1]} : vector<2x96xf32> to vector<2x32xf32>
    %820 = arith.addf %819, %103 : vector<2x32xf32>
    %821 = arith.mulf %809, %820 : vector<2x32xf32>
    %822 = arith.addf %818, %821 : vector<2x32xf32>
    %823 = math.tanh %822 : vector<2x32xf32>
    %cst_175 = arith.constant 1.000000e+00 : f32
    %824 = vector.broadcast %cst_175 : f32 to vector<2x32xf32>
    %825 = arith.subf %824, %817 : vector<2x32xf32>
    %826 = arith.mulf %825, %823 : vector<2x32xf32>
    %827 = arith.mulf %817, %786 : vector<2x32xf32>
    %828 = arith.addf %826, %827 : vector<2x32xf32>
    "tpu.trace_start"() <{level = 10 : i32, message = "bh,kh->bk"}> : () -> ()
    %cst_176 = arith.constant dense<0.000000e+00> : vector<2x32xf32>
    %829 = tpu.matmul %828, %570, %cst_176 {dimension_numbers = #tpu.dot_dimension_numbers<[1], [1], [0], [0], [0, 0, 1, 0], [], []>} : vector<2x32xf32>, vector<32x32xf32>, vector<2x32xf32> -> vector<2x32xf32>
    %cst_177 = arith.constant -1.000000e+30 : f32
    "tpu.trace_stop"() : () -> ()
    %830 = vector.broadcast %cst_177 : f32 to vector<2x32xf32>
    %831 = arith.select %589, %829, %830 : vector<2x32xi1>, vector<2x32xf32>
    %cst_178 = arith.constant dense<0xFF800000> : vector<2xf32>
    %832 = vector.multi_reduction <maximumf>, %831, %cst_178 [1] : vector<2x32xf32> to vector<2xf32>
    %833 = vector.shape_cast %832 : vector<2xf32> to vector<2x1xf32>
    %834 = vector.broadcast %833 : vector<2x1xf32> to vector<2x32xf32>
    %835 = arith.subf %831, %834 : vector<2x32xf32>
    %836 = math.exp %835 : vector<2x32xf32>
    %cst_179 = arith.constant dense<0.000000e+00> : vector<2xf32>
    %837 = vector.multi_reduction <add>, %836, %cst_179 [1] : vector<2x32xf32> to vector<2xf32>
    %838 = vector.shape_cast %837 : vector<2xf32> to vector<2x1xf32>
    %839 = vector.broadcast %838 : vector<2x1xf32> to vector<2x32xf32>
    %840 = arith.divf %836, %839 : vector<2x32xf32>
    %cst_180 = arith.constant dense<0.000000e+00> : vector<2x32xf32>
    %841 = tpu.matmul %840, %570, %cst_180 {dimension_numbers = #tpu.dot_dimension_numbers<[1], [0], [0], [1], [0, 0, 1, 1], [], []>} : vector<2x32xf32>, vector<32x32xf32>, vector<2x32xf32> -> vector<2x32xf32>
    %842 = vector.extract_strided_slice %85 {offsets = [12, 0], sizes = [2, 96], strides = [1, 1]} : vector<16x96xf32> to vector<2x96xf32>
    %cst_181 = arith.constant dense<0.000000e+00> : vector<2x96xf32>
    %843 = tpu.matmul %828, %91, %cst_181 {dimension_numbers = #tpu.dot_dimension_numbers<[1], [0], [0], [1], [0, 0, 1, 1], [], []>} : vector<2x32xf32>, vector<32x96xf32>, vector<2x96xf32> -> vector<2x96xf32>
    %844 = vector.extract_strided_slice %842 {offsets = [0, 0], sizes = [2, 32], strides = [1, 1]} : vector<2x96xf32> to vector<2x32xf32>
    %845 = vector.extract_strided_slice %843 {offsets = [0, 0], sizes = [2, 32], strides = [1, 1]} : vector<2x96xf32> to vector<2x32xf32>
    %846 = arith.addf %844, %845 : vector<2x32xf32>
    %847 = arith.negf %846 : vector<2x32xf32>
    %848 = math.exp %847 : vector<2x32xf32>
    %cst_182 = arith.constant 1.000000e+00 : f32
    %849 = vector.broadcast %cst_182 : f32 to vector<2x32xf32>
    %850 = arith.addf %849, %848 : vector<2x32xf32>
    %851 = arith.divf %849, %850 : vector<2x32xf32>
    %852 = vector.extract_strided_slice %842 {offsets = [0, 32], sizes = [2, 32], strides = [1, 1]} : vector<2x96xf32> to vector<2x32xf32>
    %853 = vector.extract_strided_slice %843 {offsets = [0, 32], sizes = [2, 32], strides = [1, 1]} : vector<2x96xf32> to vector<2x32xf32>
    %854 = arith.addf %852, %853 : vector<2x32xf32>
    %855 = arith.negf %854 : vector<2x32xf32>
    %856 = math.exp %855 : vector<2x32xf32>
    %cst_183 = arith.constant 1.000000e+00 : f32
    %857 = vector.broadcast %cst_183 : f32 to vector<2x32xf32>
    %858 = arith.addf %857, %856 : vector<2x32xf32>
    %859 = arith.divf %857, %858 : vector<2x32xf32>
    %860 = vector.extract_strided_slice %842 {offsets = [0, 64], sizes = [2, 32], strides = [1, 1]} : vector<2x96xf32> to vector<2x32xf32>
    %861 = vector.extract_strided_slice %843 {offsets = [0, 64], sizes = [2, 32], strides = [1, 1]} : vector<2x96xf32> to vector<2x32xf32>
    %862 = arith.addf %861, %103 : vector<2x32xf32>
    %863 = arith.mulf %851, %862 : vector<2x32xf32>
    %864 = arith.addf %860, %863 : vector<2x32xf32>
    %865 = math.tanh %864 : vector<2x32xf32>
    %cst_184 = arith.constant 1.000000e+00 : f32
    %866 = vector.broadcast %cst_184 : f32 to vector<2x32xf32>
    %867 = arith.subf %866, %859 : vector<2x32xf32>
    %868 = arith.mulf %867, %865 : vector<2x32xf32>
    %869 = arith.mulf %859, %828 : vector<2x32xf32>
    %870 = arith.addf %868, %869 : vector<2x32xf32>
    "tpu.trace_start"() <{level = 10 : i32, message = "bh,kh->bk"}> : () -> ()
    %cst_185 = arith.constant dense<0.000000e+00> : vector<2x32xf32>
    %871 = tpu.matmul %870, %570, %cst_185 {dimension_numbers = #tpu.dot_dimension_numbers<[1], [1], [0], [0], [0, 0, 1, 0], [], []>} : vector<2x32xf32>, vector<32x32xf32>, vector<2x32xf32> -> vector<2x32xf32>
    %cst_186 = arith.constant -1.000000e+30 : f32
    "tpu.trace_stop"() : () -> ()
    %872 = vector.broadcast %cst_186 : f32 to vector<2x32xf32>
    %873 = arith.select %589, %871, %872 : vector<2x32xi1>, vector<2x32xf32>
    %cst_187 = arith.constant dense<0xFF800000> : vector<2xf32>
    %874 = vector.multi_reduction <maximumf>, %873, %cst_187 [1] : vector<2x32xf32> to vector<2xf32>
    %875 = vector.shape_cast %874 : vector<2xf32> to vector<2x1xf32>
    %876 = vector.broadcast %875 : vector<2x1xf32> to vector<2x32xf32>
    %877 = arith.subf %873, %876 : vector<2x32xf32>
    %878 = math.exp %877 : vector<2x32xf32>
    %cst_188 = arith.constant dense<0.000000e+00> : vector<2xf32>
    %879 = vector.multi_reduction <add>, %878, %cst_188 [1] : vector<2x32xf32> to vector<2xf32>
    %880 = vector.shape_cast %879 : vector<2xf32> to vector<2x1xf32>
    %881 = vector.broadcast %880 : vector<2x1xf32> to vector<2x32xf32>
    %882 = arith.divf %878, %881 : vector<2x32xf32>
    %cst_189 = arith.constant dense<0.000000e+00> : vector<2x32xf32>
    %883 = tpu.matmul %882, %570, %cst_189 {dimension_numbers = #tpu.dot_dimension_numbers<[1], [0], [0], [1], [0, 0, 1, 1], [], []>} : vector<2x32xf32>, vector<32x32xf32>, vector<2x32xf32> -> vector<2x32xf32>
    %c0_190 = arith.constant 0 : index
    %c0_191 = arith.constant 0 : index
    %884 = vector.load %arg20[%c0_190, %c0_191] : memref<2x32xf32, #tpu.memory_space<vmem>>, vector<2x32xf32>
    tpu.vector_store %arg20[%c0_190, %c0_191], %870 {strides = array<i32>} : memref<2x32xf32, #tpu.memory_space<vmem>>, vector<2x32xf32>,
    %cst_192 = arith.constant 0.000000e+00 : f32
    %885 = vector.broadcast %cst_192 : f32 to vector<2x32xf32>
    %886 = tpu.concatenate %618, %660, %702, %744, %786, %828, %870, %885 in 0 : vector<2x32xf32>, vector<2x32xf32>, vector<2x32xf32>, vector<2x32xf32>, vector<2x32xf32>, vector<2x32xf32>, vector<2x32xf32>, vector<2x32xf32> -> vector<16x32xf32>
    %887 = tpu.concatenate %631, %673, %715, %757, %799, %841, %883, %885 in 0 : vector<2x32xf32>, vector<2x32xf32>, vector<2x32xf32>, vector<2x32xf32>, vector<2x32xf32>, vector<2x32xf32>, vector<2x32xf32>, vector<2x32xf32> -> vector<16x32xf32>
    %c0_193 = arith.constant 0 : index
    %c0_194 = arith.constant 0 : index
    %888 = vector.load %arg13[%c0_193, %c0_194] : memref<64x32xf32, #tpu.memory_space<vmem>>, vector<32x32xf32>
    %cst_195 = arith.constant dense<0.000000e+00> : vector<16x32xf32>
    %889 = tpu.matmul %886, %888, %cst_195 {dimension_numbers = #tpu.dot_dimension_numbers<[1], [0], [0], [1], [0, 0, 1, 1], [], []>} : vector<16x32xf32>, vector<32x32xf32>, vector<16x32xf32> -> vector<16x32xf32>
    %c32 = arith.constant 32 : index
    %c0_196 = arith.constant 0 : index
    %890 = vector.load %arg13[%c32, %c0_196] : memref<64x32xf32, #tpu.memory_space<vmem>>, vector<32x32xf32>
    %cst_197 = arith.constant dense<0.000000e+00> : vector<16x32xf32>
    %891 = tpu.matmul %887, %890, %cst_197 {dimension_numbers = #tpu.dot_dimension_numbers<[1], [0], [0], [1], [0, 0, 1, 1], [], []>} : vector<16x32xf32>, vector<32x32xf32>, vector<16x32xf32> -> vector<16x32xf32>
    %892 = arith.addf %889, %891 : vector<16x32xf32>
    %c0_198 = arith.constant 0 : index
    %c0_199 = arith.constant 0 : index
    %893 = vector.load %arg14[%c0_198, %c0_199] : memref<1x32xf32, #tpu.memory_space<vmem>>, vector<1x32xf32>
    %894 = vector.broadcast %893 : vector<1x32xf32> to vector<16x32xf32>
    %895 = arith.addf %892, %894 : vector<16x32xf32>
    %896 = math.tanh %895 : vector<16x32xf32>
    %c0_200 = arith.constant 0 : index
    %c0_201 = arith.constant 0 : index
    %897 = vector.load %arg15[%c0_200, %c0_201] : memref<32x128xf32, #tpu.memory_space<vmem>>, vector<32x128xf32>
    %cst_202 = arith.constant dense<0.000000e+00> : vector<16x128xf32>
    %898 = tpu.matmul %896, %897, %cst_202 {dimension_numbers = #tpu.dot_dimension_numbers<[1], [0], [0], [1], [0, 0, 1, 1], [], []>} : vector<16x32xf32>, vector<32x128xf32>, vector<16x128xf32> -> vector<16x128xf32>
    %c0_203 = arith.constant 0 : index
    %c0_204 = arith.constant 0 : index
    %899 = vector.load %arg16[%c0_203, %c0_204] : memref<1x128xf32, #tpu.memory_space<vmem>>, vector<1x128xf32>
    %900 = vector.broadcast %899 : vector<1x128xf32> to vector<16x128xf32>
    %901 = arith.addf %898, %900 : vector<16x128xf32>
    %cst_205 = arith.constant dense<0xFF800000> : vector<16xf32>
    %902 = vector.multi_reduction <maximumf>, %901, %cst_205 [1] : vector<16x128xf32> to vector<16xf32>
    %903 = vector.shape_cast %902 : vector<16xf32> to vector<16x1xf32>
    %904 = vector.broadcast %903 : vector<16x1xf32> to vector<16x128xf32>
    %905 = arith.subf %901, %904 : vector<16x128xf32>
    %906 = math.exp %905 : vector<16x128xf32>
    %cst_206 = arith.constant dense<0.000000e+00> : vector<16xf32>
    %907 = vector.multi_reduction <add>, %906, %cst_206 [1] : vector<16x128xf32> to vector<16xf32>
    %908 = vector.shape_cast %907 : vector<16xf32> to vector<16x1xf32>
    %909 = math.log %908 : vector<16x1xf32>
    %910 = arith.addf %909, %903 : vector<16x1xf32>
    %911 = vector.broadcast %910 : vector<16x1xf32> to vector<16x128xf32>
    %912 = arith.subf %901, %911 : vector<16x128xf32>
    %c0_207 = arith.constant 0 : index
    %c0_208 = arith.constant 0 : index
    %913 = vector.load %arg17[%c0_207, %c0_208] : memref<16x128xf32, #tpu.memory_space<vmem>>, vector<16x128xf32>
    tpu.vector_store %arg17[%c0_207, %c0_208], %912 {strides = array<i32>} : memref<16x128xf32, #tpu.memory_space<vmem>>, vector<16x128xf32>,
    %914 = tpu.iota {dimensions = array<i32: 1>} : vector<16x128xi32>
    %915 = vector.broadcast %903 : vector<16x1xf32> to vector<16x128xf32>
    %916 = arith.cmpf oge, %901, %915 : vector<16x128xf32>
    %c128_i32 = arith.constant 128 : i32
    %917 = vector.broadcast %c128_i32 : i32 to vector<16x128xi32>
    %918 = arith.select %916, %914, %917 : vector<16x128xi1>, vector<16x128xi32>
    %cst_209 = arith.constant dense<2147483647> : vector<16xi32>
    %919 = vector.multi_reduction <minsi>, %918, %cst_209 [1] : vector<16x128xi32> to vector<16xi32>
    %920 = vector.shape_cast %919 : vector<16xi32> to vector<16x1xi32>
    %c0_210 = arith.constant 0 : index
    %c0_211 = arith.constant 0 : index
    %921 = vector.load %arg18[%c0_210, %c0_211] : memref<16x1xi32, #tpu.memory_space<vmem>>, vector<16x1xi32>
    tpu.vector_store %arg18[%c0_210, %c0_211], %920 {strides = array<i32>} : memref<16x1xi32, #tpu.memory_space<vmem>>, vector<16x1xi32>,
    %c0_212 = arith.constant 0 : index
    %c0_213 = arith.constant 0 : index
    %922 = vector.load %arg3[%c0_212, %c0_213] : memref<16x1xi32, #tpu.memory_space<vmem>>, vector<16x1xi32>
    %923 = vector.broadcast %922 : vector<16x1xi32> to vector<16x128xi32>
    %924 = arith.cmpi eq, %914, %923 : vector<16x128xi32>
    %925 = arith.extui %924 : vector<16x128xi1> to vector<16x128xi32>
    %926 = arith.sitofp %925 : vector<16x128xi32> to vector<16x128xf32>
    %927 = arith.mulf %912, %926 : vector<16x128xf32>
    %cst_214 = arith.constant dense<0.000000e+00> : vector<16xf32>
    %928 = vector.multi_reduction <add>, %927, %cst_214 [1] : vector<16x128xf32> to vector<16xf32>
    %929 = vector.shape_cast %928 : vector<16xf32> to vector<16x1xf32>
    %c0_i32_215 = arith.constant 0 : i32
    %930 = vector.broadcast %c0_i32_215 : i32 to vector<16x1xi32>
    %931 = arith.cmpi ne, %922, %930 : vector<16x1xi32>
    %932 = arith.extui %931 : vector<16x1xi1> to vector<16x1xi32>
    %933 = arith.sitofp %932 : vector<16x1xi32> to vector<16x1xf32>
    %934 = arith.mulf %929, %933 : vector<16x1xf32>
    %cst_216 = arith.constant dense<0.000000e+00> : vector<1xf32>
    %935 = vector.multi_reduction <add>, %934, %cst_216 [0] : vector<16x1xf32> to vector<1xf32>
    %936 = vector.shape_cast %935 : vector<1xf32> to vector<1x1xf32>
    %cst_217 = arith.constant dense<0.000000e+00> : vector<1xf32>
    %937 = vector.multi_reduction <add>, %933, %cst_217 [0] : vector<16x1xf32> to vector<1xf32>
    %938 = vector.shape_cast %937 : vector<1xf32> to vector<1x1xf32>
    %cst_218 = arith.constant 1.000000e+00 : f32
    %939 = vector.broadcast %cst_218 : f32 to vector<1x1xf32>
    %940 = arith.maximumf %938, %939 : vector<1x1xf32>
    %cst_219 = arith.constant 0.000000e+00 : f32
    %941 = vector.broadcast %cst_219 : f32 to vector<1x1xf32>
    %942 = arith.subf %941, %936 : vector<1x1xf32>
    %943 = arith.divf %942, %940 : vector<1x1xf32>
    %c0_220 = arith.constant 0 : index
    %c0_221 = arith.constant 0 : index
    %944 = vector.load %arg19[%c0_220, %c0_221] : memref<1x1xf32, #tpu.memory_space<vmem>>, vector<1x1xf32>
    tpu.vector_store %arg19[%c0_220, %c0_221], %943 {strides = array<i32>} : memref<1x1xf32, #tpu.memory_space<vmem>>, vector<1x1xf32>,
    return
  }
}

</mosaic_0001>

<llo_original>
// kernel: squeeze.1
$region0: #{squeeze.1}
  %s0 = inlined_call_operand.vmem [shape: s32[14], index: 0, kind: input, shape index: {}]
  %s1 = inlined_call_operand.vmem [shape: s32[7,2], index: 1, kind: output, shape index: {}]
  $region1: #{squeeze.1} parent=0
    #allocation0 [shape = 'u8[4096]{0}', space=vmem, size = 0x1000, scoped, tag = 'scoped mem for input reshape']
    %s3 = sshllo.u32 0, 1
    %v4 = vld [vmem:[%s0] sm:%s3]
    %5 = vst [vmem:[#allocation0] sm:%s3] %v4
    %v6 = vld [vmem:[#allocation0] sm:$0x1]
    %vm7 = vcmask 15360
    %8 = vst.msk [vmem:[%s1] sm:$0x1] %vm7, %v6
    %v9 = vld [vmem:[#allocation0] sm:$0x1]
    %10 = vrot.lane.b32.xlu0 %v9, 126
    %v11 = vpop.permute.xlu0 %10
    %vm12 = vcmask 15360
    %s13 = scalar_lea.vmem %s1, 1
    %14 = vst.msk [vmem:[%s13] sm:$0x1] %vm12, %v11
    %v15 = vld [vmem:[#allocation0] sm:$0x1]
    %16 = vrot.lane.b32.xlu0 %v15, 124
    %v17 = vpop.permute.xlu0 %16
    %vm18 = vcmask 15360
    %s19 = scalar_lea.vmem %s1, 2
    %20 = vst.msk [vmem:[%s19] sm:$0x1] %vm18, %v17
    %v21 = vld [vmem:[#allocation0] sm:$0x1]
    %22 = vrot.lane.b32.xlu0 %v21, 122
    %v23 = vpop.permute.xlu0 %22
    %vm24 = vcmask 15360
    %s25 = scalar_lea.vmem %s1, 3
    %26 = vst.msk [vmem:[%s25] sm:$0x1] %vm24, %v23
    %v27 = vld [vmem:[#allocation0] sm:$0x1]
    %28 = vrot.lane.b32.xlu0 %v27, 120
    %v29 = vpop.permute.xlu0 %28
    %vm30 = vcmask 15360
    %s31 = scalar_lea.vmem %s1, 4
    %32 = vst.msk [vmem:[%s31] sm:$0x1] %vm30, %v29
    %v33 = vld [vmem:[#allocation0] sm:$0x1]
    %34 = vrot.lane.b32.xlu0 %v33, 118
    %v35 = vpop.permute.xlu0 %34
    %vm36 = vcmask 15360
    %s37 = scalar_lea.vmem %s1, 5
    %38 = vst.msk [vmem:[%s37] sm:$0x1] %vm36, %v35
    %v39 = vld [vmem:[#allocation0] sm:$0x1]
    %40 = vrot.lane.b32.xlu0 %v39, 116
    %v41 = vpop.permute.xlu0 %40
    %vm42 = vcmask 15360
    %s43 = scalar_lea.vmem %s1, 6
    %44 = vst.msk [vmem:[%s43] sm:$0x1] %vm42, %v41

// kernel: fb_seq2seq_forward.1
$region0: #{fb_seq2seq_forward.1}
  #allocation0 [shape = 'u32[]', space=smem, size = 0x4, offset = 0x4, fixed_abs, tag = 'smem constant byte address 0x4 - core index']
  #allocation1 [shape = 'u32[144,128]{1,0:T(1,128)}', space=vmem, size = 0x12000, scoped, tag = 'internal scratch']
  %s0 = inlined_call_operand.vmem [shape: s32[16,1], index: 0, kind: input, shape index: {}]
  %s1 = inlined_call_operand.vmem [shape: s32[16,1], index: 1, kind: input, shape index: {}]
  %s2 = inlined_call_operand.vmem [shape: s32[16,1], index: 2, kind: input, shape index: {}]
  %s3 = inlined_call_operand.vmem [shape: s32[16,1], index: 3, kind: input, shape index: {}]
  %s4 = inlined_call_operand.hbm [shape: s32[2,4], index: 4, kind: input, shape index: {}]
  %s5 = inlined_call_operand.vmem [shape: s32[16,1], index: 5, kind: input, shape index: {}]
  %s6 = inlined_call_operand.vmem [shape: f32[128,32], index: 6, kind: input, shape index: {}]
  %s7 = inlined_call_operand.hbm [shape: f32[16,32], index: 7, kind: input, shape index: {}]
  %s8 = inlined_call_operand.vmem [shape: f32[8,32], index: 8, kind: input, shape index: {}]
  %s9 = inlined_call_operand.hbm [shape: f32[3,32,96], index: 9, kind: input, shape index: {}]
  %s10 = inlined_call_operand.vmem [shape: f32[3,32,96], index: 10, kind: input, shape index: {}]
  %s11 = inlined_call_operand.vmem [shape: f32[3,1,96], index: 11, kind: input, shape index: {}]
  %s12 = inlined_call_operand.vmem [shape: f32[3,1,32], index: 12, kind: input, shape index: {}]
  %s13 = inlined_call_operand.vmem [shape: f32[64,32], index: 13, kind: input, shape index: {}]
  %s14 = inlined_call_operand.vmem [shape: f32[1,32], index: 14, kind: input, shape index: {}]
  %s15 = inlined_call_operand.hbm [shape: f32[32,128], index: 15, kind: input, shape index: {}]
  %s16 = inlined_call_operand.vmem [shape: f32[1,128], index: 16, kind: input, shape index: {}]
  %s17 = inlined_call_operand.vmem [shape: f32[16,128], index: 17, kind: output, shape index: {0}]
  %s18 = inlined_call_operand.vmem [shape: s32[16,1], index: 18, kind: output, shape index: {1}]
  %s19 = inlined_call_operand.hbm [shape: f32[1,1], index: 19, kind: output, shape index: {2}]
  %s20 = inlined_call_operand.hbm [shape: f32[2,32], index: 20, kind: output, shape index: {3}]
  %21 = xla_tuple %s17, %s18, %s19, %s20
  %s22 = sld [smem:[#allocation0]]
  $region118: #{fb_seq2seq_forward.1} parent=0
    _
  %s24 = ssub.s32 1, %s22
  %s25 = scalar_select 0, %s24, %s22
  $region1: #{fb_seq2seq_forward.1} parent=0
    #allocation2 [shape = 'u8[1024]{0}', space=vmem, size = 0x400, scoped, tag = 'input window, operand 4, single buffered']
    #allocation3 [shape = 's32[1]{0}', space=sflag, size = 0x4, scoped, tag = 'scoped memory for fb_seq2seq_forward.1']
    #allocation4 [shape = 's32[1]{0}', space=sflag, size = 0x4, scoped, tag = 'scoped memory for fb_seq2seq_forward.1']
    #allocation5 [shape = 'u8[8192]{0}', space=vmem, size = 0x2000, scoped, tag = 'input window, operand 7, single buffered']
    #allocation6 [shape = 's32[1]{0}', space=sflag, size = 0x4, scoped, tag = 'scoped memory for fb_seq2seq_forward.1']
    #allocation7 [shape = 'u8[49152]{0}', space=vmem, size = 0xc000, scoped, tag = 'input window, operand 9, single buffered']
    #allocation8 [shape = 'u8[16384]{0}', space=vmem, size = 0x4000, scoped, tag = 'input window, operand 15, single buffered']
    #allocation9 [shape = 's32[1]{0}', space=sflag, size = 0x4, scoped, tag = 'scoped memory for fb_seq2seq_forward.1']
    #allocation10 [shape = 'u8[512]{0}', space=vmem, size = 0x400, scoped, tag = 'output window, operand 2, single buffered']
    #allocation11 [shape = 'u8[1024]{0}', space=vmem, size = 0x400, scoped, tag = 'output window, operand 3, single buffered']
    #allocation12 [shape = 's32[1]{0}', space=sflag, size = 0x4, scoped, tag = 'scoped memory for fb_seq2seq_forward.1']
    %26 = vsyncpa [#allocation3], 0
    %27 = vsyncpa [#allocation6], 0
    %28 = vsyncpa [#allocation9], 0
    %29 = vsyncpa [#allocation4], 0
    %30 = vsyncpa [#allocation12], 0
    // Predicated region
    $region2: #{fb_seq2seq_forward.1} parent=1 // pred_check
      _
    $region3: #{fb_seq2seq_forward.1} parent=1 // pred_check_branch
      %32 = sbr.rel (0) target = $region5
    $region4: #{fb_seq2seq_forward.1} parent=1 // pred_region
      _
    $region5: #{fb_seq2seq_forward.1} parent=1 // pred_fallthru
      _
    // Predicated region
    $region6: #{fb_seq2seq_forward.1} parent=1 // pred_check
      _
    $region7: #{fb_seq2seq_forward.1} parent=1 // pred_check_branch
      %34 = sbr.rel (0) target = $region9
    $region8: #{fb_seq2seq_forward.1} parent=1 // pred_region
      _
    $region9: #{fb_seq2seq_forward.1} parent=1 // pred_fallthru
      _
    // Predicated region
    $region10: #{fb_seq2seq_forward.1} parent=1 // pred_check
      _
    $region11: #{fb_seq2seq_forward.1} parent=1 // pred_check_branch
      %36 = sbr.rel (0) target = $region13
    $region12: #{fb_seq2seq_forward.1} parent=1 // pred_region
      _
    $region13: #{fb_seq2seq_forward.1} parent=1 // pred_fallthru
      _
    // Predicated region
    $region14: #{fb_seq2seq_forward.1} parent=1 // pred_check
      _
    $region15: #{fb_seq2seq_forward.1} parent=1 // pred_check_branch
      %38 = sbr.rel (0) target = $region17
    $region16: #{fb_seq2seq_forward.1} parent=1 // pred_region
      _
    $region17: #{fb_seq2seq_forward.1} parent=1 // pred_fallthru
      _
    // Predicated region
    $region18: #{fb_seq2seq_forward.1} parent=1 // pred_check
      _
    $region19: #{fb_seq2seq_forward.1} parent=1 // pred_check_branch
      %40 = sbr.rel (0) target = $region21
    $region20: #{fb_seq2seq_forward.1} parent=1 // pred_region
      %s42 = ssub.s32 32, 32
      %43 = vsyncadd [#allocation3], %s42
      %s45 = sshll.u32 [#allocation2], 4
      %s46 = int_to_ptr.vmem [resolvable:$true] %s45
      %48 = dma.hbm_to_vmem [thread:$0]  %s4, 32, %s46, [#allocation3]
    $region21: #{fb_seq2seq_forward.1} parent=1 // pred_fallthru
      _
    // Predicated region
    $region22: #{fb_seq2seq_forward.1} parent=1 // pred_check
      _
    $region23: #{fb_seq2seq_forward.1} parent=1 // pred_check_branch
      %50 = sbr.rel (0) target = $region25
    $region24: #{fb_seq2seq_forward.1} parent=1 // pred_region
      _
    $region25: #{fb_seq2seq_forward.1} parent=1 // pred_fallthru
      _
    // Predicated region
    $region26: #{fb_seq2seq_forward.1} parent=1 // pred_check
      _
    $region27: #{fb_seq2seq_forward.1} parent=1 // pred_check_branch
      %52 = sbr.rel (0) target = $region29
    $region28: #{fb_seq2seq_forward.1} parent=1 // pred_region
      _
    $region29: #{fb_seq2seq_forward.1} parent=1 // pred_fallthru
      _
    // Predicated region
    $region30: #{fb_seq2seq_forward.1} parent=1 // pred_check
      _
    $region31: #{fb_seq2seq_forward.1} parent=1 // pred_check_branch
      %54 = sbr.rel (0) target = $region33
    $region32: #{fb_seq2seq_forward.1} parent=1 // pred_region
      %s56 = ssub.s32 256, 256
      %57 = vsyncadd [#allocation6], %s56
      %s58 = sshll.u32 [#allocation5], 4
      %s59 = int_to_ptr.vmem [resolvable:$true] %s58
      %64 = dma.hbm_to_vmem [thread:$0]  %s7, 256, %s59, [#allocation6], 128, 128, 8
    $region33: #{fb_seq2seq_forward.1} parent=1 // pred_fallthru
      _
    // Predicated region
    $region34: #{fb_seq2seq_forward.1} parent=1 // pred_check
      _
    $region35: #{fb_seq2seq_forward.1} parent=1 // pred_check_branch
      %66 = sbr.rel (0) target = $region37
    $region36: #{fb_seq2seq_forward.1} parent=1 // pred_region
      _
    $region37: #{fb_seq2seq_forward.1} parent=1 // pred_fallthru
      _
    // Predicated region
    $region38: #{fb_seq2seq_forward.1} parent=1 // pred_check
      _
    $region39: #{fb_seq2seq_forward.1} parent=1 // pred_check_branch
      %68 = sbr.rel (0) target = $region41
    $region40: #{fb_seq2seq_forward.1} parent=1 // pred_region
      %s70 = ssub.s32 1536, 1536
      %71 = vsyncadd [#allocation6], %s70
      %s72 = sshll.u32 [#allocation7], 4
      %s73 = int_to_ptr.vmem [resolvable:$true] %s72
      %78 = dma.hbm_to_vmem [thread:$0]  %s9, 1536, %s73, [#allocation6], 128, 128, 8
    $region41: #{fb_seq2seq_forward.1} parent=1 // pred_fallthru
      _
    // Predicated region
    $region42: #{fb_seq2seq_forward.1} parent=1 // pred_check
      _
    $region43: #{fb_seq2seq_forward.1} parent=1 // pred_check_branch
      %80 = sbr.rel (0) target = $region45
    $region44: #{fb_seq2seq_forward.1} parent=1 // pred_region
      _
    $region45: #{fb_seq2seq_forward.1} parent=1 // pred_fallthru
      _
    // Predicated region
    $region46: #{fb_seq2seq_forward.1} parent=1 // pred_check
      _
    $region47: #{fb_seq2seq_forward.1} parent=1 // pred_check_branch
      %82 = sbr.rel (0) target = $region49
    $region48: #{fb_seq2seq_forward.1} parent=1 // pred_region
      _
    $region49: #{fb_seq2seq_forward.1} parent=1 // pred_fallthru
      _
    // Predicated region
    $region50: #{fb_seq2seq_forward.1} parent=1 // pred_check
      _
    $region51: #{fb_seq2seq_forward.1} parent=1 // pred_check_branch
      %84 = sbr.rel (0) target = $region53
    $region52: #{fb_seq2seq_forward.1} parent=1 // pred_region
      _
    $region53: #{fb_seq2seq_forward.1} parent=1 // pred_fallthru
      _
    // Predicated region
    $region54: #{fb_seq2seq_forward.1} parent=1 // pred_check
      _
    $region55: #{fb_seq2seq_forward.1} parent=1 // pred_check_branch
      %86 = sbr.rel (0) target = $region57
    $region56: #{fb_seq2seq_forward.1} parent=1 // pred_region
      _
    $region57: #{fb_seq2seq_forward.1} parent=1 // pred_fallthru
      _
    // Predicated region
    $region58: #{fb_seq2seq_forward.1} parent=1 // pred_check
      _
    $region59: #{fb_seq2seq_forward.1} parent=1 // pred_check_branch
      %88 = sbr.rel (0) target = $region61
    $region60: #{fb_seq2seq_forward.1} parent=1 // pred_region
      _
    $region61: #{fb_seq2seq_forward.1} parent=1 // pred_fallthru
      _
    // Predicated region
    $region62: #{fb_seq2seq_forward.1} parent=1 // pred_check
      _
    $region63: #{fb_seq2seq_forward.1} parent=1 // pred_check_branch
      %90 = sbr.rel (0) target = $region65
    $region64: #{fb_seq2seq_forward.1} parent=1 // pred_region
      %s92 = ssub.s32 512, 512
      %93 = vsyncadd [#allocation9], %s92
      %s94 = sshll.u32 [#allocation8], 4
      %s95 = int_to_ptr.vmem [resolvable:$true] %s94
      %100 = dma.hbm_to_vmem [thread:$0]  %s15, 512, %s95, [#allocation9], 128, 128, 8
    $region65: #{fb_seq2seq_forward.1} parent=1 // pred_fallthru
      _
    // Predicated region
    $region66: #{fb_seq2seq_forward.1} parent=1 // pred_check
      _
    $region67: #{fb_seq2seq_forward.1} parent=1 // pred_check_branch
      %102 = sbr.rel (0) target = $region69
    $region68: #{fb_seq2seq_forward.1} parent=1 // pred_region
      _
    $region69: #{fb_seq2seq_forward.1} parent=1 // pred_fallthru
      _
    // Predicated region
    $region70: #{fb_seq2seq_forward.1} parent=1 // pred_check
      _
    $region71: #{fb_seq2seq_forward.1} parent=1 // pred_check_branch
      %104 = sbr.rel (0) target = $region73
    $region72: #{fb_seq2seq_forward.1} parent=1 // pred_region
      %105 = dma.done [#allocation3], 32
    $region73: #{fb_seq2seq_forward.1} parent=1 // pred_fallthru
      _
    // Predicated region
    $region74: #{fb_seq2seq_forward.1} parent=1 // pred_check
      _
    $region75: #{fb_seq2seq_forward.1} parent=1 // pred_check_branch
      %107 = sbr.rel (0) target = $region77
    $region76: #{fb_seq2seq_forward.1} parent=1 // pred_region
      %108 = dma.done [#allocation6], 256
    $region77: #{fb_seq2seq_forward.1} parent=1 // pred_fallthru
      _
    // Predicated region
    $region78: #{fb_seq2seq_forward.1} parent=1 // pred_check
      _
    $region79: #{fb_seq2seq_forward.1} parent=1 // pred_check_branch
      %110 = sbr.rel (0) target = $region81
    $region80: #{fb_seq2seq_forward.1} parent=1 // pred_region
      %111 = dma.done [#allocation6], 1536
    $region81: #{fb_seq2seq_forward.1} parent=1 // pred_fallthru
      _
    // Predicated region
    $region82: #{fb_seq2seq_forward.1} parent=1 // pred_check
      _
    $region83: #{fb_seq2seq_forward.1} parent=1 // pred_check_branch
      %113 = sbr.rel (0) target = $region85
    $region84: #{fb_seq2seq_forward.1} parent=1 // pred_region
      %114 = dma.done [#allocation9], 512
    $region85: #{fb_seq2seq_forward.1} parent=1 // pred_fallthru
      _
    %v115 = vld [vmem:[#allocation2] sm:$0x3]
    %v116 = vlaneseq
    %v117 = vand.u32 %v116, 127
    %118 = vset.pattern.permute.xlu0 0
    %119 = vperm.xlu0 %118, %v115
    %v120 = vpop.permute.xlu0 %119
    %vm121 = vcmp.eq.s32.totalorder %v117, %v120
    %v122 = vsel %vm121, 1, 0
    %v123 = vcvt.s32.f32 %v122
    %v124 = vadd.f32 %v123, 0.0
    %125 = vset.pattern.permute.xlu0 1
    %126 = vperm.xlu0 %125, %v115
    %v127 = vpop.permute.xlu0 %126
    %vm128 = vcmp.eq.s32.totalorder %v117, %v127
    %v129 = vsel %vm128, 1, 0
    %v130 = vcvt.s32.f32 %v129
    %v131 = vadd.f32 %v124, %v130
    %132 = vset.pattern.permute.xlu0 2
    %133 = vperm.xlu0 %132, %v115
    %v134 = vpop.permute.xlu0 %133
    %vm135 = vcmp.eq.s32.totalorder %v117, %v134
    %v136 = vsel %vm135, 1, 0
    %v137 = vcvt.s32.f32 %v136
    %v138 = vadd.f32 %v131, %v137
    %139 = vset.pattern.permute.xlu0 3
    %140 = vperm.xlu0 %139, %v115
    %v141 = vpop.permute.xlu0 %140
    %vm142 = vcmp.eq.s32.totalorder %v117, %v141
    %v143 = vsel %vm142, 1, 0
    %v144 = vcvt.s32.f32 %v143
    %v145 = vadd.f32 %v138, %v144
    %v146 = vmul.f32 %v145, 0.25
    %v147 = vld [vmem:[#allocation5] sm:$0xff]
    %v148 = vld [vmem:[#allocation5 + $0x8] sm:$0xff]
    %vm149 = vcmask 130048
    %v151 = vsel %vm149, %v146, 0
    %153 = vmatprep.subr.mxu0 0.0
    %154 = vmatpush1.msra.mxu0 %v147
    %155 = vmatprep.subr.mxu0 0.0
    %156 = vmatpush1.msra.mxu0 %v148
    %157 = vmatprep.subr.mxu0 0.0
    %158 = vmatpush1.msra.mxu0 0.0
    %159 = vmatprep.subr.mxu0 0.0
    %160 = vmatpush1.msra.mxu0 0.0
    %161 = vmatprep.subr.mxu0 0.0
    %162 = vmatpush1.msra.mxu0 0.0
    %163 = vmatprep.subr.mxu0 0.0
    %164 = vmatpush1.msra.mxu0 0.0
    %165 = vmatprep.subr.mxu0 0.0
    %166 = vmatpush1.msra.mxu0 0.0
    %167 = vmatprep.subr.mxu0 0.0
    %168 = vmatpush1.msra.mxu0 0.0
    %169 = vmatprep.subr.mxu0 0.0
    %170 = vmatpush1.msra.mxu0 0.0
    %171 = vmatprep.subr.mxu0 0.0
    %172 = vmatpush1.msra.mxu0 0.0
    %173 = vmatprep.subr.mxu0 0.0
    %174 = vmatpush1.msra.mxu0 0.0
    %175 = vmatprep.subr.mxu0 0.0
    %176 = vmatpush1.msra.mxu0 0.0
    %177 = vmatprep.subr.mxu0 0.0
    %178 = vmatpush1.msra.mxu0 0.0
    %179 = vmatprep.subr.mxu0 0.0
    %180 = vmatpush1.msra.mxu0 0.0
    %181 = vmatprep.subr.mxu0 0.0
    %182 = vmatpush1.msra.mxu0 0.0
    %183 = vmatprep.subr.mxu0 0.0
    %184 = vmatpush1.msra.mxu0 0.0
    %185 = vmatprep.subr.mxu0 0.0
    %186 = vmatpush1.msra.mxu0 0.0
    %187 = vmatprep.subr.mxu0 0.0
    %188 = vmatpush1.msra.mxu0 0.0
    %189 = vmatprep.subr.mxu0 0.0
    %190 = vmatpush1.msra.mxu0 0.0
    %191 = vmatprep.subr.mxu0 0.0
    %192 = vmatpush1.msra.mxu0 0.0
    %193 = vmatprep.subr.mxu0 0.0
    %194 = vmatpush1.msra.mxu0 0.0
    %195 = vmatprep.subr.mxu0 0.0
    %196 = vmatpush1.msra.mxu0 0.0
    %197 = vmatprep.subr.mxu0 0.0
    %198 = vmatpush1.msra.mxu0 0.0
    %199 = vmatprep.subr.mxu0 0.0
    %200 = vmatpush1.msra.mxu0 0.0
    %201 = vmatprep.subr.mxu0 0.0
    %202 = vmatpush1.msra.mxu0 0.0
    %203 = vmatprep.subr.mxu0 0.0
    %204 = vmatpush1.msra.mxu0 0.0
    %205 = vmatprep.subr.mxu0 0.0
    %206 = vmatpush1.msra.mxu0 0.0
    %207 = vmatprep.subr.mxu0 0.0
    %208 = vmatpush1.msra.mxu0 0.0
    %209 = vmatprep.subr.mxu0 0.0
    %210 = vmatpush1.msra.mxu0 0.0
    %211 = vmatprep.subr.mxu0 0.0
    %212 = vmatpush1.msra.mxu0 0.0
    %213 = vmatprep.subr.mxu0 0.0
    %214 = vmatpush1.msra.mxu0 0.0
    %215 = vmatprep.subr.mxu0 0.0
    %216 = vmatpush1.msra.mxu0 0.0
    %217 = vmatprep.mubr.f32.mxu0 0.0
    %218 = vmatmul.mubr.f32.gmra.mrb[0].mxu0 %v151
    %v219 = vpop.f32.mrb[0].mxu0
    %v220 = vadd.f32 0.0, %v219
    %v221 = vpop.f32.mrb[0].mxu0
    %222 = vdwg.mxu0
    %v224 = vrot.slane %v220, 6
    %v226 = vrot.slane %v220, 4
    %v228 = vrot.slane %v220, 2
    %vm230 = vcmask 1041408
    %v231 = vsel %vm230, %v220, %v224
    %vm232 = vcmask 1043456
    %v233 = vsel %vm232, %v231, %v226
    %vm234 = vcmask 1045504
    %v235 = vsel %vm234, %v233, %v228
    %v236 = vld [vmem:[%s5] sm:$0xff]
    %v237 = vld [vmem:[%s5 + $0x8] sm:$0xff]
    %238 = vset.pattern.permute.xlu0 0
    %239 = vperm.xlu0 %238, %v236
    %v240 = vpop.permute.xlu0 %239
    %241 = vset.pattern.permute.xlu0 0
    %242 = vperm.xlu0 %241, %v237
    %v243 = vpop.permute.xlu0 %242
    %vm244 = vcmp.eq.s32.totalorder %v117, %v240
    %vm245 = vcmp.eq.s32.totalorder %v117, %v243
    %v246 = vsel %vm244, 1, 0
    %v247 = vsel %vm245, 1, 0
    %v248 = vcvt.s32.f32 %v246
    %v249 = vcvt.s32.f32 %v247
    %v250 = vld [vmem:[%s8] sm:$0xff]
    %vm251 = vcmask 64512
    %v253 = vsel %vm251, %v248, 0
    %v256 = vsel %vm251, %v249, 0
    %258 = vmatprep.subr.mxu0 0.0
    %259 = vmatpush1.msra.mxu0 %v250
    %260 = vmatprep.subr.mxu0 0.0
    %261 = vmatpush1.msra.mxu0 0.0
    %262 = vmatprep.subr.mxu0 0.0
    %263 = vmatpush1.msra.mxu0 0.0
    %264 = vmatprep.subr.mxu0 0.0
    %265 = vmatpush1.msra.mxu0 0.0
    %266 = vmatprep.subr.mxu0 0.0
    %267 = vmatpush1.msra.mxu0 0.0
    %268 = vmatprep.subr.mxu0 0.0
    %269 = vmatpush1.msra.mxu0 0.0
    %270 = vmatprep.subr.mxu0 0.0
    %271 = vmatpush1.msra.mxu0 0.0
    %272 = vmatprep.subr.mxu0 0.0
    %273 = vmatpush1.msra.mxu0 0.0
    %274 = vmatprep.subr.mxu0 0.0
    %275 = vmatpush1.msra.mxu0 0.0
    %276 = vmatprep.subr.mxu0 0.0
    %277 = vmatpush1.msra.mxu0 0.0
    %278 = vmatprep.subr.mxu0 0.0
    %279 = vmatpush1.msra.mxu0 0.0
    %280 = vmatprep.subr.mxu0 0.0
    %281 = vmatpush1.msra.mxu0 0.0
    %282 = vmatprep.subr.mxu0 0.0
    %283 = vmatpush1.msra.mxu0 0.0
    %284 = vmatprep.subr.mxu0 0.0
    %285 = vmatpush1.msra.mxu0 0.0
    %286 = vmatprep.subr.mxu0 0.0
    %287 = vmatpush1.msra.mxu0 0.0
    %288 = vmatprep.subr.mxu0 0.0
    %289 = vmatpush1.msra.mxu0 0.0
    %290 = vmatprep.subr.mxu0 0.0
    %291 = vmatpush1.msra.mxu0 0.0
    %292 = vmatprep.subr.mxu0 0.0
    %293 = vmatpush1.msra.mxu0 0.0
    %294 = vmatprep.subr.mxu0 0.0
    %295 = vmatpush1.msra.mxu0 0.0
    %296 = vmatprep.subr.mxu0 0.0
    %297 = vmatpush1.msra.mxu0 0.0
    %298 = vmatprep.subr.mxu0 0.0
    %299 = vmatpush1.msra.mxu0 0.0
    %300 = vmatprep.subr.mxu0 0.0
    %301 = vmatpush1.msra.mxu0 0.0
    %302 = vmatprep.subr.mxu0 0.0
    %303 = vmatpush1.msra.mxu0 0.0
    %304 = vmatprep.subr.mxu0 0.0
    %305 = vmatpush1.msra.mxu0 0.0
    %306 = vmatprep.subr.mxu0 0.0
    %307 = vmatpush1.msra.mxu0 0.0
    %308 = vmatprep.subr.mxu0 0.0
    %309 = vmatpush1.msra.mxu0 0.0
    %310 = vmatprep.subr.mxu0 0.0
    %311 = vmatpush1.msra.mxu0 0.0
    %312 = vmatprep.subr.mxu0 0.0
    %313 = vmatpush1.msra.mxu0 0.0
    %314 = vmatprep.subr.mxu0 0.0
    %315 = vmatpush1.msra.mxu0 0.0
    %316 = vmatprep.subr.mxu0 0.0
    %317 = vmatpush1.msra.mxu0 0.0
    %318 = vmatprep.subr.mxu0 0.0
    %319 = vmatpush1.msra.mxu0 0.0
    %320 = vmatprep.subr.mxu0 0.0
    %321 = vmatpush1.msra.mxu0 0.0
    %322 = vmatprep.mubr.f32.mxu0 0.0
    %323 = vmatmul.mubr.f32.gmra.mrb[0].mxu0 %v253
    %v324 = vpop.f32.mrb[0].mxu0
    %v325 = vadd.f32 0.0, %v324
    %v326 = vpop.f32.mrb[0].mxu0
    %327 = vmatprep.mubr.f32.mxu0 0.0
    %328 = vmatmul.mubr.f32.gmra.mrb[0].mxu0 %v256
    %v329 = vpop.f32.mrb[0].mxu0
    %v330 = vadd.f32 0.0, %v329
    %v331 = vpop.f32.mrb[0].mxu0
    %332 = vdwg.mxu0
    %v333 = vld [vmem:[%s6] sm:$0xff]
    %v334 = vld [vmem:[%s6 + $0x8] sm:$0xff]
    %v335 = vld [vmem:[%s6 + $0x10] sm:$0xff]
    %v336 = vld [vmem:[%s6 + $0x18] sm:$0xff]
    %v337 = vld [vmem:[%s6 + $0x20] sm:$0xff]
    %v338 = vld [vmem:[%s6 + $0x28] sm:$0xff]
    %v339 = vld [vmem:[%s6 + $0x30] sm:$0xff]
    %v340 = vld [vmem:[%s6 + $0x38] sm:$0xff]
    %v341 = vld [vmem:[%s6 + $0x40] sm:$0xff]
    %v342 = vld [vmem:[%s6 + $0x48] sm:$0xff]
    %v343 = vld [vmem:[%s6 + $0x50] sm:$0xff]
    %v344 = vld [vmem:[%s6 + $0x58] sm:$0xff]
    %v345 = vld [vmem:[%s6 + $0x60] sm:$0xff]
    %v346 = vld [vmem:[%s6 + $0x68] sm:$0xff]
    %v347 = vld [vmem:[%s6 + $0x70] sm:$0xff]
    %v348 = vld [vmem:[%s6 + $0x78] sm:$0xff]
    %v349 = vld [vmem:[%s0] sm:$0xff]
    %v350 = vld [vmem:[%s0 + $0x8] sm:$0xff]
    %351 = vset.pattern.permute.xlu0 0
    %352 = vperm.xlu0 %351, %v349
    %v353 = vpop.permute.xlu0 %352
    %354 = vset.pattern.permute.xlu0 0
    %355 = vperm.xlu0 %354, %v350
    %v356 = vpop.permute.xlu0 %355
    %vm357 = vcmp.eq.s32.totalorder %v117, %v353
    %vm358 = vcmp.eq.s32.totalorder %v117, %v356
    %v359 = vsel %vm357, 1, 0
    %v360 = vsel %vm358, 1, 0
    %v361 = vcvt.s32.f32 %v359
    %v362 = vcvt.s32.f32 %v360
    %363 = vmatprep.subr.mxu0 0.0
    %364 = vmatpush1.msra.mxu0 %v333
    %365 = vmatprep.subr.mxu0 0.0
    %366 = vmatpush1.msra.mxu0 %v334
    %367 = vmatprep.subr.mxu0 0.0
    %368 = vmatpush1.msra.mxu0 %v335
    %369 = vmatprep.subr.mxu0 0.0
    %370 = vmatpush1.msra.mxu0 %v336
    %371 = vmatprep.subr.mxu0 0.0
    %372 = vmatpush1.msra.mxu0 %v337
    %373 = vmatprep.subr.mxu0 0.0
    %374 = vmatpush1.msra.mxu0 %v338
    %375 = vmatprep.subr.mxu0 0.0
    %376 = vmatpush1.msra.mxu0 %v339
    %377 = vmatprep.subr.mxu0 0.0
    %378 = vmatpush1.msra.mxu0 %v340
    %379 = vmatprep.subr.mxu0 0.0
    %380 = vmatpush1.msra.mxu0 %v341
    %381 = vmatprep.subr.mxu0 0.0
    %382 = vmatpush1.msra.mxu0 %v342
    %383 = vmatprep.subr.mxu0 0.0
    %384 = vmatpush1.msra.mxu0 %v343
    %385 = vmatprep.subr.mxu0 0.0
    %386 = vmatpush1.msra.mxu0 %v344
    %387 = vmatprep.subr.mxu0 0.0
    %388 = vmatpush1.msra.mxu0 %v345
    %389 = vmatprep.subr.mxu0 0.0
    %390 = vmatpush1.msra.mxu0 %v346
    %391 = vmatprep.subr.mxu0 0.0
    %392 = vmatpush1.msra.mxu0 %v347
    %393 = vmatprep.subr.mxu0 0.0
    %394 = vmatpush1.msra.mxu0 %v348
    %395 = vmatprep.subr.mxu0 0.0
    %396 = vmatpush1.msra.mxu0 0.0
    %397 = vmatprep.subr.mxu0 0.0
    %398 = vmatpush1.msra.mxu0 0.0
    %399 = vmatprep.subr.mxu0 0.0
    %400 = vmatpush1.msra.mxu0 0.0
    %401 = vmatprep.subr.mxu0 0.0
    %402 = vmatpush1.msra.mxu0 0.0
    %403 = vmatprep.subr.mxu0 0.0
    %404 = vmatpush1.msra.mxu0 0.0
    %405 = vmatprep.subr.mxu0 0.0
    %406 = vmatpush1.msra.mxu0 0.0
    %407 = vmatprep.subr.mxu0 0.0
    %408 = vmatpush1.msra.mxu0 0.0
    %409 = vmatprep.subr.mxu0 0.0
    %410 = vmatpush1.msra.mxu0 0.0
    %411 = vmatprep.subr.mxu0 0.0
    %412 = vmatpush1.msra.mxu0 0.0
    %413 = vmatprep.subr.mxu0 0.0
    %414 = vmatpush1.msra.mxu0 0.0
    %415 = vmatprep.subr.mxu0 0.0
    %416 = vmatpush1.msra.mxu0 0.0
    %417 = vmatprep.subr.mxu0 0.0
    %418 = vmatpush1.msra.mxu0 0.0
    %419 = vmatprep.subr.mxu0 0.0
    %420 = vmatpush1.msra.mxu0 0.0
    %421 = vmatprep.subr.mxu0 0.0
    %422 = vmatpush1.msra.mxu0 0.0
    %423 = vmatprep.subr.mxu0 0.0
    %424 = vmatpush1.msra.mxu0 0.0
    %425 = vmatprep.subr.mxu0 0.0
    %426 = vmatpush1.msra.mxu0 0.0
    %427 = vmatprep.mubr.f32.mxu0 0.0
    %428 = vmatmul.mubr.f32.gmra.mrb[0].mxu0 %v361
    %v429 = vpop.f32.mrb[0].mxu0
    %v430 = vadd.f32 %v235, %v429
    %v431 = vpop.f32.mrb[0].mxu0
    %432 = vmatprep.mubr.f32.mxu0 0.0
    %433 = vmatmul.mubr.f32.gmra.mrb[0].mxu0 %v362
    %v434 = vpop.f32.mrb[0].mxu0
    %v435 = vadd.f32 %v235, %v434
    %v436 = vpop.f32.mrb[0].mxu0
    %437 = vdwg.mxu0
    %v438 = vld [vmem:[%s1] sm:$0xff]
    %v439 = vld [vmem:[%s1 + $0x8] sm:$0xff]
    %440 = vset.pattern.permute.xlu0 0
    %441 = vperm.xlu0 %440, %v438
    %v442 = vpop.permute.xlu0 %441
    %443 = vset.pattern.permute.xlu0 0
    %444 = vperm.xlu0 %443, %v439
    %v445 = vpop.permute.xlu0 %444
    %vm446 = vcmp.eq.s32.totalorder %v117, %v442
    %vm447 = vcmp.eq.s32.totalorder %v117, %v445
    %v448 = vsel %vm446, 1, 0
    %v449 = vsel %vm447, 1, 0
    %v450 = vcvt.s32.f32 %v448
    %v451 = vcvt.s32.f32 %v449
    %452 = vmatprep.subr.mxu0 0.0
    %453 = vmatpush1.msra.mxu0 %v333
    %454 = vmatprep.subr.mxu0 0.0
    %455 = vmatpush1.msra.mxu0 %v334
    %456 = vmatprep.subr.mxu0 0.0
    %457 = vmatpush1.msra.mxu0 %v335
    %458 = vmatprep.subr.mxu0 0.0
    %459 = vmatpush1.msra.mxu0 %v336
    %460 = vmatprep.subr.mxu0 0.0
    %461 = vmatpush1.msra.mxu0 %v337
    %462 = vmatprep.subr.mxu0 0.0
    %463 = vmatpush1.msra.mxu0 %v338
    %464 = vmatprep.subr.mxu0 0.0
    %465 = vmatpush1.msra.mxu0 %v339
    %466 = vmatprep.subr.mxu0 0.0
    %467 = vmatpush1.msra.mxu0 %v340
    %468 = vmatprep.subr.mxu0 0.0
    %469 = vmatpush1.msra.mxu0 %v341
    %470 = vmatprep.subr.mxu0 0.0
    %471 = vmatpush1.msra.mxu0 %v342
    %472 = vmatprep.subr.mxu0 0.0
    %473 = vmatpush1.msra.mxu0 %v343
    %474 = vmatprep.subr.mxu0 0.0
    %475 = vmatpush1.msra.mxu0 %v344
    %476 = vmatprep.subr.mxu0 0.0
    %477 = vmatpush1.msra.mxu0 %v345
    %478 = vmatprep.subr.mxu0 0.0
    %479 = vmatpush1.msra.mxu0 %v346
    %480 = vmatprep.subr.mxu0 0.0
    %481 = vmatpush1.msra.mxu0 %v347
    %482 = vmatprep.subr.mxu0 0.0
    %483 = vmatpush1.msra.mxu0 %v348
    %484 = vmatprep.subr.mxu0 0.0
    %485 = vmatpush1.msra.mxu0 0.0
    %486 = vmatprep.subr.mxu0 0.0
    %487 = vmatpush1.msra.mxu0 0.0
    %488 = vmatprep.subr.mxu0 0.0
    %489 = vmatpush1.msra.mxu0 0.0
    %490 = vmatprep.subr.mxu0 0.0
    %491 = vmatpush1.msra.mxu0 0.0
    %492 = vmatprep.subr.mxu0 0.0
    %493 = vmatpush1.msra.mxu0 0.0
    %494 = vmatprep.subr.mxu0 0.0
    %495 = vmatpush1.msra.mxu0 0.0
    %496 = vmatprep.subr.mxu0 0.0
    %497 = vmatpush1.msra.mxu0 0.0
    %498 = vmatprep.subr.mxu0 0.0
    %499 = vmatpush1.msra.mxu0 0.0
    %500 = vmatprep.subr.mxu0 0.0
    %501 = vmatpush1.msra.mxu0 0.0
    %502 = vmatprep.subr.mxu0 0.0
    %503 = vmatpush1.msra.mxu0 0.0
    %504 = vmatprep.subr.mxu0 0.0
    %505 = vmatpush1.msra.mxu0 0.0
    %506 = vmatprep.subr.mxu0 0.0
    %507 = vmatpush1.msra.mxu0 0.0
    %508 = vmatprep.subr.mxu0 0.0
    %509 = vmatpush1.msra.mxu0 0.0
    %510 = vmatprep.subr.mxu0 0.0
    %511 = vmatpush1.msra.mxu0 0.0
    %512 = vmatprep.subr.mxu0 0.0
    %513 = vmatpush1.msra.mxu0 0.0
    %514 = vmatprep.subr.mxu0 0.0
    %515 = vmatpush1.msra.mxu0 0.0
    %516 = vmatprep.mubr.f32.mxu0 0.0
    %517 = vmatmul.mubr.f32.gmra.mrb[0].mxu0 %v450
    %v518 = vpop.f32.mrb[0].mxu0
    %v519 = vadd.f32 %v235, %v518
    %v520 = vpop.f32.mrb[0].mxu0
    %521 = vmatprep.mubr.f32.mxu0 0.0
    %522 = vmatmul.mubr.f32.gmra.mrb[0].mxu0 %v451
    %v523 = vpop.f32.mrb[0].mxu0
    %v524 = vadd.f32 %v235, %v523
    %v525 = vpop.f32.mrb[0].mxu0
    %526 = vdwg.mxu0
    %v527 = vadd.f32 %v519, %v325
    %v528 = vadd.f32 %v524, %v330
    %v529 = vld [vmem:[%s2] sm:$0xff]
    %v530 = vld [vmem:[%s2 + $0x8] sm:$0xff]
    %531 = vset.pattern.permute.xlu0 0
    %532 = vperm.xlu0 %531, %v529
    %v533 = vpop.permute.xlu0 %532
    %534 = vset.pattern.permute.xlu0 0
    %535 = vperm.xlu0 %534, %v530
    %v536 = vpop.permute.xlu0 %535
    %vm537 = vcmp.eq.s32.totalorder %v117, %v533
    %vm538 = vcmp.eq.s32.totalorder %v117, %v536
    %v539 = vsel %vm537, 1, 0
    %v540 = vsel %vm538, 1, 0
    %v541 = vcvt.s32.f32 %v539
    %v542 = vcvt.s32.f32 %v540
    %543 = vmatprep.subr.mxu0 0.0
    %544 = vmatpush1.msra.mxu0 %v333
    %545 = vmatprep.subr.mxu0 0.0
    %546 = vmatpush1.msra.mxu0 %v334
    %547 = vmatprep.subr.mxu0 0.0
    %548 = vmatpush1.msra.mxu0 %v335
    %549 = vmatprep.subr.mxu0 0.0
    %550 = vmatpush1.msra.mxu0 %v336
    %551 = vmatprep.subr.mxu0 0.0
    %552 = vmatpush1.msra.mxu0 %v337
    %553 = vmatprep.subr.mxu0 0.0
    %554 = vmatpush1.msra.mxu0 %v338
    %555 = vmatprep.subr.mxu0 0.0
    %556 = vmatpush1.msra.mxu0 %v339
    %557 = vmatprep.subr.mxu0 0.0
    %558 = vmatpush1.msra.mxu0 %v340
    %559 = vmatprep.subr.mxu0 0.0
    %560 = vmatpush1.msra.mxu0 %v341
    %561 = vmatprep.subr.mxu0 0.0
    %562 = vmatpush1.msra.mxu0 %v342
    %563 = vmatprep.subr.mxu0 0.0
    %564 = vmatpush1.msra.mxu0 %v343
    %565 = vmatprep.subr.mxu0 0.0
    %566 = vmatpush1.msra.mxu0 %v344
    %567 = vmatprep.subr.mxu0 0.0
    %568 = vmatpush1.msra.mxu0 %v345
    %569 = vmatprep.subr.mxu0 0.0
    %570 = vmatpush1.msra.mxu0 %v346
    %571 = vmatprep.subr.mxu0 0.0
    %572 = vmatpush1.msra.mxu0 %v347
    %573 = vmatprep.subr.mxu0 0.0
    %574 = vmatpush1.msra.mxu0 %v348
    %575 = vmatprep.subr.mxu0 0.0
    %576 = vmatpush1.msra.mxu0 0.0
    %577 = vmatprep.subr.mxu0 0.0
    %578 = vmatpush1.msra.mxu0 0.0
    %579 = vmatprep.subr.mxu0 0.0
    %580 = vmatpush1.msra.mxu0 0.0
    %581 = vmatprep.subr.mxu0 0.0
    %582 = vmatpush1.msra.mxu0 0.0
    %583 = vmatprep.subr.mxu0 0.0
    %584 = vmatpush1.msra.mxu0 0.0
    %585 = vmatprep.subr.mxu0 0.0
    %586 = vmatpush1.msra.mxu0 0.0
    %587 = vmatprep.subr.mxu0 0.0
    %588 = vmatpush1.msra.mxu0 0.0
    %589 = vmatprep.subr.mxu0 0.0
    %590 = vmatpush1.msra.mxu0 0.0
    %591 = vmatprep.subr.mxu0 0.0
    %592 = vmatpush1.msra.mxu0 0.0
    %593 = vmatprep.subr.mxu0 0.0
    %594 = vmatpush1.msra.mxu0 0.0
    %595 = vmatprep.subr.mxu0 0.0
    %596 = vmatpush1.msra.mxu0 0.0
    %597 = vmatprep.subr.mxu0 0.0
    %598 = vmatpush1.msra.mxu0 0.0
    %599 = vmatprep.subr.mxu0 0.0
    %600 = vmatpush1.msra.mxu0 0.0
    %601 = vmatprep.subr.mxu0 0.0
    %602 = vmatpush1.msra.mxu0 0.0
    %603 = vmatprep.subr.mxu0 0.0
    %604 = vmatpush1.msra.mxu0 0.0
    %605 = vmatprep.subr.mxu0 0.0
    %606 = vmatpush1.msra.mxu0 0.0
    %607 = vmatprep.mubr.f32.mxu0 0.0
    %608 = vmatmul.mubr.f32.gmra.mrb[0].mxu0 %v541
    %v609 = vpop.f32.mrb[0].mxu0
    %v610 = vadd.f32 %v235, %v609
    %v611 = vpop.f32.mrb[0].mxu0
    %612 = vmatprep.mubr.f32.mxu0 0.0
    %613 = vmatmul.mubr.f32.gmra.mrb[0].mxu0 %v542
    %v614 = vpop.f32.mrb[0].mxu0
    %v615 = vadd.f32 %v235, %v614
    %v616 = vpop.f32.mrb[0].mxu0
    %617 = vdwg.mxu0
    %v618 = vadd.f32 %v610, %v325
    %v619 = vadd.f32 %v615, %v330
    %v620 = vld [vmem:[#allocation7] sm:$0xff]
    %v621 = vld [vmem:[#allocation7 + $0x8] sm:$0xff]
    %v622 = vld [vmem:[#allocation7 + $0x10] sm:$0xff]
    %v623 = vld [vmem:[#allocation7 + $0x18] sm:$0xff]
    %v624 = vld [vmem:[%s11] sm:$0x1]
    %v626 = vlaneseq
    %v627 = vshrl.u32 %v626, 7
    %v628 = vsub.s32 0, %v627
    %v629 = vrot.slane %v624, %v628
    %vm631 = vcmask 261120
    %v633 = vsel %vm631, %v430, 0
    %v636 = vsel %vm631, %v435, 0
    %638 = vmatprep.subr.mxu0 0.0
    %639 = vmatpush1.msra.mxu0 %v620
    %640 = vmatprep.subr.mxu0 0.0
    %641 = vmatpush1.msra.mxu0 %v621
    %642 = vmatprep.subr.mxu0 0.0
    %643 = vmatpush1.msra.mxu0 %v622
    %644 = vmatprep.subr.mxu0 0.0
    %645 = vmatpush1.msra.mxu0 %v623
    %646 = vmatprep.subr.mxu0 0.0
    %647 = vmatpush1.msra.mxu0 0.0
    %648 = vmatprep.subr.mxu0 0.0
    %649 = vmatpush1.msra.mxu0 0.0
    %650 = vmatprep.subr.mxu0 0.0
    %651 = vmatpush1.msra.mxu0 0.0
    %652 = vmatprep.subr.mxu0 0.0
    %653 = vmatpush1.msra.mxu0 0.0
    %654 = vmatprep.subr.mxu0 0.0
    %655 = vmatpush1.msra.mxu0 0.0
    %656 = vmatprep.subr.mxu0 0.0
    %657 = vmatpush1.msra.mxu0 0.0
    %658 = vmatprep.subr.mxu0 0.0
    %659 = vmatpush1.msra.mxu0 0.0
    %660 = vmatprep.subr.mxu0 0.0
    %661 = vmatpush1.msra.mxu0 0.0
    %662 = vmatprep.subr.mxu0 0.0
    %663 = vmatpush1.msra.mxu0 0.0
    %664 = vmatprep.subr.mxu0 0.0
    %665 = vmatpush1.msra.mxu0 0.0
    %666 = vmatprep.subr.mxu0 0.0
    %667 = vmatpush1.msra.mxu0 0.0
    %668 = vmatprep.subr.mxu0 0.0
    %669 = vmatpush1.msra.mxu0 0.0
    %670 = vmatprep.subr.mxu0 0.0
    %671 = vmatpush1.msra.mxu0 0.0
    %672 = vmatprep.subr.mxu0 0.0
    %673 = vmatpush1.msra.mxu0 0.0
    %674 = vmatprep.subr.mxu0 0.0
    %675 = vmatpush1.msra.mxu0 0.0
    %676 = vmatprep.subr.mxu0 0.0
    %677 = vmatpush1.msra.mxu0 0.0
    %678 = vmatprep.subr.mxu0 0.0
    %679 = vmatpush1.msra.mxu0 0.0
    %680 = vmatprep.subr.mxu0 0.0
    %681 = vmatpush1.msra.mxu0 0.0
    %682 = vmatprep.subr.mxu0 0.0
    %683 = vmatpush1.msra.mxu0 0.0
    %684 = vmatprep.subr.mxu0 0.0
    %685 = vmatpush1.msra.mxu0 0.0
    %686 = vmatprep.subr.mxu0 0.0
    %687 = vmatpush1.msra.mxu0 0.0
    %688 = vmatprep.subr.mxu0 0.0
    %689 = vmatpush1.msra.mxu0 0.0
    %690 = vmatprep.subr.mxu0 0.0
    %691 = vmatpush1.msra.mxu0 0.0
    %692 = vmatprep.subr.mxu0 0.0
    %693 = vmatpush1.msra.mxu0 0.0
    %694 = vmatprep.subr.mxu0 0.0
    %695 = vmatpush1.msra.mxu0 0.0
    %696 = vmatprep.subr.mxu0 0.0
    %697 = vmatpush1.msra.mxu0 0.0
    %698 = vmatprep.subr.mxu0 0.0
    %699 = vmatpush1.msra.mxu0 0.0
    %700 = vmatprep.subr.mxu0 0.0
    %701 = vmatpush1.msra.mxu0 0.0
    %702 = vmatprep.mubr.f32.mxu0 0.0
    %703 = vmatmul.mubr.f32.gmra.mrb[0].mxu0 %v633
    %v704 = vpop.f32.mrb[0].mxu0
    %v705 = vadd.f32 %v629, %v704
    %v706 = vpop.f32.mrb[0].mxu0
    %707 = vmatprep.mubr.f32.mxu0 0.0
    %708 = vmatmul.mubr.f32.gmra.mrb[0].mxu0 %v636
    %v709 = vpop.f32.mrb[0].mxu0
    %v710 = vadd.f32 %v629, %v709
    %v711 = vpop.f32.mrb[0].mxu0
    %712 = vdwg.mxu0
    %s713 = scalar_lea.vmem [#allocation7], 32
    %v714 = vld [vmem:[%s713] sm:$0xff]
    %v715 = vld [vmem:[%s713 + $0x8] sm:$0xff]
    %v716 = vld [vmem:[%s713 + $0x10] sm:$0xff]
    %v717 = vld [vmem:[%s713 + $0x18] sm:$0xff]
    %s718 = scalar_lea.vmem %s11, 1
    %v719 = vld [vmem:[%s718] sm:$0x1]
    %v721 = vlaneseq
    %v722 = vshrl.u32 %v721, 7
    %v723 = vsub.s32 0, %v722
    %v724 = vrot.slane %v719, %v723
    %v727 = vsel %vm631, %v527, 0
    %v730 = vsel %vm631, %v528, 0
    %732 = vmatprep.subr.mxu0 0.0
    %733 = vmatpush1.msra.mxu0 %v714
    %734 = vmatprep.subr.mxu0 0.0
    %735 = vmatpush1.msra.mxu0 %v715
    %736 = vmatprep.subr.mxu0 0.0
    %737 = vmatpush1.msra.mxu0 %v716
    %738 = vmatprep.subr.mxu0 0.0
    %739 = vmatpush1.msra.mxu0 %v717
    %740 = vmatprep.subr.mxu0 0.0
    %741 = vmatpush1.msra.mxu0 0.0
    %742 = vmatprep.subr.mxu0 0.0
    %743 = vmatpush1.msra.mxu0 0.0
    %744 = vmatprep.subr.mxu0 0.0
    %745 = vmatpush1.msra.mxu0 0.0
    %746 = vmatprep.subr.mxu0 0.0
    %747 = vmatpush1.msra.mxu0 0.0
    %748 = vmatprep.subr.mxu0 0.0
    %749 = vmatpush1.msra.mxu0 0.0
    %750 = vmatprep.subr.mxu0 0.0
    %751 = vmatpush1.msra.mxu0 0.0
    %752 = vmatprep.subr.mxu0 0.0
    %753 = vmatpush1.msra.mxu0 0.0
    %754 = vmatprep.subr.mxu0 0.0
    %755 = vmatpush1.msra.mxu0 0.0
    %756 = vmatprep.subr.mxu0 0.0
    %757 = vmatpush1.msra.mxu0 0.0
    %758 = vmatprep.subr.mxu0 0.0
    %759 = vmatpush1.msra.mxu0 0.0
    %760 = vmatprep.subr.mxu0 0.0
    %761 = vmatpush1.msra.mxu0 0.0
    %762 = vmatprep.subr.mxu0 0.0
    %763 = vmatpush1.msra.mxu0 0.0
    %764 = vmatprep.subr.mxu0 0.0
    %765 = vmatpush1.msra.mxu0 0.0
    %766 = vmatprep.subr.mxu0 0.0
    %767 = vmatpush1.msra.mxu0 0.0
    %768 = vmatprep.subr.mxu0 0.0
    %769 = vmatpush1.msra.mxu0 0.0
    %770 = vmatprep.subr.mxu0 0.0
    %771 = vmatpush1.msra.mxu0 0.0
    %772 = vmatprep.subr.mxu0 0.0
    %773 = vmatpush1.msra.mxu0 0.0
    %774 = vmatprep.subr.mxu0 0.0
    %775 = vmatpush1.msra.mxu0 0.0
    %776 = vmatprep.subr.mxu0 0.0
    %777 = vmatpush1.msra.mxu0 0.0
    %778 = vmatprep.subr.mxu0 0.0
    %779 = vmatpush1.msra.mxu0 0.0
    %780 = vmatprep.subr.mxu0 0.0
    %781 = vmatpush1.msra.mxu0 0.0
    %782 = vmatprep.subr.mxu0 0.0
    %783 = vmatpush1.msra.mxu0 0.0
    %784 = vmatprep.subr.mxu0 0.0
    %785 = vmatpush1.msra.mxu0 0.0
    %786 = vmatprep.subr.mxu0 0.0
    %787 = vmatpush1.msra.mxu0 0.0
    %788 = vmatprep.subr.mxu0 0.0
    %789 = vmatpush1.msra.mxu0 0.0
    %790 = vmatprep.subr.mxu0 0.0
    %791 = vmatpush1.msra.mxu0 0.0
    %792 = vmatprep.subr.mxu0 0.0
    %793 = vmatpush1.msra.mxu0 0.0
    %794 = vmatprep.subr.mxu0 0.0
    %795 = vmatpush1.msra.mxu0 0.0
    %796 = vmatprep.mubr.f32.mxu0 0.0
    %797 = vmatmul.mubr.f32.gmra.mrb[0].mxu0 %v727
    %v798 = vpop.f32.mrb[0].mxu0
    %v799 = vadd.f32 %v724, %v798
    %v800 = vpop.f32.mrb[0].mxu0
    %801 = vmatprep.mubr.f32.mxu0 0.0
    %802 = vmatmul.mubr.f32.gmra.mrb[0].mxu0 %v730
    %v803 = vpop.f32.mrb[0].mxu0
    %v804 = vadd.f32 %v724, %v803
    %v805 = vpop.f32.mrb[0].mxu0
    %806 = vdwg.mxu0
    %s807 = scalar_lea.vmem [#allocation7], 64
    %v808 = vld [vmem:[%s807] sm:$0xff]
    %v809 = vld [vmem:[%s807 + $0x8] sm:$0xff]
    %v810 = vld [vmem:[%s807 + $0x10] sm:$0xff]
    %v811 = vld [vmem:[%s807 + $0x18] sm:$0xff]
    %s812 = scalar_lea.vmem %s11, 2
    %v813 = vld [vmem:[%s812] sm:$0x1]
    %v815 = vlaneseq
    %v816 = vshrl.u32 %v815, 7
    %v817 = vsub.s32 0, %v816
    %v818 = vrot.slane %v813, %v817
    %v821 = vsel %vm631, %v618, 0
    %v824 = vsel %vm631, %v619, 0
    %826 = vmatprep.subr.mxu0 0.0
    %827 = vmatpush1.msra.mxu0 %v808
    %828 = vmatprep.subr.mxu0 0.0
    %829 = vmatpush1.msra.mxu0 %v809
    %830 = vmatprep.subr.mxu0 0.0
    %831 = vmatpush1.msra.mxu0 %v810
    %832 = vmatprep.subr.mxu0 0.0
    %833 = vmatpush1.msra.mxu0 %v811
    %834 = vmatprep.subr.mxu0 0.0
    %835 = vmatpush1.msra.mxu0 0.0
    %836 = vmatprep.subr.mxu0 0.0
    %837 = vmatpush1.msra.mxu0 0.0
    %838 = vmatprep.subr.mxu0 0.0
    %839 = vmatpush1.msra.mxu0 0.0
    %840 = vmatprep.subr.mxu0 0.0
    %841 = vmatpush1.msra.mxu0 0.0
    %842 = vmatprep.subr.mxu0 0.0
    %843 = vmatpush1.msra.mxu0 0.0
    %844 = vmatprep.subr.mxu0 0.0
    %845 = vmatpush1.msra.mxu0 0.0
    %846 = vmatprep.subr.mxu0 0.0
    %847 = vmatpush1.msra.mxu0 0.0
    %848 = vmatprep.subr.mxu0 0.0
    %849 = vmatpush1.msra.mxu0 0.0
    %850 = vmatprep.subr.mxu0 0.0
    %851 = vmatpush1.msra.mxu0 0.0
    %852 = vmatprep.subr.mxu0 0.0
    %853 = vmatpush1.msra.mxu0 0.0
    %854 = vmatprep.subr.mxu0 0.0
    %855 = vmatpush1.msra.mxu0 0.0
    %856 = vmatprep.subr.mxu0 0.0
    %857 = vmatpush1.msra.mxu0 0.0
    %858 = vmatprep.subr.mxu0 0.0
    %859 = vmatpush1.msra.mxu0 0.0
    %860 = vmatprep.subr.mxu0 0.0
    %861 = vmatpush1.msra.mxu0 0.0
    %862 = vmatprep.subr.mxu0 0.0
    %863 = vmatpush1.msra.mxu0 0.0
    %864 = vmatprep.subr.mxu0 0.0
    %865 = vmatpush1.msra.mxu0 0.0
    %866 = vmatprep.subr.mxu0 0.0
    %867 = vmatpush1.msra.mxu0 0.0
    %868 = vmatprep.subr.mxu0 0.0
    %869 = vmatpush1.msra.mxu0 0.0
    %870 = vmatprep.subr.mxu0 0.0
    %871 = vmatpush1.msra.mxu0 0.0
    %872 = vmatprep.subr.mxu0 0.0
    %873 = vmatpush1.msra.mxu0 0.0
    %874 = vmatprep.subr.mxu0 0.0
    %875 = vmatpush1.msra.mxu0 0.0
    %876 = vmatprep.subr.mxu0 0.0
    %877 = vmatpush1.msra.mxu0 0.0
    %878 = vmatprep.subr.mxu0 0.0
    %879 = vmatpush1.msra.mxu0 0.0
    %880 = vmatprep.subr.mxu0 0.0
    %881 = vmatpush1.msra.mxu0 0.0
    %882 = vmatprep.subr.mxu0 0.0
    %883 = vmatpush1.msra.mxu0 0.0
    %884 = vmatprep.subr.mxu0 0.0
    %885 = vmatpush1.msra.mxu0 0.0
    %886 = vmatprep.subr.mxu0 0.0
    %887 = vmatpush1.msra.mxu0 0.0
    %888 = vmatprep.subr.mxu0 0.0
    %889 = vmatpush1.msra.mxu0 0.0
    %890 = vmatprep.mubr.f32.mxu0 0.0
    %891 = vmatmul.mubr.f32.gmra.mrb[0].mxu0 %v821
    %v892 = vpop.f32.mrb[0].mxu0
    %v893 = vadd.f32 %v818, %v892
    %v894 = vpop.f32.mrb[0].mxu0
    %895 = vmatprep.mubr.f32.mxu0 0.0
    %896 = vmatmul.mubr.f32.gmra.mrb[0].mxu0 %v824
    %v897 = vpop.f32.mrb[0].mxu0
    %v898 = vadd.f32 %v818, %v897
    %v899 = vpop.f32.mrb[0].mxu0
    %900 = vdwg.mxu0
    %v901 = vld [vmem:[%s10] sm:$0xff]
    %v902 = vld [vmem:[%s10 + $0x8] sm:$0xff]
    %v903 = vld [vmem:[%s10 + $0x10] sm:$0xff]
    %v904 = vld [vmem:[%s10 + $0x18] sm:$0xff]
    %s905 = scalar_lea.vmem %s10, 32
    %v906 = vld [vmem:[%s905] sm:$0xff]
    %v907 = vld [vmem:[%s905 + $0x8] sm:$0xff]
    %v908 = vld [vmem:[%s905 + $0x10] sm:$0xff]
    %v909 = vld [vmem:[%s905 + $0x18] sm:$0xff]
    %s910 = scalar_lea.vmem %s10, 64
    %v911 = vld [vmem:[%s910] sm:$0xff]
    %v912 = vld [vmem:[%s910 + $0x8] sm:$0xff]
    %v913 = vld [vmem:[%s910 + $0x10] sm:$0xff]
    %v914 = vld [vmem:[%s910 + $0x18] sm:$0xff]
    %v915 = vld [vmem:[%s12] sm:$0x1]
    %v917 = vlaneseq
    %v918 = vshrl.u32 %v917, 7
    %v919 = vsub.s32 0, %v918
    %v920 = vrot.slane %v915, %v919
    %s921 = scalar_lea.vmem %s12, 1
    %v922 = vld [vmem:[%s921] sm:$0x1]
    %v924 = vlaneseq
    %v925 = vshrl.u32 %v924, 7
    %v926 = vsub.s32 0, %v925
    %v927 = vrot.slane %v922, %v926
    %s928 = scalar_lea.vmem %s12, 2
    %v929 = vld [vmem:[%s928] sm:$0x1]
    %v931 = vlaneseq
    %v932 = vshrl.u32 %v931, 7
    %v933 = vsub.s32 0, %v932
    %v934 = vrot.slane %v929, %v933
    %v936 = vsel %vm631, 0.0, 0
    %938 = vmatprep.subr.mxu0 0.0
    %939 = vmatpush1.msra.mxu0 %v901
    %940 = vmatprep.subr.mxu0 0.0
    %941 = vmatpush1.msra.mxu0 %v902
    %942 = vmatprep.subr.mxu0 0.0
    %943 = vmatpush1.msra.mxu0 %v903
    %944 = vmatprep.subr.mxu0 0.0
    %945 = vmatpush1.msra.mxu0 %v904
    %946 = vmatprep.subr.mxu0 0.0
    %947 = vmatpush1.msra.mxu0 0.0
    %948 = vmatprep.subr.mxu0 0.0
    %949 = vmatpush1.msra.mxu0 0.0
    %950 = vmatprep.subr.mxu0 0.0
    %951 = vmatpush1.msra.mxu0 0.0
    %952 = vmatprep.subr.mxu0 0.0
    %953 = vmatpush1.msra.mxu0 0.0
    %954 = vmatprep.subr.mxu0 0.0
    %955 = vmatpush1.msra.mxu0 0.0
    %956 = vmatprep.subr.mxu0 0.0
    %957 = vmatpush1.msra.mxu0 0.0
    %958 = vmatprep.subr.mxu0 0.0
    %959 = vmatpush1.msra.mxu0 0.0
    %960 = vmatprep.subr.mxu0 0.0
    %961 = vmatpush1.msra.mxu0 0.0
    %962 = vmatprep.subr.mxu0 0.0
    %963 = vmatpush1.msra.mxu0 0.0
    %964 = vmatprep.subr.mxu0 0.0
    %965 = vmatpush1.msra.mxu0 0.0
    %966 = vmatprep.subr.mxu0 0.0
    %967 = vmatpush1.msra.mxu0 0.0
    %968 = vmatprep.subr.mxu0 0.0
    %969 = vmatpush1.msra.mxu0 0.0
    %970 = vmatprep.subr.mxu0 0.0
    %971 = vmatpush1.msra.mxu0 0.0
    %972 = vmatprep.subr.mxu0 0.0
    %973 = vmatpush1.msra.mxu0 0.0
    %974 = vmatprep.subr.mxu0 0.0
    %975 = vmatpush1.msra.mxu0 0.0
    %976 = vmatprep.subr.mxu0 0.0
    %977 = vmatpush1.msra.mxu0 0.0
    %978 = vmatprep.subr.mxu0 0.0
    %979 = vmatpush1.msra.mxu0 0.0
    %980 = vmatprep.subr.mxu0 0.0
    %981 = vmatpush1.msra.mxu0 0.0
    %982 = vmatprep.subr.mxu0 0.0
    %983 = vmatpush1.msra.mxu0 0.0
    %984 = vmatprep.subr.mxu0 0.0
    %985 = vmatpush1.msra.mxu0 0.0
    %986 = vmatprep.subr.mxu0 0.0
    %987 = vmatpush1.msra.mxu0 0.0
    %988 = vmatprep.subr.mxu0 0.0
    %989 = vmatpush1.msra.mxu0 0.0
    %990 = vmatprep.subr.mxu0 0.0
    %991 = vmatpush1.msra.mxu0 0.0
    %992 = vmatprep.subr.mxu0 0.0
    %993 = vmatpush1.msra.mxu0 0.0
    %994 = vmatprep.subr.mxu0 0.0
    %995 = vmatpush1.msra.mxu0 0.0
    %996 = vmatprep.subr.mxu0 0.0
    %997 = vmatpush1.msra.mxu0 0.0
    %998 = vmatprep.subr.mxu0 0.0
    %999 = vmatpush1.msra.mxu0 0.0
    %1000 = vmatprep.subr.mxu0 0.0
    %1001 = vmatpush1.msra.mxu0 0.0
    %1002 = vmatprep.mubr.f32.mxu0 0.0
    %1003 = vmatmul.mubr.f32.gmra.mrb[0].mxu0 %v936
    %v1004 = vpop.f32.mrb[0].mxu0
    %v1005 = vadd.f32 0.0, %v1004
    %v1006 = vpop.f32.mrb[0].mxu0
    %1007 = vdwg.mxu0
    %v1008 = vadd.f32 %v705, %v1005
    %v1009 = vxor.u32 %v1008, 2147483648
    %v1010 = vmul.f32 %v1009, 1.442695
    %v1011 = vpow.pop %v1010
    %v1012 = vadd.f32 %v1011, 1.0
    %v1013 = vrcp.pop %v1012
    %v1014 = vmul.f32 1.0, %v1013
    %1015 = vrot.lane.b32.xlu0 %v920, 64
    %v1016 = vpop.permute.xlu0 %1015
    %v1018 = vadd.f32 %v1005, %v1016
    %1020 = vrot.lane.b32.xlu0 %v1018, 64
    %v1021 = vpop.permute.xlu0 %1020
    %v1023 = vmul.f32 %v1014, %v1021
    %1025 = vrot.lane.b32.xlu0 %v1023, 64
    %v1026 = vpop.permute.xlu0 %1025
    %v1028 = vadd.f32 %v705, %v1026
    %v1029 = vtanh.pop %v1028
    %v1030 = vsub.f32 1.0, %v1014
    %1032 = vrot.lane.b32.xlu0 %v1029, 96
    %v1033 = vpop.permute.xlu0 %1032
    %v1035 = vmul.f32 %v1030, %v1033
    %v1036 = vmul.f32 %v1014, 0.0
    %v1037 = vadd.f32 %v1035, %v1036
    %1038 = vmatprep.subr.mxu0 0.0
    %1039 = vmatpush1.msra.mxu0 %v906
    %1040 = vmatprep.subr.mxu0 0.0
    %1041 = vmatpush1.msra.mxu0 %v907
    %1042 = vmatprep.subr.mxu0 0.0
    %1043 = vmatpush1.msra.mxu0 %v908
    %1044 = vmatprep.subr.mxu0 0.0
    %1045 = vmatpush1.msra.mxu0 %v909
    %1046 = vmatprep.subr.mxu0 0.0
    %1047 = vmatpush1.msra.mxu0 0.0
    %1048 = vmatprep.subr.mxu0 0.0
    %1049 = vmatpush1.msra.mxu0 0.0
    %1050 = vmatprep.subr.mxu0 0.0
    %1051 = vmatpush1.msra.mxu0 0.0
    %1052 = vmatprep.subr.mxu0 0.0
    %1053 = vmatpush1.msra.mxu0 0.0
    %1054 = vmatprep.subr.mxu0 0.0
    %1055 = vmatpush1.msra.mxu0 0.0
    %1056 = vmatprep.subr.mxu0 0.0
    %1057 = vmatpush1.msra.mxu0 0.0
    %1058 = vmatprep.subr.mxu0 0.0
    %1059 = vmatpush1.msra.mxu0 0.0
    %1060 = vmatprep.subr.mxu0 0.0
    %1061 = vmatpush1.msra.mxu0 0.0
    %1062 = vmatprep.subr.mxu0 0.0
    %1063 = vmatpush1.msra.mxu0 0.0
    %1064 = vmatprep.subr.mxu0 0.0
    %1065 = vmatpush1.msra.mxu0 0.0
    %1066 = vmatprep.subr.mxu0 0.0
    %1067 = vmatpush1.msra.mxu0 0.0
    %1068 = vmatprep.subr.mxu0 0.0
    %1069 = vmatpush1.msra.mxu0 0.0
    %1070 = vmatprep.subr.mxu0 0.0
    %1071 = vmatpush1.msra.mxu0 0.0
    %1072 = vmatprep.subr.mxu0 0.0
    %1073 = vmatpush1.msra.mxu0 0.0
    %1074 = vmatprep.subr.mxu0 0.0
    %1075 = vmatpush1.msra.mxu0 0.0
    %1076 = vmatprep.subr.mxu0 0.0
    %1077 = vmatpush1.msra.mxu0 0.0
    %1078 = vmatprep.subr.mxu0 0.0
    %1079 = vmatpush1.msra.mxu0 0.0
    %1080 = vmatprep.subr.mxu0 0.0
    %1081 = vmatpush1.msra.mxu0 0.0
    %1082 = vmatprep.subr.mxu0 0.0
    %1083 = vmatpush1.msra.mxu0 0.0
    %1084 = vmatprep.subr.mxu0 0.0
    %1085 = vmatpush1.msra.mxu0 0.0
    %1086 = vmatprep.subr.mxu0 0.0
    %1087 = vmatpush1.msra.mxu0 0.0
    %1088 = vmatprep.subr.mxu0 0.0
    %1089 = vmatpush1.msra.mxu0 0.0
    %1090 = vmatprep.subr.mxu0 0.0
    %1091 = vmatpush1.msra.mxu0 0.0
    %1092 = vmatprep.subr.mxu0 0.0
    %1093 = vmatpush1.msra.mxu0 0.0
    %1094 = vmatprep.subr.mxu0 0.0
    %1095 = vmatpush1.msra.mxu0 0.0
    %1096 = vmatprep.subr.mxu0 0.0
    %1097 = vmatpush1.msra.mxu0 0.0
    %1098 = vmatprep.subr.mxu0 0.0
    %1099 = vmatpush1.msra.mxu0 0.0
    %1100 = vmatprep.subr.mxu0 0.0
    %1101 = vmatpush1.msra.mxu0 0.0
    %1102 = vmatprep.mubr.f32.mxu0 0.0
    %1103 = vmatmul.mubr.f32.gmra.mrb[0].mxu0 %v936
    %v1104 = vpop.f32.mrb[0].mxu0
    %v1105 = vadd.f32 0.0, %v1104
    %v1106 = vpop.f32.mrb[0].mxu0
    %1107 = vdwg.mxu0
    %v1108 = vadd.f32 %v799, %v1105
    %v1109 = vxor.u32 %v1108, 2147483648
    %v1110 = vmul.f32 %v1109, 1.442695
    %v1111 = vpow.pop %v1110
    %v1112 = vadd.f32 %v1111, 1.0
    %v1113 = vrcp.pop %v1112
    %v1114 = vmul.f32 1.0, %v1113
    %1115 = vrot.lane.b32.xlu0 %v927, 64
    %v1116 = vpop.permute.xlu0 %1115
    %v1118 = vadd.f32 %v1105, %v1116
    %1120 = vrot.lane.b32.xlu0 %v1118, 64
    %v1121 = vpop.permute.xlu0 %1120
    %v1123 = vmul.f32 %v1114, %v1121
    %1125 = vrot.lane.b32.xlu0 %v1123, 64
    %v1126 = vpop.permute.xlu0 %1125
    %v1128 = vadd.f32 %v799, %v1126
    %v1129 = vtanh.pop %v1128
    %v1130 = vsub.f32 1.0, %v1114
    %1132 = vrot.lane.b32.xlu0 %v1129, 96
    %v1133 = vpop.permute.xlu0 %1132
    %v1135 = vmul.f32 %v1130, %v1133
    %v1136 = vmul.f32 %v1114, 0.0
    %v1137 = vadd.f32 %v1135, %v1136
    %1139 = vrot.lane.b32.xlu0 %v1037, 96
    %v1140 = vpop.permute.xlu0 %1139
    %v1141 = vsel %vm631, %v1140, 0
    %1143 = vmatprep.subr.mxu0 0.0
    %1144 = vmatpush1.msra.mxu0 %v901
    %1145 = vmatprep.subr.mxu0 0.0
    %1146 = vmatpush1.msra.mxu0 %v902
    %1147 = vmatprep.subr.mxu0 0.0
    %1148 = vmatpush1.msra.mxu0 %v903
    %1149 = vmatprep.subr.mxu0 0.0
    %1150 = vmatpush1.msra.mxu0 %v904
    %1151 = vmatprep.subr.mxu0 0.0
    %1152 = vmatpush1.msra.mxu0 0.0
    %1153 = vmatprep.subr.mxu0 0.0
    %1154 = vmatpush1.msra.mxu0 0.0
    %1155 = vmatprep.subr.mxu0 0.0
    %1156 = vmatpush1.msra.mxu0 0.0
    %1157 = vmatprep.subr.mxu0 0.0
    %1158 = vmatpush1.msra.mxu0 0.0
    %1159 = vmatprep.subr.mxu0 0.0
    %1160 = vmatpush1.msra.mxu0 0.0
    %1161 = vmatprep.subr.mxu0 0.0
    %1162 = vmatpush1.msra.mxu0 0.0
    %1163 = vmatprep.subr.mxu0 0.0
    %1164 = vmatpush1.msra.mxu0 0.0
    %1165 = vmatprep.subr.mxu0 0.0
    %1166 = vmatpush1.msra.mxu0 0.0
    %1167 = vmatprep.subr.mxu0 0.0
    %1168 = vmatpush1.msra.mxu0 0.0
    %1169 = vmatprep.subr.mxu0 0.0
    %1170 = vmatpush1.msra.mxu0 0.0
    %1171 = vmatprep.subr.mxu0 0.0
    %1172 = vmatpush1.msra.mxu0 0.0
    %1173 = vmatprep.subr.mxu0 0.0
    %1174 = vmatpush1.msra.mxu0 0.0
    %1175 = vmatprep.subr.mxu0 0.0
    %1176 = vmatpush1.msra.mxu0 0.0
    %1177 = vmatprep.subr.mxu0 0.0
    %1178 = vmatpush1.msra.mxu0 0.0
    %1179 = vmatprep.subr.mxu0 0.0
    %1180 = vmatpush1.msra.mxu0 0.0
    %1181 = vmatprep.subr.mxu0 0.0
    %1182 = vmatpush1.msra.mxu0 0.0
    %1183 = vmatprep.subr.mxu0 0.0
    %1184 = vmatpush1.msra.mxu0 0.0
    %1185 = vmatprep.subr.mxu0 0.0
    %1186 = vmatpush1.msra.mxu0 0.0
    %1187 = vmatprep.subr.mxu0 0.0
    %1188 = vmatpush1.msra.mxu0 0.0
    %1189 = vmatprep.subr.mxu0 0.0
    %1190 = vmatpush1.msra.mxu0 0.0
    %1191 = vmatprep.subr.mxu0 0.0
    %1192 = vmatpush1.msra.mxu0 0.0
    %1193 = vmatprep.subr.mxu0 0.0
    %1194 = vmatpush1.msra.mxu0 0.0
    %1195 = vmatprep.subr.mxu0 0.0
    %1196 = vmatpush1.msra.mxu0 0.0
    %1197 = vmatprep.subr.mxu0 0.0
    %1198 = vmatpush1.msra.mxu0 0.0
    %1199 = vmatprep.subr.mxu0 0.0
    %1200 = vmatpush1.msra.mxu0 0.0
    %1201 = vmatprep.subr.mxu0 0.0
    %1202 = vmatpush1.msra.mxu0 0.0
    %1203 = vmatprep.subr.mxu0 0.0
    %1204 = vmatpush1.msra.mxu0 0.0
    %1205 = vmatprep.subr.mxu0 0.0
    %1206 = vmatpush1.msra.mxu0 0.0
    %1207 = vmatprep.mubr.f32.mxu0 0.0
    %1208 = vmatmul.mubr.f32.gmra.mrb[0].mxu0 %v1141
    %v1209 = vpop.f32.mrb[0].mxu0
    %v1210 = vadd.f32 0.0, %v1209
    %v1211 = vpop.f32.mrb[0].mxu0
    %1212 = vdwg.mxu0
    %v1214 = vrot.slane %v1210, 6
    %v1216 = vadd.f32 %v705, %v1214
    %v1217 = vxor.u32 %v1216, 2147483648
    %v1218 = vmul.f32 %v1217, 1.442695
    %v1219 = vpow.pop %v1218
    %v1220 = vadd.f32 %v1219, 1.0
    %v1221 = vrcp.pop %v1220
    %v1222 = vmul.f32 1.0, %v1221
    %v1223 = vadd.f32 %v1210, %v1016
    %v1225 = vrot.slane %v1223, 6
    %1226 = vrot.lane.b32.xlu0 %v1225, 64
    %v1227 = vpop.permute.xlu0 %1226
    %v1229 = vmul.f32 %v1222, %v1227
    %1231 = vrot.lane.b32.xlu0 %v1229, 64
    %v1232 = vpop.permute.xlu0 %1231
    %v1234 = vadd.f32 %v705, %v1232
    %v1235 = vtanh.pop %v1234
    %v1236 = vsub.f32 1.0, %v1222
    %1238 = vrot.lane.b32.xlu0 %v1235, 96
    %v1239 = vpop.permute.xlu0 %1238
    %v1241 = vmul.f32 %v1236, %v1239
    %v1242 = vrot.slane %v1037, 6
    %v1244 = vmul.f32 %v1222, %v1242
    %v1245 = vadd.f32 %v1241, %v1244
    %1247 = vrot.lane.b32.xlu0 %v1137, 96
    %v1248 = vpop.permute.xlu0 %1247
    %v1249 = vsel %vm631, %v1248, 0
    %1251 = vmatprep.subr.mxu0 0.0
    %1252 = vmatpush1.msra.mxu0 %v906
    %1253 = vmatprep.subr.mxu0 0.0
    %1254 = vmatpush1.msra.mxu0 %v907
    %1255 = vmatprep.subr.mxu0 0.0
    %1256 = vmatpush1.msra.mxu0 %v908
    %1257 = vmatprep.subr.mxu0 0.0
    %1258 = vmatpush1.msra.mxu0 %v909
    %1259 = vmatprep.subr.mxu0 0.0
    %1260 = vmatpush1.msra.mxu0 0.0
    %1261 = vmatprep.subr.mxu0 0.0
    %1262 = vmatpush1.msra.mxu0 0.0
    %1263 = vmatprep.subr.mxu0 0.0
    %1264 = vmatpush1.msra.mxu0 0.0
    %1265 = vmatprep.subr.mxu0 0.0
    %1266 = vmatpush1.msra.mxu0 0.0
    %1267 = vmatprep.subr.mxu0 0.0
    %1268 = vmatpush1.msra.mxu0 0.0
    %1269 = vmatprep.subr.mxu0 0.0
    %1270 = vmatpush1.msra.mxu0 0.0
    %1271 = vmatprep.subr.mxu0 0.0
    %1272 = vmatpush1.msra.mxu0 0.0
    %1273 = vmatprep.subr.mxu0 0.0
    %1274 = vmatpush1.msra.mxu0 0.0
    %1275 = vmatprep.subr.mxu0 0.0
    %1276 = vmatpush1.msra.mxu0 0.0
    %1277 = vmatprep.subr.mxu0 0.0
    %1278 = vmatpush1.msra.mxu0 0.0
    %1279 = vmatprep.subr.mxu0 0.0
    %1280 = vmatpush1.msra.mxu0 0.0
    %1281 = vmatprep.subr.mxu0 0.0
    %1282 = vmatpush1.msra.mxu0 0.0
    %1283 = vmatprep.subr.mxu0 0.0
    %1284 = vmatpush1.msra.mxu0 0.0
    %1285 = vmatprep.subr.mxu0 0.0
    %1286 = vmatpush1.msra.mxu0 0.0
    %1287 = vmatprep.subr.mxu0 0.0
    %1288 = vmatpush1.msra.mxu0 0.0
    %1289 = vmatprep.subr.mxu0 0.0
    %1290 = vmatpush1.msra.mxu0 0.0
    %1291 = vmatprep.subr.mxu0 0.0
    %1292 = vmatpush1.msra.mxu0 0.0
    %1293 = vmatprep.subr.mxu0 0.0
    %1294 = vmatpush1.msra.mxu0 0.0
    %1295 = vmatprep.subr.mxu0 0.0
    %1296 = vmatpush1.msra.mxu0 0.0
    %1297 = vmatprep.subr.mxu0 0.0
    %1298 = vmatpush1.msra.mxu0 0.0
    %1299 = vmatprep.subr.mxu0 0.0
    %1300 = vmatpush1.msra.mxu0 0.0
    %1301 = vmatprep.subr.mxu0 0.0
    %1302 = vmatpush1.msra.mxu0 0.0
    %1303 = vmatprep.subr.mxu0 0.0
    %1304 = vmatpush1.msra.mxu0 0.0
    %1305 = vmatprep.subr.mxu0 0.0
    %1306 = vmatpush1.msra.mxu0 0.0
    %1307 = vmatprep.subr.mxu0 0.0
    %1308 = vmatpush1.msra.mxu0 0.0
    %1309 = vmatprep.subr.mxu0 0.0
    %1310 = vmatpush1.msra.mxu0 0.0
    %1311 = vmatprep.subr.mxu0 0.0
    %1312 = vmatpush1.msra.mxu0 0.0
    %1313 = vmatprep.subr.mxu0 0.0
    %1314 = vmatpush1.msra.mxu0 0.0
    %1315 = vmatprep.mubr.f32.mxu0 0.0
    %1316 = vmatmul.mubr.f32.gmra.mrb[0].mxu0 %v1249
    %v1317 = vpop.f32.mrb[0].mxu0
    %v1318 = vadd.f32 0.0, %v1317
    %v1319 = vpop.f32.mrb[0].mxu0
    %1320 = vdwg.mxu0
    %v1322 = vrot.slane %v1318, 6
    %v1324 = vadd.f32 %v799, %v1322
    %v1325 = vxor.u32 %v1324, 2147483648
    %v1326 = vmul.f32 %v1325, 1.442695
    %v1327 = vpow.pop %v1326
    %v1328 = vadd.f32 %v1327, 1.0
    %v1329 = vrcp.pop %v1328
    %v1330 = vmul.f32 1.0, %v1329
    %v1331 = vadd.f32 %v1318, %v1116
    %v1333 = vrot.slane %v1331, 6
    %1334 = vrot.lane.b32.xlu0 %v1333, 64
    %v1335 = vpop.permute.xlu0 %1334
    %v1337 = vmul.f32 %v1330, %v1335
    %1339 = vrot.lane.b32.xlu0 %v1337, 64
    %v1340 = vpop.permute.xlu0 %1339
    %v1342 = vadd.f32 %v799, %v1340
    %v1343 = vtanh.pop %v1342
    %v1344 = vsub.f32 1.0, %v1330
    %1346 = vrot.lane.b32.xlu0 %v1343, 96
    %v1347 = vpop.permute.xlu0 %1346
    %v1349 = vmul.f32 %v1344, %v1347
    %v1350 = vrot.slane %v1137, 6
    %v1352 = vmul.f32 %v1330, %v1350
    %v1353 = vadd.f32 %v1349, %v1352
    %v1355 = vrot.slane %v1245, 2
    %1356 = vrot.lane.b32.xlu0 %v1355, 96
    %v1357 = vpop.permute.xlu0 %1356
    %v1358 = vsel %vm631, %v1357, 0
    %1360 = vmatprep.subr.mxu0 0.0
    %1361 = vmatpush1.msra.mxu0 %v901
    %1362 = vmatprep.subr.mxu0 0.0
    %1363 = vmatpush1.msra.mxu0 %v902
    %1364 = vmatprep.subr.mxu0 0.0
    %1365 = vmatpush1.msra.mxu0 %v903
    %1366 = vmatprep.subr.mxu0 0.0
    %1367 = vmatpush1.msra.mxu0 %v904
    %1368 = vmatprep.subr.mxu0 0.0
    %1369 = vmatpush1.msra.mxu0 0.0
    %1370 = vmatprep.subr.mxu0 0.0
    %1371 = vmatpush1.msra.mxu0 0.0
    %1372 = vmatprep.subr.mxu0 0.0
    %1373 = vmatpush1.msra.mxu0 0.0
    %1374 = vmatprep.subr.mxu0 0.0
    %1375 = vmatpush1.msra.mxu0 0.0
    %1376 = vmatprep.subr.mxu0 0.0
    %1377 = vmatpush1.msra.mxu0 0.0
    %1378 = vmatprep.subr.mxu0 0.0
    %1379 = vmatpush1.msra.mxu0 0.0
    %1380 = vmatprep.subr.mxu0 0.0
    %1381 = vmatpush1.msra.mxu0 0.0
    %1382 = vmatprep.subr.mxu0 0.0
    %1383 = vmatpush1.msra.mxu0 0.0
    %1384 = vmatprep.subr.mxu0 0.0
    %1385 = vmatpush1.msra.mxu0 0.0
    %1386 = vmatprep.subr.mxu0 0.0
    %1387 = vmatpush1.msra.mxu0 0.0
    %1388 = vmatprep.subr.mxu0 0.0
    %1389 = vmatpush1.msra.mxu0 0.0
    %1390 = vmatprep.subr.mxu0 0.0
    %1391 = vmatpush1.msra.mxu0 0.0
    %1392 = vmatprep.subr.mxu0 0.0
    %1393 = vmatpush1.msra.mxu0 0.0
    %1394 = vmatprep.subr.mxu0 0.0
    %1395 = vmatpush1.msra.mxu0 0.0
    %1396 = vmatprep.subr.mxu0 0.0
    %1397 = vmatpush1.msra.mxu0 0.0
    %1398 = vmatprep.subr.mxu0 0.0
    %1399 = vmatpush1.msra.mxu0 0.0
    %1400 = vmatprep.subr.mxu0 0.0
    %1401 = vmatpush1.msra.mxu0 0.0
    %1402 = vmatprep.subr.mxu0 0.0
    %1403 = vmatpush1.msra.mxu0 0.0
    %1404 = vmatprep.subr.mxu0 0.0
    %1405 = vmatpush1.msra.mxu0 0.0
    %1406 = vmatprep.subr.mxu0 0.0
    %1407 = vmatpush1.msra.mxu0 0.0
    %1408 = vmatprep.subr.mxu0 0.0
    %1409 = vmatpush1.msra.mxu0 0.0
    %1410 = vmatprep.subr.mxu0 0.0
    %1411 = vmatpush1.msra.mxu0 0.0
    %1412 = vmatprep.subr.mxu0 0.0
    %1413 = vmatpush1.msra.mxu0 0.0
    %1414 = vmatprep.subr.mxu0 0.0
    %1415 = vmatpush1.msra.mxu0 0.0
    %1416 = vmatprep.subr.mxu0 0.0
    %1417 = vmatpush1.msra.mxu0 0.0
    %1418 = vmatprep.subr.mxu0 0.0
    %1419 = vmatpush1.msra.mxu0 0.0
    %1420 = vmatprep.subr.mxu0 0.0
    %1421 = vmatpush1.msra.mxu0 0.0
    %1422 = vmatprep.subr.mxu0 0.0
    %1423 = vmatpush1.msra.mxu0 0.0
    %1424 = vmatprep.mubr.f32.mxu0 0.0
    %1425 = vmatmul.mubr.f32.gmra.mrb[0].mxu0 %v1358
    %v1426 = vpop.f32.mrb[0].mxu0
    %v1427 = vadd.f32 0.0, %v1426
    %v1428 = vpop.f32.mrb[0].mxu0
    %1429 = vdwg.mxu0
    %v1431 = vrot.slane %v1427, 4
    %v1433 = vadd.f32 %v705, %v1431
    %v1434 = vxor.u32 %v1433, 2147483648
    %v1435 = vmul.f32 %v1434, 1.442695
    %v1436 = vpow.pop %v1435
    %v1437 = vadd.f32 %v1436, 1.0
    %v1438 = vrcp.pop %v1437
    %v1439 = vmul.f32 1.0, %v1438
    %v1440 = vadd.f32 %v1427, %v1016
    %v1442 = vrot.slane %v1440, 4
    %1443 = vrot.lane.b32.xlu0 %v1442, 64
    %v1444 = vpop.permute.xlu0 %1443
    %v1446 = vmul.f32 %v1439, %v1444
    %1448 = vrot.lane.b32.xlu0 %v1446, 64
    %v1449 = vpop.permute.xlu0 %1448
    %v1451 = vadd.f32 %v705, %v1449
    %v1452 = vtanh.pop %v1451
    %v1453 = vsub.f32 1.0, %v1439
    %1455 = vrot.lane.b32.xlu0 %v1452, 96
    %v1456 = vpop.permute.xlu0 %1455
    %v1458 = vmul.f32 %v1453, %v1456
    %v1459 = vrot.slane %v1245, 6
    %v1461 = vmul.f32 %v1439, %v1459
    %v1462 = vadd.f32 %v1458, %v1461
    %v1464 = vrot.slane %v1353, 2
    %1465 = vrot.lane.b32.xlu0 %v1464, 96
    %v1466 = vpop.permute.xlu0 %1465
    %v1467 = vsel %vm631, %v1466, 0
    %1469 = vmatprep.subr.mxu0 0.0
    %1470 = vmatpush1.msra.mxu0 %v906
    %1471 = vmatprep.subr.mxu0 0.0
    %1472 = vmatpush1.msra.mxu0 %v907
    %1473 = vmatprep.subr.mxu0 0.0
    %1474 = vmatpush1.msra.mxu0 %v908
    %1475 = vmatprep.subr.mxu0 0.0
    %1476 = vmatpush1.msra.mxu0 %v909
    %1477 = vmatprep.subr.mxu0 0.0
    %1478 = vmatpush1.msra.mxu0 0.0
    %1479 = vmatprep.subr.mxu0 0.0
    %1480 = vmatpush1.msra.mxu0 0.0
    %1481 = vmatprep.subr.mxu0 0.0
    %1482 = vmatpush1.msra.mxu0 0.0
    %1483 = vmatprep.subr.mxu0 0.0
    %1484 = vmatpush1.msra.mxu0 0.0
    %1485 = vmatprep.subr.mxu0 0.0
    %1486 = vmatpush1.msra.mxu0 0.0
    %1487 = vmatprep.subr.mxu0 0.0
    %1488 = vmatpush1.msra.mxu0 0.0
    %1489 = vmatprep.subr.mxu0 0.0
    %1490 = vmatpush1.msra.mxu0 0.0
    %1491 = vmatprep.subr.mxu0 0.0
    %1492 = vmatpush1.msra.mxu0 0.0
    %1493 = vmatprep.subr.mxu0 0.0
    %1494 = vmatpush1.msra.mxu0 0.0
    %1495 = vmatprep.subr.mxu0 0.0
    %1496 = vmatpush1.msra.mxu0 0.0
    %1497 = vmatprep.subr.mxu0 0.0
    %1498 = vmatpush1.msra.mxu0 0.0
    %1499 = vmatprep.subr.mxu0 0.0
    %1500 = vmatpush1.msra.mxu0 0.0
    %1501 = vmatprep.subr.mxu0 0.0
    %1502 = vmatpush1.msra.mxu0 0.0
    %1503 = vmatprep.subr.mxu0 0.0
    %1504 = vmatpush1.msra.mxu0 0.0
    %1505 = vmatprep.subr.mxu0 0.0
    %1506 = vmatpush1.msra.mxu0 0.0
    %1507 = vmatprep.subr.mxu0 0.0
    %1508 = vmatpush1.msra.mxu0 0.0
    %1509 = vmatprep.subr.mxu0 0.0
    %1510 = vmatpush1.msra.mxu0 0.0
    %1511 = vmatprep.subr.mxu0 0.0
    %1512 = vmatpush1.msra.mxu0 0.0
    %1513 = vmatprep.subr.mxu0 0.0
    %1514 = vmatpush1.msra.mxu0 0.0
    %1515 = vmatprep.subr.mxu0 0.0
    %1516 = vmatpush1.msra.mxu0 0.0
    %1517 = vmatprep.subr.mxu0 0.0
    %1518 = vmatpush1.msra.mxu0 0.0
    %1519 = vmatprep.subr.mxu0 0.0
    %1520 = vmatpush1.msra.mxu0 0.0
    %1521 = vmatprep.subr.mxu0 0.0
    %1522 = vmatpush1.msra.mxu0 0.0
    %1523 = vmatprep.subr.mxu0 0.0
    %1524 = vmatpush1.msra.mxu0 0.0
    %1525 = vmatprep.subr.mxu0 0.0
    %1526 = vmatpush1.msra.mxu0 0.0
    %1527 = vmatprep.subr.mxu0 0.0
    %1528 = vmatpush1.msra.mxu0 0.0
    %1529 = vmatprep.subr.mxu0 0.0
    %1530 = vmatpush1.msra.mxu0 0.0
    %1531 = vmatprep.subr.mxu0 0.0
    %1532 = vmatpush1.msra.mxu0 0.0
    %1533 = vmatprep.mubr.f32.mxu0 0.0
    %1534 = vmatmul.mubr.f32.gmra.mrb[0].mxu0 %v1467
    %v1535 = vpop.f32.mrb[0].mxu0
    %v1536 = vadd.f32 0.0, %v1535
    %v1537 = vpop.f32.mrb[0].mxu0
    %1538 = vdwg.mxu0
    %v1540 = vrot.slane %v1536, 4
    %v1542 = vadd.f32 %v799, %v1540
    %v1543 = vxor.u32 %v1542, 2147483648
    %v1544 = vmul.f32 %v1543, 1.442695
    %v1545 = vpow.pop %v1544
    %v1546 = vadd.f32 %v1545, 1.0
    %v1547 = vrcp.pop %v1546
    %v1548 = vmul.f32 1.0, %v1547
    %v1549 = vadd.f32 %v1536, %v1116
    %v1551 = vrot.slane %v1549, 4
    %1552 = vrot.lane.b32.xlu0 %v1551, 64
    %v1553 = vpop.permute.xlu0 %1552
    %v1555 = vmul.f32 %v1548, %v1553
    %1557 = vrot.lane.b32.xlu0 %v1555, 64
    %v1558 = vpop.permute.xlu0 %1557
    %v1560 = vadd.f32 %v799, %v1558
    %v1561 = vtanh.pop %v1560
    %v1562 = vsub.f32 1.0, %v1548
    %1564 = vrot.lane.b32.xlu0 %v1561, 96
    %v1565 = vpop.permute.xlu0 %1564
    %v1567 = vmul.f32 %v1562, %v1565
    %v1568 = vrot.slane %v1353, 6
    %v1570 = vmul.f32 %v1548, %v1568
    %v1571 = vadd.f32 %v1567, %v1570
    %v1573 = vrot.slane %v1462, 4
    %1574 = vrot.lane.b32.xlu0 %v1573, 96
    %v1575 = vpop.permute.xlu0 %1574
    %v1576 = vsel %vm631, %v1575, 0
    %1578 = vmatprep.subr.mxu0 0.0
    %1579 = vmatpush1.msra.mxu0 %v901
    %1580 = vmatprep.subr.mxu0 0.0
    %1581 = vmatpush1.msra.mxu0 %v902
    %1582 = vmatprep.subr.mxu0 0.0
    %1583 = vmatpush1.msra.mxu0 %v903
    %1584 = vmatprep.subr.mxu0 0.0
    %1585 = vmatpush1.msra.mxu0 %v904
    %1586 = vmatprep.subr.mxu0 0.0
    %1587 = vmatpush1.msra.mxu0 0.0
    %1588 = vmatprep.subr.mxu0 0.0
    %1589 = vmatpush1.msra.mxu0 0.0
    %1590 = vmatprep.subr.mxu0 0.0
    %1591 = vmatpush1.msra.mxu0 0.0
    %1592 = vmatprep.subr.mxu0 0.0
    %1593 = vmatpush1.msra.mxu0 0.0
    %1594 = vmatprep.subr.mxu0 0.0
    %1595 = vmatpush1.msra.mxu0 0.0
    %1596 = vmatprep.subr.mxu0 0.0
    %1597 = vmatpush1.msra.mxu0 0.0
    %1598 = vmatprep.subr.mxu0 0.0
    %1599 = vmatpush1.msra.mxu0 0.0
    %1600 = vmatprep.subr.mxu0 0.0
    %1601 = vmatpush1.msra.mxu0 0.0
    %1602 = vmatprep.subr.mxu0 0.0
    %1603 = vmatpush1.msra.mxu0 0.0
    %1604 = vmatprep.subr.mxu0 0.0
    %1605 = vmatpush1.msra.mxu0 0.0
    %1606 = vmatprep.subr.mxu0 0.0
    %1607 = vmatpush1.msra.mxu0 0.0
    %1608 = vmatprep.subr.mxu0 0.0
    %1609 = vmatpush1.msra.mxu0 0.0
    %1610 = vmatprep.subr.mxu0 0.0
    %1611 = vmatpush1.msra.mxu0 0.0
    %1612 = vmatprep.subr.mxu0 0.0
    %1613 = vmatpush1.msra.mxu0 0.0
    %1614 = vmatprep.subr.mxu0 0.0
    %1615 = vmatpush1.msra.mxu0 0.0
    %1616 = vmatprep.subr.mxu0 0.0
    %1617 = vmatpush1.msra.mxu0 0.0
    %1618 = vmatprep.subr.mxu0 0.0
    %1619 = vmatpush1.msra.mxu0 0.0
    %1620 = vmatprep.subr.mxu0 0.0
    %1621 = vmatpush1.msra.mxu0 0.0
    %1622 = vmatprep.subr.mxu0 0.0
    %1623 = vmatpush1.msra.mxu0 0.0
    %1624 = vmatprep.subr.mxu0 0.0
    %1625 = vmatpush1.msra.mxu0 0.0
    %1626 = vmatprep.subr.mxu0 0.0
    %1627 = vmatpush1.msra.mxu0 0.0
    %1628 = vmatprep.subr.mxu0 0.0
    %1629 = vmatpush1.msra.mxu0 0.0
    %1630 = vmatprep.subr.mxu0 0.0
    %1631 = vmatpush1.msra.mxu0 0.0
    %1632 = vmatprep.subr.mxu0 0.0
    %1633 = vmatpush1.msra.mxu0 0.0
    %1634 = vmatprep.subr.mxu0 0.0
    %1635 = vmatpush1.msra.mxu0 0.0
    %1636 = vmatprep.subr.mxu0 0.0
    %1637 = vmatpush1.msra.mxu0 0.0
    %1638 = vmatprep.subr.mxu0 0.0
    %1639 = vmatpush1.msra.mxu0 0.0
    %1640 = vmatprep.subr.mxu0 0.0
    %1641 = vmatpush1.msra.mxu0 0.0
    %1642 = vmatprep.mubr.f32.mxu0 0.0
    %1643 = vmatmul.mubr.f32.gmra.mrb[0].mxu0 %v1576
    %v1644 = vpop.f32.mrb[0].mxu0
    %v1645 = vadd.f32 0.0, %v1644
    %v1646 = vpop.f32.mrb[0].mxu0
    %1647 = vdwg.mxu0
    %v1649 = vrot.slane %v1645, 2
    %v1651 = vadd.f32 %v705, %v1649
    %v1652 = vxor.u32 %v1651, 2147483648
    %v1653 = vmul.f32 %v1652, 1.442695
    %v1654 = vpow.pop %v1653
    %v1655 = vadd.f32 %v1654, 1.0
    %v1656 = vrcp.pop %v1655
    %v1657 = vmul.f32 1.0, %v1656
    %v1658 = vadd.f32 %v1645, %v1016
    %v1660 = vrot.slane %v1658, 2
    %1661 = vrot.lane.b32.xlu0 %v1660, 64
    %v1662 = vpop.permute.xlu0 %1661
    %v1664 = vmul.f32 %v1657, %v1662
    %1666 = vrot.lane.b32.xlu0 %v1664, 64
    %v1667 = vpop.permute.xlu0 %1666
    %v1669 = vadd.f32 %v705, %v1667
    %v1670 = vtanh.pop %v1669
    %v1671 = vsub.f32 1.0, %v1657
    %1673 = vrot.lane.b32.xlu0 %v1670, 96
    %v1674 = vpop.permute.xlu0 %1673
    %v1676 = vmul.f32 %v1671, %v1674
    %v1677 = vrot.slane %v1462, 6
    %v1679 = vmul.f32 %v1657, %v1677
    %v1680 = vadd.f32 %v1676, %v1679
    %v1682 = vrot.slane %v1571, 4
    %1683 = vrot.lane.b32.xlu0 %v1682, 96
    %v1684 = vpop.permute.xlu0 %1683
    %v1685 = vsel %vm631, %v1684, 0
    %1687 = vmatprep.subr.mxu0 0.0
    %1688 = vmatpush1.msra.mxu0 %v906
    %1689 = vmatprep.subr.mxu0 0.0
    %1690 = vmatpush1.msra.mxu0 %v907
    %1691 = vmatprep.subr.mxu0 0.0
    %1692 = vmatpush1.msra.mxu0 %v908
    %1693 = vmatprep.subr.mxu0 0.0
    %1694 = vmatpush1.msra.mxu0 %v909
    %1695 = vmatprep.subr.mxu0 0.0
    %1696 = vmatpush1.msra.mxu0 0.0
    %1697 = vmatprep.subr.mxu0 0.0
    %1698 = vmatpush1.msra.mxu0 0.0
    %1699 = vmatprep.subr.mxu0 0.0
    %1700 = vmatpush1.msra.mxu0 0.0
    %1701 = vmatprep.subr.mxu0 0.0
    %1702 = vmatpush1.msra.mxu0 0.0
    %1703 = vmatprep.subr.mxu0 0.0
    %1704 = vmatpush1.msra.mxu0 0.0
    %1705 = vmatprep.subr.mxu0 0.0
    %1706 = vmatpush1.msra.mxu0 0.0
    %1707 = vmatprep.subr.mxu0 0.0
    %1708 = vmatpush1.msra.mxu0 0.0
    %1709 = vmatprep.subr.mxu0 0.0
    %1710 = vmatpush1.msra.mxu0 0.0
    %1711 = vmatprep.subr.mxu0 0.0
    %1712 = vmatpush1.msra.mxu0 0.0
    %1713 = vmatprep.subr.mxu0 0.0
    %1714 = vmatpush1.msra.mxu0 0.0
    %1715 = vmatprep.subr.mxu0 0.0
    %1716 = vmatpush1.msra.mxu0 0.0
    %1717 = vmatprep.subr.mxu0 0.0
    %1718 = vmatpush1.msra.mxu0 0.0
    %1719 = vmatprep.subr.mxu0 0.0
    %1720 = vmatpush1.msra.mxu0 0.0
    %1721 = vmatprep.subr.mxu0 0.0
    %1722 = vmatpush1.msra.mxu0 0.0
    %1723 = vmatprep.subr.mxu0 0.0
    %1724 = vmatpush1.msra.mxu0 0.0
    %1725 = vmatprep.subr.mxu0 0.0
    %1726 = vmatpush1.msra.mxu0 0.0
    %1727 = vmatprep.subr.mxu0 0.0
    %1728 = vmatpush1.msra.mxu0 0.0
    %1729 = vmatprep.subr.mxu0 0.0
    %1730 = vmatpush1.msra.mxu0 0.0
    %1731 = vmatprep.subr.mxu0 0.0
    %1732 = vmatpush1.msra.mxu0 0.0
    %1733 = vmatprep.subr.mxu0 0.0
    %1734 = vmatpush1.msra.mxu0 0.0
    %1735 = vmatprep.subr.mxu0 0.0
    %1736 = vmatpush1.msra.mxu0 0.0
    %1737 = vmatprep.subr.mxu0 0.0
    %1738 = vmatpush1.msra.mxu0 0.0
    %1739 = vmatprep.subr.mxu0 0.0
    %1740 = vmatpush1.msra.mxu0 0.0
    %1741 = vmatprep.subr.mxu0 0.0
    %1742 = vmatpush1.msra.mxu0 0.0
    %1743 = vmatprep.subr.mxu0 0.0
    %1744 = vmatpush1.msra.mxu0 0.0
    %1745 = vmatprep.subr.mxu0 0.0
    %1746 = vmatpush1.msra.mxu0 0.0
    %1747 = vmatprep.subr.mxu0 0.0
    %1748 = vmatpush1.msra.mxu0 0.0
    %1749 = vmatprep.subr.mxu0 0.0
    %1750 = vmatpush1.msra.mxu0 0.0
    %1751 = vmatprep.mubr.f32.mxu0 0.0
    %1752 = vmatmul.mubr.f32.gmra.mrb[0].mxu0 %v1685
    %v1753 = vpop.f32.mrb[0].mxu0
    %v1754 = vadd.f32 0.0, %v1753
    %v1755 = vpop.f32.mrb[0].mxu0
    %1756 = vdwg.mxu0
    %v1758 = vrot.slane %v1754, 2
    %v1760 = vadd.f32 %v799, %v1758
    %v1761 = vxor.u32 %v1760, 2147483648
    %v1762 = vmul.f32 %v1761, 1.442695
    %v1763 = vpow.pop %v1762
    %v1764 = vadd.f32 %v1763, 1.0
    %v1765 = vrcp.pop %v1764
    %v1766 = vmul.f32 1.0, %v1765
    %v1767 = vadd.f32 %v1754, %v1116
    %v1769 = vrot.slane %v1767, 2
    %1770 = vrot.lane.b32.xlu0 %v1769, 64
    %v1771 = vpop.permute.xlu0 %1770
    %v1773 = vmul.f32 %v1766, %v1771
    %1775 = vrot.lane.b32.xlu0 %v1773, 64
    %v1776 = vpop.permute.xlu0 %1775
    %v1778 = vadd.f32 %v799, %v1776
    %v1779 = vtanh.pop %v1778
    %v1780 = vsub.f32 1.0, %v1766
    %1782 = vrot.lane.b32.xlu0 %v1779, 96
    %v1783 = vpop.permute.xlu0 %1782
    %v1785 = vmul.f32 %v1780, %v1783
    %v1786 = vrot.slane %v1571, 6
    %v1788 = vmul.f32 %v1766, %v1786
    %v1789 = vadd.f32 %v1785, %v1788
    %v1791 = vrot.slane %v1680, 6
    %1792 = vrot.lane.b32.xlu0 %v1791, 96
    %v1793 = vpop.permute.xlu0 %1792
    %v1794 = vsel %vm631, %v1793, 0
    %1796 = vmatprep.subr.mxu0 0.0
    %1797 = vmatpush1.msra.mxu0 %v901
    %1798 = vmatprep.subr.mxu0 0.0
    %1799 = vmatpush1.msra.mxu0 %v902
    %1800 = vmatprep.subr.mxu0 0.0
    %1801 = vmatpush1.msra.mxu0 %v903
    %1802 = vmatprep.subr.mxu0 0.0
    %1803 = vmatpush1.msra.mxu0 %v904
    %1804 = vmatprep.subr.mxu0 0.0
    %1805 = vmatpush1.msra.mxu0 0.0
    %1806 = vmatprep.subr.mxu0 0.0
    %1807 = vmatpush1.msra.mxu0 0.0
    %1808 = vmatprep.subr.mxu0 0.0
    %1809 = vmatpush1.msra.mxu0 0.0
    %1810 = vmatprep.subr.mxu0 0.0
    %1811 = vmatpush1.msra.mxu0 0.0
    %1812 = vmatprep.subr.mxu0 0.0
    %1813 = vmatpush1.msra.mxu0 0.0
    %1814 = vmatprep.subr.mxu0 0.0
    %1815 = vmatpush1.msra.mxu0 0.0
    %1816 = vmatprep.subr.mxu0 0.0
    %1817 = vmatpush1.msra.mxu0 0.0
    %1818 = vmatprep.subr.mxu0 0.0
    %1819 = vmatpush1.msra.mxu0 0.0
    %1820 = vmatprep.subr.mxu0 0.0
    %1821 = vmatpush1.msra.mxu0 0.0
    %1822 = vmatprep.subr.mxu0 0.0
    %1823 = vmatpush1.msra.mxu0 0.0
    %1824 = vmatprep.subr.mxu0 0.0
    %1825 = vmatpush1.msra.mxu0 0.0
    %1826 = vmatprep.subr.mxu0 0.0
    %1827 = vmatpush1.msra.mxu0 0.0
    %1828 = vmatprep.subr.mxu0 0.0
    %1829 = vmatpush1.msra.mxu0 0.0
    %1830 = vmatprep.subr.mxu0 0.0
    %1831 = vmatpush1.msra.mxu0 0.0
    %1832 = vmatprep.subr.mxu0 0.0
    %1833 = vmatpush1.msra.mxu0 0.0
    %1834 = vmatprep.subr.mxu0 0.0
    %1835 = vmatpush1.msra.mxu0 0.0
    %1836 = vmatprep.subr.mxu0 0.0
    %1837 = vmatpush1.msra.mxu0 0.0
    %1838 = vmatprep.subr.mxu0 0.0
    %1839 = vmatpush1.msra.mxu0 0.0
    %1840 = vmatprep.subr.mxu0 0.0
    %1841 = vmatpush1.msra.mxu0 0.0
    %1842 = vmatprep.subr.mxu0 0.0
    %1843 = vmatpush1.msra.mxu0 0.0
    %1844 = vmatprep.subr.mxu0 0.0
    %1845 = vmatpush1.msra.mxu0 0.0
    %1846 = vmatprep.subr.mxu0 0.0
    %1847 = vmatpush1.msra.mxu0 0.0
    %1848 = vmatprep.subr.mxu0 0.0
    %1849 = vmatpush1.msra.mxu0 0.0
    %1850 = vmatprep.subr.mxu0 0.0
    %1851 = vmatpush1.msra.mxu0 0.0
    %1852 = vmatprep.subr.mxu0 0.0
    %1853 = vmatpush1.msra.mxu0 0.0
    %1854 = vmatprep.subr.mxu0 0.0
    %1855 = vmatpush1.msra.mxu0 0.0
    %1856 = vmatprep.subr.mxu0 0.0
    %1857 = vmatpush1.msra.mxu0 0.0
    %1858 = vmatprep.subr.mxu0 0.0
    %1859 = vmatpush1.msra.mxu0 0.0
    %1860 = vmatprep.mubr.f32.mxu0 0.0
    %1861 = vmatmul.mubr.f32.gmra.mrb[0].mxu0 %v1794
    %v1862 = vpop.f32.mrb[0].mxu0
    %v1863 = vadd.f32 0.0, %v1862
    %v1864 = vpop.f32.mrb[0].mxu0
    %1865 = vdwg.mxu0
    %v1866 = vadd.f32 %v710, %v1863
    %v1867 = vxor.u32 %v1866, 2147483648
    %v1868 = vmul.f32 %v1867, 1.442695
    %v1869 = vpow.pop %v1868
    %v1870 = vadd.f32 %v1869, 1.0
    %v1871 = vrcp.pop %v1870
    %v1872 = vmul.f32 1.0, %v1871
    %v1873 = vadd.f32 %v1863, %v1016
    %1875 = vrot.lane.b32.xlu0 %v1873, 64
    %v1876 = vpop.permute.xlu0 %1875
    %v1878 = vmul.f32 %v1872, %v1876
    %1880 = vrot.lane.b32.xlu0 %v1878, 64
    %v1881 = vpop.permute.xlu0 %1880
    %v1883 = vadd.f32 %v710, %v1881
    %v1884 = vtanh.pop %v1883
    %v1885 = vsub.f32 1.0, %v1872
    %1887 = vrot.lane.b32.xlu0 %v1884, 96
    %v1888 = vpop.permute.xlu0 %1887
    %v1890 = vmul.f32 %v1885, %v1888
    %v1892 = vmul.f32 %v1872, %v1791
    %v1893 = vadd.f32 %v1890, %v1892
    %v1895 = vrot.slane %v1789, 6
    %1896 = vrot.lane.b32.xlu0 %v1895, 96
    %v1897 = vpop.permute.xlu0 %1896
    %v1898 = vsel %vm631, %v1897, 0
    %1900 = vmatprep.subr.mxu0 0.0
    %1901 = vmatpush1.msra.mxu0 %v906
    %1902 = vmatprep.subr.mxu0 0.0
    %1903 = vmatpush1.msra.mxu0 %v907
    %1904 = vmatprep.subr.mxu0 0.0
    %1905 = vmatpush1.msra.mxu0 %v908
    %1906 = vmatprep.subr.mxu0 0.0
    %1907 = vmatpush1.msra.mxu0 %v909
    %1908 = vmatprep.subr.mxu0 0.0
    %1909 = vmatpush1.msra.mxu0 0.0
    %1910 = vmatprep.subr.mxu0 0.0
    %1911 = vmatpush1.msra.mxu0 0.0
    %1912 = vmatprep.subr.mxu0 0.0
    %1913 = vmatpush1.msra.mxu0 0.0
    %1914 = vmatprep.subr.mxu0 0.0
    %1915 = vmatpush1.msra.mxu0 0.0
    %1916 = vmatprep.subr.mxu0 0.0
    %1917 = vmatpush1.msra.mxu0 0.0
    %1918 = vmatprep.subr.mxu0 0.0
    %1919 = vmatpush1.msra.mxu0 0.0
    %1920 = vmatprep.subr.mxu0 0.0
    %1921 = vmatpush1.msra.mxu0 0.0
    %1922 = vmatprep.subr.mxu0 0.0
    %1923 = vmatpush1.msra.mxu0 0.0
    %1924 = vmatprep.subr.mxu0 0.0
    %1925 = vmatpush1.msra.mxu0 0.0
    %1926 = vmatprep.subr.mxu0 0.0
    %1927 = vmatpush1.msra.mxu0 0.0
    %1928 = vmatprep.subr.mxu0 0.0
    %1929 = vmatpush1.msra.mxu0 0.0
    %1930 = vmatprep.subr.mxu0 0.0
    %1931 = vmatpush1.msra.mxu0 0.0
    %1932 = vmatprep.subr.mxu0 0.0
    %1933 = vmatpush1.msra.mxu0 0.0
    %1934 = vmatprep.subr.mxu0 0.0
    %1935 = vmatpush1.msra.mxu0 0.0
    %1936 = vmatprep.subr.mxu0 0.0
    %1937 = vmatpush1.msra.mxu0 0.0
    %1938 = vmatprep.subr.mxu0 0.0
    %1939 = vmatpush1.msra.mxu0 0.0
    %1940 = vmatprep.subr.mxu0 0.0
    %1941 = vmatpush1.msra.mxu0 0.0
    %1942 = vmatprep.subr.mxu0 0.0
    %1943 = vmatpush1.msra.mxu0 0.0
    %1944 = vmatprep.subr.mxu0 0.0
    %1945 = vmatpush1.msra.mxu0 0.0
    %1946 = vmatprep.subr.mxu0 0.0
    %1947 = vmatpush1.msra.mxu0 0.0
    %1948 = vmatprep.subr.mxu0 0.0
    %1949 = vmatpush1.msra.mxu0 0.0
    %1950 = vmatprep.subr.mxu0 0.0
    %1951 = vmatpush1.msra.mxu0 0.0
    %1952 = vmatprep.subr.mxu0 0.0
    %1953 = vmatpush1.msra.mxu0 0.0
    %1954 = vmatprep.subr.mxu0 0.0
    %1955 = vmatpush1.msra.mxu0 0.0
    %1956 = vmatprep.subr.mxu0 0.0
    %1957 = vmatpush1.msra.mxu0 0.0
    %1958 = vmatprep.subr.mxu0 0.0
    %1959 = vmatpush1.msra.mxu0 0.0
    %1960 = vmatprep.subr.mxu0 0.0
    %1961 = vmatpush1.msra.mxu0 0.0
    %1962 = vmatprep.subr.mxu0 0.0
    %1963 = vmatpush1.msra.mxu0 0.0
    %1964 = vmatprep.mubr.f32.mxu0 0.0
    %1965 = vmatmul.mubr.f32.gmra.mrb[0].mxu0 %v1898
    %v1966 = vpop.f32.mrb[0].mxu0
    %v1967 = vadd.f32 0.0, %v1966
    %v1968 = vpop.f32.mrb[0].mxu0
    %1969 = vdwg.mxu0
    %v1970 = vadd.f32 %v804, %v1967
    %v1971 = vxor.u32 %v1970, 2147483648
    %v1972 = vmul.f32 %v1971, 1.442695
    %v1973 = vpow.pop %v1972
    %v1974 = vadd.f32 %v1973, 1.0
    %v1975 = vrcp.pop %v1974
    %v1976 = vmul.f32 1.0, %v1975
    %v1977 = vadd.f32 %v1967, %v1116
    %1979 = vrot.lane.b32.xlu0 %v1977, 64
    %v1980 = vpop.permute.xlu0 %1979
    %v1982 = vmul.f32 %v1976, %v1980
    %1984 = vrot.lane.b32.xlu0 %v1982, 64
    %v1985 = vpop.permute.xlu0 %1984
    %v1987 = vadd.f32 %v804, %v1985
    %v1988 = vtanh.pop %v1987
    %v1989 = vsub.f32 1.0, %v1976
    %1991 = vrot.lane.b32.xlu0 %v1988, 96
    %v1992 = vpop.permute.xlu0 %1991
    %v1994 = vmul.f32 %v1989, %v1992
    %v1996 = vmul.f32 %v1976, %v1895
    %v1997 = vadd.f32 %v1994, %v1996
    %1999 = vrot.lane.b32.xlu0 %v1893, 96
    %v2000 = vpop.permute.xlu0 %1999
    %v2001 = vsel %vm631, %v2000, 0
    %2003 = vmatprep.subr.mxu0 0.0
    %2004 = vmatpush1.msra.mxu0 %v901
    %2005 = vmatprep.subr.mxu0 0.0
    %2006 = vmatpush1.msra.mxu0 %v902
    %2007 = vmatprep.subr.mxu0 0.0
    %2008 = vmatpush1.msra.mxu0 %v903
    %2009 = vmatprep.subr.mxu0 0.0
    %2010 = vmatpush1.msra.mxu0 %v904
    %2011 = vmatprep.subr.mxu0 0.0
    %2012 = vmatpush1.msra.mxu0 0.0
    %2013 = vmatprep.subr.mxu0 0.0
    %2014 = vmatpush1.msra.mxu0 0.0
    %2015 = vmatprep.subr.mxu0 0.0
    %2016 = vmatpush1.msra.mxu0 0.0
    %2017 = vmatprep.subr.mxu0 0.0
    %2018 = vmatpush1.msra.mxu0 0.0
    %2019 = vmatprep.subr.mxu0 0.0
    %2020 = vmatpush1.msra.mxu0 0.0
    %2021 = vmatprep.subr.mxu0 0.0
    %2022 = vmatpush1.msra.mxu0 0.0
    %2023 = vmatprep.subr.mxu0 0.0
    %2024 = vmatpush1.msra.mxu0 0.0
    %2025 = vmatprep.subr.mxu0 0.0
    %2026 = vmatpush1.msra.mxu0 0.0
    %2027 = vmatprep.subr.mxu0 0.0
    %2028 = vmatpush1.msra.mxu0 0.0
    %2029 = vmatprep.subr.mxu0 0.0
    %2030 = vmatpush1.msra.mxu0 0.0
    %2031 = vmatprep.subr.mxu0 0.0
    %2032 = vmatpush1.msra.mxu0 0.0
    %2033 = vmatprep.subr.mxu0 0.0
    %2034 = vmatpush1.msra.mxu0 0.0
    %2035 = vmatprep.subr.mxu0 0.0
    %2036 = vmatpush1.msra.mxu0 0.0
    %2037 = vmatprep.subr.mxu0 0.0
    %2038 = vmatpush1.msra.mxu0 0.0
    %2039 = vmatprep.subr.mxu0 0.0
    %2040 = vmatpush1.msra.mxu0 0.0
    %2041 = vmatprep.subr.mxu0 0.0
    %2042 = vmatpush1.msra.mxu0 0.0
    %2043 = vmatprep.subr.mxu0 0.0
    %2044 = vmatpush1.msra.mxu0 0.0
    %2045 = vmatprep.subr.mxu0 0.0
    %2046 = vmatpush1.msra.mxu0 0.0
    %2047 = vmatprep.subr.mxu0 0.0
    %2048 = vmatpush1.msra.mxu0 0.0
    %2049 = vmatprep.subr.mxu0 0.0
    %2050 = vmatpush1.msra.mxu0 0.0
    %2051 = vmatprep.subr.mxu0 0.0
    %2052 = vmatpush1.msra.mxu0 0.0
    %2053 = vmatprep.subr.mxu0 0.0
    %2054 = vmatpush1.msra.mxu0 0.0
    %2055 = vmatprep.subr.mxu0 0.0
    %2056 = vmatpush1.msra.mxu0 0.0
    %2057 = vmatprep.subr.mxu0 0.0
    %2058 = vmatpush1.msra.mxu0 0.0
    %2059 = vmatprep.subr.mxu0 0.0
    %2060 = vmatpush1.msra.mxu0 0.0
    %2061 = vmatprep.subr.mxu0 0.0
    %2062 = vmatpush1.msra.mxu0 0.0
    %2063 = vmatprep.subr.mxu0 0.0
    %2064 = vmatpush1.msra.mxu0 0.0
    %2065 = vmatprep.subr.mxu0 0.0
    %2066 = vmatpush1.msra.mxu0 0.0
    %2067 = vmatprep.mubr.f32.mxu0 0.0
    %2068 = vmatmul.mubr.f32.gmra.mrb[0].mxu0 %v2001
    %v2069 = vpop.f32.mrb[0].mxu0
    %v2070 = vadd.f32 0.0, %v2069
    %v2071 = vpop.f32.mrb[0].mxu0
    %2072 = vdwg.mxu0
    %v2074 = vrot.slane %v2070, 6
    %v2076 = vadd.f32 %v710, %v2074
    %v2077 = vxor.u32 %v2076, 2147483648
    %v2078 = vmul.f32 %v2077, 1.442695
    %v2079 = vpow.pop %v2078
    %v2080 = vadd.f32 %v2079, 1.0
    %v2081 = vrcp.pop %v2080
    %v2082 = vmul.f32 1.0, %v2081
    %v2083 = vadd.f32 %v2070, %v1016
    %v2085 = vrot.slane %v2083, 6
    %2086 = vrot.lane.b32.xlu0 %v2085, 64
    %v2087 = vpop.permute.xlu0 %2086
    %v2089 = vmul.f32 %v2082, %v2087
    %2091 = vrot.lane.b32.xlu0 %v2089, 64
    %v2092 = vpop.permute.xlu0 %2091
    %v2094 = vadd.f32 %v710, %v2092
    %v2095 = vtanh.pop %v2094
    %v2096 = vsub.f32 1.0, %v2082
    %2098 = vrot.lane.b32.xlu0 %v2095, 96
    %v2099 = vpop.permute.xlu0 %2098
    %v2101 = vmul.f32 %v2096, %v2099
    %v2102 = vrot.slane %v1893, 6
    %v2104 = vmul.f32 %v2082, %v2102
    %v2105 = vadd.f32 %v2101, %v2104
    %2107 = vrot.lane.b32.xlu0 %v1997, 96
    %v2108 = vpop.permute.xlu0 %2107
    %v2109 = vsel %vm631, %v2108, 0
    %2111 = vmatprep.subr.mxu0 0.0
    %2112 = vmatpush1.msra.mxu0 %v906
    %2113 = vmatprep.subr.mxu0 0.0
    %2114 = vmatpush1.msra.mxu0 %v907
    %2115 = vmatprep.subr.mxu0 0.0
    %2116 = vmatpush1.msra.mxu0 %v908
    %2117 = vmatprep.subr.mxu0 0.0
    %2118 = vmatpush1.msra.mxu0 %v909
    %2119 = vmatprep.subr.mxu0 0.0
    %2120 = vmatpush1.msra.mxu0 0.0
    %2121 = vmatprep.subr.mxu0 0.0
    %2122 = vmatpush1.msra.mxu0 0.0
    %2123 = vmatprep.subr.mxu0 0.0
    %2124 = vmatpush1.msra.mxu0 0.0
    %2125 = vmatprep.subr.mxu0 0.0
    %2126 = vmatpush1.msra.mxu0 0.0
    %2127 = vmatprep.subr.mxu0 0.0
    %2128 = vmatpush1.msra.mxu0 0.0
    %2129 = vmatprep.subr.mxu0 0.0
    %2130 = vmatpush1.msra.mxu0 0.0
    %2131 = vmatprep.subr.mxu0 0.0
    %2132 = vmatpush1.msra.mxu0 0.0
    %2133 = vmatprep.subr.mxu0 0.0
    %2134 = vmatpush1.msra.mxu0 0.0
    %2135 = vmatprep.subr.mxu0 0.0
    %2136 = vmatpush1.msra.mxu0 0.0
    %2137 = vmatprep.subr.mxu0 0.0
    %2138 = vmatpush1.msra.mxu0 0.0
    %2139 = vmatprep.subr.mxu0 0.0
    %2140 = vmatpush1.msra.mxu0 0.0
    %2141 = vmatprep.subr.mxu0 0.0
    %2142 = vmatpush1.msra.mxu0 0.0
    %2143 = vmatprep.subr.mxu0 0.0
    %2144 = vmatpush1.msra.mxu0 0.0
    %2145 = vmatprep.subr.mxu0 0.0
    %2146 = vmatpush1.msra.mxu0 0.0
    %2147 = vmatprep.subr.mxu0 0.0
    %2148 = vmatpush1.msra.mxu0 0.0
    %2149 = vmatprep.subr.mxu0 0.0
    %2150 = vmatpush1.msra.mxu0 0.0
    %2151 = vmatprep.subr.mxu0 0.0
    %2152 = vmatpush1.msra.mxu0 0.0
    %2153 = vmatprep.subr.mxu0 0.0
    %2154 = vmatpush1.msra.mxu0 0.0
    %2155 = vmatprep.subr.mxu0 0.0
    %2156 = vmatpush1.msra.mxu0 0.0
    %2157 = vmatprep.subr.mxu0 0.0
    %2158 = vmatpush1.msra.mxu0 0.0
    %2159 = vmatprep.subr.mxu0 0.0
    %2160 = vmatpush1.msra.mxu0 0.0
    %2161 = vmatprep.subr.mxu0 0.0
    %2162 = vmatpush1.msra.mxu0 0.0
    %2163 = vmatprep.subr.mxu0 0.0
    %2164 = vmatpush1.msra.mxu0 0.0
    %2165 = vmatprep.subr.mxu0 0.0
    %2166 = vmatpush1.msra.mxu0 0.0
    %2167 = vmatprep.subr.mxu0 0.0
    %2168 = vmatpush1.msra.mxu0 0.0
    %2169 = vmatprep.subr.mxu0 0.0
    %2170 = vmatpush1.msra.mxu0 0.0
    %2171 = vmatprep.subr.mxu0 0.0
    %2172 = vmatpush1.msra.mxu0 0.0
    %2173 = vmatprep.subr.mxu0 0.0
    %2174 = vmatpush1.msra.mxu0 0.0
    %2175 = vmatprep.mubr.f32.mxu0 0.0
    %2176 = vmatmul.mubr.f32.gmra.mrb[0].mxu0 %v2109
    %v2177 = vpop.f32.mrb[0].mxu0
    %v2178 = vadd.f32 0.0, %v2177
    %v2179 = vpop.f32.mrb[0].mxu0
    %2180 = vdwg.mxu0
    %v2182 = vrot.slane %v2178, 6
    %v2184 = vadd.f32 %v804, %v2182
    %v2185 = vxor.u32 %v2184, 2147483648
    %v2186 = vmul.f32 %v2185, 1.442695
    %v2187 = vpow.pop %v2186
    %v2188 = vadd.f32 %v2187, 1.0
    %v2189 = vrcp.pop %v2188
    %v2190 = vmul.f32 1.0, %v2189
    %v2191 = vadd.f32 %v2178, %v1116
    %v2193 = vrot.slane %v2191, 6
    %2194 = vrot.lane.b32.xlu0 %v2193, 64
    %v2195 = vpop.permute.xlu0 %2194
    %v2197 = vmul.f32 %v2190, %v2195
    %2199 = vrot.lane.b32.xlu0 %v2197, 64
    %v2200 = vpop.permute.xlu0 %2199
    %v2202 = vadd.f32 %v804, %v2200
    %v2203 = vtanh.pop %v2202
    %v2204 = vsub.f32 1.0, %v2190
    %2206 = vrot.lane.b32.xlu0 %v2203, 96
    %v2207 = vpop.permute.xlu0 %2206
    %v2209 = vmul.f32 %v2204, %v2207
    %v2210 = vrot.slane %v1997, 6
    %v2212 = vmul.f32 %v2190, %v2210
    %v2213 = vadd.f32 %v2209, %v2212
    %v2215 = vrot.slane %v2105, 2
    %2216 = vrot.lane.b32.xlu0 %v2215, 96
    %v2217 = vpop.permute.xlu0 %2216
    %v2218 = vsel %vm631, %v2217, 0
    %2220 = vmatprep.subr.mxu0 0.0
    %2221 = vmatpush1.msra.mxu0 %v901
    %2222 = vmatprep.subr.mxu0 0.0
    %2223 = vmatpush1.msra.mxu0 %v902
    %2224 = vmatprep.subr.mxu0 0.0
    %2225 = vmatpush1.msra.mxu0 %v903
    %2226 = vmatprep.subr.mxu0 0.0
    %2227 = vmatpush1.msra.mxu0 %v904
    %2228 = vmatprep.subr.mxu0 0.0
    %2229 = vmatpush1.msra.mxu0 0.0
    %2230 = vmatprep.subr.mxu0 0.0
    %2231 = vmatpush1.msra.mxu0 0.0
    %2232 = vmatprep.subr.mxu0 0.0
    %2233 = vmatpush1.msra.mxu0 0.0
    %2234 = vmatprep.subr.mxu0 0.0
    %2235 = vmatpush1.msra.mxu0 0.0
    %2236 = vmatprep.subr.mxu0 0.0
    %2237 = vmatpush1.msra.mxu0 0.0
    %2238 = vmatprep.subr.mxu0 0.0
    %2239 = vmatpush1.msra.mxu0 0.0
    %2240 = vmatprep.subr.mxu0 0.0
    %2241 = vmatpush1.msra.mxu0 0.0
    %2242 = vmatprep.subr.mxu0 0.0
    %2243 = vmatpush1.msra.mxu0 0.0
    %2244 = vmatprep.subr.mxu0 0.0
    %2245 = vmatpush1.msra.mxu0 0.0
    %2246 = vmatprep.subr.mxu0 0.0
    %2247 = vmatpush1.msra.mxu0 0.0
    %2248 = vmatprep.subr.mxu0 0.0
    %2249 = vmatpush1.msra.mxu0 0.0
    %2250 = vmatprep.subr.mxu0 0.0
    %2251 = vmatpush1.msra.mxu0 0.0
    %2252 = vmatprep.subr.mxu0 0.0
    %2253 = vmatpush1.msra.mxu0 0.0
    %2254 = vmatprep.subr.mxu0 0.0
    %2255 = vmatpush1.msra.mxu0 0.0
    %2256 = vmatprep.subr.mxu0 0.0
    %2257 = vmatpush1.msra.mxu0 0.0
    %2258 = vmatprep.subr.mxu0 0.0
    %2259 = vmatpush1.msra.mxu0 0.0
    %2260 = vmatprep.subr.mxu0 0.0
    %2261 = vmatpush1.msra.mxu0 0.0
    %2262 = vmatprep.subr.mxu0 0.0
    %2263 = vmatpush1.msra.mxu0 0.0
    %2264 = vmatprep.subr.mxu0 0.0
    %2265 = vmatpush1.msra.mxu0 0.0
    %2266 = vmatprep.subr.mxu0 0.0
    %2267 = vmatpush1.msra.mxu0 0.0
    %2268 = vmatprep.subr.mxu0 0.0
    %2269 = vmatpush1.msra.mxu0 0.0
    %2270 = vmatprep.subr.mxu0 0.0
    %2271 = vmatpush1.msra.mxu0 0.0
    %2272 = vmatprep.subr.mxu0 0.0
    %2273 = vmatpush1.msra.mxu0 0.0
    %2274 = vmatprep.subr.mxu0 0.0
    %2275 = vmatpush1.msra.mxu0 0.0
    %2276 = vmatprep.subr.mxu0 0.0
    %2277 = vmatpush1.msra.mxu0 0.0
    %2278 = vmatprep.subr.mxu0 0.0
    %2279 = vmatpush1.msra.mxu0 0.0
    %2280 = vmatprep.subr.mxu0 0.0
    %2281 = vmatpush1.msra.mxu0 0.0
    %2282 = vmatprep.subr.mxu0 0.0
    %2283 = vmatpush1.msra.mxu0 0.0
    %2284 = vmatprep.mubr.f32.mxu0 0.0
    %2285 = vmatmul.mubr.f32.gmra.mrb[0].mxu0 %v2218
    %v2286 = vpop.f32.mrb[0].mxu0
    %v2287 = vadd.f32 0.0, %v2286
    %v2288 = vpop.f32.mrb[0].mxu0
    %2289 = vdwg.mxu0
    %v2291 = vrot.slane %v2287, 4
    %v2293 = vadd.f32 %v710, %v2291
    %v2294 = vxor.u32 %v2293, 2147483648
    %v2295 = vmul.f32 %v2294, 1.442695
    %v2296 = vpow.pop %v2295
    %v2297 = vadd.f32 %v2296, 1.0
    %v2298 = vrcp.pop %v2297
    %v2299 = vmul.f32 1.0, %v2298
    %v2300 = vadd.f32 %v2287, %v1016
    %v2302 = vrot.slane %v2300, 4
    %2303 = vrot.lane.b32.xlu0 %v2302, 64
    %v2304 = vpop.permute.xlu0 %2303
    %v2306 = vmul.f32 %v2299, %v2304
    %2308 = vrot.lane.b32.xlu0 %v2306, 64
    %v2309 = vpop.permute.xlu0 %2308
    %v2311 = vadd.f32 %v710, %v2309
    %v2312 = vtanh.pop %v2311
    %v2313 = vsub.f32 1.0, %v2299
    %2315 = vrot.lane.b32.xlu0 %v2312, 96
    %v2316 = vpop.permute.xlu0 %2315
    %v2318 = vmul.f32 %v2313, %v2316
    %v2319 = vrot.slane %v2105, 6
    %v2321 = vmul.f32 %v2299, %v2319
    %v2322 = vadd.f32 %v2318, %v2321
    %v2324 = vrot.slane %v2213, 2
    %2325 = vrot.lane.b32.xlu0 %v2324, 96
    %v2326 = vpop.permute.xlu0 %2325
    %v2327 = vsel %vm631, %v2326, 0
    %2329 = vmatprep.subr.mxu0 0.0
    %2330 = vmatpush1.msra.mxu0 %v906
    %2331 = vmatprep.subr.mxu0 0.0
    %2332 = vmatpush1.msra.mxu0 %v907
    %2333 = vmatprep.subr.mxu0 0.0
    %2334 = vmatpush1.msra.mxu0 %v908
    %2335 = vmatprep.subr.mxu0 0.0
    %2336 = vmatpush1.msra.mxu0 %v909
    %2337 = vmatprep.subr.mxu0 0.0
    %2338 = vmatpush1.msra.mxu0 0.0
    %2339 = vmatprep.subr.mxu0 0.0
    %2340 = vmatpush1.msra.mxu0 0.0
    %2341 = vmatprep.subr.mxu0 0.0
    %2342 = vmatpush1.msra.mxu0 0.0
    %2343 = vmatprep.subr.mxu0 0.0
    %2344 = vmatpush1.msra.mxu0 0.0
    %2345 = vmatprep.subr.mxu0 0.0
    %2346 = vmatpush1.msra.mxu0 0.0
    %2347 = vmatprep.subr.mxu0 0.0
    %2348 = vmatpush1.msra.mxu0 0.0
    %2349 = vmatprep.subr.mxu0 0.0
    %2350 = vmatpush1.msra.mxu0 0.0
    %2351 = vmatprep.subr.mxu0 0.0
    %2352 = vmatpush1.msra.mxu0 0.0
    %2353 = vmatprep.subr.mxu0 0.0
    %2354 = vmatpush1.msra.mxu0 0.0
    %2355 = vmatprep.subr.mxu0 0.0
    %2356 = vmatpush1.msra.mxu0 0.0
    %2357 = vmatprep.subr.mxu0 0.0
    %2358 = vmatpush1.msra.mxu0 0.0
    %2359 = vmatprep.subr.mxu0 0.0
    %2360 = vmatpush1.msra.mxu0 0.0
    %2361 = vmatprep.subr.mxu0 0.0
    %2362 = vmatpush1.msra.mxu0 0.0
    %2363 = vmatprep.subr.mxu0 0.0
    %2364 = vmatpush1.msra.mxu0 0.0
    %2365 = vmatprep.subr.mxu0 0.0
    %2366 = vmatpush1.msra.mxu0 0.0
    %2367 = vmatprep.subr.mxu0 0.0
    %2368 = vmatpush1.msra.mxu0 0.0
    %2369 = vmatprep.subr.mxu0 0.0
    %2370 = vmatpush1.msra.mxu0 0.0
    %2371 = vmatprep.subr.mxu0 0.0
    %2372 = vmatpush1.msra.mxu0 0.0
    %2373 = vmatprep.subr.mxu0 0.0
    %2374 = vmatpush1.msra.mxu0 0.0
    %2375 = vmatprep.subr.mxu0 0.0
    %2376 = vmatpush1.msra.mxu0 0.0
    %2377 = vmatprep.subr.mxu0 0.0
    %2378 = vmatpush1.msra.mxu0 0.0
    %2379 = vmatprep.subr.mxu0 0.0
    %2380 = vmatpush1.msra.mxu0 0.0
    %2381 = vmatprep.subr.mxu0 0.0
    %2382 = vmatpush1.msra.mxu0 0.0
    %2383 = vmatprep.subr.mxu0 0.0
    %2384 = vmatpush1.msra.mxu0 0.0
    %2385 = vmatprep.subr.mxu0 0.0
    %2386 = vmatpush1.msra.mxu0 0.0
    %2387 = vmatprep.subr.mxu0 0.0
    %2388 = vmatpush1.msra.mxu0 0.0
    %2389 = vmatprep.subr.mxu0 0.0
    %2390 = vmatpush1.msra.mxu0 0.0
    %2391 = vmatprep.subr.mxu0 0.0
    %2392 = vmatpush1.msra.mxu0 0.0
    %2393 = vmatprep.mubr.f32.mxu0 0.0
    %2394 = vmatmul.mubr.f32.gmra.mrb[0].mxu0 %v2327
    %v2395 = vpop.f32.mrb[0].mxu0
    %v2396 = vadd.f32 0.0, %v2395
    %v2397 = vpop.f32.mrb[0].mxu0
    %2398 = vdwg.mxu0
    %v2400 = vrot.slane %v2396, 4
    %v2402 = vadd.f32 %v804, %v2400
    %v2403 = vxor.u32 %v2402, 2147483648
    %v2404 = vmul.f32 %v2403, 1.442695
    %v2405 = vpow.pop %v2404
    %v2406 = vadd.f32 %v2405, 1.0
    %v2407 = vrcp.pop %v2406
    %v2408 = vmul.f32 1.0, %v2407
    %v2409 = vadd.f32 %v2396, %v1116
    %v2411 = vrot.slane %v2409, 4
    %2412 = vrot.lane.b32.xlu0 %v2411, 64
    %v2413 = vpop.permute.xlu0 %2412
    %v2415 = vmul.f32 %v2408, %v2413
    %2417 = vrot.lane.b32.xlu0 %v2415, 64
    %v2418 = vpop.permute.xlu0 %2417
    %v2420 = vadd.f32 %v804, %v2418
    %v2421 = vtanh.pop %v2420
    %v2422 = vsub.f32 1.0, %v2408
    %2424 = vrot.lane.b32.xlu0 %v2421, 96
    %v2425 = vpop.permute.xlu0 %2424
    %v2427 = vmul.f32 %v2422, %v2425
    %v2428 = vrot.slane %v2213, 6
    %v2430 = vmul.f32 %v2408, %v2428
    %v2431 = vadd.f32 %v2427, %v2430
    %v2433 = vrot.slane %v2322, 4
    %2434 = vrot.lane.b32.xlu0 %v2433, 96
    %v2435 = vpop.permute.xlu0 %2434
    %v2436 = vsel %vm631, %v2435, 0
    %2438 = vmatprep.subr.mxu0 0.0
    %2439 = vmatpush1.msra.mxu0 %v901
    %2440 = vmatprep.subr.mxu0 0.0
    %2441 = vmatpush1.msra.mxu0 %v902
    %2442 = vmatprep.subr.mxu0 0.0
    %2443 = vmatpush1.msra.mxu0 %v903
    %2444 = vmatprep.subr.mxu0 0.0
    %2445 = vmatpush1.msra.mxu0 %v904
    %2446 = vmatprep.subr.mxu0 0.0
    %2447 = vmatpush1.msra.mxu0 0.0
    %2448 = vmatprep.subr.mxu0 0.0
    %2449 = vmatpush1.msra.mxu0 0.0
    %2450 = vmatprep.subr.mxu0 0.0
    %2451 = vmatpush1.msra.mxu0 0.0
    %2452 = vmatprep.subr.mxu0 0.0
    %2453 = vmatpush1.msra.mxu0 0.0
    %2454 = vmatprep.subr.mxu0 0.0
    %2455 = vmatpush1.msra.mxu0 0.0
    %2456 = vmatprep.subr.mxu0 0.0
    %2457 = vmatpush1.msra.mxu0 0.0
    %2458 = vmatprep.subr.mxu0 0.0
    %2459 = vmatpush1.msra.mxu0 0.0
    %2460 = vmatprep.subr.mxu0 0.0
    %2461 = vmatpush1.msra.mxu0 0.0
    %2462 = vmatprep.subr.mxu0 0.0
    %2463 = vmatpush1.msra.mxu0 0.0
    %2464 = vmatprep.subr.mxu0 0.0
    %2465 = vmatpush1.msra.mxu0 0.0
    %2466 = vmatprep.subr.mxu0 0.0
    %2467 = vmatpush1.msra.mxu0 0.0
    %2468 = vmatprep.subr.mxu0 0.0
    %2469 = vmatpush1.msra.mxu0 0.0
    %2470 = vmatprep.subr.mxu0 0.0
    %2471 = vmatpush1.msra.mxu0 0.0
    %2472 = vmatprep.subr.mxu0 0.0
    %2473 = vmatpush1.msra.mxu0 0.0
    %2474 = vmatprep.subr.mxu0 0.0
    %2475 = vmatpush1.msra.mxu0 0.0
    %2476 = vmatprep.subr.mxu0 0.0
    %2477 = vmatpush1.msra.mxu0 0.0
    %2478 = vmatprep.subr.mxu0 0.0
    %2479 = vmatpush1.msra.mxu0 0.0
    %2480 = vmatprep.subr.mxu0 0.0
    %2481 = vmatpush1.msra.mxu0 0.0
    %2482 = vmatprep.subr.mxu0 0.0
    %2483 = vmatpush1.msra.mxu0 0.0
    %2484 = vmatprep.subr.mxu0 0.0
    %2485 = vmatpush1.msra.mxu0 0.0
    %2486 = vmatprep.subr.mxu0 0.0
    %2487 = vmatpush1.msra.mxu0 0.0
    %2488 = vmatprep.subr.mxu0 0.0
    %2489 = vmatpush1.msra.mxu0 0.0
    %2490 = vmatprep.subr.mxu0 0.0
    %2491 = vmatpush1.msra.mxu0 0.0
    %2492 = vmatprep.subr.mxu0 0.0
    %2493 = vmatpush1.msra.mxu0 0.0
    %2494 = vmatprep.subr.mxu0 0.0
    %2495 = vmatpush1.msra.mxu0 0.0
    %2496 = vmatprep.subr.mxu0 0.0
    %2497 = vmatpush1.msra.mxu0 0.0
    %2498 = vmatprep.subr.mxu0 0.0
    %2499 = vmatpush1.msra.mxu0 0.0
    %2500 = vmatprep.subr.mxu0 0.0
    %2501 = vmatpush1.msra.mxu0 0.0
    %2502 = vmatprep.mubr.f32.mxu0 0.0
    %2503 = vmatmul.mubr.f32.gmra.mrb[0].mxu0 %v2436
    %v2504 = vpop.f32.mrb[0].mxu0
    %v2505 = vadd.f32 0.0, %v2504
    %v2506 = vpop.f32.mrb[0].mxu0
    %2507 = vdwg.mxu0
    %v2509 = vrot.slane %v2505, 2
    %v2511 = vadd.f32 %v710, %v2509
    %v2512 = vxor.u32 %v2511, 2147483648
    %v2513 = vmul.f32 %v2512, 1.442695
    %v2514 = vpow.pop %v2513
    %v2515 = vadd.f32 %v2514, 1.0
    %v2516 = vrcp.pop %v2515
    %v2517 = vmul.f32 1.0, %v2516
    %v2518 = vadd.f32 %v2505, %v1016
    %v2520 = vrot.slane %v2518, 2
    %2521 = vrot.lane.b32.xlu0 %v2520, 64
    %v2522 = vpop.permute.xlu0 %2521
    %v2524 = vmul.f32 %v2517, %v2522
    %2526 = vrot.lane.b32.xlu0 %v2524, 64
    %v2527 = vpop.permute.xlu0 %2526
    %v2529 = vadd.f32 %v710, %v2527
    %v2530 = vtanh.pop %v2529
    %v2531 = vsub.f32 1.0, %v2517
    %2533 = vrot.lane.b32.xlu0 %v2530, 96
    %v2534 = vpop.permute.xlu0 %2533
    %v2536 = vmul.f32 %v2531, %v2534
    %v2537 = vrot.slane %v2322, 6
    %v2539 = vmul.f32 %v2517, %v2537
    %v2540 = vadd.f32 %v2536, %v2539
    %v2542 = vrot.slane %v2431, 4
    %2543 = vrot.lane.b32.xlu0 %v2542, 96
    %v2544 = vpop.permute.xlu0 %2543
    %v2545 = vsel %vm631, %v2544, 0
    %2547 = vmatprep.subr.mxu0 0.0
    %2548 = vmatpush1.msra.mxu0 %v906
    %2549 = vmatprep.subr.mxu0 0.0
    %2550 = vmatpush1.msra.mxu0 %v907
    %2551 = vmatprep.subr.mxu0 0.0
    %2552 = vmatpush1.msra.mxu0 %v908
    %2553 = vmatprep.subr.mxu0 0.0
    %2554 = vmatpush1.msra.mxu0 %v909
    %2555 = vmatprep.subr.mxu0 0.0
    %2556 = vmatpush1.msra.mxu0 0.0
    %2557 = vmatprep.subr.mxu0 0.0
    %2558 = vmatpush1.msra.mxu0 0.0
    %2559 = vmatprep.subr.mxu0 0.0
    %2560 = vmatpush1.msra.mxu0 0.0
    %2561 = vmatprep.subr.mxu0 0.0
    %2562 = vmatpush1.msra.mxu0 0.0
    %2563 = vmatprep.subr.mxu0 0.0
    %2564 = vmatpush1.msra.mxu0 0.0
    %2565 = vmatprep.subr.mxu0 0.0
    %2566 = vmatpush1.msra.mxu0 0.0
    %2567 = vmatprep.subr.mxu0 0.0
    %2568 = vmatpush1.msra.mxu0 0.0
    %2569 = vmatprep.subr.mxu0 0.0
    %2570 = vmatpush1.msra.mxu0 0.0
    %2571 = vmatprep.subr.mxu0 0.0
    %2572 = vmatpush1.msra.mxu0 0.0
    %2573 = vmatprep.subr.mxu0 0.0
    %2574 = vmatpush1.msra.mxu0 0.0
    %2575 = vmatprep.subr.mxu0 0.0
    %2576 = vmatpush1.msra.mxu0 0.0
    %2577 = vmatprep.subr.mxu0 0.0
    %2578 = vmatpush1.msra.mxu0 0.0
    %2579 = vmatprep.subr.mxu0 0.0
    %2580 = vmatpush1.msra.mxu0 0.0
    %2581 = vmatprep.subr.mxu0 0.0
    %2582 = vmatpush1.msra.mxu0 0.0
    %2583 = vmatprep.subr.mxu0 0.0
    %2584 = vmatpush1.msra.mxu0 0.0
    %2585 = vmatprep.subr.mxu0 0.0
    %2586 = vmatpush1.msra.mxu0 0.0
    %2587 = vmatprep.subr.mxu0 0.0
    %2588 = vmatpush1.msra.mxu0 0.0
    %2589 = vmatprep.subr.mxu0 0.0
    %2590 = vmatpush1.msra.mxu0 0.0
    %2591 = vmatprep.subr.mxu0 0.0
    %2592 = vmatpush1.msra.mxu0 0.0
    %2593 = vmatprep.subr.mxu0 0.0
    %2594 = vmatpush1.msra.mxu0 0.0
    %2595 = vmatprep.subr.mxu0 0.0
    %2596 = vmatpush1.msra.mxu0 0.0
    %2597 = vmatprep.subr.mxu0 0.0
    %2598 = vmatpush1.msra.mxu0 0.0
    %2599 = vmatprep.subr.mxu0 0.0
    %2600 = vmatpush1.msra.mxu0 0.0
    %2601 = vmatprep.subr.mxu0 0.0
    %2602 = vmatpush1.msra.mxu0 0.0
    %2603 = vmatprep.subr.mxu0 0.0
    %2604 = vmatpush1.msra.mxu0 0.0
    %2605 = vmatprep.subr.mxu0 0.0
    %2606 = vmatpush1.msra.mxu0 0.0
    %2607 = vmatprep.subr.mxu0 0.0
    %2608 = vmatpush1.msra.mxu0 0.0
    %2609 = vmatprep.subr.mxu0 0.0
    %2610 = vmatpush1.msra.mxu0 0.0
    %2611 = vmatprep.mubr.f32.mxu0 0.0
    %2612 = vmatmul.mubr.f32.gmra.mrb[0].mxu0 %v2545
    %v2613 = vpop.f32.mrb[0].mxu0
    %v2614 = vadd.f32 0.0, %v2613
    %v2615 = vpop.f32.mrb[0].mxu0
    %2616 = vdwg.mxu0
    %v2618 = vrot.slane %v2614, 2
    %v2620 = vadd.f32 %v804, %v2618
    %v2621 = vxor.u32 %v2620, 2147483648
    %v2622 = vmul.f32 %v2621, 1.442695
    %v2623 = vpow.pop %v2622
    %v2624 = vadd.f32 %v2623, 1.0
    %v2625 = vrcp.pop %v2624
    %v2626 = vmul.f32 1.0, %v2625
    %v2627 = vadd.f32 %v2614, %v1116
    %v2629 = vrot.slane %v2627, 2
    %2630 = vrot.lane.b32.xlu0 %v2629, 64
    %v2631 = vpop.permute.xlu0 %2630
    %v2633 = vmul.f32 %v2626, %v2631
    %2635 = vrot.lane.b32.xlu0 %v2633, 64
    %v2636 = vpop.permute.xlu0 %2635
    %v2638 = vadd.f32 %v804, %v2636
    %v2639 = vtanh.pop %v2638
    %v2640 = vsub.f32 1.0, %v2626
    %2642 = vrot.lane.b32.xlu0 %v2639, 96
    %v2643 = vpop.permute.xlu0 %2642
    %v2645 = vmul.f32 %v2640, %v2643
    %v2646 = vrot.slane %v2431, 6
    %v2648 = vmul.f32 %v2626, %v2646
    %v2649 = vadd.f32 %v2645, %v2648
    %v2650 = vsel %vm230, %v1037, %v1245
    %v2651 = vsel %vm232, %v2650, %v1462
    %v2652 = vsel %vm234, %v2651, %v1680
    %v2653 = vsel %vm230, %v1893, %v2105
    %v2654 = vsel %vm232, %v2653, %v2322
    %v2655 = vsel %vm234, %v2654, %v2540
    %v2656 = vsel %vm230, %v1137, %v1353
    %v2657 = vsel %vm232, %v2656, %v1571
    %v2658 = vsel %vm234, %v2657, %v1789
    %v2659 = vsel %vm230, %v1997, %v2213
    %v2660 = vsel %vm232, %v2659, %v2431
    %v2661 = vsel %vm234, %v2660, %v2649
    %v2662 = vlaneseq
    %v2663 = vshrl.u32 %v2662, 7
    %vm2664 = vcmp.lt.s32.totalorder %v117, 0
    %v2665 = vsub.s32 0, %v117
    %v2666 = vsel %vm2664, %v2665, %v117
    %v2667 = vshrl.u32 %v2666, 1
    %v2668 = vand.u32 %v2666, 1
    %v2669 = vsub.s32 0, %v2668
    %v2670 = vsel %vm2664, %v2669, %v2668
    %vm2671 = vcmp.ne.s32.totalorder %v2670, 0
    %vm2672 = vcmp.lt.s32.totalorder %v2670, 0
    %vm2673 = vmand %vm2672, %vm2671
    %v2674 = vadd.s32 %v2670, 2
    %v2675 = vsel %vm2673, %v2674, %v2670
    %vm2676 = vcmp.eq.s32.totalorder %v2675, %v2663
    %v2678 = vrot.slane %v2540, 6
    %2679 = vrot.lane.b32.xlu0 %v2678, 96
    %v2680 = vpop.permute.xlu0 %2679
    %v2681 = vsel %vm631, %v2680, 0
    %2683 = vmatprep.subr.mxu0 0.0
    %2684 = vmatpush1.msra.mxu0 %v911
    %2685 = vmatprep.subr.mxu0 0.0
    %2686 = vmatpush1.msra.mxu0 %v912
    %2687 = vmatprep.subr.mxu0 0.0
    %2688 = vmatpush1.msra.mxu0 %v913
    %2689 = vmatprep.subr.mxu0 0.0
    %2690 = vmatpush1.msra.mxu0 %v914
    %2691 = vmatprep.subr.mxu0 0.0
    %2692 = vmatpush1.msra.mxu0 0.0
    %2693 = vmatprep.subr.mxu0 0.0
    %2694 = vmatpush1.msra.mxu0 0.0
    %2695 = vmatprep.subr.mxu0 0.0
    %2696 = vmatpush1.msra.mxu0 0.0
    %2697 = vmatprep.subr.mxu0 0.0
    %2698 = vmatpush1.msra.mxu0 0.0
    %2699 = vmatprep.subr.mxu0 0.0
    %2700 = vmatpush1.msra.mxu0 0.0
    %2701 = vmatprep.subr.mxu0 0.0
    %2702 = vmatpush1.msra.mxu0 0.0
    %2703 = vmatprep.subr.mxu0 0.0
    %2704 = vmatpush1.msra.mxu0 0.0
    %2705 = vmatprep.subr.mxu0 0.0
    %2706 = vmatpush1.msra.mxu0 0.0
    %2707 = vmatprep.subr.mxu0 0.0
    %2708 = vmatpush1.msra.mxu0 0.0
    %2709 = vmatprep.subr.mxu0 0.0
    %2710 = vmatpush1.msra.mxu0 0.0
    %2711 = vmatprep.subr.mxu0 0.0
    %2712 = vmatpush1.msra.mxu0 0.0
    %2713 = vmatprep.subr.mxu0 0.0
    %2714 = vmatpush1.msra.mxu0 0.0
    %2715 = vmatprep.subr.mxu0 0.0
    %2716 = vmatpush1.msra.mxu0 0.0
    %2717 = vmatprep.subr.mxu0 0.0
    %2718 = vmatpush1.msra.mxu0 0.0
    %2719 = vmatprep.subr.mxu0 0.0
    %2720 = vmatpush1.msra.mxu0 0.0
    %2721 = vmatprep.subr.mxu0 0.0
    %2722 = vmatpush1.msra.mxu0 0.0
    %2723 = vmatprep.subr.mxu0 0.0
    %2724 = vmatpush1.msra.mxu0 0.0
    %2725 = vmatprep.subr.mxu0 0.0
    %2726 = vmatpush1.msra.mxu0 0.0
    %2727 = vmatprep.subr.mxu0 0.0
    %2728 = vmatpush1.msra.mxu0 0.0
    %2729 = vmatprep.subr.mxu0 0.0
    %2730 = vmatpush1.msra.mxu0 0.0
    %2731 = vmatprep.subr.mxu0 0.0
    %2732 = vmatpush1.msra.mxu0 0.0
    %2733 = vmatprep.subr.mxu0 0.0
    %2734 = vmatpush1.msra.mxu0 0.0
    %2735 = vmatprep.subr.mxu0 0.0
    %2736 = vmatpush1.msra.mxu0 0.0
    %2737 = vmatprep.subr.mxu0 0.0
    %2738 = vmatpush1.msra.mxu0 0.0
    %2739 = vmatprep.subr.mxu0 0.0
    %2740 = vmatpush1.msra.mxu0 0.0
    %2741 = vmatprep.subr.mxu0 0.0
    %2742 = vmatpush1.msra.mxu0 0.0
    %2743 = vmatprep.subr.mxu0 0.0
    %2744 = vmatpush1.msra.mxu0 0.0
    %2745 = vmatprep.subr.mxu0 0.0
    %2746 = vmatpush1.msra.mxu0 0.0
    %2747 = vmatprep.mubr.f32.mxu0 0.0
    %2748 = vmatmul.mubr.f32.gmra.mrb[0].mxu0 %v2681
    %v2749 = vpop.f32.mrb[0].mxu0
    %v2750 = vadd.f32 0.0, %v2749
    %v2751 = vpop.f32.mrb[0].mxu0
    %2752 = vdwg.mxu0
    %v2753 = vadd.f32 %v893, %v2750
    %v2754 = vxor.u32 %v2753, 2147483648
    %v2755 = vmul.f32 %v2754, 1.442695
    %v2756 = vpow.pop %v2755
    %v2757 = vadd.f32 %v2756, 1.0
    %v2758 = vrcp.pop %v2757
    %v2759 = vmul.f32 1.0, %v2758
    %2760 = vrot.lane.b32.xlu0 %v934, 64
    %v2761 = vpop.permute.xlu0 %2760
    %v2763 = vadd.f32 %v2750, %v2761
    %2765 = vrot.lane.b32.xlu0 %v2763, 64
    %v2766 = vpop.permute.xlu0 %2765
    %v2768 = vmul.f32 %v2759, %v2766
    %2770 = vrot.lane.b32.xlu0 %v2768, 64
    %v2771 = vpop.permute.xlu0 %2770
    %v2773 = vadd.f32 %v893, %v2771
    %v2774 = vtanh.pop %v2773
    %v2775 = vsub.f32 1.0, %v2759
    %2777 = vrot.lane.b32.xlu0 %v2774, 96
    %v2778 = vpop.permute.xlu0 %2777
    %v2780 = vmul.f32 %v2775, %v2778
    %v2782 = vmul.f32 %v2759, %v2678
    %v2783 = vadd.f32 %v2780, %v2782
    %2785 = vrot.lane.b32.xlu0 %v2783, 96
    %v2786 = vpop.permute.xlu0 %2785
    %2791 = vrot.lane.b32.xlu0 %v2652, 96
    %v2792 = vpop.permute.xlu0 %2791
    %2793 = vrot.lane.b32.xlu0 %v2655, 96
    %v2794 = vpop.permute.xlu0 %2793
    %2795 = vrot.lane.b32.xlu0 %v2658, 96
    %v2796 = vpop.permute.xlu0 %2795
    %2797 = vrot.lane.b32.xlu0 %v2661, 96
    %v2798 = vpop.permute.xlu0 %2797
    %v2799 = vsel %vm631, %v2786, 0
    %v2801 = vsel %vm631, %v2792, 0
    %v2803 = vsel %vm631, %v2794, 0
    %v2805 = vsel %vm631, %v2796, 0
    %v2807 = vsel %vm631, %v2798, 0
    %2809 = vmatprep.subr.mxu0 0.0
    %2810 = vmatpush1.xpose.msra.mxu0 %v2801
    %2811 = vmatprep.subr.mxu0 0.0
    %2812 = vmatpush1.xpose.msra.mxu0 %v2803
    %2813 = vmatprep.subr.mxu0 0.0
    %2814 = vmatpush1.xpose.msra.mxu0 %v2805
    %2815 = vmatprep.subr.mxu0 0.0
    %2816 = vmatpush1.xpose.msra.mxu0 %v2807
    %2817 = vmatprep.subr.mxu0 0.0
    %2818 = vmatpush1.xpose.msra.mxu0 0.0
    %2819 = vmatprep.subr.mxu0 0.0
    %2820 = vmatpush1.xpose.msra.mxu0 0.0
    %2821 = vmatprep.subr.mxu0 0.0
    %2822 = vmatpush1.xpose.msra.mxu0 0.0
    %2823 = vmatprep.subr.mxu0 0.0
    %2824 = vmatpush1.xpose.msra.mxu0 0.0
    %2825 = vmatprep.subr.mxu0 0.0
    %2826 = vmatpush1.xpose.msra.mxu0 0.0
    %2827 = vmatprep.subr.mxu0 0.0
    %2828 = vmatpush1.xpose.msra.mxu0 0.0
    %2829 = vmatprep.subr.mxu0 0.0
    %2830 = vmatpush1.xpose.msra.mxu0 0.0
    %2831 = vmatprep.subr.mxu0 0.0
    %2832 = vmatpush1.xpose.msra.mxu0 0.0
    %2833 = vmatprep.subr.mxu0 0.0
    %2834 = vmatpush1.xpose.msra.mxu0 0.0
    %2835 = vmatprep.subr.mxu0 0.0
    %2836 = vmatpush1.xpose.msra.mxu0 0.0
    %2837 = vmatprep.subr.mxu0 0.0
    %2838 = vmatpush1.xpose.msra.mxu0 0.0
    %2839 = vmatprep.subr.mxu0 0.0
    %2840 = vmatpush1.xpose.msra.mxu0 0.0
    %2841 = vmatprep.subr.mxu0 0.0
    %2842 = vmatpush1.xpose.msra.mxu0 0.0
    %2843 = vmatprep.subr.mxu0 0.0
    %2844 = vmatpush1.xpose.msra.mxu0 0.0
    %2845 = vmatprep.subr.mxu0 0.0
    %2846 = vmatpush1.xpose.msra.mxu0 0.0
    %2847 = vmatprep.subr.mxu0 0.0
    %2848 = vmatpush1.xpose.msra.mxu0 0.0
    %2849 = vmatprep.subr.mxu0 0.0
    %2850 = vmatpush1.xpose.msra.mxu0 0.0
    %2851 = vmatprep.subr.mxu0 0.0
    %2852 = vmatpush1.xpose.msra.mxu0 0.0
    %2853 = vmatprep.subr.mxu0 0.0
    %2854 = vmatpush1.xpose.msra.mxu0 0.0
    %2855 = vmatprep.subr.mxu0 0.0
    %2856 = vmatpush1.xpose.msra.mxu0 0.0
    %2857 = vmatprep.subr.mxu0 0.0
    %2858 = vmatpush1.xpose.msra.mxu0 0.0
    %2859 = vmatprep.subr.mxu0 0.0
    %2860 = vmatpush1.xpose.msra.mxu0 0.0
    %2861 = vmatprep.subr.mxu0 0.0
    %2862 = vmatpush1.xpose.msra.mxu0 0.0
    %2863 = vmatprep.subr.mxu0 0.0
    %2864 = vmatpush1.xpose.msra.mxu0 0.0
    %2865 = vmatprep.subr.mxu0 0.0
    %2866 = vmatpush1.xpose.msra.mxu0 0.0
    %2867 = vmatprep.subr.mxu0 0.0
    %2868 = vmatpush1.xpose.msra.mxu0 0.0
    %2869 = vmatprep.subr.mxu0 0.0
    %2870 = vmatpush1.xpose.msra.mxu0 0.0
    %2871 = vmatprep.subr.mxu0 0.0
    %2872 = vmatpush1.xpose.msra.mxu0 0.0
    %2873 = vmatprep.mubr.f32.mxu0 0.0
    %2874 = vmatmul.mubr.f32.gmra.mrb[0].mxu0 %v2799
    %v2875 = vpop.f32.mrb[0].mxu0
    %v2876 = vadd.f32 0.0, %v2875
    %v2877 = vpop.f32.mrb[0].mxu0
    %2878 = vdwg.mxu0
    %v2879 = vsel %vm2676, %v2876, -1e+30
    %vm2880 = vcmask 254976
    %v2881 = vsel %vm2880, %v2879, -inf
    %2882 = vmax.xlane.f32.xlu0 %v2881
    %v2883 = vpop.xlane.xlu0 %2882
    %v2884 = vsub.f32 %v2879, %v2883
    %v2885 = vmul.f32 %v2884, 1.442695
    %v2886 = vpow.pop %v2885
    %v2887 = vsel %vm2880, %v2886, 0.0
    %2888 = vadd.xlane.f32.xlu0 %v2887
    %v2889 = vpop.xlane.xlu0 %2888
    %v2890 = vrcp.pop %v2889
    %v2891 = vmul.f32 %v2886, %v2890
    %v2897 = vsel %vm631, %v2891, 0
    %2899 = vmatprep.subr.mxu0 0.0
    %2900 = vmatpush1.msra.mxu0 %v2792
    %2901 = vmatprep.subr.mxu0 0.0
    %2902 = vmatpush1.msra.mxu0 %v2794
    %2903 = vmatprep.subr.mxu0 0.0
    %2904 = vmatpush1.msra.mxu0 %v2796
    %2905 = vmatprep.subr.mxu0 0.0
    %2906 = vmatpush1.msra.mxu0 %v2798
    %2907 = vmatprep.subr.mxu0 0.0
    %2908 = vmatpush1.msra.mxu0 0.0
    %2909 = vmatprep.subr.mxu0 0.0
    %2910 = vmatpush1.msra.mxu0 0.0
    %2911 = vmatprep.subr.mxu0 0.0
    %2912 = vmatpush1.msra.mxu0 0.0
    %2913 = vmatprep.subr.mxu0 0.0
    %2914 = vmatpush1.msra.mxu0 0.0
    %2915 = vmatprep.subr.mxu0 0.0
    %2916 = vmatpush1.msra.mxu0 0.0
    %2917 = vmatprep.subr.mxu0 0.0
    %2918 = vmatpush1.msra.mxu0 0.0
    %2919 = vmatprep.subr.mxu0 0.0
    %2920 = vmatpush1.msra.mxu0 0.0
    %2921 = vmatprep.subr.mxu0 0.0
    %2922 = vmatpush1.msra.mxu0 0.0
    %2923 = vmatprep.subr.mxu0 0.0
    %2924 = vmatpush1.msra.mxu0 0.0
    %2925 = vmatprep.subr.mxu0 0.0
    %2926 = vmatpush1.msra.mxu0 0.0
    %2927 = vmatprep.subr.mxu0 0.0
    %2928 = vmatpush1.msra.mxu0 0.0
    %2929 = vmatprep.subr.mxu0 0.0
    %2930 = vmatpush1.msra.mxu0 0.0
    %2931 = vmatprep.subr.mxu0 0.0
    %2932 = vmatpush1.msra.mxu0 0.0
    %2933 = vmatprep.subr.mxu0 0.0
    %2934 = vmatpush1.msra.mxu0 0.0
    %2935 = vmatprep.subr.mxu0 0.0
    %2936 = vmatpush1.msra.mxu0 0.0
    %2937 = vmatprep.subr.mxu0 0.0
    %2938 = vmatpush1.msra.mxu0 0.0
    %2939 = vmatprep.subr.mxu0 0.0
    %2940 = vmatpush1.msra.mxu0 0.0
    %2941 = vmatprep.subr.mxu0 0.0
    %2942 = vmatpush1.msra.mxu0 0.0
    %2943 = vmatprep.subr.mxu0 0.0
    %2944 = vmatpush1.msra.mxu0 0.0
    %2945 = vmatprep.subr.mxu0 0.0
    %2946 = vmatpush1.msra.mxu0 0.0
    %2947 = vmatprep.subr.mxu0 0.0
    %2948 = vmatpush1.msra.mxu0 0.0
    %2949 = vmatprep.subr.mxu0 0.0
    %2950 = vmatpush1.msra.mxu0 0.0
    %2951 = vmatprep.subr.mxu0 0.0
    %2952 = vmatpush1.msra.mxu0 0.0
    %2953 = vmatprep.subr.mxu0 0.0
    %2954 = vmatpush1.msra.mxu0 0.0
    %2955 = vmatprep.subr.mxu0 0.0
    %2956 = vmatpush1.msra.mxu0 0.0
    %2957 = vmatprep.subr.mxu0 0.0
    %2958 = vmatpush1.msra.mxu0 0.0
    %2959 = vmatprep.subr.mxu0 0.0
    %2960 = vmatpush1.msra.mxu0 0.0
    %2961 = vmatprep.subr.mxu0 0.0
    %2962 = vmatpush1.msra.mxu0 0.0
    %2963 = vmatprep.mubr.f32.mxu0 0.0
    %2964 = vmatmul.mubr.f32.gmra.mrb[0].mxu0 %v2897
    %v2965 = vpop.f32.mrb[0].mxu0
    %v2966 = vadd.f32 0.0, %v2965
    %v2967 = vpop.f32.mrb[0].mxu0
    %2968 = vdwg.mxu0
    %2969 = vmatprep.subr.mxu0 0.0
    %2970 = vmatpush1.msra.mxu0 %v911
    %2971 = vmatprep.subr.mxu0 0.0
    %2972 = vmatpush1.msra.mxu0 %v912
    %2973 = vmatprep.subr.mxu0 0.0
    %2974 = vmatpush1.msra.mxu0 %v913
    %2975 = vmatprep.subr.mxu0 0.0
    %2976 = vmatpush1.msra.mxu0 %v914
    %2977 = vmatprep.subr.mxu0 0.0
    %2978 = vmatpush1.msra.mxu0 0.0
    %2979 = vmatprep.subr.mxu0 0.0
    %2980 = vmatpush1.msra.mxu0 0.0
    %2981 = vmatprep.subr.mxu0 0.0
    %2982 = vmatpush1.msra.mxu0 0.0
    %2983 = vmatprep.subr.mxu0 0.0
    %2984 = vmatpush1.msra.mxu0 0.0
    %2985 = vmatprep.subr.mxu0 0.0
    %2986 = vmatpush1.msra.mxu0 0.0
    %2987 = vmatprep.subr.mxu0 0.0
    %2988 = vmatpush1.msra.mxu0 0.0
    %2989 = vmatprep.subr.mxu0 0.0
    %2990 = vmatpush1.msra.mxu0 0.0
    %2991 = vmatprep.subr.mxu0 0.0
    %2992 = vmatpush1.msra.mxu0 0.0
    %2993 = vmatprep.subr.mxu0 0.0
    %2994 = vmatpush1.msra.mxu0 0.0
    %2995 = vmatprep.subr.mxu0 0.0
    %2996 = vmatpush1.msra.mxu0 0.0
    %2997 = vmatprep.subr.mxu0 0.0
    %2998 = vmatpush1.msra.mxu0 0.0
    %2999 = vmatprep.subr.mxu0 0.0
    %3000 = vmatpush1.msra.mxu0 0.0
    %3001 = vmatprep.subr.mxu0 0.0
    %3002 = vmatpush1.msra.mxu0 0.0
    %3003 = vmatprep.subr.mxu0 0.0
    %3004 = vmatpush1.msra.mxu0 0.0
    %3005 = vmatprep.subr.mxu0 0.0
    %3006 = vmatpush1.msra.mxu0 0.0
    %3007 = vmatprep.subr.mxu0 0.0
    %3008 = vmatpush1.msra.mxu0 0.0
    %3009 = vmatprep.subr.mxu0 0.0
    %3010 = vmatpush1.msra.mxu0 0.0
    %3011 = vmatprep.subr.mxu0 0.0
    %3012 = vmatpush1.msra.mxu0 0.0
    %3013 = vmatprep.subr.mxu0 0.0
    %3014 = vmatpush1.msra.mxu0 0.0
    %3015 = vmatprep.subr.mxu0 0.0
    %3016 = vmatpush1.msra.mxu0 0.0
    %3017 = vmatprep.subr.mxu0 0.0
    %3018 = vmatpush1.msra.mxu0 0.0
    %3019 = vmatprep.subr.mxu0 0.0
    %3020 = vmatpush1.msra.mxu0 0.0
    %3021 = vmatprep.subr.mxu0 0.0
    %3022 = vmatpush1.msra.mxu0 0.0
    %3023 = vmatprep.subr.mxu0 0.0
    %3024 = vmatpush1.msra.mxu0 0.0
    %3025 = vmatprep.subr.mxu0 0.0
    %3026 = vmatpush1.msra.mxu0 0.0
    %3027 = vmatprep.subr.mxu0 0.0
    %3028 = vmatpush1.msra.mxu0 0.0
    %3029 = vmatprep.subr.mxu0 0.0
    %3030 = vmatpush1.msra.mxu0 0.0
    %3031 = vmatprep.subr.mxu0 0.0
    %3032 = vmatpush1.msra.mxu0 0.0
    %3033 = vmatprep.mubr.f32.mxu0 0.0
    %3034 = vmatmul.mubr.f32.gmra.mrb[0].mxu0 %v2799
    %v3035 = vpop.f32.mrb[0].mxu0
    %v3036 = vadd.f32 0.0, %v3035
    %v3037 = vpop.f32.mrb[0].mxu0
    %3038 = vdwg.mxu0
    %v3040 = vrot.slane %v3036, 6
    %v3042 = vadd.f32 %v893, %v3040
    %v3043 = vxor.u32 %v3042, 2147483648
    %v3044 = vmul.f32 %v3043, 1.442695
    %v3045 = vpow.pop %v3044
    %v3046 = vadd.f32 %v3045, 1.0
    %v3047 = vrcp.pop %v3046
    %v3048 = vmul.f32 1.0, %v3047
    %v3049 = vadd.f32 %v3036, %v2761
    %v3051 = vrot.slane %v3049, 6
    %3052 = vrot.lane.b32.xlu0 %v3051, 64
    %v3053 = vpop.permute.xlu0 %3052
    %v3055 = vmul.f32 %v3048, %v3053
    %3057 = vrot.lane.b32.xlu0 %v3055, 64
    %v3058 = vpop.permute.xlu0 %3057
    %v3060 = vadd.f32 %v893, %v3058
    %v3061 = vtanh.pop %v3060
    %v3062 = vsub.f32 1.0, %v3048
    %3064 = vrot.lane.b32.xlu0 %v3061, 96
    %v3065 = vpop.permute.xlu0 %3064
    %v3067 = vmul.f32 %v3062, %v3065
    %v3068 = vrot.slane %v2783, 6
    %v3070 = vmul.f32 %v3048, %v3068
    %v3071 = vadd.f32 %v3067, %v3070
    %v3073 = vrot.slane %v3071, 2
    %3074 = vrot.lane.b32.xlu0 %v3073, 96
    %v3075 = vpop.permute.xlu0 %3074
    %v3076 = vsel %vm631, %v3075, 0
    %3078 = vmatprep.subr.mxu0 0.0
    %3079 = vmatpush1.xpose.msra.mxu0 %v2801
    %3080 = vmatprep.subr.mxu0 0.0
    %3081 = vmatpush1.xpose.msra.mxu0 %v2803
    %3082 = vmatprep.subr.mxu0 0.0
    %3083 = vmatpush1.xpose.msra.mxu0 %v2805
    %3084 = vmatprep.subr.mxu0 0.0
    %3085 = vmatpush1.xpose.msra.mxu0 %v2807
    %3086 = vmatprep.subr.mxu0 0.0
    %3087 = vmatpush1.xpose.msra.mxu0 0.0
    %3088 = vmatprep.subr.mxu0 0.0
    %3089 = vmatpush1.xpose.msra.mxu0 0.0
    %3090 = vmatprep.subr.mxu0 0.0
    %3091 = vmatpush1.xpose.msra.mxu0 0.0
    %3092 = vmatprep.subr.mxu0 0.0
    %3093 = vmatpush1.xpose.msra.mxu0 0.0
    %3094 = vmatprep.subr.mxu0 0.0
    %3095 = vmatpush1.xpose.msra.mxu0 0.0
    %3096 = vmatprep.subr.mxu0 0.0
    %3097 = vmatpush1.xpose.msra.mxu0 0.0
    %3098 = vmatprep.subr.mxu0 0.0
    %3099 = vmatpush1.xpose.msra.mxu0 0.0
    %3100 = vmatprep.subr.mxu0 0.0
    %3101 = vmatpush1.xpose.msra.mxu0 0.0
    %3102 = vmatprep.subr.mxu0 0.0
    %3103 = vmatpush1.xpose.msra.mxu0 0.0
    %3104 = vmatprep.subr.mxu0 0.0
    %3105 = vmatpush1.xpose.msra.mxu0 0.0
    %3106 = vmatprep.subr.mxu0 0.0
    %3107 = vmatpush1.xpose.msra.mxu0 0.0
    %3108 = vmatprep.subr.mxu0 0.0
    %3109 = vmatpush1.xpose.msra.mxu0 0.0
    %3110 = vmatprep.subr.mxu0 0.0
    %3111 = vmatpush1.xpose.msra.mxu0 0.0
    %3112 = vmatprep.subr.mxu0 0.0
    %3113 = vmatpush1.xpose.msra.mxu0 0.0
    %3114 = vmatprep.subr.mxu0 0.0
    %3115 = vmatpush1.xpose.msra.mxu0 0.0
    %3116 = vmatprep.subr.mxu0 0.0
    %3117 = vmatpush1.xpose.msra.mxu0 0.0
    %3118 = vmatprep.subr.mxu0 0.0
    %3119 = vmatpush1.xpose.msra.mxu0 0.0
    %3120 = vmatprep.subr.mxu0 0.0
    %3121 = vmatpush1.xpose.msra.mxu0 0.0
    %3122 = vmatprep.subr.mxu0 0.0
    %3123 = vmatpush1.xpose.msra.mxu0 0.0
    %3124 = vmatprep.subr.mxu0 0.0
    %3125 = vmatpush1.xpose.msra.mxu0 0.0
    %3126 = vmatprep.subr.mxu0 0.0
    %3127 = vmatpush1.xpose.msra.mxu0 0.0
    %3128 = vmatprep.subr.mxu0 0.0
    %3129 = vmatpush1.xpose.msra.mxu0 0.0
    %3130 = vmatprep.subr.mxu0 0.0
    %3131 = vmatpush1.xpose.msra.mxu0 0.0
    %3132 = vmatprep.subr.mxu0 0.0
    %3133 = vmatpush1.xpose.msra.mxu0 0.0
    %3134 = vmatprep.subr.mxu0 0.0
    %3135 = vmatpush1.xpose.msra.mxu0 0.0
    %3136 = vmatprep.subr.mxu0 0.0
    %3137 = vmatpush1.xpose.msra.mxu0 0.0
    %3138 = vmatprep.subr.mxu0 0.0
    %3139 = vmatpush1.xpose.msra.mxu0 0.0
    %3140 = vmatprep.subr.mxu0 0.0
    %3141 = vmatpush1.xpose.msra.mxu0 0.0
    %3142 = vmatprep.mubr.f32.mxu0 0.0
    %3143 = vmatmul.mubr.f32.gmra.mrb[0].mxu0 %v3076
    %v3144 = vpop.f32.mrb[0].mxu0
    %v3145 = vadd.f32 0.0, %v3144
    %v3146 = vpop.f32.mrb[0].mxu0
    %3147 = vdwg.mxu0
    %v3148 = vsel %vm2676, %v3145, -1e+30
    %v3149 = vsel %vm2880, %v3148, -inf
    %3150 = vmax.xlane.f32.xlu0 %v3149
    %v3151 = vpop.xlane.xlu0 %3150
    %v3152 = vsub.f32 %v3148, %v3151
    %v3153 = vmul.f32 %v3152, 1.442695
    %v3154 = vpow.pop %v3153
    %v3155 = vsel %vm2880, %v3154, 0.0
    %3156 = vadd.xlane.f32.xlu0 %v3155
    %v3157 = vpop.xlane.xlu0 %3156
    %v3158 = vrcp.pop %v3157
    %v3159 = vmul.f32 %v3154, %v3158
    %v3161 = vsel %vm631, %v3159, 0
    %3163 = vmatprep.subr.mxu0 0.0
    %3164 = vmatpush1.msra.mxu0 %v2792
    %3165 = vmatprep.subr.mxu0 0.0
    %3166 = vmatpush1.msra.mxu0 %v2794
    %3167 = vmatprep.subr.mxu0 0.0
    %3168 = vmatpush1.msra.mxu0 %v2796
    %3169 = vmatprep.subr.mxu0 0.0
    %3170 = vmatpush1.msra.mxu0 %v2798
    %3171 = vmatprep.subr.mxu0 0.0
    %3172 = vmatpush1.msra.mxu0 0.0
    %3173 = vmatprep.subr.mxu0 0.0
    %3174 = vmatpush1.msra.mxu0 0.0
    %3175 = vmatprep.subr.mxu0 0.0
    %3176 = vmatpush1.msra.mxu0 0.0
    %3177 = vmatprep.subr.mxu0 0.0
    %3178 = vmatpush1.msra.mxu0 0.0
    %3179 = vmatprep.subr.mxu0 0.0
    %3180 = vmatpush1.msra.mxu0 0.0
    %3181 = vmatprep.subr.mxu0 0.0
    %3182 = vmatpush1.msra.mxu0 0.0
    %3183 = vmatprep.subr.mxu0 0.0
    %3184 = vmatpush1.msra.mxu0 0.0
    %3185 = vmatprep.subr.mxu0 0.0
    %3186 = vmatpush1.msra.mxu0 0.0
    %3187 = vmatprep.subr.mxu0 0.0
    %3188 = vmatpush1.msra.mxu0 0.0
    %3189 = vmatprep.subr.mxu0 0.0
    %3190 = vmatpush1.msra.mxu0 0.0
    %3191 = vmatprep.subr.mxu0 0.0
    %3192 = vmatpush1.msra.mxu0 0.0
    %3193 = vmatprep.subr.mxu0 0.0
    %3194 = vmatpush1.msra.mxu0 0.0
    %3195 = vmatprep.subr.mxu0 0.0
    %3196 = vmatpush1.msra.mxu0 0.0
    %3197 = vmatprep.subr.mxu0 0.0
    %3198 = vmatpush1.msra.mxu0 0.0
    %3199 = vmatprep.subr.mxu0 0.0
    %3200 = vmatpush1.msra.mxu0 0.0
    %3201 = vmatprep.subr.mxu0 0.0
    %3202 = vmatpush1.msra.mxu0 0.0
    %3203 = vmatprep.subr.mxu0 0.0
    %3204 = vmatpush1.msra.mxu0 0.0
    %3205 = vmatprep.subr.mxu0 0.0
    %3206 = vmatpush1.msra.mxu0 0.0
    %3207 = vmatprep.subr.mxu0 0.0
    %3208 = vmatpush1.msra.mxu0 0.0
    %3209 = vmatprep.subr.mxu0 0.0
    %3210 = vmatpush1.msra.mxu0 0.0
    %3211 = vmatprep.subr.mxu0 0.0
    %3212 = vmatpush1.msra.mxu0 0.0
    %3213 = vmatprep.subr.mxu0 0.0
    %3214 = vmatpush1.msra.mxu0 0.0
    %3215 = vmatprep.subr.mxu0 0.0
    %3216 = vmatpush1.msra.mxu0 0.0
    %3217 = vmatprep.subr.mxu0 0.0
    %3218 = vmatpush1.msra.mxu0 0.0
    %3219 = vmatprep.subr.mxu0 0.0
    %3220 = vmatpush1.msra.mxu0 0.0
    %3221 = vmatprep.subr.mxu0 0.0
    %3222 = vmatpush1.msra.mxu0 0.0
    %3223 = vmatprep.subr.mxu0 0.0
    %3224 = vmatpush1.msra.mxu0 0.0
    %3225 = vmatprep.subr.mxu0 0.0
    %3226 = vmatpush1.msra.mxu0 0.0
    %3227 = vmatprep.mubr.f32.mxu0 0.0
    %3228 = vmatmul.mubr.f32.gmra.mrb[0].mxu0 %v3161
    %v3229 = vpop.f32.mrb[0].mxu0
    %v3230 = vadd.f32 0.0, %v3229
    %v3231 = vpop.f32.mrb[0].mxu0
    %3232 = vdwg.mxu0
    %3233 = vmatprep.subr.mxu0 0.0
    %3234 = vmatpush1.msra.mxu0 %v911
    %3235 = vmatprep.subr.mxu0 0.0
    %3236 = vmatpush1.msra.mxu0 %v912
    %3237 = vmatprep.subr.mxu0 0.0
    %3238 = vmatpush1.msra.mxu0 %v913
    %3239 = vmatprep.subr.mxu0 0.0
    %3240 = vmatpush1.msra.mxu0 %v914
    %3241 = vmatprep.subr.mxu0 0.0
    %3242 = vmatpush1.msra.mxu0 0.0
    %3243 = vmatprep.subr.mxu0 0.0
    %3244 = vmatpush1.msra.mxu0 0.0
    %3245 = vmatprep.subr.mxu0 0.0
    %3246 = vmatpush1.msra.mxu0 0.0
    %3247 = vmatprep.subr.mxu0 0.0
    %3248 = vmatpush1.msra.mxu0 0.0
    %3249 = vmatprep.subr.mxu0 0.0
    %3250 = vmatpush1.msra.mxu0 0.0
    %3251 = vmatprep.subr.mxu0 0.0
    %3252 = vmatpush1.msra.mxu0 0.0
    %3253 = vmatprep.subr.mxu0 0.0
    %3254 = vmatpush1.msra.mxu0 0.0
    %3255 = vmatprep.subr.mxu0 0.0
    %3256 = vmatpush1.msra.mxu0 0.0
    %3257 = vmatprep.subr.mxu0 0.0
    %3258 = vmatpush1.msra.mxu0 0.0
    %3259 = vmatprep.subr.mxu0 0.0
    %3260 = vmatpush1.msra.mxu0 0.0
    %3261 = vmatprep.subr.mxu0 0.0
    %3262 = vmatpush1.msra.mxu0 0.0
    %3263 = vmatprep.subr.mxu0 0.0
    %3264 = vmatpush1.msra.mxu0 0.0
    %3265 = vmatprep.subr.mxu0 0.0
    %3266 = vmatpush1.msra.mxu0 0.0
    %3267 = vmatprep.subr.mxu0 0.0
    %3268 = vmatpush1.msra.mxu0 0.0
    %3269 = vmatprep.subr.mxu0 0.0
    %3270 = vmatpush1.msra.mxu0 0.0
    %3271 = vmatprep.subr.mxu0 0.0
    %3272 = vmatpush1.msra.mxu0 0.0
    %3273 = vmatprep.subr.mxu0 0.0
    %3274 = vmatpush1.msra.mxu0 0.0
    %3275 = vmatprep.subr.mxu0 0.0
    %3276 = vmatpush1.msra.mxu0 0.0
    %3277 = vmatprep.subr.mxu0 0.0
    %3278 = vmatpush1.msra.mxu0 0.0
    %3279 = vmatprep.subr.mxu0 0.0
    %3280 = vmatpush1.msra.mxu0 0.0
    %3281 = vmatprep.subr.mxu0 0.0
    %3282 = vmatpush1.msra.mxu0 0.0
    %3283 = vmatprep.subr.mxu0 0.0
    %3284 = vmatpush1.msra.mxu0 0.0
    %3285 = vmatprep.subr.mxu0 0.0
    %3286 = vmatpush1.msra.mxu0 0.0
    %3287 = vmatprep.subr.mxu0 0.0
    %3288 = vmatpush1.msra.mxu0 0.0
    %3289 = vmatprep.subr.mxu0 0.0
    %3290 = vmatpush1.msra.mxu0 0.0
    %3291 = vmatprep.subr.mxu0 0.0
    %3292 = vmatpush1.msra.mxu0 0.0
    %3293 = vmatprep.subr.mxu0 0.0
    %3294 = vmatpush1.msra.mxu0 0.0
    %3295 = vmatprep.subr.mxu0 0.0
    %3296 = vmatpush1.msra.mxu0 0.0
    %3297 = vmatprep.mubr.f32.mxu0 0.0
    %3298 = vmatmul.mubr.f32.gmra.mrb[0].mxu0 %v3076
    %v3299 = vpop.f32.mrb[0].mxu0
    %v3300 = vadd.f32 0.0, %v3299
    %v3301 = vpop.f32.mrb[0].mxu0
    %3302 = vdwg.mxu0
    %v3304 = vrot.slane %v3300, 4
    %v3306 = vadd.f32 %v893, %v3304
    %v3307 = vxor.u32 %v3306, 2147483648
    %v3308 = vmul.f32 %v3307, 1.442695
    %v3309 = vpow.pop %v3308
    %v3310 = vadd.f32 %v3309, 1.0
    %v3311 = vrcp.pop %v3310
    %v3312 = vmul.f32 1.0, %v3311
    %v3313 = vadd.f32 %v3300, %v2761
    %v3315 = vrot.slane %v3313, 4
    %3316 = vrot.lane.b32.xlu0 %v3315, 64
    %v3317 = vpop.permute.xlu0 %3316
    %v3319 = vmul.f32 %v3312, %v3317
    %3321 = vrot.lane.b32.xlu0 %v3319, 64
    %v3322 = vpop.permute.xlu0 %3321
    %v3324 = vadd.f32 %v893, %v3322
    %v3325 = vtanh.pop %v3324
    %v3326 = vsub.f32 1.0, %v3312
    %3328 = vrot.lane.b32.xlu0 %v3325, 96
    %v3329 = vpop.permute.xlu0 %3328
    %v3331 = vmul.f32 %v3326, %v3329
    %v3332 = vrot.slane %v3071, 6
    %v3334 = vmul.f32 %v3312, %v3332
    %v3335 = vadd.f32 %v3331, %v3334
    %v3337 = vrot.slane %v3335, 4
    %3338 = vrot.lane.b32.xlu0 %v3337, 96
    %v3339 = vpop.permute.xlu0 %3338
    %v3340 = vsel %vm631, %v3339, 0
    %3342 = vmatprep.subr.mxu0 0.0
    %3343 = vmatpush1.xpose.msra.mxu0 %v2801
    %3344 = vmatprep.subr.mxu0 0.0
    %3345 = vmatpush1.xpose.msra.mxu0 %v2803
    %3346 = vmatprep.subr.mxu0 0.0
    %3347 = vmatpush1.xpose.msra.mxu0 %v2805
    %3348 = vmatprep.subr.mxu0 0.0
    %3349 = vmatpush1.xpose.msra.mxu0 %v2807
    %3350 = vmatprep.subr.mxu0 0.0
    %3351 = vmatpush1.xpose.msra.mxu0 0.0
    %3352 = vmatprep.subr.mxu0 0.0
    %3353 = vmatpush1.xpose.msra.mxu0 0.0
    %3354 = vmatprep.subr.mxu0 0.0
    %3355 = vmatpush1.xpose.msra.mxu0 0.0
    %3356 = vmatprep.subr.mxu0 0.0
    %3357 = vmatpush1.xpose.msra.mxu0 0.0
    %3358 = vmatprep.subr.mxu0 0.0
    %3359 = vmatpush1.xpose.msra.mxu0 0.0
    %3360 = vmatprep.subr.mxu0 0.0
    %3361 = vmatpush1.xpose.msra.mxu0 0.0
    %3362 = vmatprep.subr.mxu0 0.0
    %3363 = vmatpush1.xpose.msra.mxu0 0.0
    %3364 = vmatprep.subr.mxu0 0.0
    %3365 = vmatpush1.xpose.msra.mxu0 0.0
    %3366 = vmatprep.subr.mxu0 0.0
    %3367 = vmatpush1.xpose.msra.mxu0 0.0
    %3368 = vmatprep.subr.mxu0 0.0
    %3369 = vmatpush1.xpose.msra.mxu0 0.0
    %3370 = vmatprep.subr.mxu0 0.0
    %3371 = vmatpush1.xpose.msra.mxu0 0.0
    %3372 = vmatprep.subr.mxu0 0.0
    %3373 = vmatpush1.xpose.msra.mxu0 0.0
    %3374 = vmatprep.subr.mxu0 0.0
    %3375 = vmatpush1.xpose.msra.mxu0 0.0
    %3376 = vmatprep.subr.mxu0 0.0
    %3377 = vmatpush1.xpose.msra.mxu0 0.0
    %3378 = vmatprep.subr.mxu0 0.0
    %3379 = vmatpush1.xpose.msra.mxu0 0.0
    %3380 = vmatprep.subr.mxu0 0.0
    %3381 = vmatpush1.xpose.msra.mxu0 0.0
    %3382 = vmatprep.subr.mxu0 0.0
    %3383 = vmatpush1.xpose.msra.mxu0 0.0
    %3384 = vmatprep.subr.mxu0 0.0
    %3385 = vmatpush1.xpose.msra.mxu0 0.0
    %3386 = vmatprep.subr.mxu0 0.0
    %3387 = vmatpush1.xpose.msra.mxu0 0.0
    %3388 = vmatprep.subr.mxu0 0.0
    %3389 = vmatpush1.xpose.msra.mxu0 0.0
    %3390 = vmatprep.subr.mxu0 0.0
    %3391 = vmatpush1.xpose.msra.mxu0 0.0
    %3392 = vmatprep.subr.mxu0 0.0
    %3393 = vmatpush1.xpose.msra.mxu0 0.0
    %3394 = vmatprep.subr.mxu0 0.0
    %3395 = vmatpush1.xpose.msra.mxu0 0.0
    %3396 = vmatprep.subr.mxu0 0.0
    %3397 = vmatpush1.xpose.msra.mxu0 0.0
    %3398 = vmatprep.subr.mxu0 0.0
    %3399 = vmatpush1.xpose.msra.mxu0 0.0
    %3400 = vmatprep.subr.mxu0 0.0
    %3401 = vmatpush1.xpose.msra.mxu0 0.0
    %3402 = vmatprep.subr.mxu0 0.0
    %3403 = vmatpush1.xpose.msra.mxu0 0.0
    %3404 = vmatprep.subr.mxu0 0.0
    %3405 = vmatpush1.xpose.msra.mxu0 0.0
    %3406 = vmatprep.mubr.f32.mxu0 0.0
    %3407 = vmatmul.mubr.f32.gmra.mrb[0].mxu0 %v3340
    %v3408 = vpop.f32.mrb[0].mxu0
    %v3409 = vadd.f32 0.0, %v3408
    %v3410 = vpop.f32.mrb[0].mxu0
    %3411 = vdwg.mxu0
    %v3412 = vsel %vm2676, %v3409, -1e+30
    %v3413 = vsel %vm2880, %v3412, -inf
    %3414 = vmax.xlane.f32.xlu0 %v3413
    %v3415 = vpop.xlane.xlu0 %3414
    %v3416 = vsub.f32 %v3412, %v3415
    %v3417 = vmul.f32 %v3416, 1.442695
    %v3418 = vpow.pop %v3417
    %v3419 = vsel %vm2880, %v3418, 0.0
    %3420 = vadd.xlane.f32.xlu0 %v3419
    %v3421 = vpop.xlane.xlu0 %3420
    %v3422 = vrcp.pop %v3421
    %v3423 = vmul.f32 %v3418, %v3422
    %v3425 = vsel %vm631, %v3423, 0
    %3427 = vmatprep.subr.mxu0 0.0
    %3428 = vmatpush1.msra.mxu0 %v2792
    %3429 = vmatprep.subr.mxu0 0.0
    %3430 = vmatpush1.msra.mxu0 %v2794
    %3431 = vmatprep.subr.mxu0 0.0
    %3432 = vmatpush1.msra.mxu0 %v2796
    %3433 = vmatprep.subr.mxu0 0.0
    %3434 = vmatpush1.msra.mxu0 %v2798
    %3435 = vmatprep.subr.mxu0 0.0
    %3436 = vmatpush1.msra.mxu0 0.0
    %3437 = vmatprep.subr.mxu0 0.0
    %3438 = vmatpush1.msra.mxu0 0.0
    %3439 = vmatprep.subr.mxu0 0.0
    %3440 = vmatpush1.msra.mxu0 0.0
    %3441 = vmatprep.subr.mxu0 0.0
    %3442 = vmatpush1.msra.mxu0 0.0
    %3443 = vmatprep.subr.mxu0 0.0
    %3444 = vmatpush1.msra.mxu0 0.0
    %3445 = vmatprep.subr.mxu0 0.0
    %3446 = vmatpush1.msra.mxu0 0.0
    %3447 = vmatprep.subr.mxu0 0.0
    %3448 = vmatpush1.msra.mxu0 0.0
    %3449 = vmatprep.subr.mxu0 0.0
    %3450 = vmatpush1.msra.mxu0 0.0
    %3451 = vmatprep.subr.mxu0 0.0
    %3452 = vmatpush1.msra.mxu0 0.0
    %3453 = vmatprep.subr.mxu0 0.0
    %3454 = vmatpush1.msra.mxu0 0.0
    %3455 = vmatprep.subr.mxu0 0.0
    %3456 = vmatpush1.msra.mxu0 0.0
    %3457 = vmatprep.subr.mxu0 0.0
    %3458 = vmatpush1.msra.mxu0 0.0
    %3459 = vmatprep.subr.mxu0 0.0
    %3460 = vmatpush1.msra.mxu0 0.0
    %3461 = vmatprep.subr.mxu0 0.0
    %3462 = vmatpush1.msra.mxu0 0.0
    %3463 = vmatprep.subr.mxu0 0.0
    %3464 = vmatpush1.msra.mxu0 0.0
    %3465 = vmatprep.subr.mxu0 0.0
    %3466 = vmatpush1.msra.mxu0 0.0
    %3467 = vmatprep.subr.mxu0 0.0
    %3468 = vmatpush1.msra.mxu0 0.0
    %3469 = vmatprep.subr.mxu0 0.0
    %3470 = vmatpush1.msra.mxu0 0.0
    %3471 = vmatprep.subr.mxu0 0.0
    %3472 = vmatpush1.msra.mxu0 0.0
    %3473 = vmatprep.subr.mxu0 0.0
    %3474 = vmatpush1.msra.mxu0 0.0
    %3475 = vmatprep.subr.mxu0 0.0
    %3476 = vmatpush1.msra.mxu0 0.0
    %3477 = vmatprep.subr.mxu0 0.0
    %3478 = vmatpush1.msra.mxu0 0.0
    %3479 = vmatprep.subr.mxu0 0.0
    %3480 = vmatpush1.msra.mxu0 0.0
    %3481 = vmatprep.subr.mxu0 0.0
    %3482 = vmatpush1.msra.mxu0 0.0
    %3483 = vmatprep.subr.mxu0 0.0
    %3484 = vmatpush1.msra.mxu0 0.0
    %3485 = vmatprep.subr.mxu0 0.0
    %3486 = vmatpush1.msra.mxu0 0.0
    %3487 = vmatprep.subr.mxu0 0.0
    %3488 = vmatpush1.msra.mxu0 0.0
    %3489 = vmatprep.subr.mxu0 0.0
    %3490 = vmatpush1.msra.mxu0 0.0
    %3491 = vmatprep.mubr.f32.mxu0 0.0
    %3492 = vmatmul.mubr.f32.gmra.mrb[0].mxu0 %v3425
    %v3493 = vpop.f32.mrb[0].mxu0
    %v3494 = vadd.f32 0.0, %v3493
    %v3495 = vpop.f32.mrb[0].mxu0
    %3496 = vdwg.mxu0
    %3497 = vmatprep.subr.mxu0 0.0
    %3498 = vmatpush1.msra.mxu0 %v911
    %3499 = vmatprep.subr.mxu0 0.0
    %3500 = vmatpush1.msra.mxu0 %v912
    %3501 = vmatprep.subr.mxu0 0.0
    %3502 = vmatpush1.msra.mxu0 %v913
    %3503 = vmatprep.subr.mxu0 0.0
    %3504 = vmatpush1.msra.mxu0 %v914
    %3505 = vmatprep.subr.mxu0 0.0
    %3506 = vmatpush1.msra.mxu0 0.0
    %3507 = vmatprep.subr.mxu0 0.0
    %3508 = vmatpush1.msra.mxu0 0.0
    %3509 = vmatprep.subr.mxu0 0.0
    %3510 = vmatpush1.msra.mxu0 0.0
    %3511 = vmatprep.subr.mxu0 0.0
    %3512 = vmatpush1.msra.mxu0 0.0
    %3513 = vmatprep.subr.mxu0 0.0
    %3514 = vmatpush1.msra.mxu0 0.0
    %3515 = vmatprep.subr.mxu0 0.0
    %3516 = vmatpush1.msra.mxu0 0.0
    %3517 = vmatprep.subr.mxu0 0.0
    %3518 = vmatpush1.msra.mxu0 0.0
    %3519 = vmatprep.subr.mxu0 0.0
    %3520 = vmatpush1.msra.mxu0 0.0
    %3521 = vmatprep.subr.mxu0 0.0
    %3522 = vmatpush1.msra.mxu0 0.0
    %3523 = vmatprep.subr.mxu0 0.0
    %3524 = vmatpush1.msra.mxu0 0.0
    %3525 = vmatprep.subr.mxu0 0.0
    %3526 = vmatpush1.msra.mxu0 0.0
    %3527 = vmatprep.subr.mxu0 0.0
    %3528 = vmatpush1.msra.mxu0 0.0
    %3529 = vmatprep.subr.mxu0 0.0
    %3530 = vmatpush1.msra.mxu0 0.0
    %3531 = vmatprep.subr.mxu0 0.0
    %3532 = vmatpush1.msra.mxu0 0.0
    %3533 = vmatprep.subr.mxu0 0.0
    %3534 = vmatpush1.msra.mxu0 0.0
    %3535 = vmatprep.subr.mxu0 0.0
    %3536 = vmatpush1.msra.mxu0 0.0
    %3537 = vmatprep.subr.mxu0 0.0
    %3538 = vmatpush1.msra.mxu0 0.0
    %3539 = vmatprep.subr.mxu0 0.0
    %3540 = vmatpush1.msra.mxu0 0.0
    %3541 = vmatprep.subr.mxu0 0.0
    %3542 = vmatpush1.msra.mxu0 0.0
    %3543 = vmatprep.subr.mxu0 0.0
    %3544 = vmatpush1.msra.mxu0 0.0
    %3545 = vmatprep.subr.mxu0 0.0
    %3546 = vmatpush1.msra.mxu0 0.0
    %3547 = vmatprep.subr.mxu0 0.0
    %3548 = vmatpush1.msra.mxu0 0.0
    %3549 = vmatprep.subr.mxu0 0.0
    %3550 = vmatpush1.msra.mxu0 0.0
    %3551 = vmatprep.subr.mxu0 0.0
    %3552 = vmatpush1.msra.mxu0 0.0
    %3553 = vmatprep.subr.mxu0 0.0
    %3554 = vmatpush1.msra.mxu0 0.0
    %3555 = vmatprep.subr.mxu0 0.0
    %3556 = vmatpush1.msra.mxu0 0.0
    %3557 = vmatprep.subr.mxu0 0.0
    %3558 = vmatpush1.msra.mxu0 0.0
    %3559 = vmatprep.subr.mxu0 0.0
    %3560 = vmatpush1.msra.mxu0 0.0
    %3561 = vmatprep.mubr.f32.mxu0 0.0
    %3562 = vmatmul.mubr.f32.gmra.mrb[0].mxu0 %v3340
    %v3563 = vpop.f32.mrb[0].mxu0
    %v3564 = vadd.f32 0.0, %v3563
    %v3565 = vpop.f32.mrb[0].mxu0
    %3566 = vdwg.mxu0
    %v3568 = vrot.slane %v3564, 2
    %v3570 = vadd.f32 %v893, %v3568
    %v3571 = vxor.u32 %v3570, 2147483648
    %v3572 = vmul.f32 %v3571, 1.442695
    %v3573 = vpow.pop %v3572
    %v3574 = vadd.f32 %v3573, 1.0
    %v3575 = vrcp.pop %v3574
    %v3576 = vmul.f32 1.0, %v3575
    %v3577 = vadd.f32 %v3564, %v2761
    %v3579 = vrot.slane %v3577, 2
    %3580 = vrot.lane.b32.xlu0 %v3579, 64
    %v3581 = vpop.permute.xlu0 %3580
    %v3583 = vmul.f32 %v3576, %v3581
    %3585 = vrot.lane.b32.xlu0 %v3583, 64
    %v3586 = vpop.permute.xlu0 %3585
    %v3588 = vadd.f32 %v893, %v3586
    %v3589 = vtanh.pop %v3588
    %v3590 = vsub.f32 1.0, %v3576
    %3592 = vrot.lane.b32.xlu0 %v3589, 96
    %v3593 = vpop.permute.xlu0 %3592
    %v3595 = vmul.f32 %v3590, %v3593
    %v3596 = vrot.slane %v3335, 6
    %v3598 = vmul.f32 %v3576, %v3596
    %v3599 = vadd.f32 %v3595, %v3598
    %v3601 = vrot.slane %v3599, 6
    %3602 = vrot.lane.b32.xlu0 %v3601, 96
    %v3603 = vpop.permute.xlu0 %3602
    %v3604 = vsel %vm631, %v3603, 0
    %3606 = vmatprep.subr.mxu0 0.0
    %3607 = vmatpush1.xpose.msra.mxu0 %v2801
    %3608 = vmatprep.subr.mxu0 0.0
    %3609 = vmatpush1.xpose.msra.mxu0 %v2803
    %3610 = vmatprep.subr.mxu0 0.0
    %3611 = vmatpush1.xpose.msra.mxu0 %v2805
    %3612 = vmatprep.subr.mxu0 0.0
    %3613 = vmatpush1.xpose.msra.mxu0 %v2807
    %3614 = vmatprep.subr.mxu0 0.0
    %3615 = vmatpush1.xpose.msra.mxu0 0.0
    %3616 = vmatprep.subr.mxu0 0.0
    %3617 = vmatpush1.xpose.msra.mxu0 0.0
    %3618 = vmatprep.subr.mxu0 0.0
    %3619 = vmatpush1.xpose.msra.mxu0 0.0
    %3620 = vmatprep.subr.mxu0 0.0
    %3621 = vmatpush1.xpose.msra.mxu0 0.0
    %3622 = vmatprep.subr.mxu0 0.0
    %3623 = vmatpush1.xpose.msra.mxu0 0.0
    %3624 = vmatprep.subr.mxu0 0.0
    %3625 = vmatpush1.xpose.msra.mxu0 0.0
    %3626 = vmatprep.subr.mxu0 0.0
    %3627 = vmatpush1.xpose.msra.mxu0 0.0
    %3628 = vmatprep.subr.mxu0 0.0
    %3629 = vmatpush1.xpose.msra.mxu0 0.0
    %3630 = vmatprep.subr.mxu0 0.0
    %3631 = vmatpush1.xpose.msra.mxu0 0.0
    %3632 = vmatprep.subr.mxu0 0.0
    %3633 = vmatpush1.xpose.msra.mxu0 0.0
    %3634 = vmatprep.subr.mxu0 0.0
    %3635 = vmatpush1.xpose.msra.mxu0 0.0
    %3636 = vmatprep.subr.mxu0 0.0
    %3637 = vmatpush1.xpose.msra.mxu0 0.0
    %3638 = vmatprep.subr.mxu0 0.0
    %3639 = vmatpush1.xpose.msra.mxu0 0.0
    %3640 = vmatprep.subr.mxu0 0.0
    %3641 = vmatpush1.xpose.msra.mxu0 0.0
    %3642 = vmatprep.subr.mxu0 0.0
    %3643 = vmatpush1.xpose.msra.mxu0 0.0
    %3644 = vmatprep.subr.mxu0 0.0
    %3645 = vmatpush1.xpose.msra.mxu0 0.0
    %3646 = vmatprep.subr.mxu0 0.0
    %3647 = vmatpush1.xpose.msra.mxu0 0.0
    %3648 = vmatprep.subr.mxu0 0.0
    %3649 = vmatpush1.xpose.msra.mxu0 0.0
    %3650 = vmatprep.subr.mxu0 0.0
    %3651 = vmatpush1.xpose.msra.mxu0 0.0
    %3652 = vmatprep.subr.mxu0 0.0
    %3653 = vmatpush1.xpose.msra.mxu0 0.0
    %3654 = vmatprep.subr.mxu0 0.0
    %3655 = vmatpush1.xpose.msra.mxu0 0.0
    %3656 = vmatprep.subr.mxu0 0.0
    %3657 = vmatpush1.xpose.msra.mxu0 0.0
    %3658 = vmatprep.subr.mxu0 0.0
    %3659 = vmatpush1.xpose.msra.mxu0 0.0
    %3660 = vmatprep.subr.mxu0 0.0
    %3661 = vmatpush1.xpose.msra.mxu0 0.0
    %3662 = vmatprep.subr.mxu0 0.0
    %3663 = vmatpush1.xpose.msra.mxu0 0.0
    %3664 = vmatprep.subr.mxu0 0.0
    %3665 = vmatpush1.xpose.msra.mxu0 0.0
    %3666 = vmatprep.subr.mxu0 0.0
    %3667 = vmatpush1.xpose.msra.mxu0 0.0
    %3668 = vmatprep.subr.mxu0 0.0
    %3669 = vmatpush1.xpose.msra.mxu0 0.0
    %3670 = vmatprep.mubr.f32.mxu0 0.0
    %3671 = vmatmul.mubr.f32.gmra.mrb[0].mxu0 %v3604
    %v3672 = vpop.f32.mrb[0].mxu0
    %v3673 = vadd.f32 0.0, %v3672
    %v3674 = vpop.f32.mrb[0].mxu0
    %3675 = vdwg.mxu0
    %v3676 = vsel %vm2676, %v3673, -1e+30
    %v3677 = vsel %vm2880, %v3676, -inf
    %3678 = vmax.xlane.f32.xlu0 %v3677
    %v3679 = vpop.xlane.xlu0 %3678
    %v3680 = vsub.f32 %v3676, %v3679
    %v3681 = vmul.f32 %v3680, 1.442695
    %v3682 = vpow.pop %v3681
    %v3683 = vsel %vm2880, %v3682, 0.0
    %3684 = vadd.xlane.f32.xlu0 %v3683
    %v3685 = vpop.xlane.xlu0 %3684
    %v3686 = vrcp.pop %v3685
    %v3687 = vmul.f32 %v3682, %v3686
    %v3689 = vsel %vm631, %v3687, 0
    %3691 = vmatprep.subr.mxu0 0.0
    %3692 = vmatpush1.msra.mxu0 %v2792
    %3693 = vmatprep.subr.mxu0 0.0
    %3694 = vmatpush1.msra.mxu0 %v2794
    %3695 = vmatprep.subr.mxu0 0.0
    %3696 = vmatpush1.msra.mxu0 %v2796
    %3697 = vmatprep.subr.mxu0 0.0
    %3698 = vmatpush1.msra.mxu0 %v2798
    %3699 = vmatprep.subr.mxu0 0.0
    %3700 = vmatpush1.msra.mxu0 0.0
    %3701 = vmatprep.subr.mxu0 0.0
    %3702 = vmatpush1.msra.mxu0 0.0
    %3703 = vmatprep.subr.mxu0 0.0
    %3704 = vmatpush1.msra.mxu0 0.0
    %3705 = vmatprep.subr.mxu0 0.0
    %3706 = vmatpush1.msra.mxu0 0.0
    %3707 = vmatprep.subr.mxu0 0.0
    %3708 = vmatpush1.msra.mxu0 0.0
    %3709 = vmatprep.subr.mxu0 0.0
    %3710 = vmatpush1.msra.mxu0 0.0
    %3711 = vmatprep.subr.mxu0 0.0
    %3712 = vmatpush1.msra.mxu0 0.0
    %3713 = vmatprep.subr.mxu0 0.0
    %3714 = vmatpush1.msra.mxu0 0.0
    %3715 = vmatprep.subr.mxu0 0.0
    %3716 = vmatpush1.msra.mxu0 0.0
    %3717 = vmatprep.subr.mxu0 0.0
    %3718 = vmatpush1.msra.mxu0 0.0
    %3719 = vmatprep.subr.mxu0 0.0
    %3720 = vmatpush1.msra.mxu0 0.0
    %3721 = vmatprep.subr.mxu0 0.0
    %3722 = vmatpush1.msra.mxu0 0.0
    %3723 = vmatprep.subr.mxu0 0.0
    %3724 = vmatpush1.msra.mxu0 0.0
    %3725 = vmatprep.subr.mxu0 0.0
    %3726 = vmatpush1.msra.mxu0 0.0
    %3727 = vmatprep.subr.mxu0 0.0
    %3728 = vmatpush1.msra.mxu0 0.0
    %3729 = vmatprep.subr.mxu0 0.0
    %3730 = vmatpush1.msra.mxu0 0.0
    %3731 = vmatprep.subr.mxu0 0.0
    %3732 = vmatpush1.msra.mxu0 0.0
    %3733 = vmatprep.subr.mxu0 0.0
    %3734 = vmatpush1.msra.mxu0 0.0
    %3735 = vmatprep.subr.mxu0 0.0
    %3736 = vmatpush1.msra.mxu0 0.0
    %3737 = vmatprep.subr.mxu0 0.0
    %3738 = vmatpush1.msra.mxu0 0.0
    %3739 = vmatprep.subr.mxu0 0.0
    %3740 = vmatpush1.msra.mxu0 0.0
    %3741 = vmatprep.subr.mxu0 0.0
    %3742 = vmatpush1.msra.mxu0 0.0
    %3743 = vmatprep.subr.mxu0 0.0
    %3744 = vmatpush1.msra.mxu0 0.0
    %3745 = vmatprep.subr.mxu0 0.0
    %3746 = vmatpush1.msra.mxu0 0.0
    %3747 = vmatprep.subr.mxu0 0.0
    %3748 = vmatpush1.msra.mxu0 0.0
    %3749 = vmatprep.subr.mxu0 0.0
    %3750 = vmatpush1.msra.mxu0 0.0
    %3751 = vmatprep.subr.mxu0 0.0
    %3752 = vmatpush1.msra.mxu0 0.0
    %3753 = vmatprep.subr.mxu0 0.0
    %3754 = vmatpush1.msra.mxu0 0.0
    %3755 = vmatprep.mubr.f32.mxu0 0.0
    %3756 = vmatmul.mubr.f32.gmra.mrb[0].mxu0 %v3689
    %v3757 = vpop.f32.mrb[0].mxu0
    %v3758 = vadd.f32 0.0, %v3757
    %v3759 = vpop.f32.mrb[0].mxu0
    %3760 = vdwg.mxu0
    %3761 = vmatprep.subr.mxu0 0.0
    %3762 = vmatpush1.msra.mxu0 %v911
    %3763 = vmatprep.subr.mxu0 0.0
    %3764 = vmatpush1.msra.mxu0 %v912
    %3765 = vmatprep.subr.mxu0 0.0
    %3766 = vmatpush1.msra.mxu0 %v913
    %3767 = vmatprep.subr.mxu0 0.0
    %3768 = vmatpush1.msra.mxu0 %v914
    %3769 = vmatprep.subr.mxu0 0.0
    %3770 = vmatpush1.msra.mxu0 0.0
    %3771 = vmatprep.subr.mxu0 0.0
    %3772 = vmatpush1.msra.mxu0 0.0
    %3773 = vmatprep.subr.mxu0 0.0
    %3774 = vmatpush1.msra.mxu0 0.0
    %3775 = vmatprep.subr.mxu0 0.0
    %3776 = vmatpush1.msra.mxu0 0.0
    %3777 = vmatprep.subr.mxu0 0.0
    %3778 = vmatpush1.msra.mxu0 0.0
    %3779 = vmatprep.subr.mxu0 0.0
    %3780 = vmatpush1.msra.mxu0 0.0
    %3781 = vmatprep.subr.mxu0 0.0
    %3782 = vmatpush1.msra.mxu0 0.0
    %3783 = vmatprep.subr.mxu0 0.0
    %3784 = vmatpush1.msra.mxu0 0.0
    %3785 = vmatprep.subr.mxu0 0.0
    %3786 = vmatpush1.msra.mxu0 0.0
    %3787 = vmatprep.subr.mxu0 0.0
    %3788 = vmatpush1.msra.mxu0 0.0
    %3789 = vmatprep.subr.mxu0 0.0
    %3790 = vmatpush1.msra.mxu0 0.0
    %3791 = vmatprep.subr.mxu0 0.0
    %3792 = vmatpush1.msra.mxu0 0.0
    %3793 = vmatprep.subr.mxu0 0.0
    %3794 = vmatpush1.msra.mxu0 0.0
    %3795 = vmatprep.subr.mxu0 0.0
    %3796 = vmatpush1.msra.mxu0 0.0
    %3797 = vmatprep.subr.mxu0 0.0
    %3798 = vmatpush1.msra.mxu0 0.0
    %3799 = vmatprep.subr.mxu0 0.0
    %3800 = vmatpush1.msra.mxu0 0.0
    %3801 = vmatprep.subr.mxu0 0.0
    %3802 = vmatpush1.msra.mxu0 0.0
    %3803 = vmatprep.subr.mxu0 0.0
    %3804 = vmatpush1.msra.mxu0 0.0
    %3805 = vmatprep.subr.mxu0 0.0
    %3806 = vmatpush1.msra.mxu0 0.0
    %3807 = vmatprep.subr.mxu0 0.0
    %3808 = vmatpush1.msra.mxu0 0.0
    %3809 = vmatprep.subr.mxu0 0.0
    %3810 = vmatpush1.msra.mxu0 0.0
    %3811 = vmatprep.subr.mxu0 0.0
    %3812 = vmatpush1.msra.mxu0 0.0
    %3813 = vmatprep.subr.mxu0 0.0
    %3814 = vmatpush1.msra.mxu0 0.0
    %3815 = vmatprep.subr.mxu0 0.0
    %3816 = vmatpush1.msra.mxu0 0.0
    %3817 = vmatprep.subr.mxu0 0.0
    %3818 = vmatpush1.msra.mxu0 0.0
    %3819 = vmatprep.subr.mxu0 0.0
    %3820 = vmatpush1.msra.mxu0 0.0
    %3821 = vmatprep.subr.mxu0 0.0
    %3822 = vmatpush1.msra.mxu0 0.0
    %3823 = vmatprep.subr.mxu0 0.0
    %3824 = vmatpush1.msra.mxu0 0.0
    %3825 = vmatprep.mubr.f32.mxu0 0.0
    %3826 = vmatmul.mubr.f32.gmra.mrb[0].mxu0 %v3604
    %v3827 = vpop.f32.mrb[0].mxu0
    %v3828 = vadd.f32 0.0, %v3827
    %v3829 = vpop.f32.mrb[0].mxu0
    %3830 = vdwg.mxu0
    %v3831 = vadd.f32 %v898, %v3828
    %v3832 = vxor.u32 %v3831, 2147483648
    %v3833 = vmul.f32 %v3832, 1.442695
    %v3834 = vpow.pop %v3833
    %v3835 = vadd.f32 %v3834, 1.0
    %v3836 = vrcp.pop %v3835
    %v3837 = vmul.f32 1.0, %v3836
    %v3838 = vadd.f32 %v3828, %v2761
    %3840 = vrot.lane.b32.xlu0 %v3838, 64
    %v3841 = vpop.permute.xlu0 %3840
    %v3843 = vmul.f32 %v3837, %v3841
    %3845 = vrot.lane.b32.xlu0 %v3843, 64
    %v3846 = vpop.permute.xlu0 %3845
    %v3848 = vadd.f32 %v898, %v3846
    %v3849 = vtanh.pop %v3848
    %v3850 = vsub.f32 1.0, %v3837
    %3852 = vrot.lane.b32.xlu0 %v3849, 96
    %v3853 = vpop.permute.xlu0 %3852
    %v3855 = vmul.f32 %v3850, %v3853
    %v3857 = vmul.f32 %v3837, %v3601
    %v3858 = vadd.f32 %v3855, %v3857
    %3860 = vrot.lane.b32.xlu0 %v3858, 96
    %v3861 = vpop.permute.xlu0 %3860
    %v3862 = vsel %vm631, %v3861, 0
    %3864 = vmatprep.subr.mxu0 0.0
    %3865 = vmatpush1.xpose.msra.mxu0 %v2801
    %3866 = vmatprep.subr.mxu0 0.0
    %3867 = vmatpush1.xpose.msra.mxu0 %v2803
    %3868 = vmatprep.subr.mxu0 0.0
    %3869 = vmatpush1.xpose.msra.mxu0 %v2805
    %3870 = vmatprep.subr.mxu0 0.0
    %3871 = vmatpush1.xpose.msra.mxu0 %v2807
    %3872 = vmatprep.subr.mxu0 0.0
    %3873 = vmatpush1.xpose.msra.mxu0 0.0
    %3874 = vmatprep.subr.mxu0 0.0
    %3875 = vmatpush1.xpose.msra.mxu0 0.0
    %3876 = vmatprep.subr.mxu0 0.0
    %3877 = vmatpush1.xpose.msra.mxu0 0.0
    %3878 = vmatprep.subr.mxu0 0.0
    %3879 = vmatpush1.xpose.msra.mxu0 0.0
    %3880 = vmatprep.subr.mxu0 0.0
    %3881 = vmatpush1.xpose.msra.mxu0 0.0
    %3882 = vmatprep.subr.mxu0 0.0
    %3883 = vmatpush1.xpose.msra.mxu0 0.0
    %3884 = vmatprep.subr.mxu0 0.0
    %3885 = vmatpush1.xpose.msra.mxu0 0.0
    %3886 = vmatprep.subr.mxu0 0.0
    %3887 = vmatpush1.xpose.msra.mxu0 0.0
    %3888 = vmatprep.subr.mxu0 0.0
    %3889 = vmatpush1.xpose.msra.mxu0 0.0
    %3890 = vmatprep.subr.mxu0 0.0
    %3891 = vmatpush1.xpose.msra.mxu0 0.0
    %3892 = vmatprep.subr.mxu0 0.0
    %3893 = vmatpush1.xpose.msra.mxu0 0.0
    %3894 = vmatprep.subr.mxu0 0.0
    %3895 = vmatpush1.xpose.msra.mxu0 0.0
    %3896 = vmatprep.subr.mxu0 0.0
    %3897 = vmatpush1.xpose.msra.mxu0 0.0
    %3898 = vmatprep.subr.mxu0 0.0
    %3899 = vmatpush1.xpose.msra.mxu0 0.0
    %3900 = vmatprep.subr.mxu0 0.0
    %3901 = vmatpush1.xpose.msra.mxu0 0.0
    %3902 = vmatprep.subr.mxu0 0.0
    %3903 = vmatpush1.xpose.msra.mxu0 0.0
    %3904 = vmatprep.subr.mxu0 0.0
    %3905 = vmatpush1.xpose.msra.mxu0 0.0
    %3906 = vmatprep.subr.mxu0 0.0
    %3907 = vmatpush1.xpose.msra.mxu0 0.0
    %3908 = vmatprep.subr.mxu0 0.0
    %3909 = vmatpush1.xpose.msra.mxu0 0.0
    %3910 = vmatprep.subr.mxu0 0.0
    %3911 = vmatpush1.xpose.msra.mxu0 0.0
    %3912 = vmatprep.subr.mxu0 0.0
    %3913 = vmatpush1.xpose.msra.mxu0 0.0
    %3914 = vmatprep.subr.mxu0 0.0
    %3915 = vmatpush1.xpose.msra.mxu0 0.0
    %3916 = vmatprep.subr.mxu0 0.0
    %3917 = vmatpush1.xpose.msra.mxu0 0.0
    %3918 = vmatprep.subr.mxu0 0.0
    %3919 = vmatpush1.xpose.msra.mxu0 0.0
    %3920 = vmatprep.subr.mxu0 0.0
    %3921 = vmatpush1.xpose.msra.mxu0 0.0
    %3922 = vmatprep.subr.mxu0 0.0
    %3923 = vmatpush1.xpose.msra.mxu0 0.0
    %3924 = vmatprep.subr.mxu0 0.0
    %3925 = vmatpush1.xpose.msra.mxu0 0.0
    %3926 = vmatprep.subr.mxu0 0.0
    %3927 = vmatpush1.xpose.msra.mxu0 0.0
    %3928 = vmatprep.mubr.f32.mxu0 0.0
    %3929 = vmatmul.mubr.f32.gmra.mrb[0].mxu0 %v3862
    %v3930 = vpop.f32.mrb[0].mxu0
    %v3931 = vadd.f32 0.0, %v3930
    %v3932 = vpop.f32.mrb[0].mxu0
    %3933 = vdwg.mxu0
    %v3934 = vsel %vm2676, %v3931, -1e+30
    %v3935 = vsel %vm2880, %v3934, -inf
    %3936 = vmax.xlane.f32.xlu0 %v3935
    %v3937 = vpop.xlane.xlu0 %3936
    %v3938 = vsub.f32 %v3934, %v3937
    %v3939 = vmul.f32 %v3938, 1.442695
    %v3940 = vpow.pop %v3939
    %v3941 = vsel %vm2880, %v3940, 0.0
    %3942 = vadd.xlane.f32.xlu0 %v3941
    %v3943 = vpop.xlane.xlu0 %3942
    %v3944 = vrcp.pop %v3943
    %v3945 = vmul.f32 %v3940, %v3944
    %v3947 = vsel %vm631, %v3945, 0
    %3949 = vmatprep.subr.mxu0 0.0
    %3950 = vmatpush1.msra.mxu0 %v2792
    %3951 = vmatprep.subr.mxu0 0.0
    %3952 = vmatpush1.msra.mxu0 %v2794
    %3953 = vmatprep.subr.mxu0 0.0
    %3954 = vmatpush1.msra.mxu0 %v2796
    %3955 = vmatprep.subr.mxu0 0.0
    %3956 = vmatpush1.msra.mxu0 %v2798
    %3957 = vmatprep.subr.mxu0 0.0
    %3958 = vmatpush1.msra.mxu0 0.0
    %3959 = vmatprep.subr.mxu0 0.0
    %3960 = vmatpush1.msra.mxu0 0.0
    %3961 = vmatprep.subr.mxu0 0.0
    %3962 = vmatpush1.msra.mxu0 0.0
    %3963 = vmatprep.subr.mxu0 0.0
    %3964 = vmatpush1.msra.mxu0 0.0
    %3965 = vmatprep.subr.mxu0 0.0
    %3966 = vmatpush1.msra.mxu0 0.0
    %3967 = vmatprep.subr.mxu0 0.0
    %3968 = vmatpush1.msra.mxu0 0.0
    %3969 = vmatprep.subr.mxu0 0.0
    %3970 = vmatpush1.msra.mxu0 0.0
    %3971 = vmatprep.subr.mxu0 0.0
    %3972 = vmatpush1.msra.mxu0 0.0
    %3973 = vmatprep.subr.mxu0 0.0
    %3974 = vmatpush1.msra.mxu0 0.0
    %3975 = vmatprep.subr.mxu0 0.0
    %3976 = vmatpush1.msra.mxu0 0.0
    %3977 = vmatprep.subr.mxu0 0.0
    %3978 = vmatpush1.msra.mxu0 0.0
    %3979 = vmatprep.subr.mxu0 0.0
    %3980 = vmatpush1.msra.mxu0 0.0
    %3981 = vmatprep.subr.mxu0 0.0
    %3982 = vmatpush1.msra.mxu0 0.0
    %3983 = vmatprep.subr.mxu0 0.0
    %3984 = vmatpush1.msra.mxu0 0.0
    %3985 = vmatprep.subr.mxu0 0.0
    %3986 = vmatpush1.msra.mxu0 0.0
    %3987 = vmatprep.subr.mxu0 0.0
    %3988 = vmatpush1.msra.mxu0 0.0
    %3989 = vmatprep.subr.mxu0 0.0
    %3990 = vmatpush1.msra.mxu0 0.0
    %3991 = vmatprep.subr.mxu0 0.0
    %3992 = vmatpush1.msra.mxu0 0.0
    %3993 = vmatprep.subr.mxu0 0.0
    %3994 = vmatpush1.msra.mxu0 0.0
    %3995 = vmatprep.subr.mxu0 0.0
    %3996 = vmatpush1.msra.mxu0 0.0
    %3997 = vmatprep.subr.mxu0 0.0
    %3998 = vmatpush1.msra.mxu0 0.0
    %3999 = vmatprep.subr.mxu0 0.0
    %4000 = vmatpush1.msra.mxu0 0.0
    %4001 = vmatprep.subr.mxu0 0.0
    %4002 = vmatpush1.msra.mxu0 0.0
    %4003 = vmatprep.subr.mxu0 0.0
    %4004 = vmatpush1.msra.mxu0 0.0
    %4005 = vmatprep.subr.mxu0 0.0
    %4006 = vmatpush1.msra.mxu0 0.0
    %4007 = vmatprep.subr.mxu0 0.0
    %4008 = vmatpush1.msra.mxu0 0.0
    %4009 = vmatprep.subr.mxu0 0.0
    %4010 = vmatpush1.msra.mxu0 0.0
    %4011 = vmatprep.subr.mxu0 0.0
    %4012 = vmatpush1.msra.mxu0 0.0
    %4013 = vmatprep.mubr.f32.mxu0 0.0
    %4014 = vmatmul.mubr.f32.gmra.mrb[0].mxu0 %v3947
    %v4015 = vpop.f32.mrb[0].mxu0
    %v4016 = vadd.f32 0.0, %v4015
    %v4017 = vpop.f32.mrb[0].mxu0
    %4018 = vdwg.mxu0
    %4019 = vmatprep.subr.mxu0 0.0
    %4020 = vmatpush1.msra.mxu0 %v911
    %4021 = vmatprep.subr.mxu0 0.0
    %4022 = vmatpush1.msra.mxu0 %v912
    %4023 = vmatprep.subr.mxu0 0.0
    %4024 = vmatpush1.msra.mxu0 %v913
    %4025 = vmatprep.subr.mxu0 0.0
    %4026 = vmatpush1.msra.mxu0 %v914
    %4027 = vmatprep.subr.mxu0 0.0
    %4028 = vmatpush1.msra.mxu0 0.0
    %4029 = vmatprep.subr.mxu0 0.0
    %4030 = vmatpush1.msra.mxu0 0.0
    %4031 = vmatprep.subr.mxu0 0.0
    %4032 = vmatpush1.msra.mxu0 0.0
    %4033 = vmatprep.subr.mxu0 0.0
    %4034 = vmatpush1.msra.mxu0 0.0
    %4035 = vmatprep.subr.mxu0 0.0
    %4036 = vmatpush1.msra.mxu0 0.0
    %4037 = vmatprep.subr.mxu0 0.0
    %4038 = vmatpush1.msra.mxu0 0.0
    %4039 = vmatprep.subr.mxu0 0.0
    %4040 = vmatpush1.msra.mxu0 0.0
    %4041 = vmatprep.subr.mxu0 0.0
    %4042 = vmatpush1.msra.mxu0 0.0
    %4043 = vmatprep.subr.mxu0 0.0
    %4044 = vmatpush1.msra.mxu0 0.0
    %4045 = vmatprep.subr.mxu0 0.0
    %4046 = vmatpush1.msra.mxu0 0.0
    %4047 = vmatprep.subr.mxu0 0.0
    %4048 = vmatpush1.msra.mxu0 0.0
    %4049 = vmatprep.subr.mxu0 0.0
    %4050 = vmatpush1.msra.mxu0 0.0
    %4051 = vmatprep.subr.mxu0 0.0
    %4052 = vmatpush1.msra.mxu0 0.0
    %4053 = vmatprep.subr.mxu0 0.0
    %4054 = vmatpush1.msra.mxu0 0.0
    %4055 = vmatprep.subr.mxu0 0.0
    %4056 = vmatpush1.msra.mxu0 0.0
    %4057 = vmatprep.subr.mxu0 0.0
    %4058 = vmatpush1.msra.mxu0 0.0
    %4059 = vmatprep.subr.mxu0 0.0
    %4060 = vmatpush1.msra.mxu0 0.0
    %4061 = vmatprep.subr.mxu0 0.0
    %4062 = vmatpush1.msra.mxu0 0.0
    %4063 = vmatprep.subr.mxu0 0.0
    %4064 = vmatpush1.msra.mxu0 0.0
    %4065 = vmatprep.subr.mxu0 0.0
    %4066 = vmatpush1.msra.mxu0 0.0
    %4067 = vmatprep.subr.mxu0 0.0
    %4068 = vmatpush1.msra.mxu0 0.0
    %4069 = vmatprep.subr.mxu0 0.0
    %4070 = vmatpush1.msra.mxu0 0.0
    %4071 = vmatprep.subr.mxu0 0.0
    %4072 = vmatpush1.msra.mxu0 0.0
    %4073 = vmatprep.subr.mxu0 0.0
    %4074 = vmatpush1.msra.mxu0 0.0
    %4075 = vmatprep.subr.mxu0 0.0
    %4076 = vmatpush1.msra.mxu0 0.0
    %4077 = vmatprep.subr.mxu0 0.0
    %4078 = vmatpush1.msra.mxu0 0.0
    %4079 = vmatprep.subr.mxu0 0.0
    %4080 = vmatpush1.msra.mxu0 0.0
    %4081 = vmatprep.subr.mxu0 0.0
    %4082 = vmatpush1.msra.mxu0 0.0
    %4083 = vmatprep.mubr.f32.mxu0 0.0
    %4084 = vmatmul.mubr.f32.gmra.mrb[0].mxu0 %v3862
    %v4085 = vpop.f32.mrb[0].mxu0
    %v4086 = vadd.f32 0.0, %v4085
    %v4087 = vpop.f32.mrb[0].mxu0
    %4088 = vdwg.mxu0
    %v4090 = vrot.slane %v4086, 6
    %v4092 = vadd.f32 %v898, %v4090
    %v4093 = vxor.u32 %v4092, 2147483648
    %v4094 = vmul.f32 %v4093, 1.442695
    %v4095 = vpow.pop %v4094
    %v4096 = vadd.f32 %v4095, 1.0
    %v4097 = vrcp.pop %v4096
    %v4098 = vmul.f32 1.0, %v4097
    %v4099 = vadd.f32 %v4086, %v2761
    %v4101 = vrot.slane %v4099, 6
    %4102 = vrot.lane.b32.xlu0 %v4101, 64
    %v4103 = vpop.permute.xlu0 %4102
    %v4105 = vmul.f32 %v4098, %v4103
    %4107 = vrot.lane.b32.xlu0 %v4105, 64
    %v4108 = vpop.permute.xlu0 %4107
    %v4110 = vadd.f32 %v898, %v4108
    %v4111 = vtanh.pop %v4110
    %v4112 = vsub.f32 1.0, %v4098
    %4114 = vrot.lane.b32.xlu0 %v4111, 96
    %v4115 = vpop.permute.xlu0 %4114
    %v4117 = vmul.f32 %v4112, %v4115
    %v4118 = vrot.slane %v3858, 6
    %v4120 = vmul.f32 %v4098, %v4118
    %v4121 = vadd.f32 %v4117, %v4120
    %v4123 = vrot.slane %v4121, 2
    %4124 = vrot.lane.b32.xlu0 %v4123, 96
    %v4125 = vpop.permute.xlu0 %4124
    %v4126 = vsel %vm631, %v4125, 0
    %4128 = vmatprep.subr.mxu0 0.0
    %4129 = vmatpush1.xpose.msra.mxu0 %v2801
    %4130 = vmatprep.subr.mxu0 0.0
    %4131 = vmatpush1.xpose.msra.mxu0 %v2803
    %4132 = vmatprep.subr.mxu0 0.0
    %4133 = vmatpush1.xpose.msra.mxu0 %v2805
    %4134 = vmatprep.subr.mxu0 0.0
    %4135 = vmatpush1.xpose.msra.mxu0 %v2807
    %4136 = vmatprep.subr.mxu0 0.0
    %4137 = vmatpush1.xpose.msra.mxu0 0.0
    %4138 = vmatprep.subr.mxu0 0.0
    %4139 = vmatpush1.xpose.msra.mxu0 0.0
    %4140 = vmatprep.subr.mxu0 0.0
    %4141 = vmatpush1.xpose.msra.mxu0 0.0
    %4142 = vmatprep.subr.mxu0 0.0
    %4143 = vmatpush1.xpose.msra.mxu0 0.0
    %4144 = vmatprep.subr.mxu0 0.0
    %4145 = vmatpush1.xpose.msra.mxu0 0.0
    %4146 = vmatprep.subr.mxu0 0.0
    %4147 = vmatpush1.xpose.msra.mxu0 0.0
    %4148 = vmatprep.subr.mxu0 0.0
    %4149 = vmatpush1.xpose.msra.mxu0 0.0
    %4150 = vmatprep.subr.mxu0 0.0
    %4151 = vmatpush1.xpose.msra.mxu0 0.0
    %4152 = vmatprep.subr.mxu0 0.0
    %4153 = vmatpush1.xpose.msra.mxu0 0.0
    %4154 = vmatprep.subr.mxu0 0.0
    %4155 = vmatpush1.xpose.msra.mxu0 0.0
    %4156 = vmatprep.subr.mxu0 0.0
    %4157 = vmatpush1.xpose.msra.mxu0 0.0
    %4158 = vmatprep.subr.mxu0 0.0
    %4159 = vmatpush1.xpose.msra.mxu0 0.0
    %4160 = vmatprep.subr.mxu0 0.0
    %4161 = vmatpush1.xpose.msra.mxu0 0.0
    %4162 = vmatprep.subr.mxu0 0.0
    %4163 = vmatpush1.xpose.msra.mxu0 0.0
    %4164 = vmatprep.subr.mxu0 0.0
    %4165 = vmatpush1.xpose.msra.mxu0 0.0
    %4166 = vmatprep.subr.mxu0 0.0
    %4167 = vmatpush1.xpose.msra.mxu0 0.0
    %4168 = vmatprep.subr.mxu0 0.0
    %4169 = vmatpush1.xpose.msra.mxu0 0.0
    %4170 = vmatprep.subr.mxu0 0.0
    %4171 = vmatpush1.xpose.msra.mxu0 0.0
    %4172 = vmatprep.subr.mxu0 0.0
    %4173 = vmatpush1.xpose.msra.mxu0 0.0
    %4174 = vmatprep.subr.mxu0 0.0
    %4175 = vmatpush1.xpose.msra.mxu0 0.0
    %4176 = vmatprep.subr.mxu0 0.0
    %4177 = vmatpush1.xpose.msra.mxu0 0.0
    %4178 = vmatprep.subr.mxu0 0.0
    %4179 = vmatpush1.xpose.msra.mxu0 0.0
    %4180 = vmatprep.subr.mxu0 0.0
    %4181 = vmatpush1.xpose.msra.mxu0 0.0
    %4182 = vmatprep.subr.mxu0 0.0
    %4183 = vmatpush1.xpose.msra.mxu0 0.0
    %4184 = vmatprep.subr.mxu0 0.0
    %4185 = vmatpush1.xpose.msra.mxu0 0.0
    %4186 = vmatprep.subr.mxu0 0.0
    %4187 = vmatpush1.xpose.msra.mxu0 0.0
    %4188 = vmatprep.subr.mxu0 0.0
    %4189 = vmatpush1.xpose.msra.mxu0 0.0
    %4190 = vmatprep.subr.mxu0 0.0
    %4191 = vmatpush1.xpose.msra.mxu0 0.0
    %4192 = vmatprep.mubr.f32.mxu0 0.0
    %4193 = vmatmul.mubr.f32.gmra.mrb[0].mxu0 %v4126
    %v4194 = vpop.f32.mrb[0].mxu0
    %v4195 = vadd.f32 0.0, %v4194
    %v4196 = vpop.f32.mrb[0].mxu0
    %4197 = vdwg.mxu0
    %v4198 = vsel %vm2676, %v4195, -1e+30
    %v4199 = vsel %vm2880, %v4198, -inf
    %4200 = vmax.xlane.f32.xlu0 %v4199
    %v4201 = vpop.xlane.xlu0 %4200
    %v4202 = vsub.f32 %v4198, %v4201
    %v4203 = vmul.f32 %v4202, 1.442695
    %v4204 = vpow.pop %v4203
    %v4205 = vsel %vm2880, %v4204, 0.0
    %4206 = vadd.xlane.f32.xlu0 %v4205
    %v4207 = vpop.xlane.xlu0 %4206
    %v4208 = vrcp.pop %v4207
    %v4209 = vmul.f32 %v4204, %v4208
    %v4211 = vsel %vm631, %v4209, 0
    %4213 = vmatprep.subr.mxu0 0.0
    %4214 = vmatpush1.msra.mxu0 %v2792
    %4215 = vmatprep.subr.mxu0 0.0
    %4216 = vmatpush1.msra.mxu0 %v2794
    %4217 = vmatprep.subr.mxu0 0.0
    %4218 = vmatpush1.msra.mxu0 %v2796
    %4219 = vmatprep.subr.mxu0 0.0
    %4220 = vmatpush1.msra.mxu0 %v2798
    %4221 = vmatprep.subr.mxu0 0.0
    %4222 = vmatpush1.msra.mxu0 0.0
    %4223 = vmatprep.subr.mxu0 0.0
    %4224 = vmatpush1.msra.mxu0 0.0
    %4225 = vmatprep.subr.mxu0 0.0
    %4226 = vmatpush1.msra.mxu0 0.0
    %4227 = vmatprep.subr.mxu0 0.0
    %4228 = vmatpush1.msra.mxu0 0.0
    %4229 = vmatprep.subr.mxu0 0.0
    %4230 = vmatpush1.msra.mxu0 0.0
    %4231 = vmatprep.subr.mxu0 0.0
    %4232 = vmatpush1.msra.mxu0 0.0
    %4233 = vmatprep.subr.mxu0 0.0
    %4234 = vmatpush1.msra.mxu0 0.0
    %4235 = vmatprep.subr.mxu0 0.0
    %4236 = vmatpush1.msra.mxu0 0.0
    %4237 = vmatprep.subr.mxu0 0.0
    %4238 = vmatpush1.msra.mxu0 0.0
    %4239 = vmatprep.subr.mxu0 0.0
    %4240 = vmatpush1.msra.mxu0 0.0
    %4241 = vmatprep.subr.mxu0 0.0
    %4242 = vmatpush1.msra.mxu0 0.0
    %4243 = vmatprep.subr.mxu0 0.0
    %4244 = vmatpush1.msra.mxu0 0.0
    %4245 = vmatprep.subr.mxu0 0.0
    %4246 = vmatpush1.msra.mxu0 0.0
    %4247 = vmatprep.subr.mxu0 0.0
    %4248 = vmatpush1.msra.mxu0 0.0
    %4249 = vmatprep.subr.mxu0 0.0
    %4250 = vmatpush1.msra.mxu0 0.0
    %4251 = vmatprep.subr.mxu0 0.0
    %4252 = vmatpush1.msra.mxu0 0.0
    %4253 = vmatprep.subr.mxu0 0.0
    %4254 = vmatpush1.msra.mxu0 0.0
    %4255 = vmatprep.subr.mxu0 0.0
    %4256 = vmatpush1.msra.mxu0 0.0
    %4257 = vmatprep.subr.mxu0 0.0
    %4258 = vmatpush1.msra.mxu0 0.0
    %4259 = vmatprep.subr.mxu0 0.0
    %4260 = vmatpush1.msra.mxu0 0.0
    %4261 = vmatprep.subr.mxu0 0.0
    %4262 = vmatpush1.msra.mxu0 0.0
    %4263 = vmatprep.subr.mxu0 0.0
    %4264 = vmatpush1.msra.mxu0 0.0
    %4265 = vmatprep.subr.mxu0 0.0
    %4266 = vmatpush1.msra.mxu0 0.0
    %4267 = vmatprep.subr.mxu0 0.0
    %4268 = vmatpush1.msra.mxu0 0.0
    %4269 = vmatprep.subr.mxu0 0.0
    %4270 = vmatpush1.msra.mxu0 0.0
    %4271 = vmatprep.subr.mxu0 0.0
    %4272 = vmatpush1.msra.mxu0 0.0
    %4273 = vmatprep.subr.mxu0 0.0
    %4274 = vmatpush1.msra.mxu0 0.0
    %4275 = vmatprep.subr.mxu0 0.0
    %4276 = vmatpush1.msra.mxu0 0.0
    %4277 = vmatprep.mubr.f32.mxu0 0.0
    %4278 = vmatmul.mubr.f32.gmra.mrb[0].mxu0 %v4211
    %v4279 = vpop.f32.mrb[0].mxu0
    %v4280 = vadd.f32 0.0, %v4279
    %v4281 = vpop.f32.mrb[0].mxu0
    %4282 = vdwg.mxu0
    %4283 = vmatprep.subr.mxu0 0.0
    %4284 = vmatpush1.msra.mxu0 %v911
    %4285 = vmatprep.subr.mxu0 0.0
    %4286 = vmatpush1.msra.mxu0 %v912
    %4287 = vmatprep.subr.mxu0 0.0
    %4288 = vmatpush1.msra.mxu0 %v913
    %4289 = vmatprep.subr.mxu0 0.0
    %4290 = vmatpush1.msra.mxu0 %v914
    %4291 = vmatprep.subr.mxu0 0.0
    %4292 = vmatpush1.msra.mxu0 0.0
    %4293 = vmatprep.subr.mxu0 0.0
    %4294 = vmatpush1.msra.mxu0 0.0
    %4295 = vmatprep.subr.mxu0 0.0
    %4296 = vmatpush1.msra.mxu0 0.0
    %4297 = vmatprep.subr.mxu0 0.0
    %4298 = vmatpush1.msra.mxu0 0.0
    %4299 = vmatprep.subr.mxu0 0.0
    %4300 = vmatpush1.msra.mxu0 0.0
    %4301 = vmatprep.subr.mxu0 0.0
    %4302 = vmatpush1.msra.mxu0 0.0
    %4303 = vmatprep.subr.mxu0 0.0
    %4304 = vmatpush1.msra.mxu0 0.0
    %4305 = vmatprep.subr.mxu0 0.0
    %4306 = vmatpush1.msra.mxu0 0.0
    %4307 = vmatprep.subr.mxu0 0.0
    %4308 = vmatpush1.msra.mxu0 0.0
    %4309 = vmatprep.subr.mxu0 0.0
    %4310 = vmatpush1.msra.mxu0 0.0
    %4311 = vmatprep.subr.mxu0 0.0
    %4312 = vmatpush1.msra.mxu0 0.0
    %4313 = vmatprep.subr.mxu0 0.0
    %4314 = vmatpush1.msra.mxu0 0.0
    %4315 = vmatprep.subr.mxu0 0.0
    %4316 = vmatpush1.msra.mxu0 0.0
    %4317 = vmatprep.subr.mxu0 0.0
    %4318 = vmatpush1.msra.mxu0 0.0
    %4319 = vmatprep.subr.mxu0 0.0
    %4320 = vmatpush1.msra.mxu0 0.0
    %4321 = vmatprep.subr.mxu0 0.0
    %4322 = vmatpush1.msra.mxu0 0.0
    %4323 = vmatprep.subr.mxu0 0.0
    %4324 = vmatpush1.msra.mxu0 0.0
    %4325 = vmatprep.subr.mxu0 0.0
    %4326 = vmatpush1.msra.mxu0 0.0
    %4327 = vmatprep.subr.mxu0 0.0
    %4328 = vmatpush1.msra.mxu0 0.0
    %4329 = vmatprep.subr.mxu0 0.0
    %4330 = vmatpush1.msra.mxu0 0.0
    %4331 = vmatprep.subr.mxu0 0.0
    %4332 = vmatpush1.msra.mxu0 0.0
    %4333 = vmatprep.subr.mxu0 0.0
    %4334 = vmatpush1.msra.mxu0 0.0
    %4335 = vmatprep.subr.mxu0 0.0
    %4336 = vmatpush1.msra.mxu0 0.0
    %4337 = vmatprep.subr.mxu0 0.0
    %4338 = vmatpush1.msra.mxu0 0.0
    %4339 = vmatprep.subr.mxu0 0.0
    %4340 = vmatpush1.msra.mxu0 0.0
    %4341 = vmatprep.subr.mxu0 0.0
    %4342 = vmatpush1.msra.mxu0 0.0
    %4343 = vmatprep.subr.mxu0 0.0
    %4344 = vmatpush1.msra.mxu0 0.0
    %4345 = vmatprep.subr.mxu0 0.0
    %4346 = vmatpush1.msra.mxu0 0.0
    %4347 = vmatprep.mubr.f32.mxu0 0.0
    %4348 = vmatmul.mubr.f32.gmra.mrb[0].mxu0 %v4126
    %v4349 = vpop.f32.mrb[0].mxu0
    %v4350 = vadd.f32 0.0, %v4349
    %v4351 = vpop.f32.mrb[0].mxu0
    %4352 = vdwg.mxu0
    %v4354 = vrot.slane %v4350, 4
    %v4356 = vadd.f32 %v898, %v4354
    %v4357 = vxor.u32 %v4356, 2147483648
    %v4358 = vmul.f32 %v4357, 1.442695
    %v4359 = vpow.pop %v4358
    %v4360 = vadd.f32 %v4359, 1.0
    %v4361 = vrcp.pop %v4360
    %v4362 = vmul.f32 1.0, %v4361
    %v4363 = vadd.f32 %v4350, %v2761
    %v4365 = vrot.slane %v4363, 4
    %4366 = vrot.lane.b32.xlu0 %v4365, 64
    %v4367 = vpop.permute.xlu0 %4366
    %v4369 = vmul.f32 %v4362, %v4367
    %4371 = vrot.lane.b32.xlu0 %v4369, 64
    %v4372 = vpop.permute.xlu0 %4371
    %v4374 = vadd.f32 %v898, %v4372
    %v4375 = vtanh.pop %v4374
    %v4376 = vsub.f32 1.0, %v4362
    %4378 = vrot.lane.b32.xlu0 %v4375, 96
    %v4379 = vpop.permute.xlu0 %4378
    %v4381 = vmul.f32 %v4376, %v4379
    %v4382 = vrot.slane %v4121, 6
    %v4384 = vmul.f32 %v4362, %v4382
    %v4385 = vadd.f32 %v4381, %v4384
    %v4387 = vrot.slane %v4385, 4
    %4388 = vrot.lane.b32.xlu0 %v4387, 96
    %v4389 = vpop.permute.xlu0 %4388
    %v4390 = vsel %vm631, %v4389, 0
    %4392 = vmatprep.subr.mxu0 0.0
    %4393 = vmatpush1.xpose.msra.mxu0 %v2801
    %4394 = vmatprep.subr.mxu0 0.0
    %4395 = vmatpush1.xpose.msra.mxu0 %v2803
    %4396 = vmatprep.subr.mxu0 0.0
    %4397 = vmatpush1.xpose.msra.mxu0 %v2805
    %4398 = vmatprep.subr.mxu0 0.0
    %4399 = vmatpush1.xpose.msra.mxu0 %v2807
    %4400 = vmatprep.subr.mxu0 0.0
    %4401 = vmatpush1.xpose.msra.mxu0 0.0
    %4402 = vmatprep.subr.mxu0 0.0
    %4403 = vmatpush1.xpose.msra.mxu0 0.0
    %4404 = vmatprep.subr.mxu0 0.0
    %4405 = vmatpush1.xpose.msra.mxu0 0.0
    %4406 = vmatprep.subr.mxu0 0.0
    %4407 = vmatpush1.xpose.msra.mxu0 0.0
    %4408 = vmatprep.subr.mxu0 0.0
    %4409 = vmatpush1.xpose.msra.mxu0 0.0
    %4410 = vmatprep.subr.mxu0 0.0
    %4411 = vmatpush1.xpose.msra.mxu0 0.0
    %4412 = vmatprep.subr.mxu0 0.0
    %4413 = vmatpush1.xpose.msra.mxu0 0.0
    %4414 = vmatprep.subr.mxu0 0.0
    %4415 = vmatpush1.xpose.msra.mxu0 0.0
    %4416 = vmatprep.subr.mxu0 0.0
    %4417 = vmatpush1.xpose.msra.mxu0 0.0
    %4418 = vmatprep.subr.mxu0 0.0
    %4419 = vmatpush1.xpose.msra.mxu0 0.0
    %4420 = vmatprep.subr.mxu0 0.0
    %4421 = vmatpush1.xpose.msra.mxu0 0.0
    %4422 = vmatprep.subr.mxu0 0.0
    %4423 = vmatpush1.xpose.msra.mxu0 0.0
    %4424 = vmatprep.subr.mxu0 0.0
    %4425 = vmatpush1.xpose.msra.mxu0 0.0
    %4426 = vmatprep.subr.mxu0 0.0
    %4427 = vmatpush1.xpose.msra.mxu0 0.0
    %4428 = vmatprep.subr.mxu0 0.0
    %4429 = vmatpush1.xpose.msra.mxu0 0.0
    %4430 = vmatprep.subr.mxu0 0.0
    %4431 = vmatpush1.xpose.msra.mxu0 0.0
    %4432 = vmatprep.subr.mxu0 0.0
    %4433 = vmatpush1.xpose.msra.mxu0 0.0
    %4434 = vmatprep.subr.mxu0 0.0
    %4435 = vmatpush1.xpose.msra.mxu0 0.0
    %4436 = vmatprep.subr.mxu0 0.0
    %4437 = vmatpush1.xpose.msra.mxu0 0.0
    %4438 = vmatprep.subr.mxu0 0.0
    %4439 = vmatpush1.xpose.msra.mxu0 0.0
    %4440 = vmatprep.subr.mxu0 0.0
    %4441 = vmatpush1.xpose.msra.mxu0 0.0
    %4442 = vmatprep.subr.mxu0 0.0
    %4443 = vmatpush1.xpose.msra.mxu0 0.0
    %4444 = vmatprep.subr.mxu0 0.0
    %4445 = vmatpush1.xpose.msra.mxu0 0.0
    %4446 = vmatprep.subr.mxu0 0.0
    %4447 = vmatpush1.xpose.msra.mxu0 0.0
    %4448 = vmatprep.subr.mxu0 0.0
    %4449 = vmatpush1.xpose.msra.mxu0 0.0
    %4450 = vmatprep.subr.mxu0 0.0
    %4451 = vmatpush1.xpose.msra.mxu0 0.0
    %4452 = vmatprep.subr.mxu0 0.0
    %4453 = vmatpush1.xpose.msra.mxu0 0.0
    %4454 = vmatprep.subr.mxu0 0.0
    %4455 = vmatpush1.xpose.msra.mxu0 0.0
    %4456 = vmatprep.mubr.f32.mxu0 0.0
    %4457 = vmatmul.mubr.f32.gmra.mrb[0].mxu0 %v4390
    %v4458 = vpop.f32.mrb[0].mxu0
    %v4459 = vadd.f32 0.0, %v4458
    %v4460 = vpop.f32.mrb[0].mxu0
    %4461 = vdwg.mxu0
    %v4462 = vsel %vm2676, %v4459, -1e+30
    %v4463 = vsel %vm2880, %v4462, -inf
    %4464 = vmax.xlane.f32.xlu0 %v4463
    %v4465 = vpop.xlane.xlu0 %4464
    %v4466 = vsub.f32 %v4462, %v4465
    %v4467 = vmul.f32 %v4466, 1.442695
    %v4468 = vpow.pop %v4467
    %v4469 = vsel %vm2880, %v4468, 0.0
    %4470 = vadd.xlane.f32.xlu0 %v4469
    %v4471 = vpop.xlane.xlu0 %4470
    %v4472 = vrcp.pop %v4471
    %v4473 = vmul.f32 %v4468, %v4472
    %v4475 = vsel %vm631, %v4473, 0
    %4477 = vmatprep.subr.mxu0 0.0
    %4478 = vmatpush1.msra.mxu0 %v2792
    %4479 = vmatprep.subr.mxu0 0.0
    %4480 = vmatpush1.msra.mxu0 %v2794
    %4481 = vmatprep.subr.mxu0 0.0
    %4482 = vmatpush1.msra.mxu0 %v2796
    %4483 = vmatprep.subr.mxu0 0.0
    %4484 = vmatpush1.msra.mxu0 %v2798
    %4485 = vmatprep.subr.mxu0 0.0
    %4486 = vmatpush1.msra.mxu0 0.0
    %4487 = vmatprep.subr.mxu0 0.0
    %4488 = vmatpush1.msra.mxu0 0.0
    %4489 = vmatprep.subr.mxu0 0.0
    %4490 = vmatpush1.msra.mxu0 0.0
    %4491 = vmatprep.subr.mxu0 0.0
    %4492 = vmatpush1.msra.mxu0 0.0
    %4493 = vmatprep.subr.mxu0 0.0
    %4494 = vmatpush1.msra.mxu0 0.0
    %4495 = vmatprep.subr.mxu0 0.0
    %4496 = vmatpush1.msra.mxu0 0.0
    %4497 = vmatprep.subr.mxu0 0.0
    %4498 = vmatpush1.msra.mxu0 0.0
    %4499 = vmatprep.subr.mxu0 0.0
    %4500 = vmatpush1.msra.mxu0 0.0
    %4501 = vmatprep.subr.mxu0 0.0
    %4502 = vmatpush1.msra.mxu0 0.0
    %4503 = vmatprep.subr.mxu0 0.0
    %4504 = vmatpush1.msra.mxu0 0.0
    %4505 = vmatprep.subr.mxu0 0.0
    %4506 = vmatpush1.msra.mxu0 0.0
    %4507 = vmatprep.subr.mxu0 0.0
    %4508 = vmatpush1.msra.mxu0 0.0
    %4509 = vmatprep.subr.mxu0 0.0
    %4510 = vmatpush1.msra.mxu0 0.0
    %4511 = vmatprep.subr.mxu0 0.0
    %4512 = vmatpush1.msra.mxu0 0.0
    %4513 = vmatprep.subr.mxu0 0.0
    %4514 = vmatpush1.msra.mxu0 0.0
    %4515 = vmatprep.subr.mxu0 0.0
    %4516 = vmatpush1.msra.mxu0 0.0
    %4517 = vmatprep.subr.mxu0 0.0
    %4518 = vmatpush1.msra.mxu0 0.0
    %4519 = vmatprep.subr.mxu0 0.0
    %4520 = vmatpush1.msra.mxu0 0.0
    %4521 = vmatprep.subr.mxu0 0.0
    %4522 = vmatpush1.msra.mxu0 0.0
    %4523 = vmatprep.subr.mxu0 0.0
    %4524 = vmatpush1.msra.mxu0 0.0
    %4525 = vmatprep.subr.mxu0 0.0
    %4526 = vmatpush1.msra.mxu0 0.0
    %4527 = vmatprep.subr.mxu0 0.0
    %4528 = vmatpush1.msra.mxu0 0.0
    %4529 = vmatprep.subr.mxu0 0.0
    %4530 = vmatpush1.msra.mxu0 0.0
    %4531 = vmatprep.subr.mxu0 0.0
    %4532 = vmatpush1.msra.mxu0 0.0
    %4533 = vmatprep.subr.mxu0 0.0
    %4534 = vmatpush1.msra.mxu0 0.0
    %4535 = vmatprep.subr.mxu0 0.0
    %4536 = vmatpush1.msra.mxu0 0.0
    %4537 = vmatprep.subr.mxu0 0.0
    %4538 = vmatpush1.msra.mxu0 0.0
    %4539 = vmatprep.subr.mxu0 0.0
    %4540 = vmatpush1.msra.mxu0 0.0
    %4541 = vmatprep.mubr.f32.mxu0 0.0
    %4542 = vmatmul.mubr.f32.gmra.mrb[0].mxu0 %v4475
    %v4543 = vpop.f32.mrb[0].mxu0
    %v4544 = vadd.f32 0.0, %v4543
    %v4545 = vpop.f32.mrb[0].mxu0
    %4546 = vdwg.mxu0
    %4547 = vrot.lane.b32.xlu0 %v4385, 96
    %v4548 = vpop.permute.xlu0 %4547
    %vm4550 = vcmask 259076
    %4551 = vst.msk [vmem:[#allocation11 - $0x4] sm:$0x30] %vm4550, %v4548
    %v4552 = vsel %vm230, %v2783, %v3071
    %v4553 = vsel %vm232, %v4552, %v3335
    %v4554 = vsel %vm234, %v4553, %v3599
    %v4555 = vsel %vm230, %v3858, %v4121
    %v4556 = vsel %vm232, %v4555, %v4385
    %v4557 = vsel %vm234, %v4556, 0.0
    %v4559 = vrot.slane %v3230, 6
    %v4562 = vrot.slane %v3494, 4
    %v4565 = vrot.slane %v3758, 2
    %v4568 = vrot.slane %v4280, 6
    %v4571 = vrot.slane %v4544, 4
    %v4573 = vsel %vm230, %v2966, %v4559
    %v4574 = vsel %vm232, %v4573, %v4562
    %v4575 = vsel %vm234, %v4574, %v4565
    %v4576 = vsel %vm230, %v4016, %v4568
    %v4577 = vsel %vm232, %v4576, %v4571
    %v4578 = vsel %vm234, %v4577, 0.0
    %v4579 = vld [vmem:[%s13] sm:$0xff]
    %v4580 = vld [vmem:[%s13 + $0x8] sm:$0xff]
    %v4581 = vld [vmem:[%s13 + $0x10] sm:$0xff]
    %v4582 = vld [vmem:[%s13 + $0x18] sm:$0xff]
    %v4583 = vld [vmem:[%s13 + $0x20] sm:$0xff]
    %v4584 = vld [vmem:[%s13 + $0x28] sm:$0xff]
    %v4585 = vld [vmem:[%s13 + $0x30] sm:$0xff]
    %v4586 = vld [vmem:[%s13 + $0x38] sm:$0xff]
    %v4588 = vsel %vm631, %v4575, 0
    %v4591 = vsel %vm631, %v4578, 0
    %4593 = vmatprep.subr.mxu0 0.0
    %4594 = vmatpush1.msra.mxu0 %v4583
    %4595 = vmatprep.subr.mxu0 0.0
    %4596 = vmatpush1.msra.mxu0 %v4584
    %4597 = vmatprep.subr.mxu0 0.0
    %4598 = vmatpush1.msra.mxu0 %v4585
    %4599 = vmatprep.subr.mxu0 0.0
    %4600 = vmatpush1.msra.mxu0 %v4586
    %4601 = vmatprep.subr.mxu0 0.0
    %4602 = vmatpush1.msra.mxu0 0.0
    %4603 = vmatprep.subr.mxu0 0.0
    %4604 = vmatpush1.msra.mxu0 0.0
    %4605 = vmatprep.subr.mxu0 0.0
    %4606 = vmatpush1.msra.mxu0 0.0
    %4607 = vmatprep.subr.mxu0 0.0
    %4608 = vmatpush1.msra.mxu0 0.0
    %4609 = vmatprep.subr.mxu0 0.0
    %4610 = vmatpush1.msra.mxu0 0.0
    %4611 = vmatprep.subr.mxu0 0.0
    %4612 = vmatpush1.msra.mxu0 0.0
    %4613 = vmatprep.subr.mxu0 0.0
    %4614 = vmatpush1.msra.mxu0 0.0
    %4615 = vmatprep.subr.mxu0 0.0
    %4616 = vmatpush1.msra.mxu0 0.0
    %4617 = vmatprep.subr.mxu0 0.0
    %4618 = vmatpush1.msra.mxu0 0.0
    %4619 = vmatprep.subr.mxu0 0.0
    %4620 = vmatpush1.msra.mxu0 0.0
    %4621 = vmatprep.subr.mxu0 0.0
    %4622 = vmatpush1.msra.mxu0 0.0
    %4623 = vmatprep.subr.mxu0 0.0
    %4624 = vmatpush1.msra.mxu0 0.0
    %4625 = vmatprep.subr.mxu0 0.0
    %4626 = vmatpush1.msra.mxu0 0.0
    %4627 = vmatprep.subr.mxu0 0.0
    %4628 = vmatpush1.msra.mxu0 0.0
    %4629 = vmatprep.subr.mxu0 0.0
    %4630 = vmatpush1.msra.mxu0 0.0
    %4631 = vmatprep.subr.mxu0 0.0
    %4632 = vmatpush1.msra.mxu0 0.0
    %4633 = vmatprep.subr.mxu0 0.0
    %4634 = vmatpush1.msra.mxu0 0.0
    %4635 = vmatprep.subr.mxu0 0.0
    %4636 = vmatpush1.msra.mxu0 0.0
    %4637 = vmatprep.subr.mxu0 0.0
    %4638 = vmatpush1.msra.mxu0 0.0
    %4639 = vmatprep.subr.mxu0 0.0
    %4640 = vmatpush1.msra.mxu0 0.0
    %4641 = vmatprep.subr.mxu0 0.0
    %4642 = vmatpush1.msra.mxu0 0.0
    %4643 = vmatprep.subr.mxu0 0.0
    %4644 = vmatpush1.msra.mxu0 0.0
    %4645 = vmatprep.subr.mxu0 0.0
    %4646 = vmatpush1.msra.mxu0 0.0
    %4647 = vmatprep.subr.mxu0 0.0
    %4648 = vmatpush1.msra.mxu0 0.0
    %4649 = vmatprep.subr.mxu0 0.0
    %4650 = vmatpush1.msra.mxu0 0.0
    %4651 = vmatprep.subr.mxu0 0.0
    %4652 = vmatpush1.msra.mxu0 0.0
    %4653 = vmatprep.subr.mxu0 0.0
    %4654 = vmatpush1.msra.mxu0 0.0
    %4655 = vmatprep.subr.mxu0 0.0
    %4656 = vmatpush1.msra.mxu0 0.0
    %4657 = vmatprep.mubr.f32.mxu0 0.0
    %4658 = vmatmul.mubr.f32.gmra.mrb[0].mxu0 %v4588
    %v4659 = vpop.f32.mrb[0].mxu0
    %v4660 = vadd.f32 0.0, %v4659
    %v4661 = vpop.f32.mrb[0].mxu0
    %4662 = vmatprep.mubr.f32.mxu0 0.0
    %4663 = vmatmul.mubr.f32.gmra.mrb[0].mxu0 %v4591
    %v4664 = vpop.f32.mrb[0].mxu0
    %v4665 = vadd.f32 0.0, %v4664
    %v4666 = vpop.f32.mrb[0].mxu0
    %4667 = vdwg.mxu0
    %4670 = vrot.lane.b32.xlu0 %v4554, 96
    %v4671 = vpop.permute.xlu0 %4670
    %4672 = vrot.lane.b32.xlu0 %v4557, 96
    %v4673 = vpop.permute.xlu0 %4672
    %v4674 = vsel %vm631, %v4671, 0
    %v4676 = vsel %vm631, %v4673, 0
    %4678 = vmatprep.subr.mxu0 0.0
    %4679 = vmatpush1.msra.mxu0 %v4579
    %4680 = vmatprep.subr.mxu0 0.0
    %4681 = vmatpush1.msra.mxu0 %v4580
    %4682 = vmatprep.subr.mxu0 0.0
    %4683 = vmatpush1.msra.mxu0 %v4581
    %4684 = vmatprep.subr.mxu0 0.0
    %4685 = vmatpush1.msra.mxu0 %v4582
    %4686 = vmatprep.subr.mxu0 0.0
    %4687 = vmatpush1.msra.mxu0 0.0
    %4688 = vmatprep.subr.mxu0 0.0
    %4689 = vmatpush1.msra.mxu0 0.0
    %4690 = vmatprep.subr.mxu0 0.0
    %4691 = vmatpush1.msra.mxu0 0.0
    %4692 = vmatprep.subr.mxu0 0.0
    %4693 = vmatpush1.msra.mxu0 0.0
    %4694 = vmatprep.subr.mxu0 0.0
    %4695 = vmatpush1.msra.mxu0 0.0
    %4696 = vmatprep.subr.mxu0 0.0
    %4697 = vmatpush1.msra.mxu0 0.0
    %4698 = vmatprep.subr.mxu0 0.0
    %4699 = vmatpush1.msra.mxu0 0.0
    %4700 = vmatprep.subr.mxu0 0.0
    %4701 = vmatpush1.msra.mxu0 0.0
    %4702 = vmatprep.subr.mxu0 0.0
    %4703 = vmatpush1.msra.mxu0 0.0
    %4704 = vmatprep.subr.mxu0 0.0
    %4705 = vmatpush1.msra.mxu0 0.0
    %4706 = vmatprep.subr.mxu0 0.0
    %4707 = vmatpush1.msra.mxu0 0.0
    %4708 = vmatprep.subr.mxu0 0.0
    %4709 = vmatpush1.msra.mxu0 0.0
    %4710 = vmatprep.subr.mxu0 0.0
    %4711 = vmatpush1.msra.mxu0 0.0
    %4712 = vmatprep.subr.mxu0 0.0
    %4713 = vmatpush1.msra.mxu0 0.0
    %4714 = vmatprep.subr.mxu0 0.0
    %4715 = vmatpush1.msra.mxu0 0.0
    %4716 = vmatprep.subr.mxu0 0.0
    %4717 = vmatpush1.msra.mxu0 0.0
    %4718 = vmatprep.subr.mxu0 0.0
    %4719 = vmatpush1.msra.mxu0 0.0
    %4720 = vmatprep.subr.mxu0 0.0
    %4721 = vmatpush1.msra.mxu0 0.0
    %4722 = vmatprep.subr.mxu0 0.0
    %4723 = vmatpush1.msra.mxu0 0.0
    %4724 = vmatprep.subr.mxu0 0.0
    %4725 = vmatpush1.msra.mxu0 0.0
    %4726 = vmatprep.subr.mxu0 0.0
    %4727 = vmatpush1.msra.mxu0 0.0
    %4728 = vmatprep.subr.mxu0 0.0
    %4729 = vmatpush1.msra.mxu0 0.0
    %4730 = vmatprep.subr.mxu0 0.0
    %4731 = vmatpush1.msra.mxu0 0.0
    %4732 = vmatprep.subr.mxu0 0.0
    %4733 = vmatpush1.msra.mxu0 0.0
    %4734 = vmatprep.subr.mxu0 0.0
    %4735 = vmatpush1.msra.mxu0 0.0
    %4736 = vmatprep.subr.mxu0 0.0
    %4737 = vmatpush1.msra.mxu0 0.0
    %4738 = vmatprep.subr.mxu0 0.0
    %4739 = vmatpush1.msra.mxu0 0.0
    %4740 = vmatprep.subr.mxu0 0.0
    %4741 = vmatpush1.msra.mxu0 0.0
    %4742 = vmatprep.mubr.f32.mxu0 0.0
    %4743 = vmatmul.mubr.f32.gmra.mrb[0].mxu0 %v4674
    %v4744 = vpop.f32.mrb[0].mxu0
    %v4745 = vadd.f32 %v4660, %v4744
    %v4746 = vpop.f32.mrb[0].mxu0
    %4747 = vmatprep.mubr.f32.mxu0 0.0
    %4748 = vmatmul.mubr.f32.gmra.mrb[0].mxu0 %v4676
    %v4749 = vpop.f32.mrb[0].mxu0
    %v4750 = vadd.f32 %v4665, %v4749
    %v4751 = vpop.f32.mrb[0].mxu0
    %4752 = vdwg.mxu0
    %v4753 = vld [vmem:[%s14] sm:$0x1]
    %v4755 = vlaneseq
    %v4756 = vshrl.u32 %v4755, 7
    %v4757 = vsub.s32 0, %v4756
    %v4758 = vrot.slane %v4753, %v4757
    %v4760 = vadd.f32 %v4745, %v4758
    %v4761 = vadd.f32 %v4750, %v4758
    %v4762 = vtanh.pop %v4760
    %v4763 = vtanh.pop %v4761
    %v4764 = vld [vmem:[#allocation8] sm:$0xff]
    %v4765 = vld [vmem:[#allocation8 + $0x8] sm:$0xff]
    %v4766 = vld [vmem:[#allocation8 + $0x10] sm:$0xff]
    %v4767 = vld [vmem:[#allocation8 + $0x18] sm:$0xff]
    %v4768 = vld [vmem:[%s16] sm:$0x1]
    %v4770 = vlaneseq
    %v4771 = vshrl.u32 %v4770, 7
    %v4772 = vsub.s32 0, %v4771
    %v4773 = vrot.slane %v4768, %v4772
    %v4776 = vsel %vm631, %v4762, 0
    %v4779 = vsel %vm631, %v4763, 0
    %4781 = vmatprep.subr.mxu0 0.0
    %4782 = vmatpush1.msra.mxu0 %v4764
    %4783 = vmatprep.subr.mxu0 0.0
    %4784 = vmatpush1.msra.mxu0 %v4765
    %4785 = vmatprep.subr.mxu0 0.0
    %4786 = vmatpush1.msra.mxu0 %v4766
    %4787 = vmatprep.subr.mxu0 0.0
    %4788 = vmatpush1.msra.mxu0 %v4767
    %4789 = vmatprep.subr.mxu0 0.0
    %4790 = vmatpush1.msra.mxu0 0.0
    %4791 = vmatprep.subr.mxu0 0.0
    %4792 = vmatpush1.msra.mxu0 0.0
    %4793 = vmatprep.subr.mxu0 0.0
    %4794 = vmatpush1.msra.mxu0 0.0
    %4795 = vmatprep.subr.mxu0 0.0
    %4796 = vmatpush1.msra.mxu0 0.0
    %4797 = vmatprep.subr.mxu0 0.0
    %4798 = vmatpush1.msra.mxu0 0.0
    %4799 = vmatprep.subr.mxu0 0.0
    %4800 = vmatpush1.msra.mxu0 0.0
    %4801 = vmatprep.subr.mxu0 0.0
    %4802 = vmatpush1.msra.mxu0 0.0
    %4803 = vmatprep.subr.mxu0 0.0
    %4804 = vmatpush1.msra.mxu0 0.0
    %4805 = vmatprep.subr.mxu0 0.0
    %4806 = vmatpush1.msra.mxu0 0.0
    %4807 = vmatprep.subr.mxu0 0.0
    %4808 = vmatpush1.msra.mxu0 0.0
    %4809 = vmatprep.subr.mxu0 0.0
    %4810 = vmatpush1.msra.mxu0 0.0
    %4811 = vmatprep.subr.mxu0 0.0
    %4812 = vmatpush1.msra.mxu0 0.0
    %4813 = vmatprep.subr.mxu0 0.0
    %4814 = vmatpush1.msra.mxu0 0.0
    %4815 = vmatprep.subr.mxu0 0.0
    %4816 = vmatpush1.msra.mxu0 0.0
    %4817 = vmatprep.subr.mxu0 0.0
    %4818 = vmatpush1.msra.mxu0 0.0
    %4819 = vmatprep.subr.mxu0 0.0
    %4820 = vmatpush1.msra.mxu0 0.0
    %4821 = vmatprep.subr.mxu0 0.0
    %4822 = vmatpush1.msra.mxu0 0.0
    %4823 = vmatprep.subr.mxu0 0.0
    %4824 = vmatpush1.msra.mxu0 0.0
    %4825 = vmatprep.subr.mxu0 0.0
    %4826 = vmatpush1.msra.mxu0 0.0
    %4827 = vmatprep.subr.mxu0 0.0
    %4828 = vmatpush1.msra.mxu0 0.0
    %4829 = vmatprep.subr.mxu0 0.0
    %4830 = vmatpush1.msra.mxu0 0.0
    %4831 = vmatprep.subr.mxu0 0.0
    %4832 = vmatpush1.msra.mxu0 0.0
    %4833 = vmatprep.subr.mxu0 0.0
    %4834 = vmatpush1.msra.mxu0 0.0
    %4835 = vmatprep.subr.mxu0 0.0
    %4836 = vmatpush1.msra.mxu0 0.0
    %4837 = vmatprep.subr.mxu0 0.0
    %4838 = vmatpush1.msra.mxu0 0.0
    %4839 = vmatprep.subr.mxu0 0.0
    %4840 = vmatpush1.msra.mxu0 0.0
    %4841 = vmatprep.subr.mxu0 0.0
    %4842 = vmatpush1.msra.mxu0 0.0
    %4843 = vmatprep.subr.mxu0 0.0
    %4844 = vmatpush1.msra.mxu0 0.0
    %4845 = vmatprep.mubr.f32.mxu0 0.0
    %4846 = vmatmul.mubr.f32.gmra.mrb[0].mxu0 %v4776
    %v4847 = vpop.f32.mrb[0].mxu0
    %v4848 = vadd.f32 %v4773, %v4847
    %v4849 = vpop.f32.mrb[0].mxu0
    %4850 = vmatprep.mubr.f32.mxu0 0.0
    %4851 = vmatmul.mubr.f32.gmra.mrb[0].mxu0 %v4779
    %v4852 = vpop.f32.mrb[0].mxu0
    %v4853 = vadd.f32 %v4773, %v4852
    %v4854 = vpop.f32.mrb[0].mxu0
    %4855 = vdwg.mxu0
    %4856 = vmax.xlane.f32.xlu0 %v4848
    %v4857 = vpop.xlane.xlu0 %4856
    %4858 = vmax.xlane.f32.xlu0 %v4853
    %v4859 = vpop.xlane.xlu0 %4858
    %v4860 = vsub.f32 %v4848, %v4857
    %v4861 = vsub.f32 %v4853, %v4859
    %v4862 = vmul.f32 %v4860, 1.442695
    %v4863 = vpow.pop %v4862
    %v4864 = vmul.f32 %v4861, 1.442695
    %v4865 = vpow.pop %v4864
    %4866 = vadd.xlane.f32.xlu0 %v4863
    %v4867 = vpop.xlane.xlu0 %4866
    %4868 = vadd.xlane.f32.xlu0 %v4865
    %v4869 = vpop.xlane.xlu0 %4868
    %v4870 = vlog2.pop %v4867
    %v4871 = vmul.f32 %v4870, 0.6931472
    %v4872 = vlog2.pop %v4869
    %v4873 = vmul.f32 %v4872, 0.6931472
    %v4874 = vadd.f32 %v4871, %v4857
    %v4875 = vadd.f32 %v4873, %v4859
    %v4876 = vsub.f32 %v4848, %v4874
    %v4877 = vsub.f32 %v4853, %v4875
    %4878 = vst [vmem:[%s17] sm:$0xff] %v4876
    %4879 = vst [vmem:[%s17 + $0x8] sm:$0xff] %v4877
    %vm4880 = vcmp.ge.f32.partialorder %v4848, %v4857
    %vm4881 = vcmp.ge.f32.partialorder %v4853, %v4859
    %v4882 = vsel %vm4880, %v117, 128
    %v4883 = vsel %vm4881, %v117, 128
    %v4884 = vand.u32 %v4882, 65535
    %v4885 = vshra.s32 %v4882, 16
    %v4886 = vcvt.s32.f32 %v4884
    %v4887 = vcvt.s32.f32 %v4885
    %4888 = vmin.xlane.f32.xlu0 %v4887
    %v4889 = vpop.xlane.xlu0 %4888
    %vm4890 = vcmp.eq.f32.partialorder %v4887, %v4889
    %v4891 = vsel %vm4890, %v4886, inf
    %4892 = vmin.xlane.f32.xlu0 %v4891
    %v4893 = vpop.xlane.xlu0 %4892
    %v4894 = vcvt.f32.s32 %v4893
    %v4895 = vcvt.f32.s32 %v4889
    %v4896 = vshll.u32 %v4895, 16
    %v4897 = vadd.s32 %v4896, %v4894
    %v4898 = vand.u32 %v4883, 65535
    %v4899 = vshra.s32 %v4883, 16
    %v4900 = vcvt.s32.f32 %v4898
    %v4901 = vcvt.s32.f32 %v4899
    %4902 = vmin.xlane.f32.xlu0 %v4901
    %v4903 = vpop.xlane.xlu0 %4902
    %vm4904 = vcmp.eq.f32.partialorder %v4901, %v4903
    %v4905 = vsel %vm4904, %v4900, inf
    %4906 = vmin.xlane.f32.xlu0 %v4905
    %v4907 = vpop.xlane.xlu0 %4906
    %v4908 = vcvt.f32.s32 %v4907
    %v4909 = vcvt.f32.s32 %v4903
    %v4910 = vshll.u32 %v4909, 16
    %v4911 = vadd.s32 %v4910, %v4908
    %vm4912 = vcmask 7168
    %4913 = vst.msk [vmem:[%s18] sm:$0xff] %vm4912, %v4897
    %4914 = vst.msk [vmem:[%s18 + $0x8] sm:$0xff] %vm4912, %v4911
    %v4915 = vld [vmem:[%s3] sm:$0xff]
    %v4916 = vld [vmem:[%s3 + $0x8] sm:$0xff]
    %4917 = vset.pattern.permute.xlu0 0
    %4918 = vperm.xlu0 %4917, %v4915
    %v4919 = vpop.permute.xlu0 %4918
    %4920 = vset.pattern.permute.xlu0 0
    %4921 = vperm.xlu0 %4920, %v4916
    %v4922 = vpop.permute.xlu0 %4921
    %vm4923 = vcmp.eq.s32.totalorder %v117, %v4919
    %vm4924 = vcmp.eq.s32.totalorder %v117, %v4922
    %v4925 = vsel %vm4923, 1, 0
    %v4926 = vsel %vm4924, 1, 0
    %v4927 = vcvt.s32.f32 %v4925
    %v4928 = vcvt.s32.f32 %v4926
    %v4929 = vmul.f32 %v4876, %v4927
    %v4930 = vmul.f32 %v4877, %v4928
    %4931 = vadd.xlane.f32.xlu0 %v4929
    %v4932 = vpop.xlane.xlu0 %4931
    %4933 = vadd.xlane.f32.xlu0 %v4930
    %v4934 = vpop.xlane.xlu0 %4933
    %vm4935 = vcmp.ne.s32.totalorder %v4915, 0
    %vm4936 = vcmp.ne.s32.totalorder %v4916, 0
    %v4937 = vsel %vm4935, 1, 0
    %v4938 = vsel %vm4936, 1, 0
    %v4939 = vcvt.s32.f32 %v4937
    %v4940 = vcvt.s32.f32 %v4938
    %v4941 = vmul.f32 %v4932, %v4939
    %v4942 = vmul.f32 %v4934, %v4940
    %v4943 = vsel %vm4912, %v4941, 0.0
    %v4944 = vsel %vm4912, %v4942, 0.0
    %v4945 = vadd.f32 %v4943, %v4944
    %v4946 = vrot.slane %v4945, 4
    %v4947 = vadd.f32 %v4945, %v4946
    %v4948 = vrot.slane %v4947, 2
    %v4949 = vadd.f32 %v4947, %v4948
    %v4950 = vrot.slane %v4949, 1
    %v4951 = vadd.f32 %v4949, %v4950
    %v4952 = vsel %vm4912, %v4939, 0.0
    %v4953 = vsel %vm4912, %v4940, 0.0
    %v4954 = vadd.f32 %v4952, %v4953
    %v4955 = vrot.slane %v4954, 4
    %v4956 = vadd.f32 %v4954, %v4955
    %v4957 = vrot.slane %v4956, 2
    %v4958 = vadd.f32 %v4956, %v4957
    %v4959 = vrot.slane %v4958, 1
    %v4960 = vadd.f32 %v4958, %v4959
    %v4961 = vmax.f32 %v4960, 1.0
    %v4962 = vsub.f32 0.0, %v4951
    %v4963 = vrcp.pop %v4961
    %v4964 = vmul.f32 %v4962, %v4963
    %vm4965 = vcmask 0
    %4966 = vst.msk [vmem:[#allocation10] sm:$0x1] %vm4965, %v4964
    // Predicated region
    $region86: #{fb_seq2seq_forward.1} parent=1 // pred_check
      _
    $region87: #{fb_seq2seq_forward.1} parent=1 // pred_check_branch
      %4968 = sbr.rel (0) target = $region89
    $region88: #{fb_seq2seq_forward.1} parent=1 // pred_region
      _
    $region89: #{fb_seq2seq_forward.1} parent=1 // pred_fallthru
      _
    // Predicated region
    $region90: #{fb_seq2seq_forward.1} parent=1 // pred_check
      _
    $region91: #{fb_seq2seq_forward.1} parent=1 // pred_check_branch
      %4970 = sbr.rel (0) target = $region93
    $region92: #{fb_seq2seq_forward.1} parent=1 // pred_region
      _
    $region93: #{fb_seq2seq_forward.1} parent=1 // pred_fallthru
      _
    // Predicated region
    $region94: #{fb_seq2seq_forward.1} parent=1 // pred_check
      _
    $region95: #{fb_seq2seq_forward.1} parent=1 // pred_check_branch
      %4972 = sbr.rel (0) target = $region97
    $region96: #{fb_seq2seq_forward.1} parent=1 // pred_region
      %s4974 = ssub.s32 16, 16
      %4975 = vsyncadd [#allocation4], %s4974
      %s4977 = sshll.u32 [#allocation10], 4
      %s4978 = int_to_ptr.vmem [resolvable:$true] %s4977
      %4980 = dma.vmem_to_hbm [thread:$0]  %s4978, 16, %s19, [#allocation4]
    $region97: #{fb_seq2seq_forward.1} parent=1 // pred_fallthru
      _
    // Predicated region
    $region98: #{fb_seq2seq_forward.1} parent=1 // pred_check
      _
    $region99: #{fb_seq2seq_forward.1} parent=1 // pred_check_branch
      %4982 = sbr.rel (0) target = $region101
    $region100: #{fb_seq2seq_forward.1} parent=1 // pred_region
      %s4984 = ssub.s32 32, 32
      %4985 = vsyncadd [#allocation12], %s4984
      %s4987 = sshll.u32 [#allocation11], 4
      %s4988 = int_to_ptr.vmem [resolvable:$true] %s4987
      %4990 = dma.vmem_to_hbm [thread:$0]  %s4988, 32, %s20, [#allocation12]
    $region101: #{fb_seq2seq_forward.1} parent=1 // pred_fallthru
      _
    // Predicated region
    $region102: #{fb_seq2seq_forward.1} parent=1 // pred_check
      _
    $region103: #{fb_seq2seq_forward.1} parent=1 // pred_check_branch
      %4992 = sbr.rel (0) target = $region105
    $region104: #{fb_seq2seq_forward.1} parent=1 // pred_region
      _
    $region105: #{fb_seq2seq_forward.1} parent=1 // pred_fallthru
      _
    // Predicated region
    $region106: #{fb_seq2seq_forward.1} parent=1 // pred_check
      _
    $region107: #{fb_seq2seq_forward.1} parent=1 // pred_check_branch
      %4994 = sbr.rel (0) target = $region109
    $region108: #{fb_seq2seq_forward.1} parent=1 // pred_region
      _
    $region109: #{fb_seq2seq_forward.1} parent=1 // pred_fallthru
      _
    // Predicated region
    $region110: #{fb_seq2seq_forward.1} parent=1 // pred_check
      _
    $region111: #{fb_seq2seq_forward.1} parent=1 // pred_check_branch
      %4996 = sbr.rel (0) target = $region113
    $region112: #{fb_seq2seq_forward.1} parent=1 // pred_region
      %4997 = dma.done [#allocation4], 16
    $region113: #{fb_seq2seq_forward.1} parent=1 // pred_fallthru
      _
    // Predicated region
    $region114: #{fb_seq2seq_forward.1} parent=1 // pred_check
      _
    $region115: #{fb_seq2seq_forward.1} parent=1 // pred_check_branch
      %4999 = sbr.rel (0) target = $region117
    $region116: #{fb_seq2seq_forward.1} parent=1 // pred_region
      %5000 = dma.done [#allocation12], 32
    $region117: #{fb_seq2seq_forward.1} parent=1 // pred_fallthru
      _
    %5001 = vsyncpa [#allocation3], 1
    %5002 = vsyncpa [#allocation6], 1
    %5003 = vsyncpa [#allocation9], 1
    %5004 = vsyncpa [#allocation4], 1
    %5005 = vsyncpa [#allocation12], 1

</llo_original>
